<compile_context>
chip_gen: v7x
topology: tpu7x:2x2x1
jax: 0.10.0
libtpu: 0.0.40
codegen_flags: <defaults>
</compile_context>

<pallas_src>
import functools

import jax
import jax.numpy as jnp
from jax.experimental import pallas as pl
from jax.experimental.pallas import tpu as pltpu


# ------------------------------ fused kernel --------------------------------


def seq2seq_fused_kernel(
    x_ref,        # (T*BP, P)     encoder input, time-major rows (t*BP + b), zero padded
    dec_in_ref,   # (BP, P)       initial decoder input (last_location), zero padded
    ew_ih_ref,    # (L, P, 3*HP)  encoder W_ih, gate-stacked (r,z,n), zero padded
    ew_hh_ref,    # (L, HP, 3*HP)
    eb_ih_ref,    # (L, 1, 3*HP)
    eb_hh_ref,    # (L, 1, 3*HP)
    dw_ih_ref,    # (L, P, 3*HP)  decoder GRU weights
    dw_hh_ref,    # (L, HP, 3*HP)
    db_ih_ref,    # (L, 1, 3*HP)
    db_hh_ref,    # (L, 1, 3*HP)
    lin_w_ref,    # (HP, P)       decoder Linear weight, (in, out) layout, zero padded
    lin_b_ref,    # (1, P)
    out_ref,      # (PRED, BP, P) decoder output per prediction step
    seq_ref,      # VMEM scratch (T*BP, HP): per-layer output-sequence buffer
):
    BP, P = dec_in_ref.shape
    T = x_ref.shape[0] // BP
    L = ew_ih_ref.shape[0]
    HP = ew_hh_ref.shape[1]
    PRED = out_ref.shape[0]

    def gru_gates(gi, gh, h):
        # PyTorch GRU cell, gate order r, z, n (b_hh_n stays inside r * (...)).
        r = jax.nn.sigmoid(gi[:, :HP] + gh[:, :HP])
        z = jax.nn.sigmoid(gi[:, HP:2 * HP] + gh[:, HP:2 * HP])
        n = jnp.tanh(gi[:, 2 * HP:] + r * gh[:, 2 * HP:])
        return (1.0 - z) * n + z * h

    # ------------------------------ encoder ------------------------------
    layer_in = x_ref[...]                                   # (T*BP, P)
    enc_hidden = []
    for l in range(L):
        w_hh = ew_hh_ref[l]                                  # VMEM-resident
        b_hh = jnp.broadcast_to(eb_hh_ref[l], (BP, 3 * HP))  # hoist broadcast out of loop
        # Hoisted input projection: one (T*BP, P) x (P, 3*HP) matmul per layer.
        gi_all = (
            jnp.dot(layer_in, ew_ih_ref[l], preferred_element_type=jnp.float32)
            + eb_ih_ref[l]
        )
        h = jnp.zeros((BP, HP), jnp.float32)
        for t in range(T):                                   # serial recurrence
            gh = jnp.dot(h, w_hh, preferred_element_type=jnp.float32) + b_hh
            h = gru_gates(gi_all[t * BP:(t + 1) * BP, :], gh, h)
            if l + 1 < L:
                seq_ref[t * BP:(t + 1) * BP, :] = h          # next layer's input seq
        enc_hidden.append(h)                                 # final hidden of layer l
        if l + 1 < L:
            layer_in = seq_ref[...]

    # ------------------------------ decoder ------------------------------
    # The model always feeds encoder_hidden as the GRU hidden state, so the
    # hidden-side projection is constant across prediction steps.
    gh_const = [
        jnp.dot(enc_hidden[l], dw_hh_ref[l], preferred_element_type=jnp.float32)
        + jnp.broadcast_to(db_hh_ref[l], (BP, 3 * HP))
        for l in range(L)
    ]
    dw_ih = [dw_ih_ref[l] for l in range(L)]
    db_ih = [jnp.broadcast_to(db_ih_ref[l], (BP, 3 * HP)) for l in range(L)]
    lin_w = lin_w_ref[...]
    lin_b = jnp.broadcast_to(lin_b_ref[...], (BP, P))

    dec_in = dec_in_ref[...]                                 # (BP, P)
    for s in range(PRED):
        xs = dec_in
        for l in range(L):
            gi = jnp.dot(xs, dw_ih[l], preferred_element_type=jnp.float32) + db_ih[l]
            xs = gru_gates(gi, gh_const[l], enc_hidden[l])
        # TODO(synk): nn.Dropout treated as identity (eval / p=0 semantics).
        dec_out = (
            jnp.dot(xs, lin_w, preferred_element_type=jnp.float32) + lin_b + dec_in
        )
        out_ref[s] = dec_out
        dec_in = dec_out


# --------------------------- parameter packing -------------------------------


def init_gru_raw(key, input_size, hidden, num_layers):
    """PyTorch-layout GRU params: w_ih (3H, in), w_hh (3H, H), biases (3H,)."""
    params = []
    bound = 1.0 / float(hidden) ** 0.5
    for l in range(num_layers):
        in_dim = input_size if l == 0 else hidden
        key, k1, k2, k3, k4 = jax.random.split(key, 5)
        params.append(dict(
            w_ih=jax.random.uniform(k1, (3 * hidden, in_dim), jnp.float32, -bound, bound),
            w_hh=jax.random.uniform(k2, (3 * hidden, hidden), jnp.float32, -bound, bound),
            b_ih=jax.random.uniform(k3, (3 * hidden,), jnp.float32, -bound, bound),
            b_hh=jax.random.uniform(k4, (3 * hidden,), jnp.float32, -bound, bound),
        ))
    return params


def _pack_gru_w(w, hidden, hp, p):
    """(3H, in) torch layout -> (p, 3*hp), gate-stacked along lanes, zero padded."""
    in_dim = w.shape[1]
    w = w.reshape(3, hidden, in_dim)          # gates r, z, n
    w = jnp.transpose(w, (2, 0, 1))           # (in, 3, H)
    w = jnp.pad(w, ((0, p - in_dim), (0, 0), (0, hp - hidden)))
    return w.reshape(p, 3 * hp)


def _pack_gru_b(b, hidden, hp):
    b = b.reshape(3, hidden)
    b = jnp.pad(b, ((0, 0), (0, hp - hidden)))
    return b.reshape(1, 3 * hp)


def pack_params(enc_raw, dec_raw, lin_w, lin_b, hidden, hp, p):
    def stack_layers(raw):
        return dict(
            w_ih=jnp.stack([_pack_gru_w(l["w_ih"], hidden, hp, p) for l in raw]),
            w_hh=jnp.stack([_pack_gru_w(l["w_hh"], hidden, hp, p) for l in raw]),
            b_ih=jnp.stack([_pack_gru_b(l["b_ih"], hidden, hp) for l in raw]),
            b_hh=jnp.stack([_pack_gru_b(l["b_hh"], hidden, hp) for l in raw]),
        )
    enc = stack_layers(enc_raw)
    dec = stack_layers(dec_raw)
    out_dim = lin_w.shape[0]
    lw = jnp.pad(lin_w.T, ((0, hp - hidden), (0, p - out_dim)))       # (hp, p)
    lb = jnp.pad(lin_b.reshape(1, -1), ((0, 0), (0, p - out_dim)))    # (1, p)
    return dict(
        ew_ih=enc["w_ih"], ew_hh=enc["w_hh"], eb_ih=enc["b_ih"], eb_hh=enc["b_hh"],
        dw_ih=dec["w_ih"], dw_hh=dec["w_hh"], db_ih=dec["b_ih"], db_hh=dec["b_hh"],
        lin_w=lw, lin_b=lb,
    )


# ------------------------------- wrapper -------------------------------------


@functools.partial(jax.jit, static_argnums=(3, 4))
def seq2seq_forward(packed, x, last_location, prediction_length, out_dim):
    """Matches Seq2seq.forward with teacher_force_ratio=0, teacher_location=None."""
    B, T, F = x.shape
    P = packed["lin_w"].shape[1]
    HP = packed["ew_hh"].shape[1]
    BP = ((B + 7) // 8) * 8

    # Pad to lane/sublane-aligned slabs (zero padding keeps padded lanes of h == 0).
    x_tm = jnp.transpose(x, (1, 0, 2))                                   # (T, B, F)
    x_flat = jnp.pad(x_tm, ((0, 0), (0, BP - B), (0, P - F))).reshape(T * BP, P)
    d0 = last_location[:, 0, :]
    d0 = jnp.pad(d0, ((0, BP - B), (0, P - d0.shape[1])))

    vmem = pl.BlockSpec(memory_space=pltpu.MemorySpace.VMEM)
    out_pad = pl.pallas_call(
        seq2seq_fused_kernel,
        out_shape=jax.ShapeDtypeStruct((prediction_length, BP, P), jnp.float32),
        in_specs=[vmem] * 12,
        out_specs=vmem,
        scratch_shapes=[pltpu.VMEM((T * BP, HP), jnp.float32)],
    )(x_flat, d0,
      packed["ew_ih"], packed["ew_hh"], packed["eb_ih"], packed["eb_hh"],
      packed["dw_ih"], packed["dw_hh"], packed["db_ih"], packed["db_hh"],
      packed["lin_w"], packed["lin_b"])

    return jnp.transpose(out_pad, (1, 0, 2))[:B, :, :out_dim]            # (B, PRED, out)


# ------------------------- pure-JAX reference check ---------------------------


def _gru_cell_ref(x, h, p, prec):
    gi = jnp.dot(x, p["w_ih"].T, precision=prec) + p["b_ih"]
    gh = jnp.dot(h, p["w_hh"].T, precision=prec) + p["b_hh"]
    i_r, i_z, i_n = jnp.split(gi, 3, axis=-1)
    h_r, h_z, h_n = jnp.split(gh, 3, axis=-1)
    r = jax.nn.sigmoid(i_r + h_r)
    z = jax.nn.sigmoid(i_z + h_z)
    n = jnp.tanh(i_n + r * h_n)
    return (1.0 - z) * n + z * h


def seq2seq_reference(enc_raw, dec_raw, lin_w, lin_b, x, last_location, prediction_length):
    prec = jax.lax.Precision.HIGHEST
    B, T, _ = x.shape
    H = enc_raw[0]["w_hh"].shape[1]
    layer_in = x
    enc_hidden = []
    for p in enc_raw:
        h = jnp.zeros((B, H), jnp.float32)
        outs = []
        for t in range(T):
            h = _gru_cell_ref(layer_in[:, t, :], h, p, prec)
            outs.append(h)
        layer_in = jnp.stack(outs, axis=1)
        enc_hidden.append(h)
    dec_in = last_location[:, 0, :]
    outs = []
    for _ in range(prediction_length):
        xs = dec_in
        for l, p in enumerate(dec_raw):
            xs = _gru_cell_ref(xs, enc_hidden[l], p, prec)
        o = jnp.dot(xs, lin_w.T, precision=prec) + lin_b + dec_in
        outs.append(o)
        dec_in = o
    return jnp.stack(outs, axis=1)


# --------------------------------- main --------------------------------------


if __name__ == "__main__":
    input_size = 4
    hidden_size = 4
    num_layers = 2
    batch = 2
    seq_len = 8
    prediction_length = 3

    H = hidden_size * 30          # 120: GRU hidden per the PyTorch module
    HP = 128                      # lane-padded hidden
    P = 128                       # lane-padded feature width for all activations

    key = jax.random.PRNGKey(0)
    key, ke, kd, kw, kb, kx, kl = jax.random.split(key, 7)

    enc_raw = init_gru_raw(ke, input_size, H, num_layers)
    dec_raw = init_gru_raw(kd, hidden_size, H, num_layers)
    lin_bound = 1.0 / float(H) ** 0.5
    lin_w = jax.random.uniform(kw, (hidden_size, H), jnp.float32, -lin_bound, lin_bound)
    lin_b = jax.random.uniform(kb, (hidden_size,), jnp.float32, -lin_bound, lin_bound)

    packed = pack_params(enc_raw, dec_raw, lin_w, lin_b, H, HP, P)

    x = jax.random.normal(kx, (batch, seq_len, input_size), jnp.float32)
    last_location = jax.random.normal(kl, (batch, 1, hidden_size), jnp.float32)

    out = seq2seq_forward(packed, x, last_location, prediction_length, hidden_size)
    out = jax.block_until_ready(out)

    assert out.shape == (batch, prediction_length, hidden_size), out.shape
    assert bool(jnp.all(jnp.isfinite(out)))

    ref = seq2seq_reference(enc_raw, dec_raw, lin_w, lin_b, x, last_location,
                            prediction_length)
    max_err = float(jnp.max(jnp.abs(out - ref)))
    assert max_err < 2e-2, f"max abs error vs reference: {max_err}"

    print("KERNEL_OK")
</pallas_src>

<mosaic_0001>
module attributes {stable_mosaic.version = 11 : i64} {
  func.func @seq2seq_fused_kernel(%arg0: memref<64x128xf32, #tpu.memory_space<vmem>>, %arg1: memref<8x128xf32, #tpu.memory_space<vmem>>, %arg2: memref<2x128x384xf32, #tpu.memory_space<vmem>>, %arg3: memref<2x128x384xf32, #tpu.memory_space<vmem>>, %arg4: memref<2x1x384xf32, #tpu.memory_space<vmem>>, %arg5: memref<2x1x384xf32, #tpu.memory_space<vmem>>, %arg6: memref<2x128x384xf32, #tpu.memory_space<vmem>>, %arg7: memref<2x128x384xf32, #tpu.memory_space<vmem>>, %arg8: memref<2x1x384xf32, #tpu.memory_space<vmem>>, %arg9: memref<2x1x384xf32, #tpu.memory_space<vmem>>, %arg10: memref<128x128xf32, #tpu.memory_space<vmem>>, %arg11: memref<1x128xf32, #tpu.memory_space<vmem>>, %arg12: memref<3x8x128xf32, #tpu.memory_space<vmem>>, %arg13: memref<64x128xf32, #tpu.memory_space<vmem>>) attributes {dimension_semantics = [], scalar_prefetch = 0 : i64, scratch_operands = 1 : i64, tpu.core_type = #tpu.core_type<tc>} {
    %c0 = arith.constant 0 : index
    %c0_0 = arith.constant 0 : index
    %0 = vector.load %arg0[%c0, %c0_0] : memref<64x128xf32, #tpu.memory_space<vmem>>, vector<64x128xf32>
    %c0_1 = arith.constant 0 : index
    %c0_2 = arith.constant 0 : index
    %c0_3 = arith.constant 0 : index
    %1 = vector.load %arg3[%c0_1, %c0_2, %c0_3] : memref<2x128x384xf32, #tpu.memory_space<vmem>>, vector<1x128x384xf32>
    %2 = vector.shape_cast %1 : vector<1x128x384xf32> to vector<128x384xf32>
    %c0_4 = arith.constant 0 : index
    %c0_5 = arith.constant 0 : index
    %c0_6 = arith.constant 0 : index
    %3 = vector.load %arg5[%c0_4, %c0_5, %c0_6] : memref<2x1x384xf32, #tpu.memory_space<vmem>>, vector<1x1x384xf32>
    %4 = vector.shape_cast %3 : vector<1x1x384xf32> to vector<1x384xf32>
    %5 = vector.shape_cast %4 : vector<1x384xf32> to vector<1x384xf32>
    %6 = vector.broadcast %5 : vector<1x384xf32> to vector<8x384xf32>
    %c0_7 = arith.constant 0 : index
    %c0_8 = arith.constant 0 : index
    %c0_9 = arith.constant 0 : index
    %7 = vector.load %arg2[%c0_7, %c0_8, %c0_9] : memref<2x128x384xf32, #tpu.memory_space<vmem>>, vector<1x128x384xf32>
    %8 = vector.shape_cast %7 : vector<1x128x384xf32> to vector<128x384xf32>
    %cst = arith.constant dense<0.000000e+00> : vector<64x384xf32>
    %9 = tpu.matmul %0, %8, %cst {dimension_numbers = #tpu.dot_dimension_numbers<[1], [0], [0], [1], [0, 0, 1, 1], [], []>} : vector<64x128xf32>, vector<128x384xf32>, vector<64x384xf32> -> vector<64x384xf32>
    %c0_10 = arith.constant 0 : index
    %c0_11 = arith.constant 0 : index
    %c0_12 = arith.constant 0 : index
    %10 = vector.load %arg4[%c0_10, %c0_11, %c0_12] : memref<2x1x384xf32, #tpu.memory_space<vmem>>, vector<1x1x384xf32>
    %11 = vector.shape_cast %10 : vector<1x1x384xf32> to vector<1x384xf32>
    %12 = vector.broadcast %11 : vector<1x384xf32> to vector<64x384xf32>
    %13 = arith.addf %9, %12 : vector<64x384xf32>
    %cst_13 = arith.constant 0.000000e+00 : f32
    %14 = vector.broadcast %cst_13 : f32 to vector<8x128xf32>
    %cst_14 = arith.constant dense<0.000000e+00> : vector<8x384xf32>
    %15 = tpu.matmul %14, %2, %cst_14 {dimension_numbers = #tpu.dot_dimension_numbers<[1], [0], [0], [1], [0, 0, 1, 1], [], []>} : vector<8x128xf32>, vector<128x384xf32>, vector<8x384xf32> -> vector<8x384xf32>
    %16 = arith.addf %15, %6 : vector<8x384xf32>
    %17 = vector.extract_strided_slice %13 {offsets = [0, 0], sizes = [8, 384], strides = [1, 1]} : vector<64x384xf32> to vector<8x384xf32>
    %18 = vector.extract_strided_slice %17 {offsets = [0, 0], sizes = [8, 128], strides = [1, 1]} : vector<8x384xf32> to vector<8x128xf32>
    %19 = vector.extract_strided_slice %16 {offsets = [0, 0], sizes = [8, 128], strides = [1, 1]} : vector<8x384xf32> to vector<8x128xf32>
    %20 = arith.addf %18, %19 : vector<8x128xf32>
    %21 = arith.negf %20 : vector<8x128xf32>
    %22 = math.exp %21 : vector<8x128xf32>
    %cst_15 = arith.constant 1.000000e+00 : f32
    %23 = vector.broadcast %cst_15 : f32 to vector<8x128xf32>
    %24 = arith.addf %23, %22 : vector<8x128xf32>
    %25 = arith.divf %23, %24 : vector<8x128xf32>
    %26 = vector.extract_strided_slice %17 {offsets = [0, 128], sizes = [8, 128], strides = [1, 1]} : vector<8x384xf32> to vector<8x128xf32>
    %27 = vector.extract_strided_slice %16 {offsets = [0, 128], sizes = [8, 128], strides = [1, 1]} : vector<8x384xf32> to vector<8x128xf32>
    %28 = arith.addf %26, %27 : vector<8x128xf32>
    %29 = arith.negf %28 : vector<8x128xf32>
    %30 = math.exp %29 : vector<8x128xf32>
    %cst_16 = arith.constant 1.000000e+00 : f32
    %31 = vector.broadcast %cst_16 : f32 to vector<8x128xf32>
    %32 = arith.addf %31, %30 : vector<8x128xf32>
    %33 = arith.divf %31, %32 : vector<8x128xf32>
    %34 = vector.extract_strided_slice %17 {offsets = [0, 256], sizes = [8, 128], strides = [1, 1]} : vector<8x384xf32> to vector<8x128xf32>
    %35 = vector.extract_strided_slice %16 {offsets = [0, 256], sizes = [8, 128], strides = [1, 1]} : vector<8x384xf32> to vector<8x128xf32>
    %36 = arith.mulf %25, %35 : vector<8x128xf32>
    %37 = arith.addf %34, %36 : vector<8x128xf32>
    %38 = math.tanh %37 : vector<8x128xf32>
    %cst_17 = arith.constant 1.000000e+00 : f32
    %39 = vector.broadcast %cst_17 : f32 to vector<8x128xf32>
    %40 = arith.subf %39, %33 : vector<8x128xf32>
    %41 = arith.mulf %40, %38 : vector<8x128xf32>
    %42 = arith.mulf %33, %14 : vector<8x128xf32>
    %43 = arith.addf %41, %42 : vector<8x128xf32>
    %c0_18 = arith.constant 0 : index
    %c0_19 = arith.constant 0 : index
    %44 = vector.load %arg13[%c0_18, %c0_19] : memref<64x128xf32, #tpu.memory_space<vmem>>, vector<8x128xf32>
    tpu.vector_store %arg13[%c0_18, %c0_19], %43 {strides = array<i32>} : memref<64x128xf32, #tpu.memory_space<vmem>>, vector<8x128xf32>,
    %cst_20 = arith.constant dense<0.000000e+00> : vector<8x384xf32>
    %45 = tpu.matmul %43, %2, %cst_20 {dimension_numbers = #tpu.dot_dimension_numbers<[1], [0], [0], [1], [0, 0, 1, 1], [], []>} : vector<8x128xf32>, vector<128x384xf32>, vector<8x384xf32> -> vector<8x384xf32>
    %46 = arith.addf %45, %6 : vector<8x384xf32>
    %47 = vector.extract_strided_slice %13 {offsets = [8, 0], sizes = [8, 384], strides = [1, 1]} : vector<64x384xf32> to vector<8x384xf32>
    %48 = vector.extract_strided_slice %47 {offsets = [0, 0], sizes = [8, 128], strides = [1, 1]} : vector<8x384xf32> to vector<8x128xf32>
    %49 = vector.extract_strided_slice %46 {offsets = [0, 0], sizes = [8, 128], strides = [1, 1]} : vector<8x384xf32> to vector<8x128xf32>
    %50 = arith.addf %48, %49 : vector<8x128xf32>
    %51 = arith.negf %50 : vector<8x128xf32>
    %52 = math.exp %51 : vector<8x128xf32>
    %cst_21 = arith.constant 1.000000e+00 : f32
    %53 = vector.broadcast %cst_21 : f32 to vector<8x128xf32>
    %54 = arith.addf %53, %52 : vector<8x128xf32>
    %55 = arith.divf %53, %54 : vector<8x128xf32>
    %56 = vector.extract_strided_slice %47 {offsets = [0, 128], sizes = [8, 128], strides = [1, 1]} : vector<8x384xf32> to vector<8x128xf32>
    %57 = vector.extract_strided_slice %46 {offsets = [0, 128], sizes = [8, 128], strides = [1, 1]} : vector<8x384xf32> to vector<8x128xf32>
    %58 = arith.addf %56, %57 : vector<8x128xf32>
    %59 = arith.negf %58 : vector<8x128xf32>
    %60 = math.exp %59 : vector<8x128xf32>
    %cst_22 = arith.constant 1.000000e+00 : f32
    %61 = vector.broadcast %cst_22 : f32 to vector<8x128xf32>
    %62 = arith.addf %61, %60 : vector<8x128xf32>
    %63 = arith.divf %61, %62 : vector<8x128xf32>
    %64 = vector.extract_strided_slice %47 {offsets = [0, 256], sizes = [8, 128], strides = [1, 1]} : vector<8x384xf32> to vector<8x128xf32>
    %65 = vector.extract_strided_slice %46 {offsets = [0, 256], sizes = [8, 128], strides = [1, 1]} : vector<8x384xf32> to vector<8x128xf32>
    %66 = arith.mulf %55, %65 : vector<8x128xf32>
    %67 = arith.addf %64, %66 : vector<8x128xf32>
    %68 = math.tanh %67 : vector<8x128xf32>
    %cst_23 = arith.constant 1.000000e+00 : f32
    %69 = vector.broadcast %cst_23 : f32 to vector<8x128xf32>
    %70 = arith.subf %69, %63 : vector<8x128xf32>
    %71 = arith.mulf %70, %68 : vector<8x128xf32>
    %72 = arith.mulf %63, %43 : vector<8x128xf32>
    %73 = arith.addf %71, %72 : vector<8x128xf32>
    %c8 = arith.constant 8 : index
    %c0_24 = arith.constant 0 : index
    %74 = vector.load %arg13[%c8, %c0_24] : memref<64x128xf32, #tpu.memory_space<vmem>>, vector<8x128xf32>
    tpu.vector_store %arg13[%c8, %c0_24], %73 {strides = array<i32>} : memref<64x128xf32, #tpu.memory_space<vmem>>, vector<8x128xf32>,
    %cst_25 = arith.constant dense<0.000000e+00> : vector<8x384xf32>
    %75 = tpu.matmul %73, %2, %cst_25 {dimension_numbers = #tpu.dot_dimension_numbers<[1], [0], [0], [1], [0, 0, 1, 1], [], []>} : vector<8x128xf32>, vector<128x384xf32>, vector<8x384xf32> -> vector<8x384xf32>
    %76 = arith.addf %75, %6 : vector<8x384xf32>
    %77 = vector.extract_strided_slice %13 {offsets = [16, 0], sizes = [8, 384], strides = [1, 1]} : vector<64x384xf32> to vector<8x384xf32>
    %78 = vector.extract_strided_slice %77 {offsets = [0, 0], sizes = [8, 128], strides = [1, 1]} : vector<8x384xf32> to vector<8x128xf32>
    %79 = vector.extract_strided_slice %76 {offsets = [0, 0], sizes = [8, 128], strides = [1, 1]} : vector<8x384xf32> to vector<8x128xf32>
    %80 = arith.addf %78, %79 : vector<8x128xf32>
    %81 = arith.negf %80 : vector<8x128xf32>
    %82 = math.exp %81 : vector<8x128xf32>
    %cst_26 = arith.constant 1.000000e+00 : f32
    %83 = vector.broadcast %cst_26 : f32 to vector<8x128xf32>
    %84 = arith.addf %83, %82 : vector<8x128xf32>
    %85 = arith.divf %83, %84 : vector<8x128xf32>
    %86 = vector.extract_strided_slice %77 {offsets = [0, 128], sizes = [8, 128], strides = [1, 1]} : vector<8x384xf32> to vector<8x128xf32>
    %87 = vector.extract_strided_slice %76 {offsets = [0, 128], sizes = [8, 128], strides = [1, 1]} : vector<8x384xf32> to vector<8x128xf32>
    %88 = arith.addf %86, %87 : vector<8x128xf32>
    %89 = arith.negf %88 : vector<8x128xf32>
    %90 = math.exp %89 : vector<8x128xf32>
    %cst_27 = arith.constant 1.000000e+00 : f32
    %91 = vector.broadcast %cst_27 : f32 to vector<8x128xf32>
    %92 = arith.addf %91, %90 : vector<8x128xf32>
    %93 = arith.divf %91, %92 : vector<8x128xf32>
    %94 = vector.extract_strided_slice %77 {offsets = [0, 256], sizes = [8, 128], strides = [1, 1]} : vector<8x384xf32> to vector<8x128xf32>
    %95 = vector.extract_strided_slice %76 {offsets = [0, 256], sizes = [8, 128], strides = [1, 1]} : vector<8x384xf32> to vector<8x128xf32>
    %96 = arith.mulf %85, %95 : vector<8x128xf32>
    %97 = arith.addf %94, %96 : vector<8x128xf32>
    %98 = math.tanh %97 : vector<8x128xf32>
    %cst_28 = arith.constant 1.000000e+00 : f32
    %99 = vector.broadcast %cst_28 : f32 to vector<8x128xf32>
    %100 = arith.subf %99, %93 : vector<8x128xf32>
    %101 = arith.mulf %100, %98 : vector<8x128xf32>
    %102 = arith.mulf %93, %73 : vector<8x128xf32>
    %103 = arith.addf %101, %102 : vector<8x128xf32>
    %c16 = arith.constant 16 : index
    %c0_29 = arith.constant 0 : index
    %104 = vector.load %arg13[%c16, %c0_29] : memref<64x128xf32, #tpu.memory_space<vmem>>, vector<8x128xf32>
    tpu.vector_store %arg13[%c16, %c0_29], %103 {strides = array<i32>} : memref<64x128xf32, #tpu.memory_space<vmem>>, vector<8x128xf32>,
    %cst_30 = arith.constant dense<0.000000e+00> : vector<8x384xf32>
    %105 = tpu.matmul %103, %2, %cst_30 {dimension_numbers = #tpu.dot_dimension_numbers<[1], [0], [0], [1], [0, 0, 1, 1], [], []>} : vector<8x128xf32>, vector<128x384xf32>, vector<8x384xf32> -> vector<8x384xf32>
    %106 = arith.addf %105, %6 : vector<8x384xf32>
    %107 = vector.extract_strided_slice %13 {offsets = [24, 0], sizes = [8, 384], strides = [1, 1]} : vector<64x384xf32> to vector<8x384xf32>
    %108 = vector.extract_strided_slice %107 {offsets = [0, 0], sizes = [8, 128], strides = [1, 1]} : vector<8x384xf32> to vector<8x128xf32>
    %109 = vector.extract_strided_slice %106 {offsets = [0, 0], sizes = [8, 128], strides = [1, 1]} : vector<8x384xf32> to vector<8x128xf32>
    %110 = arith.addf %108, %109 : vector<8x128xf32>
    %111 = arith.negf %110 : vector<8x128xf32>
    %112 = math.exp %111 : vector<8x128xf32>
    %cst_31 = arith.constant 1.000000e+00 : f32
    %113 = vector.broadcast %cst_31 : f32 to vector<8x128xf32>
    %114 = arith.addf %113, %112 : vector<8x128xf32>
    %115 = arith.divf %113, %114 : vector<8x128xf32>
    %116 = vector.extract_strided_slice %107 {offsets = [0, 128], sizes = [8, 128], strides = [1, 1]} : vector<8x384xf32> to vector<8x128xf32>
    %117 = vector.extract_strided_slice %106 {offsets = [0, 128], sizes = [8, 128], strides = [1, 1]} : vector<8x384xf32> to vector<8x128xf32>
    %118 = arith.addf %116, %117 : vector<8x128xf32>
    %119 = arith.negf %118 : vector<8x128xf32>
    %120 = math.exp %119 : vector<8x128xf32>
    %cst_32 = arith.constant 1.000000e+00 : f32
    %121 = vector.broadcast %cst_32 : f32 to vector<8x128xf32>
    %122 = arith.addf %121, %120 : vector<8x128xf32>
    %123 = arith.divf %121, %122 : vector<8x128xf32>
    %124 = vector.extract_strided_slice %107 {offsets = [0, 256], sizes = [8, 128], strides = [1, 1]} : vector<8x384xf32> to vector<8x128xf32>
    %125 = vector.extract_strided_slice %106 {offsets = [0, 256], sizes = [8, 128], strides = [1, 1]} : vector<8x384xf32> to vector<8x128xf32>
    %126 = arith.mulf %115, %125 : vector<8x128xf32>
    %127 = arith.addf %124, %126 : vector<8x128xf32>
    %128 = math.tanh %127 : vector<8x128xf32>
    %cst_33 = arith.constant 1.000000e+00 : f32
    %129 = vector.broadcast %cst_33 : f32 to vector<8x128xf32>
    %130 = arith.subf %129, %123 : vector<8x128xf32>
    %131 = arith.mulf %130, %128 : vector<8x128xf32>
    %132 = arith.mulf %123, %103 : vector<8x128xf32>
    %133 = arith.addf %131, %132 : vector<8x128xf32>
    %c24 = arith.constant 24 : index
    %c0_34 = arith.constant 0 : index
    %134 = vector.load %arg13[%c24, %c0_34] : memref<64x128xf32, #tpu.memory_space<vmem>>, vector<8x128xf32>
    tpu.vector_store %arg13[%c24, %c0_34], %133 {strides = array<i32>} : memref<64x128xf32, #tpu.memory_space<vmem>>, vector<8x128xf32>,
    %cst_35 = arith.constant dense<0.000000e+00> : vector<8x384xf32>
    %135 = tpu.matmul %133, %2, %cst_35 {dimension_numbers = #tpu.dot_dimension_numbers<[1], [0], [0], [1], [0, 0, 1, 1], [], []>} : vector<8x128xf32>, vector<128x384xf32>, vector<8x384xf32> -> vector<8x384xf32>
    %136 = arith.addf %135, %6 : vector<8x384xf32>
    %137 = vector.extract_strided_slice %13 {offsets = [32, 0], sizes = [8, 384], strides = [1, 1]} : vector<64x384xf32> to vector<8x384xf32>
    %138 = vector.extract_strided_slice %137 {offsets = [0, 0], sizes = [8, 128], strides = [1, 1]} : vector<8x384xf32> to vector<8x128xf32>
    %139 = vector.extract_strided_slice %136 {offsets = [0, 0], sizes = [8, 128], strides = [1, 1]} : vector<8x384xf32> to vector<8x128xf32>
    %140 = arith.addf %138, %139 : vector<8x128xf32>
    %141 = arith.negf %140 : vector<8x128xf32>
    %142 = math.exp %141 : vector<8x128xf32>
    %cst_36 = arith.constant 1.000000e+00 : f32
    %143 = vector.broadcast %cst_36 : f32 to vector<8x128xf32>
    %144 = arith.addf %143, %142 : vector<8x128xf32>
    %145 = arith.divf %143, %144 : vector<8x128xf32>
    %146 = vector.extract_strided_slice %137 {offsets = [0, 128], sizes = [8, 128], strides = [1, 1]} : vector<8x384xf32> to vector<8x128xf32>
    %147 = vector.extract_strided_slice %136 {offsets = [0, 128], sizes = [8, 128], strides = [1, 1]} : vector<8x384xf32> to vector<8x128xf32>
    %148 = arith.addf %146, %147 : vector<8x128xf32>
    %149 = arith.negf %148 : vector<8x128xf32>
    %150 = math.exp %149 : vector<8x128xf32>
    %cst_37 = arith.constant 1.000000e+00 : f32
    %151 = vector.broadcast %cst_37 : f32 to vector<8x128xf32>
    %152 = arith.addf %151, %150 : vector<8x128xf32>
    %153 = arith.divf %151, %152 : vector<8x128xf32>
    %154 = vector.extract_strided_slice %137 {offsets = [0, 256], sizes = [8, 128], strides = [1, 1]} : vector<8x384xf32> to vector<8x128xf32>
    %155 = vector.extract_strided_slice %136 {offsets = [0, 256], sizes = [8, 128], strides = [1, 1]} : vector<8x384xf32> to vector<8x128xf32>
    %156 = arith.mulf %145, %155 : vector<8x128xf32>
    %157 = arith.addf %154, %156 : vector<8x128xf32>
    %158 = math.tanh %157 : vector<8x128xf32>
    %cst_38 = arith.constant 1.000000e+00 : f32
    %159 = vector.broadcast %cst_38 : f32 to vector<8x128xf32>
    %160 = arith.subf %159, %153 : vector<8x128xf32>
    %161 = arith.mulf %160, %158 : vector<8x128xf32>
    %162 = arith.mulf %153, %133 : vector<8x128xf32>
    %163 = arith.addf %161, %162 : vector<8x128xf32>
    %c32 = arith.constant 32 : index
    %c0_39 = arith.constant 0 : index
    %164 = vector.load %arg13[%c32, %c0_39] : memref<64x128xf32, #tpu.memory_space<vmem>>, vector<8x128xf32>
    tpu.vector_store %arg13[%c32, %c0_39], %163 {strides = array<i32>} : memref<64x128xf32, #tpu.memory_space<vmem>>, vector<8x128xf32>,
    %cst_40 = arith.constant dense<0.000000e+00> : vector<8x384xf32>
    %165 = tpu.matmul %163, %2, %cst_40 {dimension_numbers = #tpu.dot_dimension_numbers<[1], [0], [0], [1], [0, 0, 1, 1], [], []>} : vector<8x128xf32>, vector<128x384xf32>, vector<8x384xf32> -> vector<8x384xf32>
    %166 = arith.addf %165, %6 : vector<8x384xf32>
    %167 = vector.extract_strided_slice %13 {offsets = [40, 0], sizes = [8, 384], strides = [1, 1]} : vector<64x384xf32> to vector<8x384xf32>
    %168 = vector.extract_strided_slice %167 {offsets = [0, 0], sizes = [8, 128], strides = [1, 1]} : vector<8x384xf32> to vector<8x128xf32>
    %169 = vector.extract_strided_slice %166 {offsets = [0, 0], sizes = [8, 128], strides = [1, 1]} : vector<8x384xf32> to vector<8x128xf32>
    %170 = arith.addf %168, %169 : vector<8x128xf32>
    %171 = arith.negf %170 : vector<8x128xf32>
    %172 = math.exp %171 : vector<8x128xf32>
    %cst_41 = arith.constant 1.000000e+00 : f32
    %173 = vector.broadcast %cst_41 : f32 to vector<8x128xf32>
    %174 = arith.addf %173, %172 : vector<8x128xf32>
    %175 = arith.divf %173, %174 : vector<8x128xf32>
    %176 = vector.extract_strided_slice %167 {offsets = [0, 128], sizes = [8, 128], strides = [1, 1]} : vector<8x384xf32> to vector<8x128xf32>
    %177 = vector.extract_strided_slice %166 {offsets = [0, 128], sizes = [8, 128], strides = [1, 1]} : vector<8x384xf32> to vector<8x128xf32>
    %178 = arith.addf %176, %177 : vector<8x128xf32>
    %179 = arith.negf %178 : vector<8x128xf32>
    %180 = math.exp %179 : vector<8x128xf32>
    %cst_42 = arith.constant 1.000000e+00 : f32
    %181 = vector.broadcast %cst_42 : f32 to vector<8x128xf32>
    %182 = arith.addf %181, %180 : vector<8x128xf32>
    %183 = arith.divf %181, %182 : vector<8x128xf32>
    %184 = vector.extract_strided_slice %167 {offsets = [0, 256], sizes = [8, 128], strides = [1, 1]} : vector<8x384xf32> to vector<8x128xf32>
    %185 = vector.extract_strided_slice %166 {offsets = [0, 256], sizes = [8, 128], strides = [1, 1]} : vector<8x384xf32> to vector<8x128xf32>
    %186 = arith.mulf %175, %185 : vector<8x128xf32>
    %187 = arith.addf %184, %186 : vector<8x128xf32>
    %188 = math.tanh %187 : vector<8x128xf32>
    %cst_43 = arith.constant 1.000000e+00 : f32
    %189 = vector.broadcast %cst_43 : f32 to vector<8x128xf32>
    %190 = arith.subf %189, %183 : vector<8x128xf32>
    %191 = arith.mulf %190, %188 : vector<8x128xf32>
    %192 = arith.mulf %183, %163 : vector<8x128xf32>
    %193 = arith.addf %191, %192 : vector<8x128xf32>
    %c40 = arith.constant 40 : index
    %c0_44 = arith.constant 0 : index
    %194 = vector.load %arg13[%c40, %c0_44] : memref<64x128xf32, #tpu.memory_space<vmem>>, vector<8x128xf32>
    tpu.vector_store %arg13[%c40, %c0_44], %193 {strides = array<i32>} : memref<64x128xf32, #tpu.memory_space<vmem>>, vector<8x128xf32>,
    %cst_45 = arith.constant dense<0.000000e+00> : vector<8x384xf32>
    %195 = tpu.matmul %193, %2, %cst_45 {dimension_numbers = #tpu.dot_dimension_numbers<[1], [0], [0], [1], [0, 0, 1, 1], [], []>} : vector<8x128xf32>, vector<128x384xf32>, vector<8x384xf32> -> vector<8x384xf32>
    %196 = arith.addf %195, %6 : vector<8x384xf32>
    %197 = vector.extract_strided_slice %13 {offsets = [48, 0], sizes = [8, 384], strides = [1, 1]} : vector<64x384xf32> to vector<8x384xf32>
    %198 = vector.extract_strided_slice %197 {offsets = [0, 0], sizes = [8, 128], strides = [1, 1]} : vector<8x384xf32> to vector<8x128xf32>
    %199 = vector.extract_strided_slice %196 {offsets = [0, 0], sizes = [8, 128], strides = [1, 1]} : vector<8x384xf32> to vector<8x128xf32>
    %200 = arith.addf %198, %199 : vector<8x128xf32>
    %201 = arith.negf %200 : vector<8x128xf32>
    %202 = math.exp %201 : vector<8x128xf32>
    %cst_46 = arith.constant 1.000000e+00 : f32
    %203 = vector.broadcast %cst_46 : f32 to vector<8x128xf32>
    %204 = arith.addf %203, %202 : vector<8x128xf32>
    %205 = arith.divf %203, %204 : vector<8x128xf32>
    %206 = vector.extract_strided_slice %197 {offsets = [0, 128], sizes = [8, 128], strides = [1, 1]} : vector<8x384xf32> to vector<8x128xf32>
    %207 = vector.extract_strided_slice %196 {offsets = [0, 128], sizes = [8, 128], strides = [1, 1]} : vector<8x384xf32> to vector<8x128xf32>
    %208 = arith.addf %206, %207 : vector<8x128xf32>
    %209 = arith.negf %208 : vector<8x128xf32>
    %210 = math.exp %209 : vector<8x128xf32>
    %cst_47 = arith.constant 1.000000e+00 : f32
    %211 = vector.broadcast %cst_47 : f32 to vector<8x128xf32>
    %212 = arith.addf %211, %210 : vector<8x128xf32>
    %213 = arith.divf %211, %212 : vector<8x128xf32>
    %214 = vector.extract_strided_slice %197 {offsets = [0, 256], sizes = [8, 128], strides = [1, 1]} : vector<8x384xf32> to vector<8x128xf32>
    %215 = vector.extract_strided_slice %196 {offsets = [0, 256], sizes = [8, 128], strides = [1, 1]} : vector<8x384xf32> to vector<8x128xf32>
    %216 = arith.mulf %205, %215 : vector<8x128xf32>
    %217 = arith.addf %214, %216 : vector<8x128xf32>
    %218 = math.tanh %217 : vector<8x128xf32>
    %cst_48 = arith.constant 1.000000e+00 : f32
    %219 = vector.broadcast %cst_48 : f32 to vector<8x128xf32>
    %220 = arith.subf %219, %213 : vector<8x128xf32>
    %221 = arith.mulf %220, %218 : vector<8x128xf32>
    %222 = arith.mulf %213, %193 : vector<8x128xf32>
    %223 = arith.addf %221, %222 : vector<8x128xf32>
    %c48 = arith.constant 48 : index
    %c0_49 = arith.constant 0 : index
    %224 = vector.load %arg13[%c48, %c0_49] : memref<64x128xf32, #tpu.memory_space<vmem>>, vector<8x128xf32>
    tpu.vector_store %arg13[%c48, %c0_49], %223 {strides = array<i32>} : memref<64x128xf32, #tpu.memory_space<vmem>>, vector<8x128xf32>,
    %cst_50 = arith.constant dense<0.000000e+00> : vector<8x384xf32>
    %225 = tpu.matmul %223, %2, %cst_50 {dimension_numbers = #tpu.dot_dimension_numbers<[1], [0], [0], [1], [0, 0, 1, 1], [], []>} : vector<8x128xf32>, vector<128x384xf32>, vector<8x384xf32> -> vector<8x384xf32>
    %226 = arith.addf %225, %6 : vector<8x384xf32>
    %227 = vector.extract_strided_slice %13 {offsets = [56, 0], sizes = [8, 384], strides = [1, 1]} : vector<64x384xf32> to vector<8x384xf32>
    %228 = vector.extract_strided_slice %227 {offsets = [0, 0], sizes = [8, 128], strides = [1, 1]} : vector<8x384xf32> to vector<8x128xf32>
    %229 = vector.extract_strided_slice %226 {offsets = [0, 0], sizes = [8, 128], strides = [1, 1]} : vector<8x384xf32> to vector<8x128xf32>
    %230 = arith.addf %228, %229 : vector<8x128xf32>
    %231 = arith.negf %230 : vector<8x128xf32>
    %232 = math.exp %231 : vector<8x128xf32>
    %cst_51 = arith.constant 1.000000e+00 : f32
    %233 = vector.broadcast %cst_51 : f32 to vector<8x128xf32>
    %234 = arith.addf %233, %232 : vector<8x128xf32>
    %235 = arith.divf %233, %234 : vector<8x128xf32>
    %236 = vector.extract_strided_slice %227 {offsets = [0, 128], sizes = [8, 128], strides = [1, 1]} : vector<8x384xf32> to vector<8x128xf32>
    %237 = vector.extract_strided_slice %226 {offsets = [0, 128], sizes = [8, 128], strides = [1, 1]} : vector<8x384xf32> to vector<8x128xf32>
    %238 = arith.addf %236, %237 : vector<8x128xf32>
    %239 = arith.negf %238 : vector<8x128xf32>
    %240 = math.exp %239 : vector<8x128xf32>
    %cst_52 = arith.constant 1.000000e+00 : f32
    %241 = vector.broadcast %cst_52 : f32 to vector<8x128xf32>
    %242 = arith.addf %241, %240 : vector<8x128xf32>
    %243 = arith.divf %241, %242 : vector<8x128xf32>
    %244 = vector.extract_strided_slice %227 {offsets = [0, 256], sizes = [8, 128], strides = [1, 1]} : vector<8x384xf32> to vector<8x128xf32>
    %245 = vector.extract_strided_slice %226 {offsets = [0, 256], sizes = [8, 128], strides = [1, 1]} : vector<8x384xf32> to vector<8x128xf32>
    %246 = arith.mulf %235, %245 : vector<8x128xf32>
    %247 = arith.addf %244, %246 : vector<8x128xf32>
    %248 = math.tanh %247 : vector<8x128xf32>
    %cst_53 = arith.constant 1.000000e+00 : f32
    %249 = vector.broadcast %cst_53 : f32 to vector<8x128xf32>
    %250 = arith.subf %249, %243 : vector<8x128xf32>
    %251 = arith.mulf %250, %248 : vector<8x128xf32>
    %252 = arith.mulf %243, %223 : vector<8x128xf32>
    %253 = arith.addf %251, %252 : vector<8x128xf32>
    %c56 = arith.constant 56 : index
    %c0_54 = arith.constant 0 : index
    %254 = vector.load %arg13[%c56, %c0_54] : memref<64x128xf32, #tpu.memory_space<vmem>>, vector<8x128xf32>
    tpu.vector_store %arg13[%c56, %c0_54], %253 {strides = array<i32>} : memref<64x128xf32, #tpu.memory_space<vmem>>, vector<8x128xf32>,
    %c0_55 = arith.constant 0 : index
    %c0_56 = arith.constant 0 : index
    %255 = vector.load %arg13[%c0_55, %c0_56] : memref<64x128xf32, #tpu.memory_space<vmem>>, vector<64x128xf32>
    %c1 = arith.constant 1 : index
    %c0_57 = arith.constant 0 : index
    %c0_58 = arith.constant 0 : index
    %256 = vector.load %arg3[%c1, %c0_57, %c0_58] : memref<2x128x384xf32, #tpu.memory_space<vmem>>, vector<1x128x384xf32>
    %257 = vector.shape_cast %256 : vector<1x128x384xf32> to vector<128x384xf32>
    %c1_59 = arith.constant 1 : index
    %c0_60 = arith.constant 0 : index
    %c0_61 = arith.constant 0 : index
    %258 = vector.load %arg5[%c1_59, %c0_60, %c0_61] : memref<2x1x384xf32, #tpu.memory_space<vmem>>, vector<1x1x384xf32>
    %259 = vector.shape_cast %258 : vector<1x1x384xf32> to vector<1x384xf32>
    %260 = vector.shape_cast %259 : vector<1x384xf32> to vector<1x384xf32>
    %261 = vector.broadcast %260 : vector<1x384xf32> to vector<8x384xf32>
    %c1_62 = arith.constant 1 : index
    %c0_63 = arith.constant 0 : index
    %c0_64 = arith.constant 0 : index
    %262 = vector.load %arg2[%c1_62, %c0_63, %c0_64] : memref<2x128x384xf32, #tpu.memory_space<vmem>>, vector<1x128x384xf32>
    %263 = vector.shape_cast %262 : vector<1x128x384xf32> to vector<128x384xf32>
    %cst_65 = arith.constant dense<0.000000e+00> : vector<64x384xf32>
    %264 = tpu.matmul %255, %263, %cst_65 {dimension_numbers = #tpu.dot_dimension_numbers<[1], [0], [0], [1], [0, 0, 1, 1], [], []>} : vector<64x128xf32>, vector<128x384xf32>, vector<64x384xf32> -> vector<64x384xf32>
    %c1_66 = arith.constant 1 : index
    %c0_67 = arith.constant 0 : index
    %c0_68 = arith.constant 0 : index
    %265 = vector.load %arg4[%c1_66, %c0_67, %c0_68] : memref<2x1x384xf32, #tpu.memory_space<vmem>>, vector<1x1x384xf32>
    %266 = vector.shape_cast %265 : vector<1x1x384xf32> to vector<1x384xf32>
    %267 = vector.broadcast %266 : vector<1x384xf32> to vector<64x384xf32>
    %268 = arith.addf %264, %267 : vector<64x384xf32>
    %cst_69 = arith.constant 0.000000e+00 : f32
    %269 = vector.broadcast %cst_69 : f32 to vector<8x128xf32>
    %cst_70 = arith.constant dense<0.000000e+00> : vector<8x384xf32>
    %270 = tpu.matmul %269, %257, %cst_70 {dimension_numbers = #tpu.dot_dimension_numbers<[1], [0], [0], [1], [0, 0, 1, 1], [], []>} : vector<8x128xf32>, vector<128x384xf32>, vector<8x384xf32> -> vector<8x384xf32>
    %271 = arith.addf %270, %261 : vector<8x384xf32>
    %272 = vector.extract_strided_slice %268 {offsets = [0, 0], sizes = [8, 384], strides = [1, 1]} : vector<64x384xf32> to vector<8x384xf32>
    %273 = vector.extract_strided_slice %272 {offsets = [0, 0], sizes = [8, 128], strides = [1, 1]} : vector<8x384xf32> to vector<8x128xf32>
    %274 = vector.extract_strided_slice %271 {offsets = [0, 0], sizes = [8, 128], strides = [1, 1]} : vector<8x384xf32> to vector<8x128xf32>
    %275 = arith.addf %273, %274 : vector<8x128xf32>
    %276 = arith.negf %275 : vector<8x128xf32>
    %277 = math.exp %276 : vector<8x128xf32>
    %cst_71 = arith.constant 1.000000e+00 : f32
    %278 = vector.broadcast %cst_71 : f32 to vector<8x128xf32>
    %279 = arith.addf %278, %277 : vector<8x128xf32>
    %280 = arith.divf %278, %279 : vector<8x128xf32>
    %281 = vector.extract_strided_slice %272 {offsets = [0, 128], sizes = [8, 128], strides = [1, 1]} : vector<8x384xf32> to vector<8x128xf32>
    %282 = vector.extract_strided_slice %271 {offsets = [0, 128], sizes = [8, 128], strides = [1, 1]} : vector<8x384xf32> to vector<8x128xf32>
    %283 = arith.addf %281, %282 : vector<8x128xf32>
    %284 = arith.negf %283 : vector<8x128xf32>
    %285 = math.exp %284 : vector<8x128xf32>
    %cst_72 = arith.constant 1.000000e+00 : f32
    %286 = vector.broadcast %cst_72 : f32 to vector<8x128xf32>
    %287 = arith.addf %286, %285 : vector<8x128xf32>
    %288 = arith.divf %286, %287 : vector<8x128xf32>
    %289 = vector.extract_strided_slice %272 {offsets = [0, 256], sizes = [8, 128], strides = [1, 1]} : vector<8x384xf32> to vector<8x128xf32>
    %290 = vector.extract_strided_slice %271 {offsets = [0, 256], sizes = [8, 128], strides = [1, 1]} : vector<8x384xf32> to vector<8x128xf32>
    %291 = arith.mulf %280, %290 : vector<8x128xf32>
    %292 = arith.addf %289, %291 : vector<8x128xf32>
    %293 = math.tanh %292 : vector<8x128xf32>
    %cst_73 = arith.constant 1.000000e+00 : f32
    %294 = vector.broadcast %cst_73 : f32 to vector<8x128xf32>
    %295 = arith.subf %294, %288 : vector<8x128xf32>
    %296 = arith.mulf %295, %293 : vector<8x128xf32>
    %297 = arith.mulf %288, %269 : vector<8x128xf32>
    %298 = arith.addf %296, %297 : vector<8x128xf32>
    %cst_74 = arith.constant dense<0.000000e+00> : vector<8x384xf32>
    %299 = tpu.matmul %298, %257, %cst_74 {dimension_numbers = #tpu.dot_dimension_numbers<[1], [0], [0], [1], [0, 0, 1, 1], [], []>} : vector<8x128xf32>, vector<128x384xf32>, vector<8x384xf32> -> vector<8x384xf32>
    %300 = arith.addf %299, %261 : vector<8x384xf32>
    %301 = vector.extract_strided_slice %268 {offsets = [8, 0], sizes = [8, 384], strides = [1, 1]} : vector<64x384xf32> to vector<8x384xf32>
    %302 = vector.extract_strided_slice %301 {offsets = [0, 0], sizes = [8, 128], strides = [1, 1]} : vector<8x384xf32> to vector<8x128xf32>
    %303 = vector.extract_strided_slice %300 {offsets = [0, 0], sizes = [8, 128], strides = [1, 1]} : vector<8x384xf32> to vector<8x128xf32>
    %304 = arith.addf %302, %303 : vector<8x128xf32>
    %305 = arith.negf %304 : vector<8x128xf32>
    %306 = math.exp %305 : vector<8x128xf32>
    %cst_75 = arith.constant 1.000000e+00 : f32
    %307 = vector.broadcast %cst_75 : f32 to vector<8x128xf32>
    %308 = arith.addf %307, %306 : vector<8x128xf32>
    %309 = arith.divf %307, %308 : vector<8x128xf32>
    %310 = vector.extract_strided_slice %301 {offsets = [0, 128], sizes = [8, 128], strides = [1, 1]} : vector<8x384xf32> to vector<8x128xf32>
    %311 = vector.extract_strided_slice %300 {offsets = [0, 128], sizes = [8, 128], strides = [1, 1]} : vector<8x384xf32> to vector<8x128xf32>
    %312 = arith.addf %310, %311 : vector<8x128xf32>
    %313 = arith.negf %312 : vector<8x128xf32>
    %314 = math.exp %313 : vector<8x128xf32>
    %cst_76 = arith.constant 1.000000e+00 : f32
    %315 = vector.broadcast %cst_76 : f32 to vector<8x128xf32>
    %316 = arith.addf %315, %314 : vector<8x128xf32>
    %317 = arith.divf %315, %316 : vector<8x128xf32>
    %318 = vector.extract_strided_slice %301 {offsets = [0, 256], sizes = [8, 128], strides = [1, 1]} : vector<8x384xf32> to vector<8x128xf32>
    %319 = vector.extract_strided_slice %300 {offsets = [0, 256], sizes = [8, 128], strides = [1, 1]} : vector<8x384xf32> to vector<8x128xf32>
    %320 = arith.mulf %309, %319 : vector<8x128xf32>
    %321 = arith.addf %318, %320 : vector<8x128xf32>
    %322 = math.tanh %321 : vector<8x128xf32>
    %cst_77 = arith.constant 1.000000e+00 : f32
    %323 = vector.broadcast %cst_77 : f32 to vector<8x128xf32>
    %324 = arith.subf %323, %317 : vector<8x128xf32>
    %325 = arith.mulf %324, %322 : vector<8x128xf32>
    %326 = arith.mulf %317, %298 : vector<8x128xf32>
    %327 = arith.addf %325, %326 : vector<8x128xf32>
    %cst_78 = arith.constant dense<0.000000e+00> : vector<8x384xf32>
    %328 = tpu.matmul %327, %257, %cst_78 {dimension_numbers = #tpu.dot_dimension_numbers<[1], [0], [0], [1], [0, 0, 1, 1], [], []>} : vector<8x128xf32>, vector<128x384xf32>, vector<8x384xf32> -> vector<8x384xf32>
    %329 = arith.addf %328, %261 : vector<8x384xf32>
    %330 = vector.extract_strided_slice %268 {offsets = [16, 0], sizes = [8, 384], strides = [1, 1]} : vector<64x384xf32> to vector<8x384xf32>
    %331 = vector.extract_strided_slice %330 {offsets = [0, 0], sizes = [8, 128], strides = [1, 1]} : vector<8x384xf32> to vector<8x128xf32>
    %332 = vector.extract_strided_slice %329 {offsets = [0, 0], sizes = [8, 128], strides = [1, 1]} : vector<8x384xf32> to vector<8x128xf32>
    %333 = arith.addf %331, %332 : vector<8x128xf32>
    %334 = arith.negf %333 : vector<8x128xf32>
    %335 = math.exp %334 : vector<8x128xf32>
    %cst_79 = arith.constant 1.000000e+00 : f32
    %336 = vector.broadcast %cst_79 : f32 to vector<8x128xf32>
    %337 = arith.addf %336, %335 : vector<8x128xf32>
    %338 = arith.divf %336, %337 : vector<8x128xf32>
    %339 = vector.extract_strided_slice %330 {offsets = [0, 128], sizes = [8, 128], strides = [1, 1]} : vector<8x384xf32> to vector<8x128xf32>
    %340 = vector.extract_strided_slice %329 {offsets = [0, 128], sizes = [8, 128], strides = [1, 1]} : vector<8x384xf32> to vector<8x128xf32>
    %341 = arith.addf %339, %340 : vector<8x128xf32>
    %342 = arith.negf %341 : vector<8x128xf32>
    %343 = math.exp %342 : vector<8x128xf32>
    %cst_80 = arith.constant 1.000000e+00 : f32
    %344 = vector.broadcast %cst_80 : f32 to vector<8x128xf32>
    %345 = arith.addf %344, %343 : vector<8x128xf32>
    %346 = arith.divf %344, %345 : vector<8x128xf32>
    %347 = vector.extract_strided_slice %330 {offsets = [0, 256], sizes = [8, 128], strides = [1, 1]} : vector<8x384xf32> to vector<8x128xf32>
    %348 = vector.extract_strided_slice %329 {offsets = [0, 256], sizes = [8, 128], strides = [1, 1]} : vector<8x384xf32> to vector<8x128xf32>
    %349 = arith.mulf %338, %348 : vector<8x128xf32>
    %350 = arith.addf %347, %349 : vector<8x128xf32>
    %351 = math.tanh %350 : vector<8x128xf32>
    %cst_81 = arith.constant 1.000000e+00 : f32
    %352 = vector.broadcast %cst_81 : f32 to vector<8x128xf32>
    %353 = arith.subf %352, %346 : vector<8x128xf32>
    %354 = arith.mulf %353, %351 : vector<8x128xf32>
    %355 = arith.mulf %346, %327 : vector<8x128xf32>
    %356 = arith.addf %354, %355 : vector<8x128xf32>
    %cst_82 = arith.constant dense<0.000000e+00> : vector<8x384xf32>
    %357 = tpu.matmul %356, %257, %cst_82 {dimension_numbers = #tpu.dot_dimension_numbers<[1], [0], [0], [1], [0, 0, 1, 1], [], []>} : vector<8x128xf32>, vector<128x384xf32>, vector<8x384xf32> -> vector<8x384xf32>
    %358 = arith.addf %357, %261 : vector<8x384xf32>
    %359 = vector.extract_strided_slice %268 {offsets = [24, 0], sizes = [8, 384], strides = [1, 1]} : vector<64x384xf32> to vector<8x384xf32>
    %360 = vector.extract_strided_slice %359 {offsets = [0, 0], sizes = [8, 128], strides = [1, 1]} : vector<8x384xf32> to vector<8x128xf32>
    %361 = vector.extract_strided_slice %358 {offsets = [0, 0], sizes = [8, 128], strides = [1, 1]} : vector<8x384xf32> to vector<8x128xf32>
    %362 = arith.addf %360, %361 : vector<8x128xf32>
    %363 = arith.negf %362 : vector<8x128xf32>
    %364 = math.exp %363 : vector<8x128xf32>
    %cst_83 = arith.constant 1.000000e+00 : f32
    %365 = vector.broadcast %cst_83 : f32 to vector<8x128xf32>
    %366 = arith.addf %365, %364 : vector<8x128xf32>
    %367 = arith.divf %365, %366 : vector<8x128xf32>
    %368 = vector.extract_strided_slice %359 {offsets = [0, 128], sizes = [8, 128], strides = [1, 1]} : vector<8x384xf32> to vector<8x128xf32>
    %369 = vector.extract_strided_slice %358 {offsets = [0, 128], sizes = [8, 128], strides = [1, 1]} : vector<8x384xf32> to vector<8x128xf32>
    %370 = arith.addf %368, %369 : vector<8x128xf32>
    %371 = arith.negf %370 : vector<8x128xf32>
    %372 = math.exp %371 : vector<8x128xf32>
    %cst_84 = arith.constant 1.000000e+00 : f32
    %373 = vector.broadcast %cst_84 : f32 to vector<8x128xf32>
    %374 = arith.addf %373, %372 : vector<8x128xf32>
    %375 = arith.divf %373, %374 : vector<8x128xf32>
    %376 = vector.extract_strided_slice %359 {offsets = [0, 256], sizes = [8, 128], strides = [1, 1]} : vector<8x384xf32> to vector<8x128xf32>
    %377 = vector.extract_strided_slice %358 {offsets = [0, 256], sizes = [8, 128], strides = [1, 1]} : vector<8x384xf32> to vector<8x128xf32>
    %378 = arith.mulf %367, %377 : vector<8x128xf32>
    %379 = arith.addf %376, %378 : vector<8x128xf32>
    %380 = math.tanh %379 : vector<8x128xf32>
    %cst_85 = arith.constant 1.000000e+00 : f32
    %381 = vector.broadcast %cst_85 : f32 to vector<8x128xf32>
    %382 = arith.subf %381, %375 : vector<8x128xf32>
    %383 = arith.mulf %382, %380 : vector<8x128xf32>
    %384 = arith.mulf %375, %356 : vector<8x128xf32>
    %385 = arith.addf %383, %384 : vector<8x128xf32>
    %cst_86 = arith.constant dense<0.000000e+00> : vector<8x384xf32>
    %386 = tpu.matmul %385, %257, %cst_86 {dimension_numbers = #tpu.dot_dimension_numbers<[1], [0], [0], [1], [0, 0, 1, 1], [], []>} : vector<8x128xf32>, vector<128x384xf32>, vector<8x384xf32> -> vector<8x384xf32>
    %387 = arith.addf %386, %261 : vector<8x384xf32>
    %388 = vector.extract_strided_slice %268 {offsets = [32, 0], sizes = [8, 384], strides = [1, 1]} : vector<64x384xf32> to vector<8x384xf32>
    %389 = vector.extract_strided_slice %388 {offsets = [0, 0], sizes = [8, 128], strides = [1, 1]} : vector<8x384xf32> to vector<8x128xf32>
    %390 = vector.extract_strided_slice %387 {offsets = [0, 0], sizes = [8, 128], strides = [1, 1]} : vector<8x384xf32> to vector<8x128xf32>
    %391 = arith.addf %389, %390 : vector<8x128xf32>
    %392 = arith.negf %391 : vector<8x128xf32>
    %393 = math.exp %392 : vector<8x128xf32>
    %cst_87 = arith.constant 1.000000e+00 : f32
    %394 = vector.broadcast %cst_87 : f32 to vector<8x128xf32>
    %395 = arith.addf %394, %393 : vector<8x128xf32>
    %396 = arith.divf %394, %395 : vector<8x128xf32>
    %397 = vector.extract_strided_slice %388 {offsets = [0, 128], sizes = [8, 128], strides = [1, 1]} : vector<8x384xf32> to vector<8x128xf32>
    %398 = vector.extract_strided_slice %387 {offsets = [0, 128], sizes = [8, 128], strides = [1, 1]} : vector<8x384xf32> to vector<8x128xf32>
    %399 = arith.addf %397, %398 : vector<8x128xf32>
    %400 = arith.negf %399 : vector<8x128xf32>
    %401 = math.exp %400 : vector<8x128xf32>
    %cst_88 = arith.constant 1.000000e+00 : f32
    %402 = vector.broadcast %cst_88 : f32 to vector<8x128xf32>
    %403 = arith.addf %402, %401 : vector<8x128xf32>
    %404 = arith.divf %402, %403 : vector<8x128xf32>
    %405 = vector.extract_strided_slice %388 {offsets = [0, 256], sizes = [8, 128], strides = [1, 1]} : vector<8x384xf32> to vector<8x128xf32>
    %406 = vector.extract_strided_slice %387 {offsets = [0, 256], sizes = [8, 128], strides = [1, 1]} : vector<8x384xf32> to vector<8x128xf32>
    %407 = arith.mulf %396, %406 : vector<8x128xf32>
    %408 = arith.addf %405, %407 : vector<8x128xf32>
    %409 = math.tanh %408 : vector<8x128xf32>
    %cst_89 = arith.constant 1.000000e+00 : f32
    %410 = vector.broadcast %cst_89 : f32 to vector<8x128xf32>
    %411 = arith.subf %410, %404 : vector<8x128xf32>
    %412 = arith.mulf %411, %409 : vector<8x128xf32>
    %413 = arith.mulf %404, %385 : vector<8x128xf32>
    %414 = arith.addf %412, %413 : vector<8x128xf32>
    %cst_90 = arith.constant dense<0.000000e+00> : vector<8x384xf32>
    %415 = tpu.matmul %414, %257, %cst_90 {dimension_numbers = #tpu.dot_dimension_numbers<[1], [0], [0], [1], [0, 0, 1, 1], [], []>} : vector<8x128xf32>, vector<128x384xf32>, vector<8x384xf32> -> vector<8x384xf32>
    %416 = arith.addf %415, %261 : vector<8x384xf32>
    %417 = vector.extract_strided_slice %268 {offsets = [40, 0], sizes = [8, 384], strides = [1, 1]} : vector<64x384xf32> to vector<8x384xf32>
    %418 = vector.extract_strided_slice %417 {offsets = [0, 0], sizes = [8, 128], strides = [1, 1]} : vector<8x384xf32> to vector<8x128xf32>
    %419 = vector.extract_strided_slice %416 {offsets = [0, 0], sizes = [8, 128], strides = [1, 1]} : vector<8x384xf32> to vector<8x128xf32>
    %420 = arith.addf %418, %419 : vector<8x128xf32>
    %421 = arith.negf %420 : vector<8x128xf32>
    %422 = math.exp %421 : vector<8x128xf32>
    %cst_91 = arith.constant 1.000000e+00 : f32
    %423 = vector.broadcast %cst_91 : f32 to vector<8x128xf32>
    %424 = arith.addf %423, %422 : vector<8x128xf32>
    %425 = arith.divf %423, %424 : vector<8x128xf32>
    %426 = vector.extract_strided_slice %417 {offsets = [0, 128], sizes = [8, 128], strides = [1, 1]} : vector<8x384xf32> to vector<8x128xf32>
    %427 = vector.extract_strided_slice %416 {offsets = [0, 128], sizes = [8, 128], strides = [1, 1]} : vector<8x384xf32> to vector<8x128xf32>
    %428 = arith.addf %426, %427 : vector<8x128xf32>
    %429 = arith.negf %428 : vector<8x128xf32>
    %430 = math.exp %429 : vector<8x128xf32>
    %cst_92 = arith.constant 1.000000e+00 : f32
    %431 = vector.broadcast %cst_92 : f32 to vector<8x128xf32>
    %432 = arith.addf %431, %430 : vector<8x128xf32>
    %433 = arith.divf %431, %432 : vector<8x128xf32>
    %434 = vector.extract_strided_slice %417 {offsets = [0, 256], sizes = [8, 128], strides = [1, 1]} : vector<8x384xf32> to vector<8x128xf32>
    %435 = vector.extract_strided_slice %416 {offsets = [0, 256], sizes = [8, 128], strides = [1, 1]} : vector<8x384xf32> to vector<8x128xf32>
    %436 = arith.mulf %425, %435 : vector<8x128xf32>
    %437 = arith.addf %434, %436 : vector<8x128xf32>
    %438 = math.tanh %437 : vector<8x128xf32>
    %cst_93 = arith.constant 1.000000e+00 : f32
    %439 = vector.broadcast %cst_93 : f32 to vector<8x128xf32>
    %440 = arith.subf %439, %433 : vector<8x128xf32>
    %441 = arith.mulf %440, %438 : vector<8x128xf32>
    %442 = arith.mulf %433, %414 : vector<8x128xf32>
    %443 = arith.addf %441, %442 : vector<8x128xf32>
    %cst_94 = arith.constant dense<0.000000e+00> : vector<8x384xf32>
    %444 = tpu.matmul %443, %257, %cst_94 {dimension_numbers = #tpu.dot_dimension_numbers<[1], [0], [0], [1], [0, 0, 1, 1], [], []>} : vector<8x128xf32>, vector<128x384xf32>, vector<8x384xf32> -> vector<8x384xf32>
    %445 = arith.addf %444, %261 : vector<8x384xf32>
    %446 = vector.extract_strided_slice %268 {offsets = [48, 0], sizes = [8, 384], strides = [1, 1]} : vector<64x384xf32> to vector<8x384xf32>
    %447 = vector.extract_strided_slice %446 {offsets = [0, 0], sizes = [8, 128], strides = [1, 1]} : vector<8x384xf32> to vector<8x128xf32>
    %448 = vector.extract_strided_slice %445 {offsets = [0, 0], sizes = [8, 128], strides = [1, 1]} : vector<8x384xf32> to vector<8x128xf32>
    %449 = arith.addf %447, %448 : vector<8x128xf32>
    %450 = arith.negf %449 : vector<8x128xf32>
    %451 = math.exp %450 : vector<8x128xf32>
    %cst_95 = arith.constant 1.000000e+00 : f32
    %452 = vector.broadcast %cst_95 : f32 to vector<8x128xf32>
    %453 = arith.addf %452, %451 : vector<8x128xf32>
    %454 = arith.divf %452, %453 : vector<8x128xf32>
    %455 = vector.extract_strided_slice %446 {offsets = [0, 128], sizes = [8, 128], strides = [1, 1]} : vector<8x384xf32> to vector<8x128xf32>
    %456 = vector.extract_strided_slice %445 {offsets = [0, 128], sizes = [8, 128], strides = [1, 1]} : vector<8x384xf32> to vector<8x128xf32>
    %457 = arith.addf %455, %456 : vector<8x128xf32>
    %458 = arith.negf %457 : vector<8x128xf32>
    %459 = math.exp %458 : vector<8x128xf32>
    %cst_96 = arith.constant 1.000000e+00 : f32
    %460 = vector.broadcast %cst_96 : f32 to vector<8x128xf32>
    %461 = arith.addf %460, %459 : vector<8x128xf32>
    %462 = arith.divf %460, %461 : vector<8x128xf32>
    %463 = vector.extract_strided_slice %446 {offsets = [0, 256], sizes = [8, 128], strides = [1, 1]} : vector<8x384xf32> to vector<8x128xf32>
    %464 = vector.extract_strided_slice %445 {offsets = [0, 256], sizes = [8, 128], strides = [1, 1]} : vector<8x384xf32> to vector<8x128xf32>
    %465 = arith.mulf %454, %464 : vector<8x128xf32>
    %466 = arith.addf %463, %465 : vector<8x128xf32>
    %467 = math.tanh %466 : vector<8x128xf32>
    %cst_97 = arith.constant 1.000000e+00 : f32
    %468 = vector.broadcast %cst_97 : f32 to vector<8x128xf32>
    %469 = arith.subf %468, %462 : vector<8x128xf32>
    %470 = arith.mulf %469, %467 : vector<8x128xf32>
    %471 = arith.mulf %462, %443 : vector<8x128xf32>
    %472 = arith.addf %470, %471 : vector<8x128xf32>
    %cst_98 = arith.constant dense<0.000000e+00> : vector<8x384xf32>
    %473 = tpu.matmul %472, %257, %cst_98 {dimension_numbers = #tpu.dot_dimension_numbers<[1], [0], [0], [1], [0, 0, 1, 1], [], []>} : vector<8x128xf32>, vector<128x384xf32>, vector<8x384xf32> -> vector<8x384xf32>
    %474 = arith.addf %473, %261 : vector<8x384xf32>
    %475 = vector.extract_strided_slice %268 {offsets = [56, 0], sizes = [8, 384], strides = [1, 1]} : vector<64x384xf32> to vector<8x384xf32>
    %476 = vector.extract_strided_slice %475 {offsets = [0, 0], sizes = [8, 128], strides = [1, 1]} : vector<8x384xf32> to vector<8x128xf32>
    %477 = vector.extract_strided_slice %474 {offsets = [0, 0], sizes = [8, 128], strides = [1, 1]} : vector<8x384xf32> to vector<8x128xf32>
    %478 = arith.addf %476, %477 : vector<8x128xf32>
    %479 = arith.negf %478 : vector<8x128xf32>
    %480 = math.exp %479 : vector<8x128xf32>
    %cst_99 = arith.constant 1.000000e+00 : f32
    %481 = vector.broadcast %cst_99 : f32 to vector<8x128xf32>
    %482 = arith.addf %481, %480 : vector<8x128xf32>
    %483 = arith.divf %481, %482 : vector<8x128xf32>
    %484 = vector.extract_strided_slice %475 {offsets = [0, 128], sizes = [8, 128], strides = [1, 1]} : vector<8x384xf32> to vector<8x128xf32>
    %485 = vector.extract_strided_slice %474 {offsets = [0, 128], sizes = [8, 128], strides = [1, 1]} : vector<8x384xf32> to vector<8x128xf32>
    %486 = arith.addf %484, %485 : vector<8x128xf32>
    %487 = arith.negf %486 : vector<8x128xf32>
    %488 = math.exp %487 : vector<8x128xf32>
    %cst_100 = arith.constant 1.000000e+00 : f32
    %489 = vector.broadcast %cst_100 : f32 to vector<8x128xf32>
    %490 = arith.addf %489, %488 : vector<8x128xf32>
    %491 = arith.divf %489, %490 : vector<8x128xf32>
    %492 = vector.extract_strided_slice %475 {offsets = [0, 256], sizes = [8, 128], strides = [1, 1]} : vector<8x384xf32> to vector<8x128xf32>
    %493 = vector.extract_strided_slice %474 {offsets = [0, 256], sizes = [8, 128], strides = [1, 1]} : vector<8x384xf32> to vector<8x128xf32>
    %494 = arith.mulf %483, %493 : vector<8x128xf32>
    %495 = arith.addf %492, %494 : vector<8x128xf32>
    %496 = math.tanh %495 : vector<8x128xf32>
    %cst_101 = arith.constant 1.000000e+00 : f32
    %497 = vector.broadcast %cst_101 : f32 to vector<8x128xf32>
    %498 = arith.subf %497, %491 : vector<8x128xf32>
    %499 = arith.mulf %498, %496 : vector<8x128xf32>
    %500 = arith.mulf %491, %472 : vector<8x128xf32>
    %501 = arith.addf %499, %500 : vector<8x128xf32>
    %c0_102 = arith.constant 0 : index
    %c0_103 = arith.constant 0 : index
    %c0_104 = arith.constant 0 : index
    %502 = vector.load %arg7[%c0_102, %c0_103, %c0_104] : memref<2x128x384xf32, #tpu.memory_space<vmem>>, vector<1x128x384xf32>
    %503 = vector.shape_cast %502 : vector<1x128x384xf32> to vector<128x384xf32>
    %cst_105 = arith.constant dense<0.000000e+00> : vector<8x384xf32>
    %504 = tpu.matmul %253, %503, %cst_105 {dimension_numbers = #tpu.dot_dimension_numbers<[1], [0], [0], [1], [0, 0, 1, 1], [], []>} : vector<8x128xf32>, vector<128x384xf32>, vector<8x384xf32> -> vector<8x384xf32>
    %c0_106 = arith.constant 0 : index
    %c0_107 = arith.constant 0 : index
    %c0_108 = arith.constant 0 : index
    %505 = vector.load %arg9[%c0_106, %c0_107, %c0_108] : memref<2x1x384xf32, #tpu.memory_space<vmem>>, vector<1x1x384xf32>
    %506 = vector.shape_cast %505 : vector<1x1x384xf32> to vector<1x384xf32>
    %507 = vector.shape_cast %506 : vector<1x384xf32> to vector<1x384xf32>
    %508 = vector.broadcast %507 : vector<1x384xf32> to vector<8x384xf32>
    %509 = arith.addf %504, %508 : vector<8x384xf32>
    %c1_109 = arith.constant 1 : index
    %c0_110 = arith.constant 0 : index
    %c0_111 = arith.constant 0 : index
    %510 = vector.load %arg7[%c1_109, %c0_110, %c0_111] : memref<2x128x384xf32, #tpu.memory_space<vmem>>, vector<1x128x384xf32>
    %511 = vector.shape_cast %510 : vector<1x128x384xf32> to vector<128x384xf32>
    %cst_112 = arith.constant dense<0.000000e+00> : vector<8x384xf32>
    %512 = tpu.matmul %501, %511, %cst_112 {dimension_numbers = #tpu.dot_dimension_numbers<[1], [0], [0], [1], [0, 0, 1, 1], [], []>} : vector<8x128xf32>, vector<128x384xf32>, vector<8x384xf32> -> vector<8x384xf32>
    %c1_113 = arith.constant 1 : index
    %c0_114 = arith.constant 0 : index
    %c0_115 = arith.constant 0 : index
    %513 = vector.load %arg9[%c1_113, %c0_114, %c0_115] : memref<2x1x384xf32, #tpu.memory_space<vmem>>, vector<1x1x384xf32>
    %514 = vector.shape_cast %513 : vector<1x1x384xf32> to vector<1x384xf32>
    %515 = vector.shape_cast %514 : vector<1x384xf32> to vector<1x384xf32>
    %516 = vector.broadcast %515 : vector<1x384xf32> to vector<8x384xf32>
    %517 = arith.addf %512, %516 : vector<8x384xf32>
    %c0_116 = arith.constant 0 : index
    %c0_117 = arith.constant 0 : index
    %c0_118 = arith.constant 0 : index
    %518 = vector.load %arg6[%c0_116, %c0_117, %c0_118] : memref<2x128x384xf32, #tpu.memory_space<vmem>>, vector<1x128x384xf32>
    %519 = vector.shape_cast %518 : vector<1x128x384xf32> to vector<128x384xf32>
    %c1_119 = arith.constant 1 : index
    %c0_120 = arith.constant 0 : index
    %c0_121 = arith.constant 0 : index
    %520 = vector.load %arg6[%c1_119, %c0_120, %c0_121] : memref<2x128x384xf32, #tpu.memory_space<vmem>>, vector<1x128x384xf32>
    %521 = vector.shape_cast %520 : vector<1x128x384xf32> to vector<128x384xf32>
    %c0_122 = arith.constant 0 : index
    %c0_123 = arith.constant 0 : index
    %c0_124 = arith.constant 0 : index
    %522 = vector.load %arg8[%c0_122, %c0_123, %c0_124] : memref<2x1x384xf32, #tpu.memory_space<vmem>>, vector<1x1x384xf32>
    %523 = vector.shape_cast %522 : vector<1x1x384xf32> to vector<1x384xf32>
    %524 = vector.shape_cast %523 : vector<1x384xf32> to vector<1x384xf32>
    %525 = vector.broadcast %524 : vector<1x384xf32> to vector<8x384xf32>
    %c1_125 = arith.constant 1 : index
    %c0_126 = arith.constant 0 : index
    %c0_127 = arith.constant 0 : index
    %526 = vector.load %arg8[%c1_125, %c0_126, %c0_127] : memref<2x1x384xf32, #tpu.memory_space<vmem>>, vector<1x1x384xf32>
    %527 = vector.shape_cast %526 : vector<1x1x384xf32> to vector<1x384xf32>
    %528 = vector.shape_cast %527 : vector<1x384xf32> to vector<1x384xf32>
    %529 = vector.broadcast %528 : vector<1x384xf32> to vector<8x384xf32>
    %c0_128 = arith.constant 0 : index
    %c0_129 = arith.constant 0 : index
    %530 = vector.load %arg10[%c0_128, %c0_129] : memref<128x128xf32, #tpu.memory_space<vmem>>, vector<128x128xf32>
    %c0_130 = arith.constant 0 : index
    %c0_131 = arith.constant 0 : index
    %531 = vector.load %arg11[%c0_130, %c0_131] : memref<1x128xf32, #tpu.memory_space<vmem>>, vector<1x128xf32>
    %532 = vector.shape_cast %531 : vector<1x128xf32> to vector<1x128xf32>
    %533 = vector.broadcast %532 : vector<1x128xf32> to vector<8x128xf32>
    %c0_132 = arith.constant 0 : index
    %c0_133 = arith.constant 0 : index
    %534 = vector.load %arg1[%c0_132, %c0_133] : memref<8x128xf32, #tpu.memory_space<vmem>>, vector<8x128xf32>
    %cst_134 = arith.constant dense<0.000000e+00> : vector<8x384xf32>
    %535 = tpu.matmul %534, %519, %cst_134 {dimension_numbers = #tpu.dot_dimension_numbers<[1], [0], [0], [1], [0, 0, 1, 1], [], []>} : vector<8x128xf32>, vector<128x384xf32>, vector<8x384xf32> -> vector<8x384xf32>
    %536 = arith.addf %535, %525 : vector<8x384xf32>
    %537 = vector.extract_strided_slice %536 {offsets = [0, 0], sizes = [8, 128], strides = [1, 1]} : vector<8x384xf32> to vector<8x128xf32>
    %538 = vector.extract_strided_slice %509 {offsets = [0, 0], sizes = [8, 128], strides = [1, 1]} : vector<8x384xf32> to vector<8x128xf32>
    %539 = arith.addf %537, %538 : vector<8x128xf32>
    %540 = arith.negf %539 : vector<8x128xf32>
    %541 = math.exp %540 : vector<8x128xf32>
    %cst_135 = arith.constant 1.000000e+00 : f32
    %542 = vector.broadcast %cst_135 : f32 to vector<8x128xf32>
    %543 = arith.addf %542, %541 : vector<8x128xf32>
    %544 = arith.divf %542, %543 : vector<8x128xf32>
    %545 = vector.extract_strided_slice %536 {offsets = [0, 128], sizes = [8, 128], strides = [1, 1]} : vector<8x384xf32> to vector<8x128xf32>
    %546 = vector.extract_strided_slice %509 {offsets = [0, 128], sizes = [8, 128], strides = [1, 1]} : vector<8x384xf32> to vector<8x128xf32>
    %547 = arith.addf %545, %546 : vector<8x128xf32>
    %548 = arith.negf %547 : vector<8x128xf32>
    %549 = math.exp %548 : vector<8x128xf32>
    %cst_136 = arith.constant 1.000000e+00 : f32
    %550 = vector.broadcast %cst_136 : f32 to vector<8x128xf32>
    %551 = arith.addf %550, %549 : vector<8x128xf32>
    %552 = arith.divf %550, %551 : vector<8x128xf32>
    %553 = vector.extract_strided_slice %536 {offsets = [0, 256], sizes = [8, 128], strides = [1, 1]} : vector<8x384xf32> to vector<8x128xf32>
    %554 = vector.extract_strided_slice %509 {offsets = [0, 256], sizes = [8, 128], strides = [1, 1]} : vector<8x384xf32> to vector<8x128xf32>
    %555 = arith.mulf %544, %554 : vector<8x128xf32>
    %556 = arith.addf %553, %555 : vector<8x128xf32>
    %557 = math.tanh %556 : vector<8x128xf32>
    %cst_137 = arith.constant 1.000000e+00 : f32
    %558 = vector.broadcast %cst_137 : f32 to vector<8x128xf32>
    %559 = arith.subf %558, %552 : vector<8x128xf32>
    %560 = arith.mulf %559, %557 : vector<8x128xf32>
    %561 = arith.mulf %552, %253 : vector<8x128xf32>
    %562 = arith.addf %560, %561 : vector<8x128xf32>
    %cst_138 = arith.constant dense<0.000000e+00> : vector<8x384xf32>
    %563 = tpu.matmul %562, %521, %cst_138 {dimension_numbers = #tpu.dot_dimension_numbers<[1], [0], [0], [1], [0, 0, 1, 1], [], []>} : vector<8x128xf32>, vector<128x384xf32>, vector<8x384xf32> -> vector<8x384xf32>
    %564 = arith.addf %563, %529 : vector<8x384xf32>
    %565 = vector.extract_strided_slice %564 {offsets = [0, 0], sizes = [8, 128], strides = [1, 1]} : vector<8x384xf32> to vector<8x128xf32>
    %566 = vector.extract_strided_slice %517 {offsets = [0, 0], sizes = [8, 128], strides = [1, 1]} : vector<8x384xf32> to vector<8x128xf32>
    %567 = arith.addf %565, %566 : vector<8x128xf32>
    %568 = arith.negf %567 : vector<8x128xf32>
    %569 = math.exp %568 : vector<8x128xf32>
    %cst_139 = arith.constant 1.000000e+00 : f32
    %570 = vector.broadcast %cst_139 : f32 to vector<8x128xf32>
    %571 = arith.addf %570, %569 : vector<8x128xf32>
    %572 = arith.divf %570, %571 : vector<8x128xf32>
    %573 = vector.extract_strided_slice %564 {offsets = [0, 128], sizes = [8, 128], strides = [1, 1]} : vector<8x384xf32> to vector<8x128xf32>
    %574 = vector.extract_strided_slice %517 {offsets = [0, 128], sizes = [8, 128], strides = [1, 1]} : vector<8x384xf32> to vector<8x128xf32>
    %575 = arith.addf %573, %574 : vector<8x128xf32>
    %576 = arith.negf %575 : vector<8x128xf32>
    %577 = math.exp %576 : vector<8x128xf32>
    %cst_140 = arith.constant 1.000000e+00 : f32
    %578 = vector.broadcast %cst_140 : f32 to vector<8x128xf32>
    %579 = arith.addf %578, %577 : vector<8x128xf32>
    %580 = arith.divf %578, %579 : vector<8x128xf32>
    %581 = vector.extract_strided_slice %564 {offsets = [0, 256], sizes = [8, 128], strides = [1, 1]} : vector<8x384xf32> to vector<8x128xf32>
    %582 = vector.extract_strided_slice %517 {offsets = [0, 256], sizes = [8, 128], strides = [1, 1]} : vector<8x384xf32> to vector<8x128xf32>
    %583 = arith.mulf %572, %582 : vector<8x128xf32>
    %584 = arith.addf %581, %583 : vector<8x128xf32>
    %585 = math.tanh %584 : vector<8x128xf32>
    %cst_141 = arith.constant 1.000000e+00 : f32
    %586 = vector.broadcast %cst_141 : f32 to vector<8x128xf32>
    %587 = arith.subf %586, %580 : vector<8x128xf32>
    %588 = arith.mulf %587, %585 : vector<8x128xf32>
    %589 = arith.mulf %580, %501 : vector<8x128xf32>
    %590 = arith.addf %588, %589 : vector<8x128xf32>
    %cst_142 = arith.constant dense<0.000000e+00> : vector<8x128xf32>
    %591 = tpu.matmul %590, %530, %cst_142 {dimension_numbers = #tpu.dot_dimension_numbers<[1], [0], [0], [1], [0, 0, 1, 1], [], []>} : vector<8x128xf32>, vector<128x128xf32>, vector<8x128xf32> -> vector<8x128xf32>
    %592 = arith.addf %591, %533 : vector<8x128xf32>
    %593 = arith.addf %592, %534 : vector<8x128xf32>
    %c0_143 = arith.constant 0 : index
    %c0_144 = arith.constant 0 : index
    %c0_145 = arith.constant 0 : index
    %594 = vector.load %arg12[%c0_143, %c0_144, %c0_145] : memref<3x8x128xf32, #tpu.memory_space<vmem>>, vector<1x8x128xf32>
    %595 = vector.shape_cast %594 : vector<1x8x128xf32> to vector<8x128xf32>
    %596 = vector.shape_cast %593 : vector<8x128xf32> to vector<1x8x128xf32>
    tpu.vector_store %arg12[%c0_143, %c0_144, %c0_145], %596 {strides = array<i32>} : memref<3x8x128xf32, #tpu.memory_space<vmem>>, vector<1x8x128xf32>,
    %cst_146 = arith.constant dense<0.000000e+00> : vector<8x384xf32>
    %597 = tpu.matmul %593, %519, %cst_146 {dimension_numbers = #tpu.dot_dimension_numbers<[1], [0], [0], [1], [0, 0, 1, 1], [], []>} : vector<8x128xf32>, vector<128x384xf32>, vector<8x384xf32> -> vector<8x384xf32>
    %598 = arith.addf %597, %525 : vector<8x384xf32>
    %599 = vector.extract_strided_slice %598 {offsets = [0, 0], sizes = [8, 128], strides = [1, 1]} : vector<8x384xf32> to vector<8x128xf32>
    %600 = vector.extract_strided_slice %509 {offsets = [0, 0], sizes = [8, 128], strides = [1, 1]} : vector<8x384xf32> to vector<8x128xf32>
    %601 = arith.addf %599, %600 : vector<8x128xf32>
    %602 = arith.negf %601 : vector<8x128xf32>
    %603 = math.exp %602 : vector<8x128xf32>
    %cst_147 = arith.constant 1.000000e+00 : f32
    %604 = vector.broadcast %cst_147 : f32 to vector<8x128xf32>
    %605 = arith.addf %604, %603 : vector<8x128xf32>
    %606 = arith.divf %604, %605 : vector<8x128xf32>
    %607 = vector.extract_strided_slice %598 {offsets = [0, 128], sizes = [8, 128], strides = [1, 1]} : vector<8x384xf32> to vector<8x128xf32>
    %608 = vector.extract_strided_slice %509 {offsets = [0, 128], sizes = [8, 128], strides = [1, 1]} : vector<8x384xf32> to vector<8x128xf32>
    %609 = arith.addf %607, %608 : vector<8x128xf32>
    %610 = arith.negf %609 : vector<8x128xf32>
    %611 = math.exp %610 : vector<8x128xf32>
    %cst_148 = arith.constant 1.000000e+00 : f32
    %612 = vector.broadcast %cst_148 : f32 to vector<8x128xf32>
    %613 = arith.addf %612, %611 : vector<8x128xf32>
    %614 = arith.divf %612, %613 : vector<8x128xf32>
    %615 = vector.extract_strided_slice %598 {offsets = [0, 256], sizes = [8, 128], strides = [1, 1]} : vector<8x384xf32> to vector<8x128xf32>
    %616 = vector.extract_strided_slice %509 {offsets = [0, 256], sizes = [8, 128], strides = [1, 1]} : vector<8x384xf32> to vector<8x128xf32>
    %617 = arith.mulf %606, %616 : vector<8x128xf32>
    %618 = arith.addf %615, %617 : vector<8x128xf32>
    %619 = math.tanh %618 : vector<8x128xf32>
    %cst_149 = arith.constant 1.000000e+00 : f32
    %620 = vector.broadcast %cst_149 : f32 to vector<8x128xf32>
    %621 = arith.subf %620, %614 : vector<8x128xf32>
    %622 = arith.mulf %621, %619 : vector<8x128xf32>
    %623 = arith.mulf %614, %253 : vector<8x128xf32>
    %624 = arith.addf %622, %623 : vector<8x128xf32>
    %cst_150 = arith.constant dense<0.000000e+00> : vector<8x384xf32>
    %625 = tpu.matmul %624, %521, %cst_150 {dimension_numbers = #tpu.dot_dimension_numbers<[1], [0], [0], [1], [0, 0, 1, 1], [], []>} : vector<8x128xf32>, vector<128x384xf32>, vector<8x384xf32> -> vector<8x384xf32>
    %626 = arith.addf %625, %529 : vector<8x384xf32>
    %627 = vector.extract_strided_slice %626 {offsets = [0, 0], sizes = [8, 128], strides = [1, 1]} : vector<8x384xf32> to vector<8x128xf32>
    %628 = vector.extract_strided_slice %517 {offsets = [0, 0], sizes = [8, 128], strides = [1, 1]} : vector<8x384xf32> to vector<8x128xf32>
    %629 = arith.addf %627, %628 : vector<8x128xf32>
    %630 = arith.negf %629 : vector<8x128xf32>
    %631 = math.exp %630 : vector<8x128xf32>
    %cst_151 = arith.constant 1.000000e+00 : f32
    %632 = vector.broadcast %cst_151 : f32 to vector<8x128xf32>
    %633 = arith.addf %632, %631 : vector<8x128xf32>
    %634 = arith.divf %632, %633 : vector<8x128xf32>
    %635 = vector.extract_strided_slice %626 {offsets = [0, 128], sizes = [8, 128], strides = [1, 1]} : vector<8x384xf32> to vector<8x128xf32>
    %636 = vector.extract_strided_slice %517 {offsets = [0, 128], sizes = [8, 128], strides = [1, 1]} : vector<8x384xf32> to vector<8x128xf32>
    %637 = arith.addf %635, %636 : vector<8x128xf32>
    %638 = arith.negf %637 : vector<8x128xf32>
    %639 = math.exp %638 : vector<8x128xf32>
    %cst_152 = arith.constant 1.000000e+00 : f32
    %640 = vector.broadcast %cst_152 : f32 to vector<8x128xf32>
    %641 = arith.addf %640, %639 : vector<8x128xf32>
    %642 = arith.divf %640, %641 : vector<8x128xf32>
    %643 = vector.extract_strided_slice %626 {offsets = [0, 256], sizes = [8, 128], strides = [1, 1]} : vector<8x384xf32> to vector<8x128xf32>
    %644 = vector.extract_strided_slice %517 {offsets = [0, 256], sizes = [8, 128], strides = [1, 1]} : vector<8x384xf32> to vector<8x128xf32>
    %645 = arith.mulf %634, %644 : vector<8x128xf32>
    %646 = arith.addf %643, %645 : vector<8x128xf32>
    %647 = math.tanh %646 : vector<8x128xf32>
    %cst_153 = arith.constant 1.000000e+00 : f32
    %648 = vector.broadcast %cst_153 : f32 to vector<8x128xf32>
    %649 = arith.subf %648, %642 : vector<8x128xf32>
    %650 = arith.mulf %649, %647 : vector<8x128xf32>
    %651 = arith.mulf %642, %501 : vector<8x128xf32>
    %652 = arith.addf %650, %651 : vector<8x128xf32>
    %cst_154 = arith.constant dense<0.000000e+00> : vector<8x128xf32>
    %653 = tpu.matmul %652, %530, %cst_154 {dimension_numbers = #tpu.dot_dimension_numbers<[1], [0], [0], [1], [0, 0, 1, 1], [], []>} : vector<8x128xf32>, vector<128x128xf32>, vector<8x128xf32> -> vector<8x128xf32>
    %654 = arith.addf %653, %533 : vector<8x128xf32>
    %655 = arith.addf %654, %593 : vector<8x128xf32>
    %c1_155 = arith.constant 1 : index
    %c0_156 = arith.constant 0 : index
    %c0_157 = arith.constant 0 : index
    %656 = vector.load %arg12[%c1_155, %c0_156, %c0_157] : memref<3x8x128xf32, #tpu.memory_space<vmem>>, vector<1x8x128xf32>
    %657 = vector.shape_cast %656 : vector<1x8x128xf32> to vector<8x128xf32>
    %658 = vector.shape_cast %655 : vector<8x128xf32> to vector<1x8x128xf32>
    tpu.vector_store %arg12[%c1_155, %c0_156, %c0_157], %658 {strides = array<i32>} : memref<3x8x128xf32, #tpu.memory_space<vmem>>, vector<1x8x128xf32>,
    %cst_158 = arith.constant dense<0.000000e+00> : vector<8x384xf32>
    %659 = tpu.matmul %655, %519, %cst_158 {dimension_numbers = #tpu.dot_dimension_numbers<[1], [0], [0], [1], [0, 0, 1, 1], [], []>} : vector<8x128xf32>, vector<128x384xf32>, vector<8x384xf32> -> vector<8x384xf32>
    %660 = arith.addf %659, %525 : vector<8x384xf32>
    %661 = vector.extract_strided_slice %660 {offsets = [0, 0], sizes = [8, 128], strides = [1, 1]} : vector<8x384xf32> to vector<8x128xf32>
    %662 = vector.extract_strided_slice %509 {offsets = [0, 0], sizes = [8, 128], strides = [1, 1]} : vector<8x384xf32> to vector<8x128xf32>
    %663 = arith.addf %661, %662 : vector<8x128xf32>
    %664 = arith.negf %663 : vector<8x128xf32>
    %665 = math.exp %664 : vector<8x128xf32>
    %cst_159 = arith.constant 1.000000e+00 : f32
    %666 = vector.broadcast %cst_159 : f32 to vector<8x128xf32>
    %667 = arith.addf %666, %665 : vector<8x128xf32>
    %668 = arith.divf %666, %667 : vector<8x128xf32>
    %669 = vector.extract_strided_slice %660 {offsets = [0, 128], sizes = [8, 128], strides = [1, 1]} : vector<8x384xf32> to vector<8x128xf32>
    %670 = vector.extract_strided_slice %509 {offsets = [0, 128], sizes = [8, 128], strides = [1, 1]} : vector<8x384xf32> to vector<8x128xf32>
    %671 = arith.addf %669, %670 : vector<8x128xf32>
    %672 = arith.negf %671 : vector<8x128xf32>
    %673 = math.exp %672 : vector<8x128xf32>
    %cst_160 = arith.constant 1.000000e+00 : f32
    %674 = vector.broadcast %cst_160 : f32 to vector<8x128xf32>
    %675 = arith.addf %674, %673 : vector<8x128xf32>
    %676 = arith.divf %674, %675 : vector<8x128xf32>
    %677 = vector.extract_strided_slice %660 {offsets = [0, 256], sizes = [8, 128], strides = [1, 1]} : vector<8x384xf32> to vector<8x128xf32>
    %678 = vector.extract_strided_slice %509 {offsets = [0, 256], sizes = [8, 128], strides = [1, 1]} : vector<8x384xf32> to vector<8x128xf32>
    %679 = arith.mulf %668, %678 : vector<8x128xf32>
    %680 = arith.addf %677, %679 : vector<8x128xf32>
    %681 = math.tanh %680 : vector<8x128xf32>
    %cst_161 = arith.constant 1.000000e+00 : f32
    %682 = vector.broadcast %cst_161 : f32 to vector<8x128xf32>
    %683 = arith.subf %682, %676 : vector<8x128xf32>
    %684 = arith.mulf %683, %681 : vector<8x128xf32>
    %685 = arith.mulf %676, %253 : vector<8x128xf32>
    %686 = arith.addf %684, %685 : vector<8x128xf32>
    %cst_162 = arith.constant dense<0.000000e+00> : vector<8x384xf32>
    %687 = tpu.matmul %686, %521, %cst_162 {dimension_numbers = #tpu.dot_dimension_numbers<[1], [0], [0], [1], [0, 0, 1, 1], [], []>} : vector<8x128xf32>, vector<128x384xf32>, vector<8x384xf32> -> vector<8x384xf32>
    %688 = arith.addf %687, %529 : vector<8x384xf32>
    %689 = vector.extract_strided_slice %688 {offsets = [0, 0], sizes = [8, 128], strides = [1, 1]} : vector<8x384xf32> to vector<8x128xf32>
    %690 = vector.extract_strided_slice %517 {offsets = [0, 0], sizes = [8, 128], strides = [1, 1]} : vector<8x384xf32> to vector<8x128xf32>
    %691 = arith.addf %689, %690 : vector<8x128xf32>
    %692 = arith.negf %691 : vector<8x128xf32>
    %693 = math.exp %692 : vector<8x128xf32>
    %cst_163 = arith.constant 1.000000e+00 : f32
    %694 = vector.broadcast %cst_163 : f32 to vector<8x128xf32>
    %695 = arith.addf %694, %693 : vector<8x128xf32>
    %696 = arith.divf %694, %695 : vector<8x128xf32>
    %697 = vector.extract_strided_slice %688 {offsets = [0, 128], sizes = [8, 128], strides = [1, 1]} : vector<8x384xf32> to vector<8x128xf32>
    %698 = vector.extract_strided_slice %517 {offsets = [0, 128], sizes = [8, 128], strides = [1, 1]} : vector<8x384xf32> to vector<8x128xf32>
    %699 = arith.addf %697, %698 : vector<8x128xf32>
    %700 = arith.negf %699 : vector<8x128xf32>
    %701 = math.exp %700 : vector<8x128xf32>
    %cst_164 = arith.constant 1.000000e+00 : f32
    %702 = vector.broadcast %cst_164 : f32 to vector<8x128xf32>
    %703 = arith.addf %702, %701 : vector<8x128xf32>
    %704 = arith.divf %702, %703 : vector<8x128xf32>
    %705 = vector.extract_strided_slice %688 {offsets = [0, 256], sizes = [8, 128], strides = [1, 1]} : vector<8x384xf32> to vector<8x128xf32>
    %706 = vector.extract_strided_slice %517 {offsets = [0, 256], sizes = [8, 128], strides = [1, 1]} : vector<8x384xf32> to vector<8x128xf32>
    %707 = arith.mulf %696, %706 : vector<8x128xf32>
    %708 = arith.addf %705, %707 : vector<8x128xf32>
    %709 = math.tanh %708 : vector<8x128xf32>
    %cst_165 = arith.constant 1.000000e+00 : f32
    %710 = vector.broadcast %cst_165 : f32 to vector<8x128xf32>
    %711 = arith.subf %710, %704 : vector<8x128xf32>
    %712 = arith.mulf %711, %709 : vector<8x128xf32>
    %713 = arith.mulf %704, %501 : vector<8x128xf32>
    %714 = arith.addf %712, %713 : vector<8x128xf32>
    %cst_166 = arith.constant dense<0.000000e+00> : vector<8x128xf32>
    %715 = tpu.matmul %714, %530, %cst_166 {dimension_numbers = #tpu.dot_dimension_numbers<[1], [0], [0], [1], [0, 0, 1, 1], [], []>} : vector<8x128xf32>, vector<128x128xf32>, vector<8x128xf32> -> vector<8x128xf32>
    %716 = arith.addf %715, %533 : vector<8x128xf32>
    %717 = arith.addf %716, %655 : vector<8x128xf32>
    %c2 = arith.constant 2 : index
    %c0_167 = arith.constant 0 : index
    %c0_168 = arith.constant 0 : index
    %718 = vector.load %arg12[%c2, %c0_167, %c0_168] : memref<3x8x128xf32, #tpu.memory_space<vmem>>, vector<1x8x128xf32>
    %719 = vector.shape_cast %718 : vector<1x8x128xf32> to vector<8x128xf32>
    %720 = vector.shape_cast %717 : vector<8x128xf32> to vector<1x8x128xf32>
    tpu.vector_store %arg12[%c2, %c0_167, %c0_168], %720 {strides = array<i32>} : memref<3x8x128xf32, #tpu.memory_space<vmem>>, vector<1x8x128xf32>,
    return
  }
}

</mosaic_0001>

<llo_original>
// kernel: seq2seq_forward.1
$region0: #{seq2seq_forward.1}
  #allocation0 [shape = 'u32[]', space=smem, size = 0x4, offset = 0x4, fixed_abs, tag = 'smem constant byte address 0x4 - core index']
  #allocation1 [shape = 'u32[144,128]{1,0:T(1,128)}', space=vmem, size = 0x12000, scoped, tag = 'internal scratch']
  #allocation2 [shape = 'f32[64,128]{1,0:T(8,128)}', space=vmem, size = 0x8000, scoped, tag = 'scratch operand']
  %s0 = inlined_call_operand.vmem [shape: f32[64,128], index: 0, kind: input, shape index: {}]
  %s1 = inlined_call_operand.vmem [shape: f32[8,128], index: 1, kind: input, shape index: {}]
  %s2 = inlined_call_operand.hbm [shape: f32[2,128,384], index: 2, kind: input, shape index: {}]
  %s3 = inlined_call_operand.hbm [shape: f32[2,128,384], index: 3, kind: input, shape index: {}]
  %s4 = inlined_call_operand.vmem [shape: f32[2,1,384], index: 4, kind: input, shape index: {}]
  %s5 = inlined_call_operand.vmem [shape: f32[2,1,384], index: 5, kind: input, shape index: {}]
  %s6 = inlined_call_operand.hbm [shape: f32[2,128,384], index: 6, kind: input, shape index: {}]
  %s7 = inlined_call_operand.hbm [shape: f32[2,128,384], index: 7, kind: input, shape index: {}]
  %s8 = inlined_call_operand.vmem [shape: f32[2,1,384], index: 8, kind: input, shape index: {}]
  %s9 = inlined_call_operand.vmem [shape: f32[2,1,384], index: 9, kind: input, shape index: {}]
  %s10 = inlined_call_operand.vmem [shape: f32[128,128], index: 10, kind: input, shape index: {}]
  %s11 = inlined_call_operand.hbm [shape: f32[1,128], index: 11, kind: input, shape index: {}]
  %s12 = inlined_call_operand.vmem [shape: f32[3,8,128], index: 12, kind: output, shape index: {}]
  %s13 = sld [smem:[#allocation0]]
  $region78: #{seq2seq_forward.1} parent=0
    _
  %s15 = ssub.s32 1, %s13
  %s16 = scalar_select 0, %s15, %s13
  $region1: #{seq2seq_forward.1} parent=0
    #allocation3 [shape = 'u8[393216]{0}', space=vmem, size = 0x60000, scoped, tag = 'input window, operand 2, single buffered']
    #allocation4 [shape = 's32[1]{0}', space=sflag, size = 0x4, scoped, tag = 'scoped memory for seq2seq_forward.1']
    #allocation5 [shape = 'u8[393216]{0}', space=vmem, size = 0x60000, scoped, tag = 'input window, operand 3, single buffered']
    #allocation6 [shape = 's32[1]{0}', space=sflag, size = 0x4, scoped, tag = 'scoped memory for seq2seq_forward.1']
    #allocation7 [shape = 'u8[393216]{0}', space=vmem, size = 0x60000, scoped, tag = 'input window, operand 6, single buffered']
    #allocation8 [shape = 'u8[393216]{0}', space=vmem, size = 0x60000, scoped, tag = 'input window, operand 7, single buffered']
    #allocation9 [shape = 's32[1]{0}', space=sflag, size = 0x4, scoped, tag = 'scoped memory for seq2seq_forward.1']
    #allocation10 [shape = 'u8[512]{0}', space=vmem, size = 0x400, scoped, tag = 'input window, operand 11, single buffered']
    %17 = vsyncpa [#allocation4], 0
    %18 = vsyncpa [#allocation6], 0
    %19 = vsyncpa [#allocation9], 0
    // Predicated region
    $region2: #{seq2seq_forward.1} parent=1 // pred_check
      _
    $region3: #{seq2seq_forward.1} parent=1 // pred_check_branch
      %21 = sbr.rel (0) target = $region5
    $region4: #{seq2seq_forward.1} parent=1 // pred_region
      _
    $region5: #{seq2seq_forward.1} parent=1 // pred_fallthru
      _
    // Predicated region
    $region6: #{seq2seq_forward.1} parent=1 // pred_check
      _
    $region7: #{seq2seq_forward.1} parent=1 // pred_check_branch
      %23 = sbr.rel (0) target = $region9
    $region8: #{seq2seq_forward.1} parent=1 // pred_region
      _
    $region9: #{seq2seq_forward.1} parent=1 // pred_fallthru
      _
    // Predicated region
    $region10: #{seq2seq_forward.1} parent=1 // pred_check
      _
    $region11: #{seq2seq_forward.1} parent=1 // pred_check_branch
      %25 = sbr.rel (0) target = $region13
    $region12: #{seq2seq_forward.1} parent=1 // pred_region
      %s27 = ssub.s32 12288, 12288
      %28 = vsyncadd [#allocation4], %s27
      %s29 = sshll.u32 [#allocation3], 4
      %s30 = int_to_ptr.vmem [resolvable:$true] %s29
      %35 = dma.hbm_to_vmem [thread:$0]  %s2, 12288, %s30, [#allocation4], 384, 384, 24
    $region13: #{seq2seq_forward.1} parent=1 // pred_fallthru
      _
    // Predicated region
    $region14: #{seq2seq_forward.1} parent=1 // pred_check
      _
    $region15: #{seq2seq_forward.1} parent=1 // pred_check_branch
      %37 = sbr.rel (0) target = $region17
    $region16: #{seq2seq_forward.1} parent=1 // pred_region
      %s39 = ssub.s32 12288, 12288
      %40 = vsyncadd [#allocation6], %s39
      %s41 = sshll.u32 [#allocation5], 4
      %s42 = int_to_ptr.vmem [resolvable:$true] %s41
      %47 = dma.hbm_to_vmem [thread:$0]  %s3, 12288, %s42, [#allocation6], 384, 384, 24
    $region17: #{seq2seq_forward.1} parent=1 // pred_fallthru
      _
    // Predicated region
    $region18: #{seq2seq_forward.1} parent=1 // pred_check
      _
    $region19: #{seq2seq_forward.1} parent=1 // pred_check_branch
      %49 = sbr.rel (0) target = $region21
    $region20: #{seq2seq_forward.1} parent=1 // pred_region
      _
    $region21: #{seq2seq_forward.1} parent=1 // pred_fallthru
      _
    // Predicated region
    $region22: #{seq2seq_forward.1} parent=1 // pred_check
      _
    $region23: #{seq2seq_forward.1} parent=1 // pred_check_branch
      %51 = sbr.rel (0) target = $region25
    $region24: #{seq2seq_forward.1} parent=1 // pred_region
      _
    $region25: #{seq2seq_forward.1} parent=1 // pred_fallthru
      _
    // Predicated region
    $region26: #{seq2seq_forward.1} parent=1 // pred_check
      _
    $region27: #{seq2seq_forward.1} parent=1 // pred_check_branch
      %53 = sbr.rel (0) target = $region29
    $region28: #{seq2seq_forward.1} parent=1 // pred_region
      %s55 = ssub.s32 12288, 12288
      %56 = vsyncadd [#allocation6], %s55
      %s57 = sshll.u32 [#allocation7], 4
      %s58 = int_to_ptr.vmem [resolvable:$true] %s57
      %63 = dma.hbm_to_vmem [thread:$0]  %s6, 12288, %s58, [#allocation6], 384, 384, 24
    $region29: #{seq2seq_forward.1} parent=1 // pred_fallthru
      _
    // Predicated region
    $region30: #{seq2seq_forward.1} parent=1 // pred_check
      _
    $region31: #{seq2seq_forward.1} parent=1 // pred_check_branch
      %65 = sbr.rel (0) target = $region33
    $region32: #{seq2seq_forward.1} parent=1 // pred_region
      %s67 = ssub.s32 12288, 12288
      %68 = vsyncadd [#allocation9], %s67
      %s69 = sshll.u32 [#allocation8], 4
      %s70 = int_to_ptr.vmem [resolvable:$true] %s69
      %75 = dma.hbm_to_vmem [thread:$0]  %s7, 12288, %s70, [#allocation9], 384, 384, 24
    $region33: #{seq2seq_forward.1} parent=1 // pred_fallthru
      _
    // Predicated region
    $region34: #{seq2seq_forward.1} parent=1 // pred_check
      _
    $region35: #{seq2seq_forward.1} parent=1 // pred_check_branch
      %77 = sbr.rel (0) target = $region37
    $region36: #{seq2seq_forward.1} parent=1 // pred_region
      _
    $region37: #{seq2seq_forward.1} parent=1 // pred_fallthru
      _
    // Predicated region
    $region38: #{seq2seq_forward.1} parent=1 // pred_check
      _
    $region39: #{seq2seq_forward.1} parent=1 // pred_check_branch
      %79 = sbr.rel (0) target = $region41
    $region40: #{seq2seq_forward.1} parent=1 // pred_region
      _
    $region41: #{seq2seq_forward.1} parent=1 // pred_fallthru
      _
    // Predicated region
    $region42: #{seq2seq_forward.1} parent=1 // pred_check
      _
    $region43: #{seq2seq_forward.1} parent=1 // pred_check_branch
      %81 = sbr.rel (0) target = $region45
    $region44: #{seq2seq_forward.1} parent=1 // pred_region
      _
    $region45: #{seq2seq_forward.1} parent=1 // pred_fallthru
      _
    // Predicated region
    $region46: #{seq2seq_forward.1} parent=1 // pred_check
      _
    $region47: #{seq2seq_forward.1} parent=1 // pred_check_branch
      %83 = sbr.rel (0) target = $region49
    $region48: #{seq2seq_forward.1} parent=1 // pred_region
      %s85 = ssub.s32 16, 16
      %86 = vsyncadd [#allocation9], %s85
      %s88 = sshll.u32 [#allocation10], 4
      %s89 = int_to_ptr.vmem [resolvable:$true] %s88
      %91 = dma.hbm_to_vmem [thread:$0]  %s11, 16, %s89, [#allocation9]
    $region49: #{seq2seq_forward.1} parent=1 // pred_fallthru
      _
    // Predicated region
    $region50: #{seq2seq_forward.1} parent=1 // pred_check
      _
    $region51: #{seq2seq_forward.1} parent=1 // pred_check_branch
      %93 = sbr.rel (0) target = $region53
    $region52: #{seq2seq_forward.1} parent=1 // pred_region
      %94 = dma.done [#allocation4], 12288
    $region53: #{seq2seq_forward.1} parent=1 // pred_fallthru
      _
    // Predicated region
    $region54: #{seq2seq_forward.1} parent=1 // pred_check
      _
    $region55: #{seq2seq_forward.1} parent=1 // pred_check_branch
      %96 = sbr.rel (0) target = $region57
    $region56: #{seq2seq_forward.1} parent=1 // pred_region
      %97 = dma.done [#allocation6], 12288
    $region57: #{seq2seq_forward.1} parent=1 // pred_fallthru
      _
    // Predicated region
    $region58: #{seq2seq_forward.1} parent=1 // pred_check
      _
    $region59: #{seq2seq_forward.1} parent=1 // pred_check_branch
      %99 = sbr.rel (0) target = $region61
    $region60: #{seq2seq_forward.1} parent=1 // pred_region
      %100 = dma.done [#allocation6], 12288
    $region61: #{seq2seq_forward.1} parent=1 // pred_fallthru
      _
    // Predicated region
    $region62: #{seq2seq_forward.1} parent=1 // pred_check
      _
    $region63: #{seq2seq_forward.1} parent=1 // pred_check_branch
      %102 = sbr.rel (0) target = $region65
    $region64: #{seq2seq_forward.1} parent=1 // pred_region
      %103 = dma.done [#allocation9], 12288
    $region65: #{seq2seq_forward.1} parent=1 // pred_fallthru
      _
    // Predicated region
    $region66: #{seq2seq_forward.1} parent=1 // pred_check
      _
    $region67: #{seq2seq_forward.1} parent=1 // pred_check_branch
      %105 = sbr.rel (0) target = $region69
    $region68: #{seq2seq_forward.1} parent=1 // pred_region
      %106 = dma.done [#allocation9], 16
    $region69: #{seq2seq_forward.1} parent=1 // pred_fallthru
      _
    %v107 = vld [vmem:[%s0] sm:$0xff]
    %v108 = vld [vmem:[%s0 + $0x8] sm:$0xff]
    %v109 = vld [vmem:[%s0 + $0x10] sm:$0xff]
    %v110 = vld [vmem:[%s0 + $0x18] sm:$0xff]
    %v111 = vld [vmem:[%s0 + $0x20] sm:$0xff]
    %v112 = vld [vmem:[%s0 + $0x28] sm:$0xff]
    %v113 = vld [vmem:[%s0 + $0x30] sm:$0xff]
    %v114 = vld [vmem:[%s0 + $0x38] sm:$0xff]
    %v115 = vld [vmem:[#allocation5] sm:$0xff]
    %v116 = vld [vmem:[#allocation5 + $0x8] sm:$0xff]
    %v117 = vld [vmem:[#allocation5 + $0x10] sm:$0xff]
    %v118 = vld [vmem:[#allocation5 + $0x18] sm:$0xff]
    %v119 = vld [vmem:[#allocation5 + $0x20] sm:$0xff]
    %v120 = vld [vmem:[#allocation5 + $0x28] sm:$0xff]
    %v121 = vld [vmem:[#allocation5 + $0x30] sm:$0xff]
    %v122 = vld [vmem:[#allocation5 + $0x38] sm:$0xff]
    %v123 = vld [vmem:[#allocation5 + $0x40] sm:$0xff]
    %v124 = vld [vmem:[#allocation5 + $0x48] sm:$0xff]
    %v125 = vld [vmem:[#allocation5 + $0x50] sm:$0xff]
    %v126 = vld [vmem:[#allocation5 + $0x58] sm:$0xff]
    %v127 = vld [vmem:[#allocation5 + $0x60] sm:$0xff]
    %v128 = vld [vmem:[#allocation5 + $0x68] sm:$0xff]
    %v129 = vld [vmem:[#allocation5 + $0x70] sm:$0xff]
    %v130 = vld [vmem:[#allocation5 + $0x78] sm:$0xff]
    %v131 = vld [vmem:[#allocation5 + $0x80] sm:$0xff]
    %v132 = vld [vmem:[#allocation5 + $0x88] sm:$0xff]
    %v133 = vld [vmem:[#allocation5 + $0x90] sm:$0xff]
    %v134 = vld [vmem:[#allocation5 + $0x98] sm:$0xff]
    %v135 = vld [vmem:[#allocation5 + $0xa0] sm:$0xff]
    %v136 = vld [vmem:[#allocation5 + $0xa8] sm:$0xff]
    %v137 = vld [vmem:[#allocation5 + $0xb0] sm:$0xff]
    %v138 = vld [vmem:[#allocation5 + $0xb8] sm:$0xff]
    %v139 = vld [vmem:[#allocation5 + $0xc0] sm:$0xff]
    %v140 = vld [vmem:[#allocation5 + $0xc8] sm:$0xff]
    %v141 = vld [vmem:[#allocation5 + $0xd0] sm:$0xff]
    %v142 = vld [vmem:[#allocation5 + $0xd8] sm:$0xff]
    %v143 = vld [vmem:[#allocation5 + $0xe0] sm:$0xff]
    %v144 = vld [vmem:[#allocation5 + $0xe8] sm:$0xff]
    %v145 = vld [vmem:[#allocation5 + $0xf0] sm:$0xff]
    %v146 = vld [vmem:[#allocation5 + $0xf8] sm:$0xff]
    %v147 = vld [vmem:[#allocation5 + $0x100] sm:$0xff]
    %v148 = vld [vmem:[#allocation5 + $0x108] sm:$0xff]
    %v149 = vld [vmem:[#allocation5 + $0x110] sm:$0xff]
    %v150 = vld [vmem:[#allocation5 + $0x118] sm:$0xff]
    %v151 = vld [vmem:[#allocation5 + $0x120] sm:$0xff]
    %v152 = vld [vmem:[#allocation5 + $0x128] sm:$0xff]
    %v153 = vld [vmem:[#allocation5 + $0x130] sm:$0xff]
    %v154 = vld [vmem:[#allocation5 + $0x138] sm:$0xff]
    %v155 = vld [vmem:[#allocation5 + $0x140] sm:$0xff]
    %v156 = vld [vmem:[#allocation5 + $0x148] sm:$0xff]
    %v157 = vld [vmem:[#allocation5 + $0x150] sm:$0xff]
    %v158 = vld [vmem:[#allocation5 + $0x158] sm:$0xff]
    %v159 = vld [vmem:[#allocation5 + $0x160] sm:$0xff]
    %v160 = vld [vmem:[#allocation5 + $0x168] sm:$0xff]
    %v161 = vld [vmem:[#allocation5 + $0x170] sm:$0xff]
    %v162 = vld [vmem:[#allocation5 + $0x178] sm:$0xff]
    %v163 = vld [vmem:[%s5] sm:$0x7]
    %v165 = vlaneseq
    %v166 = vshrl.u32 %v165, 7
    %v167 = vsub.s32 0, %v166
    %v168 = vrot.slane %v163, %v167
    %v169 = vlaneseq
    %v170 = vshrl.u32 %v169, 7
    %v171 = vsub.s32 1, %v170
    %v172 = vrot.slane %v163, %v171
    %v173 = vlaneseq
    %v174 = vshrl.u32 %v173, 7
    %v175 = vsub.s32 2, %v174
    %v176 = vrot.slane %v163, %v175
    %v180 = vld [vmem:[#allocation3] sm:$0xff]
    %v181 = vld [vmem:[#allocation3 + $0x8] sm:$0xff]
    %v182 = vld [vmem:[#allocation3 + $0x10] sm:$0xff]
    %v183 = vld [vmem:[#allocation3 + $0x18] sm:$0xff]
    %v184 = vld [vmem:[#allocation3 + $0x20] sm:$0xff]
    %v185 = vld [vmem:[#allocation3 + $0x28] sm:$0xff]
    %v186 = vld [vmem:[#allocation3 + $0x30] sm:$0xff]
    %v187 = vld [vmem:[#allocation3 + $0x38] sm:$0xff]
    %v188 = vld [vmem:[#allocation3 + $0x40] sm:$0xff]
    %v189 = vld [vmem:[#allocation3 + $0x48] sm:$0xff]
    %v190 = vld [vmem:[#allocation3 + $0x50] sm:$0xff]
    %v191 = vld [vmem:[#allocation3 + $0x58] sm:$0xff]
    %v192 = vld [vmem:[#allocation3 + $0x60] sm:$0xff]
    %v193 = vld [vmem:[#allocation3 + $0x68] sm:$0xff]
    %v194 = vld [vmem:[#allocation3 + $0x70] sm:$0xff]
    %v195 = vld [vmem:[#allocation3 + $0x78] sm:$0xff]
    %v196 = vld [vmem:[#allocation3 + $0x80] sm:$0xff]
    %v197 = vld [vmem:[#allocation3 + $0x88] sm:$0xff]
    %v198 = vld [vmem:[#allocation3 + $0x90] sm:$0xff]
    %v199 = vld [vmem:[#allocation3 + $0x98] sm:$0xff]
    %v200 = vld [vmem:[#allocation3 + $0xa0] sm:$0xff]
    %v201 = vld [vmem:[#allocation3 + $0xa8] sm:$0xff]
    %v202 = vld [vmem:[#allocation3 + $0xb0] sm:$0xff]
    %v203 = vld [vmem:[#allocation3 + $0xb8] sm:$0xff]
    %v204 = vld [vmem:[#allocation3 + $0xc0] sm:$0xff]
    %v205 = vld [vmem:[#allocation3 + $0xc8] sm:$0xff]
    %v206 = vld [vmem:[#allocation3 + $0xd0] sm:$0xff]
    %v207 = vld [vmem:[#allocation3 + $0xd8] sm:$0xff]
    %v208 = vld [vmem:[#allocation3 + $0xe0] sm:$0xff]
    %v209 = vld [vmem:[#allocation3 + $0xe8] sm:$0xff]
    %v210 = vld [vmem:[#allocation3 + $0xf0] sm:$0xff]
    %v211 = vld [vmem:[#allocation3 + $0xf8] sm:$0xff]
    %v212 = vld [vmem:[#allocation3 + $0x100] sm:$0xff]
    %v213 = vld [vmem:[#allocation3 + $0x108] sm:$0xff]
    %v214 = vld [vmem:[#allocation3 + $0x110] sm:$0xff]
    %v215 = vld [vmem:[#allocation3 + $0x118] sm:$0xff]
    %v216 = vld [vmem:[#allocation3 + $0x120] sm:$0xff]
    %v217 = vld [vmem:[#allocation3 + $0x128] sm:$0xff]
    %v218 = vld [vmem:[#allocation3 + $0x130] sm:$0xff]
    %v219 = vld [vmem:[#allocation3 + $0x138] sm:$0xff]
    %v220 = vld [vmem:[#allocation3 + $0x140] sm:$0xff]
    %v221 = vld [vmem:[#allocation3 + $0x148] sm:$0xff]
    %v222 = vld [vmem:[#allocation3 + $0x150] sm:$0xff]
    %v223 = vld [vmem:[#allocation3 + $0x158] sm:$0xff]
    %v224 = vld [vmem:[#allocation3 + $0x160] sm:$0xff]
    %v225 = vld [vmem:[#allocation3 + $0x168] sm:$0xff]
    %v226 = vld [vmem:[#allocation3 + $0x170] sm:$0xff]
    %v227 = vld [vmem:[#allocation3 + $0x178] sm:$0xff]
    %v228 = vld [vmem:[%s4] sm:$0x7]
    %v230 = vlaneseq
    %v231 = vshrl.u32 %v230, 7
    %v232 = vsub.s32 0, %v231
    %v233 = vrot.slane %v228, %v232
    %v234 = vlaneseq
    %v235 = vshrl.u32 %v234, 7
    %v236 = vsub.s32 1, %v235
    %v237 = vrot.slane %v228, %v236
    %v238 = vlaneseq
    %v239 = vshrl.u32 %v238, 7
    %v240 = vsub.s32 2, %v239
    %v241 = vrot.slane %v228, %v240
    %245 = vmatprep.subr.mxu0 %v181
    %246 = vmatpush1.msra.mxu0 %v180
    %247 = vmatprep.subr.mxu0 %v184
    %248 = vmatpush1.msra.mxu0 %v183
    %249 = vmatprep.subr.mxu0 %v187
    %250 = vmatpush1.msra.mxu0 %v186
    %251 = vmatprep.subr.mxu0 %v190
    %252 = vmatpush1.msra.mxu0 %v189
    %253 = vmatprep.subr.mxu0 %v193
    %254 = vmatpush1.msra.mxu0 %v192
    %255 = vmatprep.subr.mxu0 %v196
    %256 = vmatpush1.msra.mxu0 %v195
    %257 = vmatprep.subr.mxu0 %v199
    %258 = vmatpush1.msra.mxu0 %v198
    %259 = vmatprep.subr.mxu0 %v202
    %260 = vmatpush1.msra.mxu0 %v201
    %261 = vmatprep.subr.mxu0 %v205
    %262 = vmatpush1.msra.mxu0 %v204
    %263 = vmatprep.subr.mxu0 %v208
    %264 = vmatpush1.msra.mxu0 %v207
    %265 = vmatprep.subr.mxu0 %v211
    %266 = vmatpush1.msra.mxu0 %v210
    %267 = vmatprep.subr.mxu0 %v214
    %268 = vmatpush1.msra.mxu0 %v213
    %269 = vmatprep.subr.mxu0 %v217
    %270 = vmatpush1.msra.mxu0 %v216
    %271 = vmatprep.subr.mxu0 %v220
    %272 = vmatpush1.msra.mxu0 %v219
    %273 = vmatprep.subr.mxu0 %v223
    %274 = vmatpush1.msra.mxu0 %v222
    %275 = vmatprep.subr.mxu0 %v226
    %276 = vmatpush1.msra.mxu0 %v225
    %277 = vmatprep.subr.mxu0 0.0
    %278 = vmatpush1.msra.mxu0 0.0
    %279 = vmatprep.subr.mxu0 0.0
    %280 = vmatpush1.msra.mxu0 0.0
    %281 = vmatprep.subr.mxu0 0.0
    %282 = vmatpush1.msra.mxu0 0.0
    %283 = vmatprep.subr.mxu0 0.0
    %284 = vmatpush1.msra.mxu0 0.0
    %285 = vmatprep.subr.mxu0 0.0
    %286 = vmatpush1.msra.mxu0 0.0
    %287 = vmatprep.subr.mxu0 0.0
    %288 = vmatpush1.msra.mxu0 0.0
    %289 = vmatprep.subr.mxu0 0.0
    %290 = vmatpush1.msra.mxu0 0.0
    %291 = vmatprep.subr.mxu0 0.0
    %292 = vmatpush1.msra.mxu0 0.0
    %293 = vmatprep.subr.mxu0 0.0
    %294 = vmatpush1.msra.mxu0 0.0
    %295 = vmatprep.subr.mxu0 0.0
    %296 = vmatpush1.msra.mxu0 0.0
    %297 = vmatprep.subr.mxu0 0.0
    %298 = vmatpush1.msra.mxu0 0.0
    %299 = vmatprep.subr.mxu0 0.0
    %300 = vmatpush1.msra.mxu0 0.0
    %301 = vmatprep.subr.mxu0 0.0
    %302 = vmatpush1.msra.mxu0 0.0
    %303 = vmatprep.subr.mxu0 0.0
    %304 = vmatpush1.msra.mxu0 0.0
    %305 = vmatprep.subr.mxu0 0.0
    %306 = vmatpush1.msra.mxu0 0.0
    %307 = vmatprep.subr.mxu0 0.0
    %308 = vmatpush1.msra.mxu0 0.0
    %309 = vmatprep.mubr.f32.mxu0 0.0
    %310 = vmatmul.mubr.f32.gmra.mrb[0].mxu0 %v107
    %v311 = vpop.f32.mrb[0].mxu0
    %v312 = vadd.f32 %v233, %v311
    %v313 = vpop.f32.mrb[0].mxu0
    %v314 = vadd.f32 %v237, %v313
    %315 = vmatprep.mubr.f32.mxu0 0.0
    %316 = vmatmul.mubr.f32.gmra.mrb[0].mxu0 %v108
    %v317 = vpop.f32.mrb[0].mxu0
    %v318 = vadd.f32 %v233, %v317
    %v319 = vpop.f32.mrb[0].mxu0
    %v320 = vadd.f32 %v237, %v319
    %321 = vmatprep.mubr.f32.mxu0 0.0
    %322 = vmatmul.mubr.f32.gmra.mrb[0].mxu0 %v109
    %v323 = vpop.f32.mrb[0].mxu0
    %v324 = vadd.f32 %v233, %v323
    %v325 = vpop.f32.mrb[0].mxu0
    %v326 = vadd.f32 %v237, %v325
    %327 = vmatprep.mubr.f32.mxu0 0.0
    %328 = vmatmul.mubr.f32.gmra.mrb[0].mxu0 %v110
    %v329 = vpop.f32.mrb[0].mxu0
    %v330 = vadd.f32 %v233, %v329
    %v331 = vpop.f32.mrb[0].mxu0
    %v332 = vadd.f32 %v237, %v331
    %333 = vmatprep.mubr.f32.mxu0 0.0
    %334 = vmatmul.mubr.f32.gmra.mrb[0].mxu0 %v111
    %v335 = vpop.f32.mrb[0].mxu0
    %v336 = vadd.f32 %v233, %v335
    %v337 = vpop.f32.mrb[0].mxu0
    %v338 = vadd.f32 %v237, %v337
    %339 = vmatprep.mubr.f32.mxu0 0.0
    %340 = vmatmul.mubr.f32.gmra.mrb[0].mxu0 %v112
    %v341 = vpop.f32.mrb[0].mxu0
    %v342 = vadd.f32 %v233, %v341
    %v343 = vpop.f32.mrb[0].mxu0
    %v344 = vadd.f32 %v237, %v343
    %345 = vmatprep.mubr.f32.mxu0 0.0
    %346 = vmatmul.mubr.f32.gmra.mrb[0].mxu0 %v113
    %v347 = vpop.f32.mrb[0].mxu0
    %v348 = vadd.f32 %v233, %v347
    %v349 = vpop.f32.mrb[0].mxu0
    %v350 = vadd.f32 %v237, %v349
    %351 = vmatprep.mubr.f32.mxu0 0.0
    %352 = vmatmul.mubr.f32.gmra.mrb[0].mxu0 %v114
    %v353 = vpop.f32.mrb[0].mxu0
    %v354 = vadd.f32 %v233, %v353
    %v355 = vpop.f32.mrb[0].mxu0
    %v356 = vadd.f32 %v237, %v355
    %357 = vdwg.mxu0
    %358 = vmatprep.subr.mxu0 0.0
    %359 = vmatpush1.msra.mxu0 %v182
    %360 = vmatprep.subr.mxu0 0.0
    %361 = vmatpush1.msra.mxu0 %v185
    %362 = vmatprep.subr.mxu0 0.0
    %363 = vmatpush1.msra.mxu0 %v188
    %364 = vmatprep.subr.mxu0 0.0
    %365 = vmatpush1.msra.mxu0 %v191
    %366 = vmatprep.subr.mxu0 0.0
    %367 = vmatpush1.msra.mxu0 %v194
    %368 = vmatprep.subr.mxu0 0.0
    %369 = vmatpush1.msra.mxu0 %v197
    %370 = vmatprep.subr.mxu0 0.0
    %371 = vmatpush1.msra.mxu0 %v200
    %372 = vmatprep.subr.mxu0 0.0
    %373 = vmatpush1.msra.mxu0 %v203
    %374 = vmatprep.subr.mxu0 0.0
    %375 = vmatpush1.msra.mxu0 %v206
    %376 = vmatprep.subr.mxu0 0.0
    %377 = vmatpush1.msra.mxu0 %v209
    %378 = vmatprep.subr.mxu0 0.0
    %379 = vmatpush1.msra.mxu0 %v212
    %380 = vmatprep.subr.mxu0 0.0
    %381 = vmatpush1.msra.mxu0 %v215
    %382 = vmatprep.subr.mxu0 0.0
    %383 = vmatpush1.msra.mxu0 %v218
    %384 = vmatprep.subr.mxu0 0.0
    %385 = vmatpush1.msra.mxu0 %v221
    %386 = vmatprep.subr.mxu0 0.0
    %387 = vmatpush1.msra.mxu0 %v224
    %388 = vmatprep.subr.mxu0 0.0
    %389 = vmatpush1.msra.mxu0 %v227
    %390 = vmatprep.subr.mxu0 0.0
    %391 = vmatpush1.msra.mxu0 0.0
    %392 = vmatprep.subr.mxu0 0.0
    %393 = vmatpush1.msra.mxu0 0.0
    %394 = vmatprep.subr.mxu0 0.0
    %395 = vmatpush1.msra.mxu0 0.0
    %396 = vmatprep.subr.mxu0 0.0
    %397 = vmatpush1.msra.mxu0 0.0
    %398 = vmatprep.subr.mxu0 0.0
    %399 = vmatpush1.msra.mxu0 0.0
    %400 = vmatprep.subr.mxu0 0.0
    %401 = vmatpush1.msra.mxu0 0.0
    %402 = vmatprep.subr.mxu0 0.0
    %403 = vmatpush1.msra.mxu0 0.0
    %404 = vmatprep.subr.mxu0 0.0
    %405 = vmatpush1.msra.mxu0 0.0
    %406 = vmatprep.subr.mxu0 0.0
    %407 = vmatpush1.msra.mxu0 0.0
    %408 = vmatprep.subr.mxu0 0.0
    %409 = vmatpush1.msra.mxu0 0.0
    %410 = vmatprep.subr.mxu0 0.0
    %411 = vmatpush1.msra.mxu0 0.0
    %412 = vmatprep.subr.mxu0 0.0
    %413 = vmatpush1.msra.mxu0 0.0
    %414 = vmatprep.subr.mxu0 0.0
    %415 = vmatpush1.msra.mxu0 0.0
    %416 = vmatprep.subr.mxu0 0.0
    %417 = vmatpush1.msra.mxu0 0.0
    %418 = vmatprep.subr.mxu0 0.0
    %419 = vmatpush1.msra.mxu0 0.0
    %420 = vmatprep.subr.mxu0 0.0
    %421 = vmatpush1.msra.mxu0 0.0
    %422 = vmatprep.mubr.f32.mxu0 0.0
    %423 = vmatmul.mubr.f32.gmra.mrb[0].mxu0 %v107
    %v424 = vpop.f32.mrb[0].mxu0
    %v425 = vadd.f32 %v241, %v424
    %v426 = vpop.f32.mrb[0].mxu0
    %427 = vmatprep.mubr.f32.mxu0 0.0
    %428 = vmatmul.mubr.f32.gmra.mrb[0].mxu0 %v108
    %v429 = vpop.f32.mrb[0].mxu0
    %v430 = vadd.f32 %v241, %v429
    %v431 = vpop.f32.mrb[0].mxu0
    %432 = vmatprep.mubr.f32.mxu0 0.0
    %433 = vmatmul.mubr.f32.gmra.mrb[0].mxu0 %v109
    %v434 = vpop.f32.mrb[0].mxu0
    %v435 = vadd.f32 %v241, %v434
    %v436 = vpop.f32.mrb[0].mxu0
    %437 = vmatprep.mubr.f32.mxu0 0.0
    %438 = vmatmul.mubr.f32.gmra.mrb[0].mxu0 %v110
    %v439 = vpop.f32.mrb[0].mxu0
    %v440 = vadd.f32 %v241, %v439
    %v441 = vpop.f32.mrb[0].mxu0
    %442 = vmatprep.mubr.f32.mxu0 0.0
    %443 = vmatmul.mubr.f32.gmra.mrb[0].mxu0 %v111
    %v444 = vpop.f32.mrb[0].mxu0
    %v445 = vadd.f32 %v241, %v444
    %v446 = vpop.f32.mrb[0].mxu0
    %447 = vmatprep.mubr.f32.mxu0 0.0
    %448 = vmatmul.mubr.f32.gmra.mrb[0].mxu0 %v112
    %v449 = vpop.f32.mrb[0].mxu0
    %v450 = vadd.f32 %v241, %v449
    %v451 = vpop.f32.mrb[0].mxu0
    %452 = vmatprep.mubr.f32.mxu0 0.0
    %453 = vmatmul.mubr.f32.gmra.mrb[0].mxu0 %v113
    %v454 = vpop.f32.mrb[0].mxu0
    %v455 = vadd.f32 %v241, %v454
    %v456 = vpop.f32.mrb[0].mxu0
    %457 = vmatprep.mubr.f32.mxu0 0.0
    %458 = vmatmul.mubr.f32.gmra.mrb[0].mxu0 %v114
    %v459 = vpop.f32.mrb[0].mxu0
    %v460 = vadd.f32 %v241, %v459
    %v461 = vpop.f32.mrb[0].mxu0
    %462 = vdwg.mxu0
    %463 = vmatprep.subr.mxu0 %v116
    %464 = vmatpush1.msra.mxu0 %v115
    %465 = vmatprep.subr.mxu0 %v119
    %466 = vmatpush1.msra.mxu0 %v118
    %467 = vmatprep.subr.mxu0 %v122
    %468 = vmatpush1.msra.mxu0 %v121
    %469 = vmatprep.subr.mxu0 %v125
    %470 = vmatpush1.msra.mxu0 %v124
    %471 = vmatprep.subr.mxu0 %v128
    %472 = vmatpush1.msra.mxu0 %v127
    %473 = vmatprep.subr.mxu0 %v131
    %474 = vmatpush1.msra.mxu0 %v130
    %475 = vmatprep.subr.mxu0 %v134
    %476 = vmatpush1.msra.mxu0 %v133
    %477 = vmatprep.subr.mxu0 %v137
    %478 = vmatpush1.msra.mxu0 %v136
    %479 = vmatprep.subr.mxu0 %v140
    %480 = vmatpush1.msra.mxu0 %v139
    %481 = vmatprep.subr.mxu0 %v143
    %482 = vmatpush1.msra.mxu0 %v142
    %483 = vmatprep.subr.mxu0 %v146
    %484 = vmatpush1.msra.mxu0 %v145
    %485 = vmatprep.subr.mxu0 %v149
    %486 = vmatpush1.msra.mxu0 %v148
    %487 = vmatprep.subr.mxu0 %v152
    %488 = vmatpush1.msra.mxu0 %v151
    %489 = vmatprep.subr.mxu0 %v155
    %490 = vmatpush1.msra.mxu0 %v154
    %491 = vmatprep.subr.mxu0 %v158
    %492 = vmatpush1.msra.mxu0 %v157
    %493 = vmatprep.subr.mxu0 %v161
    %494 = vmatpush1.msra.mxu0 %v160
    %495 = vmatprep.subr.mxu0 0.0
    %496 = vmatpush1.msra.mxu0 0.0
    %497 = vmatprep.subr.mxu0 0.0
    %498 = vmatpush1.msra.mxu0 0.0
    %499 = vmatprep.subr.mxu0 0.0
    %500 = vmatpush1.msra.mxu0 0.0
    %501 = vmatprep.subr.mxu0 0.0
    %502 = vmatpush1.msra.mxu0 0.0
    %503 = vmatprep.subr.mxu0 0.0
    %504 = vmatpush1.msra.mxu0 0.0
    %505 = vmatprep.subr.mxu0 0.0
    %506 = vmatpush1.msra.mxu0 0.0
    %507 = vmatprep.subr.mxu0 0.0
    %508 = vmatpush1.msra.mxu0 0.0
    %509 = vmatprep.subr.mxu0 0.0
    %510 = vmatpush1.msra.mxu0 0.0
    %511 = vmatprep.subr.mxu0 0.0
    %512 = vmatpush1.msra.mxu0 0.0
    %513 = vmatprep.subr.mxu0 0.0
    %514 = vmatpush1.msra.mxu0 0.0
    %515 = vmatprep.subr.mxu0 0.0
    %516 = vmatpush1.msra.mxu0 0.0
    %517 = vmatprep.subr.mxu0 0.0
    %518 = vmatpush1.msra.mxu0 0.0
    %519 = vmatprep.subr.mxu0 0.0
    %520 = vmatpush1.msra.mxu0 0.0
    %521 = vmatprep.subr.mxu0 0.0
    %522 = vmatpush1.msra.mxu0 0.0
    %523 = vmatprep.subr.mxu0 0.0
    %524 = vmatpush1.msra.mxu0 0.0
    %525 = vmatprep.subr.mxu0 0.0
    %526 = vmatpush1.msra.mxu0 0.0
    %527 = vmatprep.mubr.f32.mxu0 0.0
    %528 = vmatmul.mubr.f32.gmra.mrb[0].mxu0 0.0
    %v529 = vpop.f32.mrb[0].mxu0
    %v530 = vadd.f32 %v168, %v529
    %v531 = vpop.f32.mrb[0].mxu0
    %v532 = vadd.f32 %v172, %v531
    %533 = vdwg.mxu0
    %534 = vmatprep.subr.mxu0 0.0
    %535 = vmatpush1.msra.mxu0 %v117
    %536 = vmatprep.subr.mxu0 0.0
    %537 = vmatpush1.msra.mxu0 %v120
    %538 = vmatprep.subr.mxu0 0.0
    %539 = vmatpush1.msra.mxu0 %v123
    %540 = vmatprep.subr.mxu0 0.0
    %541 = vmatpush1.msra.mxu0 %v126
    %542 = vmatprep.subr.mxu0 0.0
    %543 = vmatpush1.msra.mxu0 %v129
    %544 = vmatprep.subr.mxu0 0.0
    %545 = vmatpush1.msra.mxu0 %v132
    %546 = vmatprep.subr.mxu0 0.0
    %547 = vmatpush1.msra.mxu0 %v135
    %548 = vmatprep.subr.mxu0 0.0
    %549 = vmatpush1.msra.mxu0 %v138
    %550 = vmatprep.subr.mxu0 0.0
    %551 = vmatpush1.msra.mxu0 %v141
    %552 = vmatprep.subr.mxu0 0.0
    %553 = vmatpush1.msra.mxu0 %v144
    %554 = vmatprep.subr.mxu0 0.0
    %555 = vmatpush1.msra.mxu0 %v147
    %556 = vmatprep.subr.mxu0 0.0
    %557 = vmatpush1.msra.mxu0 %v150
    %558 = vmatprep.subr.mxu0 0.0
    %559 = vmatpush1.msra.mxu0 %v153
    %560 = vmatprep.subr.mxu0 0.0
    %561 = vmatpush1.msra.mxu0 %v156
    %562 = vmatprep.subr.mxu0 0.0
    %563 = vmatpush1.msra.mxu0 %v159
    %564 = vmatprep.subr.mxu0 0.0
    %565 = vmatpush1.msra.mxu0 %v162
    %566 = vmatprep.subr.mxu0 0.0
    %567 = vmatpush1.msra.mxu0 0.0
    %568 = vmatprep.subr.mxu0 0.0
    %569 = vmatpush1.msra.mxu0 0.0
    %570 = vmatprep.subr.mxu0 0.0
    %571 = vmatpush1.msra.mxu0 0.0
    %572 = vmatprep.subr.mxu0 0.0
    %573 = vmatpush1.msra.mxu0 0.0
    %574 = vmatprep.subr.mxu0 0.0
    %575 = vmatpush1.msra.mxu0 0.0
    %576 = vmatprep.subr.mxu0 0.0
    %577 = vmatpush1.msra.mxu0 0.0
    %578 = vmatprep.subr.mxu0 0.0
    %579 = vmatpush1.msra.mxu0 0.0
    %580 = vmatprep.subr.mxu0 0.0
    %581 = vmatpush1.msra.mxu0 0.0
    %582 = vmatprep.subr.mxu0 0.0
    %583 = vmatpush1.msra.mxu0 0.0
    %584 = vmatprep.subr.mxu0 0.0
    %585 = vmatpush1.msra.mxu0 0.0
    %586 = vmatprep.subr.mxu0 0.0
    %587 = vmatpush1.msra.mxu0 0.0
    %588 = vmatprep.subr.mxu0 0.0
    %589 = vmatpush1.msra.mxu0 0.0
    %590 = vmatprep.subr.mxu0 0.0
    %591 = vmatpush1.msra.mxu0 0.0
    %592 = vmatprep.subr.mxu0 0.0
    %593 = vmatpush1.msra.mxu0 0.0
    %594 = vmatprep.subr.mxu0 0.0
    %595 = vmatpush1.msra.mxu0 0.0
    %596 = vmatprep.subr.mxu0 0.0
    %597 = vmatpush1.msra.mxu0 0.0
    %598 = vmatprep.mubr.f32.mxu0 0.0
    %599 = vmatmul.mubr.f32.gmra.mrb[0].mxu0 0.0
    %v600 = vpop.f32.mrb[0].mxu0
    %v601 = vadd.f32 %v176, %v600
    %v602 = vpop.f32.mrb[0].mxu0
    %603 = vdwg.mxu0
    %v604 = vadd.f32 %v312, %v530
    %v605 = vxor.u32 %v604, 2147483648
    %v606 = vmul.f32 %v605, 1.442695
    %v607 = vpow.pop %v606
    %v608 = vadd.f32 %v607, 1.0
    %v609 = vrcp.pop %v608
    %v610 = vmul.f32 1.0, %v609
    %v611 = vadd.f32 %v314, %v532
    %v612 = vxor.u32 %v611, 2147483648
    %v613 = vmul.f32 %v612, 1.442695
    %v614 = vpow.pop %v613
    %v615 = vadd.f32 %v614, 1.0
    %v616 = vrcp.pop %v615
    %v617 = vmul.f32 1.0, %v616
    %v618 = vmul.f32 %v610, %v601
    %v619 = vadd.f32 %v425, %v618
    %v620 = vtanh.pop %v619
    %v621 = vsub.f32 1.0, %v617
    %v622 = vmul.f32 %v621, %v620
    %v623 = vmul.f32 %v617, 0.0
    %v624 = vadd.f32 %v622, %v623
    %625 = vst [vmem:[#allocation2] sm:$0xff] %v624
    %626 = vmatprep.subr.mxu0 %v116
    %627 = vmatpush1.msra.mxu0 %v115
    %628 = vmatprep.subr.mxu0 %v119
    %629 = vmatpush1.msra.mxu0 %v118
    %630 = vmatprep.subr.mxu0 %v122
    %631 = vmatpush1.msra.mxu0 %v121
    %632 = vmatprep.subr.mxu0 %v125
    %633 = vmatpush1.msra.mxu0 %v124
    %634 = vmatprep.subr.mxu0 %v128
    %635 = vmatpush1.msra.mxu0 %v127
    %636 = vmatprep.subr.mxu0 %v131
    %637 = vmatpush1.msra.mxu0 %v130
    %638 = vmatprep.subr.mxu0 %v134
    %639 = vmatpush1.msra.mxu0 %v133
    %640 = vmatprep.subr.mxu0 %v137
    %641 = vmatpush1.msra.mxu0 %v136
    %642 = vmatprep.subr.mxu0 %v140
    %643 = vmatpush1.msra.mxu0 %v139
    %644 = vmatprep.subr.mxu0 %v143
    %645 = vmatpush1.msra.mxu0 %v142
    %646 = vmatprep.subr.mxu0 %v146
    %647 = vmatpush1.msra.mxu0 %v145
    %648 = vmatprep.subr.mxu0 %v149
    %649 = vmatpush1.msra.mxu0 %v148
    %650 = vmatprep.subr.mxu0 %v152
    %651 = vmatpush1.msra.mxu0 %v151
    %652 = vmatprep.subr.mxu0 %v155
    %653 = vmatpush1.msra.mxu0 %v154
    %654 = vmatprep.subr.mxu0 %v158
    %655 = vmatpush1.msra.mxu0 %v157
    %656 = vmatprep.subr.mxu0 %v161
    %657 = vmatpush1.msra.mxu0 %v160
    %658 = vmatprep.subr.mxu0 0.0
    %659 = vmatpush1.msra.mxu0 0.0
    %660 = vmatprep.subr.mxu0 0.0
    %661 = vmatpush1.msra.mxu0 0.0
    %662 = vmatprep.subr.mxu0 0.0
    %663 = vmatpush1.msra.mxu0 0.0
    %664 = vmatprep.subr.mxu0 0.0
    %665 = vmatpush1.msra.mxu0 0.0
    %666 = vmatprep.subr.mxu0 0.0
    %667 = vmatpush1.msra.mxu0 0.0
    %668 = vmatprep.subr.mxu0 0.0
    %669 = vmatpush1.msra.mxu0 0.0
    %670 = vmatprep.subr.mxu0 0.0
    %671 = vmatpush1.msra.mxu0 0.0
    %672 = vmatprep.subr.mxu0 0.0
    %673 = vmatpush1.msra.mxu0 0.0
    %674 = vmatprep.subr.mxu0 0.0
    %675 = vmatpush1.msra.mxu0 0.0
    %676 = vmatprep.subr.mxu0 0.0
    %677 = vmatpush1.msra.mxu0 0.0
    %678 = vmatprep.subr.mxu0 0.0
    %679 = vmatpush1.msra.mxu0 0.0
    %680 = vmatprep.subr.mxu0 0.0
    %681 = vmatpush1.msra.mxu0 0.0
    %682 = vmatprep.subr.mxu0 0.0
    %683 = vmatpush1.msra.mxu0 0.0
    %684 = vmatprep.subr.mxu0 0.0
    %685 = vmatpush1.msra.mxu0 0.0
    %686 = vmatprep.subr.mxu0 0.0
    %687 = vmatpush1.msra.mxu0 0.0
    %688 = vmatprep.subr.mxu0 0.0
    %689 = vmatpush1.msra.mxu0 0.0
    %690 = vmatprep.mubr.f32.mxu0 0.0
    %691 = vmatmul.mubr.f32.gmra.mrb[0].mxu0 %v624
    %v692 = vpop.f32.mrb[0].mxu0
    %v693 = vadd.f32 %v168, %v692
    %v694 = vpop.f32.mrb[0].mxu0
    %v695 = vadd.f32 %v172, %v694
    %696 = vdwg.mxu0
    %697 = vmatprep.subr.mxu0 0.0
    %698 = vmatpush1.msra.mxu0 %v117
    %699 = vmatprep.subr.mxu0 0.0
    %700 = vmatpush1.msra.mxu0 %v120
    %701 = vmatprep.subr.mxu0 0.0
    %702 = vmatpush1.msra.mxu0 %v123
    %703 = vmatprep.subr.mxu0 0.0
    %704 = vmatpush1.msra.mxu0 %v126
    %705 = vmatprep.subr.mxu0 0.0
    %706 = vmatpush1.msra.mxu0 %v129
    %707 = vmatprep.subr.mxu0 0.0
    %708 = vmatpush1.msra.mxu0 %v132
    %709 = vmatprep.subr.mxu0 0.0
    %710 = vmatpush1.msra.mxu0 %v135
    %711 = vmatprep.subr.mxu0 0.0
    %712 = vmatpush1.msra.mxu0 %v138
    %713 = vmatprep.subr.mxu0 0.0
    %714 = vmatpush1.msra.mxu0 %v141
    %715 = vmatprep.subr.mxu0 0.0
    %716 = vmatpush1.msra.mxu0 %v144
    %717 = vmatprep.subr.mxu0 0.0
    %718 = vmatpush1.msra.mxu0 %v147
    %719 = vmatprep.subr.mxu0 0.0
    %720 = vmatpush1.msra.mxu0 %v150
    %721 = vmatprep.subr.mxu0 0.0
    %722 = vmatpush1.msra.mxu0 %v153
    %723 = vmatprep.subr.mxu0 0.0
    %724 = vmatpush1.msra.mxu0 %v156
    %725 = vmatprep.subr.mxu0 0.0
    %726 = vmatpush1.msra.mxu0 %v159
    %727 = vmatprep.subr.mxu0 0.0
    %728 = vmatpush1.msra.mxu0 %v162
    %729 = vmatprep.subr.mxu0 0.0
    %730 = vmatpush1.msra.mxu0 0.0
    %731 = vmatprep.subr.mxu0 0.0
    %732 = vmatpush1.msra.mxu0 0.0
    %733 = vmatprep.subr.mxu0 0.0
    %734 = vmatpush1.msra.mxu0 0.0
    %735 = vmatprep.subr.mxu0 0.0
    %736 = vmatpush1.msra.mxu0 0.0
    %737 = vmatprep.subr.mxu0 0.0
    %738 = vmatpush1.msra.mxu0 0.0
    %739 = vmatprep.subr.mxu0 0.0
    %740 = vmatpush1.msra.mxu0 0.0
    %741 = vmatprep.subr.mxu0 0.0
    %742 = vmatpush1.msra.mxu0 0.0
    %743 = vmatprep.subr.mxu0 0.0
    %744 = vmatpush1.msra.mxu0 0.0
    %745 = vmatprep.subr.mxu0 0.0
    %746 = vmatpush1.msra.mxu0 0.0
    %747 = vmatprep.subr.mxu0 0.0
    %748 = vmatpush1.msra.mxu0 0.0
    %749 = vmatprep.subr.mxu0 0.0
    %750 = vmatpush1.msra.mxu0 0.0
    %751 = vmatprep.subr.mxu0 0.0
    %752 = vmatpush1.msra.mxu0 0.0
    %753 = vmatprep.subr.mxu0 0.0
    %754 = vmatpush1.msra.mxu0 0.0
    %755 = vmatprep.subr.mxu0 0.0
    %756 = vmatpush1.msra.mxu0 0.0
    %757 = vmatprep.subr.mxu0 0.0
    %758 = vmatpush1.msra.mxu0 0.0
    %759 = vmatprep.subr.mxu0 0.0
    %760 = vmatpush1.msra.mxu0 0.0
    %761 = vmatprep.mubr.f32.mxu0 0.0
    %762 = vmatmul.mubr.f32.gmra.mrb[0].mxu0 %v624
    %v763 = vpop.f32.mrb[0].mxu0
    %v764 = vadd.f32 %v176, %v763
    %v765 = vpop.f32.mrb[0].mxu0
    %766 = vdwg.mxu0
    %v767 = vadd.f32 %v318, %v693
    %v768 = vxor.u32 %v767, 2147483648
    %v769 = vmul.f32 %v768, 1.442695
    %v770 = vpow.pop %v769
    %v771 = vadd.f32 %v770, 1.0
    %v772 = vrcp.pop %v771
    %v773 = vmul.f32 1.0, %v772
    %v774 = vadd.f32 %v320, %v695
    %v775 = vxor.u32 %v774, 2147483648
    %v776 = vmul.f32 %v775, 1.442695
    %v777 = vpow.pop %v776
    %v778 = vadd.f32 %v777, 1.0
    %v779 = vrcp.pop %v778
    %v780 = vmul.f32 1.0, %v779
    %v781 = vmul.f32 %v773, %v764
    %v782 = vadd.f32 %v430, %v781
    %v783 = vtanh.pop %v782
    %v784 = vsub.f32 1.0, %v780
    %v785 = vmul.f32 %v784, %v783
    %v786 = vmul.f32 %v780, %v624
    %v787 = vadd.f32 %v785, %v786
    %788 = vst [vmem:[#allocation2 + $0x8] sm:$0xff] %v787
    %789 = vmatprep.subr.mxu0 %v116
    %790 = vmatpush1.msra.mxu0 %v115
    %791 = vmatprep.subr.mxu0 %v119
    %792 = vmatpush1.msra.mxu0 %v118
    %793 = vmatprep.subr.mxu0 %v122
    %794 = vmatpush1.msra.mxu0 %v121
    %795 = vmatprep.subr.mxu0 %v125
    %796 = vmatpush1.msra.mxu0 %v124
    %797 = vmatprep.subr.mxu0 %v128
    %798 = vmatpush1.msra.mxu0 %v127
    %799 = vmatprep.subr.mxu0 %v131
    %800 = vmatpush1.msra.mxu0 %v130
    %801 = vmatprep.subr.mxu0 %v134
    %802 = vmatpush1.msra.mxu0 %v133
    %803 = vmatprep.subr.mxu0 %v137
    %804 = vmatpush1.msra.mxu0 %v136
    %805 = vmatprep.subr.mxu0 %v140
    %806 = vmatpush1.msra.mxu0 %v139
    %807 = vmatprep.subr.mxu0 %v143
    %808 = vmatpush1.msra.mxu0 %v142
    %809 = vmatprep.subr.mxu0 %v146
    %810 = vmatpush1.msra.mxu0 %v145
    %811 = vmatprep.subr.mxu0 %v149
    %812 = vmatpush1.msra.mxu0 %v148
    %813 = vmatprep.subr.mxu0 %v152
    %814 = vmatpush1.msra.mxu0 %v151
    %815 = vmatprep.subr.mxu0 %v155
    %816 = vmatpush1.msra.mxu0 %v154
    %817 = vmatprep.subr.mxu0 %v158
    %818 = vmatpush1.msra.mxu0 %v157
    %819 = vmatprep.subr.mxu0 %v161
    %820 = vmatpush1.msra.mxu0 %v160
    %821 = vmatprep.subr.mxu0 0.0
    %822 = vmatpush1.msra.mxu0 0.0
    %823 = vmatprep.subr.mxu0 0.0
    %824 = vmatpush1.msra.mxu0 0.0
    %825 = vmatprep.subr.mxu0 0.0
    %826 = vmatpush1.msra.mxu0 0.0
    %827 = vmatprep.subr.mxu0 0.0
    %828 = vmatpush1.msra.mxu0 0.0
    %829 = vmatprep.subr.mxu0 0.0
    %830 = vmatpush1.msra.mxu0 0.0
    %831 = vmatprep.subr.mxu0 0.0
    %832 = vmatpush1.msra.mxu0 0.0
    %833 = vmatprep.subr.mxu0 0.0
    %834 = vmatpush1.msra.mxu0 0.0
    %835 = vmatprep.subr.mxu0 0.0
    %836 = vmatpush1.msra.mxu0 0.0
    %837 = vmatprep.subr.mxu0 0.0
    %838 = vmatpush1.msra.mxu0 0.0
    %839 = vmatprep.subr.mxu0 0.0
    %840 = vmatpush1.msra.mxu0 0.0
    %841 = vmatprep.subr.mxu0 0.0
    %842 = vmatpush1.msra.mxu0 0.0
    %843 = vmatprep.subr.mxu0 0.0
    %844 = vmatpush1.msra.mxu0 0.0
    %845 = vmatprep.subr.mxu0 0.0
    %846 = vmatpush1.msra.mxu0 0.0
    %847 = vmatprep.subr.mxu0 0.0
    %848 = vmatpush1.msra.mxu0 0.0
    %849 = vmatprep.subr.mxu0 0.0
    %850 = vmatpush1.msra.mxu0 0.0
    %851 = vmatprep.subr.mxu0 0.0
    %852 = vmatpush1.msra.mxu0 0.0
    %853 = vmatprep.mubr.f32.mxu0 0.0
    %854 = vmatmul.mubr.f32.gmra.mrb[0].mxu0 %v787
    %v855 = vpop.f32.mrb[0].mxu0
    %v856 = vadd.f32 %v168, %v855
    %v857 = vpop.f32.mrb[0].mxu0
    %v858 = vadd.f32 %v172, %v857
    %859 = vdwg.mxu0
    %860 = vmatprep.subr.mxu0 0.0
    %861 = vmatpush1.msra.mxu0 %v117
    %862 = vmatprep.subr.mxu0 0.0
    %863 = vmatpush1.msra.mxu0 %v120
    %864 = vmatprep.subr.mxu0 0.0
    %865 = vmatpush1.msra.mxu0 %v123
    %866 = vmatprep.subr.mxu0 0.0
    %867 = vmatpush1.msra.mxu0 %v126
    %868 = vmatprep.subr.mxu0 0.0
    %869 = vmatpush1.msra.mxu0 %v129
    %870 = vmatprep.subr.mxu0 0.0
    %871 = vmatpush1.msra.mxu0 %v132
    %872 = vmatprep.subr.mxu0 0.0
    %873 = vmatpush1.msra.mxu0 %v135
    %874 = vmatprep.subr.mxu0 0.0
    %875 = vmatpush1.msra.mxu0 %v138
    %876 = vmatprep.subr.mxu0 0.0
    %877 = vmatpush1.msra.mxu0 %v141
    %878 = vmatprep.subr.mxu0 0.0
    %879 = vmatpush1.msra.mxu0 %v144
    %880 = vmatprep.subr.mxu0 0.0
    %881 = vmatpush1.msra.mxu0 %v147
    %882 = vmatprep.subr.mxu0 0.0
    %883 = vmatpush1.msra.mxu0 %v150
    %884 = vmatprep.subr.mxu0 0.0
    %885 = vmatpush1.msra.mxu0 %v153
    %886 = vmatprep.subr.mxu0 0.0
    %887 = vmatpush1.msra.mxu0 %v156
    %888 = vmatprep.subr.mxu0 0.0
    %889 = vmatpush1.msra.mxu0 %v159
    %890 = vmatprep.subr.mxu0 0.0
    %891 = vmatpush1.msra.mxu0 %v162
    %892 = vmatprep.subr.mxu0 0.0
    %893 = vmatpush1.msra.mxu0 0.0
    %894 = vmatprep.subr.mxu0 0.0
    %895 = vmatpush1.msra.mxu0 0.0
    %896 = vmatprep.subr.mxu0 0.0
    %897 = vmatpush1.msra.mxu0 0.0
    %898 = vmatprep.subr.mxu0 0.0
    %899 = vmatpush1.msra.mxu0 0.0
    %900 = vmatprep.subr.mxu0 0.0
    %901 = vmatpush1.msra.mxu0 0.0
    %902 = vmatprep.subr.mxu0 0.0
    %903 = vmatpush1.msra.mxu0 0.0
    %904 = vmatprep.subr.mxu0 0.0
    %905 = vmatpush1.msra.mxu0 0.0
    %906 = vmatprep.subr.mxu0 0.0
    %907 = vmatpush1.msra.mxu0 0.0
    %908 = vmatprep.subr.mxu0 0.0
    %909 = vmatpush1.msra.mxu0 0.0
    %910 = vmatprep.subr.mxu0 0.0
    %911 = vmatpush1.msra.mxu0 0.0
    %912 = vmatprep.subr.mxu0 0.0
    %913 = vmatpush1.msra.mxu0 0.0
    %914 = vmatprep.subr.mxu0 0.0
    %915 = vmatpush1.msra.mxu0 0.0
    %916 = vmatprep.subr.mxu0 0.0
    %917 = vmatpush1.msra.mxu0 0.0
    %918 = vmatprep.subr.mxu0 0.0
    %919 = vmatpush1.msra.mxu0 0.0
    %920 = vmatprep.subr.mxu0 0.0
    %921 = vmatpush1.msra.mxu0 0.0
    %922 = vmatprep.subr.mxu0 0.0
    %923 = vmatpush1.msra.mxu0 0.0
    %924 = vmatprep.mubr.f32.mxu0 0.0
    %925 = vmatmul.mubr.f32.gmra.mrb[0].mxu0 %v787
    %v926 = vpop.f32.mrb[0].mxu0
    %v927 = vadd.f32 %v176, %v926
    %v928 = vpop.f32.mrb[0].mxu0
    %929 = vdwg.mxu0
    %v930 = vadd.f32 %v324, %v856
    %v931 = vxor.u32 %v930, 2147483648
    %v932 = vmul.f32 %v931, 1.442695
    %v933 = vpow.pop %v932
    %v934 = vadd.f32 %v933, 1.0
    %v935 = vrcp.pop %v934
    %v936 = vmul.f32 1.0, %v935
    %v937 = vadd.f32 %v326, %v858
    %v938 = vxor.u32 %v937, 2147483648
    %v939 = vmul.f32 %v938, 1.442695
    %v940 = vpow.pop %v939
    %v941 = vadd.f32 %v940, 1.0
    %v942 = vrcp.pop %v941
    %v943 = vmul.f32 1.0, %v942
    %v944 = vmul.f32 %v936, %v927
    %v945 = vadd.f32 %v435, %v944
    %v946 = vtanh.pop %v945
    %v947 = vsub.f32 1.0, %v943
    %v948 = vmul.f32 %v947, %v946
    %v949 = vmul.f32 %v943, %v787
    %v950 = vadd.f32 %v948, %v949
    %951 = vst [vmem:[#allocation2 + $0x10] sm:$0xff] %v950
    %952 = vmatprep.subr.mxu0 %v116
    %953 = vmatpush1.msra.mxu0 %v115
    %954 = vmatprep.subr.mxu0 %v119
    %955 = vmatpush1.msra.mxu0 %v118
    %956 = vmatprep.subr.mxu0 %v122
    %957 = vmatpush1.msra.mxu0 %v121
    %958 = vmatprep.subr.mxu0 %v125
    %959 = vmatpush1.msra.mxu0 %v124
    %960 = vmatprep.subr.mxu0 %v128
    %961 = vmatpush1.msra.mxu0 %v127
    %962 = vmatprep.subr.mxu0 %v131
    %963 = vmatpush1.msra.mxu0 %v130
    %964 = vmatprep.subr.mxu0 %v134
    %965 = vmatpush1.msra.mxu0 %v133
    %966 = vmatprep.subr.mxu0 %v137
    %967 = vmatpush1.msra.mxu0 %v136
    %968 = vmatprep.subr.mxu0 %v140
    %969 = vmatpush1.msra.mxu0 %v139
    %970 = vmatprep.subr.mxu0 %v143
    %971 = vmatpush1.msra.mxu0 %v142
    %972 = vmatprep.subr.mxu0 %v146
    %973 = vmatpush1.msra.mxu0 %v145
    %974 = vmatprep.subr.mxu0 %v149
    %975 = vmatpush1.msra.mxu0 %v148
    %976 = vmatprep.subr.mxu0 %v152
    %977 = vmatpush1.msra.mxu0 %v151
    %978 = vmatprep.subr.mxu0 %v155
    %979 = vmatpush1.msra.mxu0 %v154
    %980 = vmatprep.subr.mxu0 %v158
    %981 = vmatpush1.msra.mxu0 %v157
    %982 = vmatprep.subr.mxu0 %v161
    %983 = vmatpush1.msra.mxu0 %v160
    %984 = vmatprep.subr.mxu0 0.0
    %985 = vmatpush1.msra.mxu0 0.0
    %986 = vmatprep.subr.mxu0 0.0
    %987 = vmatpush1.msra.mxu0 0.0
    %988 = vmatprep.subr.mxu0 0.0
    %989 = vmatpush1.msra.mxu0 0.0
    %990 = vmatprep.subr.mxu0 0.0
    %991 = vmatpush1.msra.mxu0 0.0
    %992 = vmatprep.subr.mxu0 0.0
    %993 = vmatpush1.msra.mxu0 0.0
    %994 = vmatprep.subr.mxu0 0.0
    %995 = vmatpush1.msra.mxu0 0.0
    %996 = vmatprep.subr.mxu0 0.0
    %997 = vmatpush1.msra.mxu0 0.0
    %998 = vmatprep.subr.mxu0 0.0
    %999 = vmatpush1.msra.mxu0 0.0
    %1000 = vmatprep.subr.mxu0 0.0
    %1001 = vmatpush1.msra.mxu0 0.0
    %1002 = vmatprep.subr.mxu0 0.0
    %1003 = vmatpush1.msra.mxu0 0.0
    %1004 = vmatprep.subr.mxu0 0.0
    %1005 = vmatpush1.msra.mxu0 0.0
    %1006 = vmatprep.subr.mxu0 0.0
    %1007 = vmatpush1.msra.mxu0 0.0
    %1008 = vmatprep.subr.mxu0 0.0
    %1009 = vmatpush1.msra.mxu0 0.0
    %1010 = vmatprep.subr.mxu0 0.0
    %1011 = vmatpush1.msra.mxu0 0.0
    %1012 = vmatprep.subr.mxu0 0.0
    %1013 = vmatpush1.msra.mxu0 0.0
    %1014 = vmatprep.subr.mxu0 0.0
    %1015 = vmatpush1.msra.mxu0 0.0
    %1016 = vmatprep.mubr.f32.mxu0 0.0
    %1017 = vmatmul.mubr.f32.gmra.mrb[0].mxu0 %v950
    %v1018 = vpop.f32.mrb[0].mxu0
    %v1019 = vadd.f32 %v168, %v1018
    %v1020 = vpop.f32.mrb[0].mxu0
    %v1021 = vadd.f32 %v172, %v1020
    %1022 = vdwg.mxu0
    %1023 = vmatprep.subr.mxu0 0.0
    %1024 = vmatpush1.msra.mxu0 %v117
    %1025 = vmatprep.subr.mxu0 0.0
    %1026 = vmatpush1.msra.mxu0 %v120
    %1027 = vmatprep.subr.mxu0 0.0
    %1028 = vmatpush1.msra.mxu0 %v123
    %1029 = vmatprep.subr.mxu0 0.0
    %1030 = vmatpush1.msra.mxu0 %v126
    %1031 = vmatprep.subr.mxu0 0.0
    %1032 = vmatpush1.msra.mxu0 %v129
    %1033 = vmatprep.subr.mxu0 0.0
    %1034 = vmatpush1.msra.mxu0 %v132
    %1035 = vmatprep.subr.mxu0 0.0
    %1036 = vmatpush1.msra.mxu0 %v135
    %1037 = vmatprep.subr.mxu0 0.0
    %1038 = vmatpush1.msra.mxu0 %v138
    %1039 = vmatprep.subr.mxu0 0.0
    %1040 = vmatpush1.msra.mxu0 %v141
    %1041 = vmatprep.subr.mxu0 0.0
    %1042 = vmatpush1.msra.mxu0 %v144
    %1043 = vmatprep.subr.mxu0 0.0
    %1044 = vmatpush1.msra.mxu0 %v147
    %1045 = vmatprep.subr.mxu0 0.0
    %1046 = vmatpush1.msra.mxu0 %v150
    %1047 = vmatprep.subr.mxu0 0.0
    %1048 = vmatpush1.msra.mxu0 %v153
    %1049 = vmatprep.subr.mxu0 0.0
    %1050 = vmatpush1.msra.mxu0 %v156
    %1051 = vmatprep.subr.mxu0 0.0
    %1052 = vmatpush1.msra.mxu0 %v159
    %1053 = vmatprep.subr.mxu0 0.0
    %1054 = vmatpush1.msra.mxu0 %v162
    %1055 = vmatprep.subr.mxu0 0.0
    %1056 = vmatpush1.msra.mxu0 0.0
    %1057 = vmatprep.subr.mxu0 0.0
    %1058 = vmatpush1.msra.mxu0 0.0
    %1059 = vmatprep.subr.mxu0 0.0
    %1060 = vmatpush1.msra.mxu0 0.0
    %1061 = vmatprep.subr.mxu0 0.0
    %1062 = vmatpush1.msra.mxu0 0.0
    %1063 = vmatprep.subr.mxu0 0.0
    %1064 = vmatpush1.msra.mxu0 0.0
    %1065 = vmatprep.subr.mxu0 0.0
    %1066 = vmatpush1.msra.mxu0 0.0
    %1067 = vmatprep.subr.mxu0 0.0
    %1068 = vmatpush1.msra.mxu0 0.0
    %1069 = vmatprep.subr.mxu0 0.0
    %1070 = vmatpush1.msra.mxu0 0.0
    %1071 = vmatprep.subr.mxu0 0.0
    %1072 = vmatpush1.msra.mxu0 0.0
    %1073 = vmatprep.subr.mxu0 0.0
    %1074 = vmatpush1.msra.mxu0 0.0
    %1075 = vmatprep.subr.mxu0 0.0
    %1076 = vmatpush1.msra.mxu0 0.0
    %1077 = vmatprep.subr.mxu0 0.0
    %1078 = vmatpush1.msra.mxu0 0.0
    %1079 = vmatprep.subr.mxu0 0.0
    %1080 = vmatpush1.msra.mxu0 0.0
    %1081 = vmatprep.subr.mxu0 0.0
    %1082 = vmatpush1.msra.mxu0 0.0
    %1083 = vmatprep.subr.mxu0 0.0
    %1084 = vmatpush1.msra.mxu0 0.0
    %1085 = vmatprep.subr.mxu0 0.0
    %1086 = vmatpush1.msra.mxu0 0.0
    %1087 = vmatprep.mubr.f32.mxu0 0.0
    %1088 = vmatmul.mubr.f32.gmra.mrb[0].mxu0 %v950
    %v1089 = vpop.f32.mrb[0].mxu0
    %v1090 = vadd.f32 %v176, %v1089
    %v1091 = vpop.f32.mrb[0].mxu0
    %1092 = vdwg.mxu0
    %v1093 = vadd.f32 %v330, %v1019
    %v1094 = vxor.u32 %v1093, 2147483648
    %v1095 = vmul.f32 %v1094, 1.442695
    %v1096 = vpow.pop %v1095
    %v1097 = vadd.f32 %v1096, 1.0
    %v1098 = vrcp.pop %v1097
    %v1099 = vmul.f32 1.0, %v1098
    %v1100 = vadd.f32 %v332, %v1021
    %v1101 = vxor.u32 %v1100, 2147483648
    %v1102 = vmul.f32 %v1101, 1.442695
    %v1103 = vpow.pop %v1102
    %v1104 = vadd.f32 %v1103, 1.0
    %v1105 = vrcp.pop %v1104
    %v1106 = vmul.f32 1.0, %v1105
    %v1107 = vmul.f32 %v1099, %v1090
    %v1108 = vadd.f32 %v440, %v1107
    %v1109 = vtanh.pop %v1108
    %v1110 = vsub.f32 1.0, %v1106
    %v1111 = vmul.f32 %v1110, %v1109
    %v1112 = vmul.f32 %v1106, %v950
    %v1113 = vadd.f32 %v1111, %v1112
    %1114 = vst [vmem:[#allocation2 + $0x18] sm:$0xff] %v1113
    %1115 = vmatprep.subr.mxu0 %v116
    %1116 = vmatpush1.msra.mxu0 %v115
    %1117 = vmatprep.subr.mxu0 %v119
    %1118 = vmatpush1.msra.mxu0 %v118
    %1119 = vmatprep.subr.mxu0 %v122
    %1120 = vmatpush1.msra.mxu0 %v121
    %1121 = vmatprep.subr.mxu0 %v125
    %1122 = vmatpush1.msra.mxu0 %v124
    %1123 = vmatprep.subr.mxu0 %v128
    %1124 = vmatpush1.msra.mxu0 %v127
    %1125 = vmatprep.subr.mxu0 %v131
    %1126 = vmatpush1.msra.mxu0 %v130
    %1127 = vmatprep.subr.mxu0 %v134
    %1128 = vmatpush1.msra.mxu0 %v133
    %1129 = vmatprep.subr.mxu0 %v137
    %1130 = vmatpush1.msra.mxu0 %v136
    %1131 = vmatprep.subr.mxu0 %v140
    %1132 = vmatpush1.msra.mxu0 %v139
    %1133 = vmatprep.subr.mxu0 %v143
    %1134 = vmatpush1.msra.mxu0 %v142
    %1135 = vmatprep.subr.mxu0 %v146
    %1136 = vmatpush1.msra.mxu0 %v145
    %1137 = vmatprep.subr.mxu0 %v149
    %1138 = vmatpush1.msra.mxu0 %v148
    %1139 = vmatprep.subr.mxu0 %v152
    %1140 = vmatpush1.msra.mxu0 %v151
    %1141 = vmatprep.subr.mxu0 %v155
    %1142 = vmatpush1.msra.mxu0 %v154
    %1143 = vmatprep.subr.mxu0 %v158
    %1144 = vmatpush1.msra.mxu0 %v157
    %1145 = vmatprep.subr.mxu0 %v161
    %1146 = vmatpush1.msra.mxu0 %v160
    %1147 = vmatprep.subr.mxu0 0.0
    %1148 = vmatpush1.msra.mxu0 0.0
    %1149 = vmatprep.subr.mxu0 0.0
    %1150 = vmatpush1.msra.mxu0 0.0
    %1151 = vmatprep.subr.mxu0 0.0
    %1152 = vmatpush1.msra.mxu0 0.0
    %1153 = vmatprep.subr.mxu0 0.0
    %1154 = vmatpush1.msra.mxu0 0.0
    %1155 = vmatprep.subr.mxu0 0.0
    %1156 = vmatpush1.msra.mxu0 0.0
    %1157 = vmatprep.subr.mxu0 0.0
    %1158 = vmatpush1.msra.mxu0 0.0
    %1159 = vmatprep.subr.mxu0 0.0
    %1160 = vmatpush1.msra.mxu0 0.0
    %1161 = vmatprep.subr.mxu0 0.0
    %1162 = vmatpush1.msra.mxu0 0.0
    %1163 = vmatprep.subr.mxu0 0.0
    %1164 = vmatpush1.msra.mxu0 0.0
    %1165 = vmatprep.subr.mxu0 0.0
    %1166 = vmatpush1.msra.mxu0 0.0
    %1167 = vmatprep.subr.mxu0 0.0
    %1168 = vmatpush1.msra.mxu0 0.0
    %1169 = vmatprep.subr.mxu0 0.0
    %1170 = vmatpush1.msra.mxu0 0.0
    %1171 = vmatprep.subr.mxu0 0.0
    %1172 = vmatpush1.msra.mxu0 0.0
    %1173 = vmatprep.subr.mxu0 0.0
    %1174 = vmatpush1.msra.mxu0 0.0
    %1175 = vmatprep.subr.mxu0 0.0
    %1176 = vmatpush1.msra.mxu0 0.0
    %1177 = vmatprep.subr.mxu0 0.0
    %1178 = vmatpush1.msra.mxu0 0.0
    %1179 = vmatprep.mubr.f32.mxu0 0.0
    %1180 = vmatmul.mubr.f32.gmra.mrb[0].mxu0 %v1113
    %v1181 = vpop.f32.mrb[0].mxu0
    %v1182 = vadd.f32 %v168, %v1181
    %v1183 = vpop.f32.mrb[0].mxu0
    %v1184 = vadd.f32 %v172, %v1183
    %1185 = vdwg.mxu0
    %1186 = vmatprep.subr.mxu0 0.0
    %1187 = vmatpush1.msra.mxu0 %v117
    %1188 = vmatprep.subr.mxu0 0.0
    %1189 = vmatpush1.msra.mxu0 %v120
    %1190 = vmatprep.subr.mxu0 0.0
    %1191 = vmatpush1.msra.mxu0 %v123
    %1192 = vmatprep.subr.mxu0 0.0
    %1193 = vmatpush1.msra.mxu0 %v126
    %1194 = vmatprep.subr.mxu0 0.0
    %1195 = vmatpush1.msra.mxu0 %v129
    %1196 = vmatprep.subr.mxu0 0.0
    %1197 = vmatpush1.msra.mxu0 %v132
    %1198 = vmatprep.subr.mxu0 0.0
    %1199 = vmatpush1.msra.mxu0 %v135
    %1200 = vmatprep.subr.mxu0 0.0
    %1201 = vmatpush1.msra.mxu0 %v138
    %1202 = vmatprep.subr.mxu0 0.0
    %1203 = vmatpush1.msra.mxu0 %v141
    %1204 = vmatprep.subr.mxu0 0.0
    %1205 = vmatpush1.msra.mxu0 %v144
    %1206 = vmatprep.subr.mxu0 0.0
    %1207 = vmatpush1.msra.mxu0 %v147
    %1208 = vmatprep.subr.mxu0 0.0
    %1209 = vmatpush1.msra.mxu0 %v150
    %1210 = vmatprep.subr.mxu0 0.0
    %1211 = vmatpush1.msra.mxu0 %v153
    %1212 = vmatprep.subr.mxu0 0.0
    %1213 = vmatpush1.msra.mxu0 %v156
    %1214 = vmatprep.subr.mxu0 0.0
    %1215 = vmatpush1.msra.mxu0 %v159
    %1216 = vmatprep.subr.mxu0 0.0
    %1217 = vmatpush1.msra.mxu0 %v162
    %1218 = vmatprep.subr.mxu0 0.0
    %1219 = vmatpush1.msra.mxu0 0.0
    %1220 = vmatprep.subr.mxu0 0.0
    %1221 = vmatpush1.msra.mxu0 0.0
    %1222 = vmatprep.subr.mxu0 0.0
    %1223 = vmatpush1.msra.mxu0 0.0
    %1224 = vmatprep.subr.mxu0 0.0
    %1225 = vmatpush1.msra.mxu0 0.0
    %1226 = vmatprep.subr.mxu0 0.0
    %1227 = vmatpush1.msra.mxu0 0.0
    %1228 = vmatprep.subr.mxu0 0.0
    %1229 = vmatpush1.msra.mxu0 0.0
    %1230 = vmatprep.subr.mxu0 0.0
    %1231 = vmatpush1.msra.mxu0 0.0
    %1232 = vmatprep.subr.mxu0 0.0
    %1233 = vmatpush1.msra.mxu0 0.0
    %1234 = vmatprep.subr.mxu0 0.0
    %1235 = vmatpush1.msra.mxu0 0.0
    %1236 = vmatprep.subr.mxu0 0.0
    %1237 = vmatpush1.msra.mxu0 0.0
    %1238 = vmatprep.subr.mxu0 0.0
    %1239 = vmatpush1.msra.mxu0 0.0
    %1240 = vmatprep.subr.mxu0 0.0
    %1241 = vmatpush1.msra.mxu0 0.0
    %1242 = vmatprep.subr.mxu0 0.0
    %1243 = vmatpush1.msra.mxu0 0.0
    %1244 = vmatprep.subr.mxu0 0.0
    %1245 = vmatpush1.msra.mxu0 0.0
    %1246 = vmatprep.subr.mxu0 0.0
    %1247 = vmatpush1.msra.mxu0 0.0
    %1248 = vmatprep.subr.mxu0 0.0
    %1249 = vmatpush1.msra.mxu0 0.0
    %1250 = vmatprep.mubr.f32.mxu0 0.0
    %1251 = vmatmul.mubr.f32.gmra.mrb[0].mxu0 %v1113
    %v1252 = vpop.f32.mrb[0].mxu0
    %v1253 = vadd.f32 %v176, %v1252
    %v1254 = vpop.f32.mrb[0].mxu0
    %1255 = vdwg.mxu0
    %v1256 = vadd.f32 %v336, %v1182
    %v1257 = vxor.u32 %v1256, 2147483648
    %v1258 = vmul.f32 %v1257, 1.442695
    %v1259 = vpow.pop %v1258
    %v1260 = vadd.f32 %v1259, 1.0
    %v1261 = vrcp.pop %v1260
    %v1262 = vmul.f32 1.0, %v1261
    %v1263 = vadd.f32 %v338, %v1184
    %v1264 = vxor.u32 %v1263, 2147483648
    %v1265 = vmul.f32 %v1264, 1.442695
    %v1266 = vpow.pop %v1265
    %v1267 = vadd.f32 %v1266, 1.0
    %v1268 = vrcp.pop %v1267
    %v1269 = vmul.f32 1.0, %v1268
    %v1270 = vmul.f32 %v1262, %v1253
    %v1271 = vadd.f32 %v445, %v1270
    %v1272 = vtanh.pop %v1271
    %v1273 = vsub.f32 1.0, %v1269
    %v1274 = vmul.f32 %v1273, %v1272
    %v1275 = vmul.f32 %v1269, %v1113
    %v1276 = vadd.f32 %v1274, %v1275
    %1277 = vst [vmem:[#allocation2 + $0x20] sm:$0xff] %v1276
    %1278 = vmatprep.subr.mxu0 %v116
    %1279 = vmatpush1.msra.mxu0 %v115
    %1280 = vmatprep.subr.mxu0 %v119
    %1281 = vmatpush1.msra.mxu0 %v118
    %1282 = vmatprep.subr.mxu0 %v122
    %1283 = vmatpush1.msra.mxu0 %v121
    %1284 = vmatprep.subr.mxu0 %v125
    %1285 = vmatpush1.msra.mxu0 %v124
    %1286 = vmatprep.subr.mxu0 %v128
    %1287 = vmatpush1.msra.mxu0 %v127
    %1288 = vmatprep.subr.mxu0 %v131
    %1289 = vmatpush1.msra.mxu0 %v130
    %1290 = vmatprep.subr.mxu0 %v134
    %1291 = vmatpush1.msra.mxu0 %v133
    %1292 = vmatprep.subr.mxu0 %v137
    %1293 = vmatpush1.msra.mxu0 %v136
    %1294 = vmatprep.subr.mxu0 %v140
    %1295 = vmatpush1.msra.mxu0 %v139
    %1296 = vmatprep.subr.mxu0 %v143
    %1297 = vmatpush1.msra.mxu0 %v142
    %1298 = vmatprep.subr.mxu0 %v146
    %1299 = vmatpush1.msra.mxu0 %v145
    %1300 = vmatprep.subr.mxu0 %v149
    %1301 = vmatpush1.msra.mxu0 %v148
    %1302 = vmatprep.subr.mxu0 %v152
    %1303 = vmatpush1.msra.mxu0 %v151
    %1304 = vmatprep.subr.mxu0 %v155
    %1305 = vmatpush1.msra.mxu0 %v154
    %1306 = vmatprep.subr.mxu0 %v158
    %1307 = vmatpush1.msra.mxu0 %v157
    %1308 = vmatprep.subr.mxu0 %v161
    %1309 = vmatpush1.msra.mxu0 %v160
    %1310 = vmatprep.subr.mxu0 0.0
    %1311 = vmatpush1.msra.mxu0 0.0
    %1312 = vmatprep.subr.mxu0 0.0
    %1313 = vmatpush1.msra.mxu0 0.0
    %1314 = vmatprep.subr.mxu0 0.0
    %1315 = vmatpush1.msra.mxu0 0.0
    %1316 = vmatprep.subr.mxu0 0.0
    %1317 = vmatpush1.msra.mxu0 0.0
    %1318 = vmatprep.subr.mxu0 0.0
    %1319 = vmatpush1.msra.mxu0 0.0
    %1320 = vmatprep.subr.mxu0 0.0
    %1321 = vmatpush1.msra.mxu0 0.0
    %1322 = vmatprep.subr.mxu0 0.0
    %1323 = vmatpush1.msra.mxu0 0.0
    %1324 = vmatprep.subr.mxu0 0.0
    %1325 = vmatpush1.msra.mxu0 0.0
    %1326 = vmatprep.subr.mxu0 0.0
    %1327 = vmatpush1.msra.mxu0 0.0
    %1328 = vmatprep.subr.mxu0 0.0
    %1329 = vmatpush1.msra.mxu0 0.0
    %1330 = vmatprep.subr.mxu0 0.0
    %1331 = vmatpush1.msra.mxu0 0.0
    %1332 = vmatprep.subr.mxu0 0.0
    %1333 = vmatpush1.msra.mxu0 0.0
    %1334 = vmatprep.subr.mxu0 0.0
    %1335 = vmatpush1.msra.mxu0 0.0
    %1336 = vmatprep.subr.mxu0 0.0
    %1337 = vmatpush1.msra.mxu0 0.0
    %1338 = vmatprep.subr.mxu0 0.0
    %1339 = vmatpush1.msra.mxu0 0.0
    %1340 = vmatprep.subr.mxu0 0.0
    %1341 = vmatpush1.msra.mxu0 0.0
    %1342 = vmatprep.mubr.f32.mxu0 0.0
    %1343 = vmatmul.mubr.f32.gmra.mrb[0].mxu0 %v1276
    %v1344 = vpop.f32.mrb[0].mxu0
    %v1345 = vadd.f32 %v168, %v1344
    %v1346 = vpop.f32.mrb[0].mxu0
    %v1347 = vadd.f32 %v172, %v1346
    %1348 = vdwg.mxu0
    %1349 = vmatprep.subr.mxu0 0.0
    %1350 = vmatpush1.msra.mxu0 %v117
    %1351 = vmatprep.subr.mxu0 0.0
    %1352 = vmatpush1.msra.mxu0 %v120
    %1353 = vmatprep.subr.mxu0 0.0
    %1354 = vmatpush1.msra.mxu0 %v123
    %1355 = vmatprep.subr.mxu0 0.0
    %1356 = vmatpush1.msra.mxu0 %v126
    %1357 = vmatprep.subr.mxu0 0.0
    %1358 = vmatpush1.msra.mxu0 %v129
    %1359 = vmatprep.subr.mxu0 0.0
    %1360 = vmatpush1.msra.mxu0 %v132
    %1361 = vmatprep.subr.mxu0 0.0
    %1362 = vmatpush1.msra.mxu0 %v135
    %1363 = vmatprep.subr.mxu0 0.0
    %1364 = vmatpush1.msra.mxu0 %v138
    %1365 = vmatprep.subr.mxu0 0.0
    %1366 = vmatpush1.msra.mxu0 %v141
    %1367 = vmatprep.subr.mxu0 0.0
    %1368 = vmatpush1.msra.mxu0 %v144
    %1369 = vmatprep.subr.mxu0 0.0
    %1370 = vmatpush1.msra.mxu0 %v147
    %1371 = vmatprep.subr.mxu0 0.0
    %1372 = vmatpush1.msra.mxu0 %v150
    %1373 = vmatprep.subr.mxu0 0.0
    %1374 = vmatpush1.msra.mxu0 %v153
    %1375 = vmatprep.subr.mxu0 0.0
    %1376 = vmatpush1.msra.mxu0 %v156
    %1377 = vmatprep.subr.mxu0 0.0
    %1378 = vmatpush1.msra.mxu0 %v159
    %1379 = vmatprep.subr.mxu0 0.0
    %1380 = vmatpush1.msra.mxu0 %v162
    %1381 = vmatprep.subr.mxu0 0.0
    %1382 = vmatpush1.msra.mxu0 0.0
    %1383 = vmatprep.subr.mxu0 0.0
    %1384 = vmatpush1.msra.mxu0 0.0
    %1385 = vmatprep.subr.mxu0 0.0
    %1386 = vmatpush1.msra.mxu0 0.0
    %1387 = vmatprep.subr.mxu0 0.0
    %1388 = vmatpush1.msra.mxu0 0.0
    %1389 = vmatprep.subr.mxu0 0.0
    %1390 = vmatpush1.msra.mxu0 0.0
    %1391 = vmatprep.subr.mxu0 0.0
    %1392 = vmatpush1.msra.mxu0 0.0
    %1393 = vmatprep.subr.mxu0 0.0
    %1394 = vmatpush1.msra.mxu0 0.0
    %1395 = vmatprep.subr.mxu0 0.0
    %1396 = vmatpush1.msra.mxu0 0.0
    %1397 = vmatprep.subr.mxu0 0.0
    %1398 = vmatpush1.msra.mxu0 0.0
    %1399 = vmatprep.subr.mxu0 0.0
    %1400 = vmatpush1.msra.mxu0 0.0
    %1401 = vmatprep.subr.mxu0 0.0
    %1402 = vmatpush1.msra.mxu0 0.0
    %1403 = vmatprep.subr.mxu0 0.0
    %1404 = vmatpush1.msra.mxu0 0.0
    %1405 = vmatprep.subr.mxu0 0.0
    %1406 = vmatpush1.msra.mxu0 0.0
    %1407 = vmatprep.subr.mxu0 0.0
    %1408 = vmatpush1.msra.mxu0 0.0
    %1409 = vmatprep.subr.mxu0 0.0
    %1410 = vmatpush1.msra.mxu0 0.0
    %1411 = vmatprep.subr.mxu0 0.0
    %1412 = vmatpush1.msra.mxu0 0.0
    %1413 = vmatprep.mubr.f32.mxu0 0.0
    %1414 = vmatmul.mubr.f32.gmra.mrb[0].mxu0 %v1276
    %v1415 = vpop.f32.mrb[0].mxu0
    %v1416 = vadd.f32 %v176, %v1415
    %v1417 = vpop.f32.mrb[0].mxu0
    %1418 = vdwg.mxu0
    %v1419 = vadd.f32 %v342, %v1345
    %v1420 = vxor.u32 %v1419, 2147483648
    %v1421 = vmul.f32 %v1420, 1.442695
    %v1422 = vpow.pop %v1421
    %v1423 = vadd.f32 %v1422, 1.0
    %v1424 = vrcp.pop %v1423
    %v1425 = vmul.f32 1.0, %v1424
    %v1426 = vadd.f32 %v344, %v1347
    %v1427 = vxor.u32 %v1426, 2147483648
    %v1428 = vmul.f32 %v1427, 1.442695
    %v1429 = vpow.pop %v1428
    %v1430 = vadd.f32 %v1429, 1.0
    %v1431 = vrcp.pop %v1430
    %v1432 = vmul.f32 1.0, %v1431
    %v1433 = vmul.f32 %v1425, %v1416
    %v1434 = vadd.f32 %v450, %v1433
    %v1435 = vtanh.pop %v1434
    %v1436 = vsub.f32 1.0, %v1432
    %v1437 = vmul.f32 %v1436, %v1435
    %v1438 = vmul.f32 %v1432, %v1276
    %v1439 = vadd.f32 %v1437, %v1438
    %1440 = vst [vmem:[#allocation2 + $0x28] sm:$0xff] %v1439
    %1441 = vmatprep.subr.mxu0 %v116
    %1442 = vmatpush1.msra.mxu0 %v115
    %1443 = vmatprep.subr.mxu0 %v119
    %1444 = vmatpush1.msra.mxu0 %v118
    %1445 = vmatprep.subr.mxu0 %v122
    %1446 = vmatpush1.msra.mxu0 %v121
    %1447 = vmatprep.subr.mxu0 %v125
    %1448 = vmatpush1.msra.mxu0 %v124
    %1449 = vmatprep.subr.mxu0 %v128
    %1450 = vmatpush1.msra.mxu0 %v127
    %1451 = vmatprep.subr.mxu0 %v131
    %1452 = vmatpush1.msra.mxu0 %v130
    %1453 = vmatprep.subr.mxu0 %v134
    %1454 = vmatpush1.msra.mxu0 %v133
    %1455 = vmatprep.subr.mxu0 %v137
    %1456 = vmatpush1.msra.mxu0 %v136
    %1457 = vmatprep.subr.mxu0 %v140
    %1458 = vmatpush1.msra.mxu0 %v139
    %1459 = vmatprep.subr.mxu0 %v143
    %1460 = vmatpush1.msra.mxu0 %v142
    %1461 = vmatprep.subr.mxu0 %v146
    %1462 = vmatpush1.msra.mxu0 %v145
    %1463 = vmatprep.subr.mxu0 %v149
    %1464 = vmatpush1.msra.mxu0 %v148
    %1465 = vmatprep.subr.mxu0 %v152
    %1466 = vmatpush1.msra.mxu0 %v151
    %1467 = vmatprep.subr.mxu0 %v155
    %1468 = vmatpush1.msra.mxu0 %v154
    %1469 = vmatprep.subr.mxu0 %v158
    %1470 = vmatpush1.msra.mxu0 %v157
    %1471 = vmatprep.subr.mxu0 %v161
    %1472 = vmatpush1.msra.mxu0 %v160
    %1473 = vmatprep.subr.mxu0 0.0
    %1474 = vmatpush1.msra.mxu0 0.0
    %1475 = vmatprep.subr.mxu0 0.0
    %1476 = vmatpush1.msra.mxu0 0.0
    %1477 = vmatprep.subr.mxu0 0.0
    %1478 = vmatpush1.msra.mxu0 0.0
    %1479 = vmatprep.subr.mxu0 0.0
    %1480 = vmatpush1.msra.mxu0 0.0
    %1481 = vmatprep.subr.mxu0 0.0
    %1482 = vmatpush1.msra.mxu0 0.0
    %1483 = vmatprep.subr.mxu0 0.0
    %1484 = vmatpush1.msra.mxu0 0.0
    %1485 = vmatprep.subr.mxu0 0.0
    %1486 = vmatpush1.msra.mxu0 0.0
    %1487 = vmatprep.subr.mxu0 0.0
    %1488 = vmatpush1.msra.mxu0 0.0
    %1489 = vmatprep.subr.mxu0 0.0
    %1490 = vmatpush1.msra.mxu0 0.0
    %1491 = vmatprep.subr.mxu0 0.0
    %1492 = vmatpush1.msra.mxu0 0.0
    %1493 = vmatprep.subr.mxu0 0.0
    %1494 = vmatpush1.msra.mxu0 0.0
    %1495 = vmatprep.subr.mxu0 0.0
    %1496 = vmatpush1.msra.mxu0 0.0
    %1497 = vmatprep.subr.mxu0 0.0
    %1498 = vmatpush1.msra.mxu0 0.0
    %1499 = vmatprep.subr.mxu0 0.0
    %1500 = vmatpush1.msra.mxu0 0.0
    %1501 = vmatprep.subr.mxu0 0.0
    %1502 = vmatpush1.msra.mxu0 0.0
    %1503 = vmatprep.subr.mxu0 0.0
    %1504 = vmatpush1.msra.mxu0 0.0
    %1505 = vmatprep.mubr.f32.mxu0 0.0
    %1506 = vmatmul.mubr.f32.gmra.mrb[0].mxu0 %v1439
    %v1507 = vpop.f32.mrb[0].mxu0
    %v1508 = vadd.f32 %v168, %v1507
    %v1509 = vpop.f32.mrb[0].mxu0
    %v1510 = vadd.f32 %v172, %v1509
    %1511 = vdwg.mxu0
    %1512 = vmatprep.subr.mxu0 0.0
    %1513 = vmatpush1.msra.mxu0 %v117
    %1514 = vmatprep.subr.mxu0 0.0
    %1515 = vmatpush1.msra.mxu0 %v120
    %1516 = vmatprep.subr.mxu0 0.0
    %1517 = vmatpush1.msra.mxu0 %v123
    %1518 = vmatprep.subr.mxu0 0.0
    %1519 = vmatpush1.msra.mxu0 %v126
    %1520 = vmatprep.subr.mxu0 0.0
    %1521 = vmatpush1.msra.mxu0 %v129
    %1522 = vmatprep.subr.mxu0 0.0
    %1523 = vmatpush1.msra.mxu0 %v132
    %1524 = vmatprep.subr.mxu0 0.0
    %1525 = vmatpush1.msra.mxu0 %v135
    %1526 = vmatprep.subr.mxu0 0.0
    %1527 = vmatpush1.msra.mxu0 %v138
    %1528 = vmatprep.subr.mxu0 0.0
    %1529 = vmatpush1.msra.mxu0 %v141
    %1530 = vmatprep.subr.mxu0 0.0
    %1531 = vmatpush1.msra.mxu0 %v144
    %1532 = vmatprep.subr.mxu0 0.0
    %1533 = vmatpush1.msra.mxu0 %v147
    %1534 = vmatprep.subr.mxu0 0.0
    %1535 = vmatpush1.msra.mxu0 %v150
    %1536 = vmatprep.subr.mxu0 0.0
    %1537 = vmatpush1.msra.mxu0 %v153
    %1538 = vmatprep.subr.mxu0 0.0
    %1539 = vmatpush1.msra.mxu0 %v156
    %1540 = vmatprep.subr.mxu0 0.0
    %1541 = vmatpush1.msra.mxu0 %v159
    %1542 = vmatprep.subr.mxu0 0.0
    %1543 = vmatpush1.msra.mxu0 %v162
    %1544 = vmatprep.subr.mxu0 0.0
    %1545 = vmatpush1.msra.mxu0 0.0
    %1546 = vmatprep.subr.mxu0 0.0
    %1547 = vmatpush1.msra.mxu0 0.0
    %1548 = vmatprep.subr.mxu0 0.0
    %1549 = vmatpush1.msra.mxu0 0.0
    %1550 = vmatprep.subr.mxu0 0.0
    %1551 = vmatpush1.msra.mxu0 0.0
    %1552 = vmatprep.subr.mxu0 0.0
    %1553 = vmatpush1.msra.mxu0 0.0
    %1554 = vmatprep.subr.mxu0 0.0
    %1555 = vmatpush1.msra.mxu0 0.0
    %1556 = vmatprep.subr.mxu0 0.0
    %1557 = vmatpush1.msra.mxu0 0.0
    %1558 = vmatprep.subr.mxu0 0.0
    %1559 = vmatpush1.msra.mxu0 0.0
    %1560 = vmatprep.subr.mxu0 0.0
    %1561 = vmatpush1.msra.mxu0 0.0
    %1562 = vmatprep.subr.mxu0 0.0
    %1563 = vmatpush1.msra.mxu0 0.0
    %1564 = vmatprep.subr.mxu0 0.0
    %1565 = vmatpush1.msra.mxu0 0.0
    %1566 = vmatprep.subr.mxu0 0.0
    %1567 = vmatpush1.msra.mxu0 0.0
    %1568 = vmatprep.subr.mxu0 0.0
    %1569 = vmatpush1.msra.mxu0 0.0
    %1570 = vmatprep.subr.mxu0 0.0
    %1571 = vmatpush1.msra.mxu0 0.0
    %1572 = vmatprep.subr.mxu0 0.0
    %1573 = vmatpush1.msra.mxu0 0.0
    %1574 = vmatprep.subr.mxu0 0.0
    %1575 = vmatpush1.msra.mxu0 0.0
    %1576 = vmatprep.mubr.f32.mxu0 0.0
    %1577 = vmatmul.mubr.f32.gmra.mrb[0].mxu0 %v1439
    %v1578 = vpop.f32.mrb[0].mxu0
    %v1579 = vadd.f32 %v176, %v1578
    %v1580 = vpop.f32.mrb[0].mxu0
    %1581 = vdwg.mxu0
    %v1582 = vadd.f32 %v348, %v1508
    %v1583 = vxor.u32 %v1582, 2147483648
    %v1584 = vmul.f32 %v1583, 1.442695
    %v1585 = vpow.pop %v1584
    %v1586 = vadd.f32 %v1585, 1.0
    %v1587 = vrcp.pop %v1586
    %v1588 = vmul.f32 1.0, %v1587
    %v1589 = vadd.f32 %v350, %v1510
    %v1590 = vxor.u32 %v1589, 2147483648
    %v1591 = vmul.f32 %v1590, 1.442695
    %v1592 = vpow.pop %v1591
    %v1593 = vadd.f32 %v1592, 1.0
    %v1594 = vrcp.pop %v1593
    %v1595 = vmul.f32 1.0, %v1594
    %v1596 = vmul.f32 %v1588, %v1579
    %v1597 = vadd.f32 %v455, %v1596
    %v1598 = vtanh.pop %v1597
    %v1599 = vsub.f32 1.0, %v1595
    %v1600 = vmul.f32 %v1599, %v1598
    %v1601 = vmul.f32 %v1595, %v1439
    %v1602 = vadd.f32 %v1600, %v1601
    %1603 = vst [vmem:[#allocation2 + $0x30] sm:$0xff] %v1602
    %1604 = vmatprep.subr.mxu0 %v116
    %1605 = vmatpush1.msra.mxu0 %v115
    %1606 = vmatprep.subr.mxu0 %v119
    %1607 = vmatpush1.msra.mxu0 %v118
    %1608 = vmatprep.subr.mxu0 %v122
    %1609 = vmatpush1.msra.mxu0 %v121
    %1610 = vmatprep.subr.mxu0 %v125
    %1611 = vmatpush1.msra.mxu0 %v124
    %1612 = vmatprep.subr.mxu0 %v128
    %1613 = vmatpush1.msra.mxu0 %v127
    %1614 = vmatprep.subr.mxu0 %v131
    %1615 = vmatpush1.msra.mxu0 %v130
    %1616 = vmatprep.subr.mxu0 %v134
    %1617 = vmatpush1.msra.mxu0 %v133
    %1618 = vmatprep.subr.mxu0 %v137
    %1619 = vmatpush1.msra.mxu0 %v136
    %1620 = vmatprep.subr.mxu0 %v140
    %1621 = vmatpush1.msra.mxu0 %v139
    %1622 = vmatprep.subr.mxu0 %v143
    %1623 = vmatpush1.msra.mxu0 %v142
    %1624 = vmatprep.subr.mxu0 %v146
    %1625 = vmatpush1.msra.mxu0 %v145
    %1626 = vmatprep.subr.mxu0 %v149
    %1627 = vmatpush1.msra.mxu0 %v148
    %1628 = vmatprep.subr.mxu0 %v152
    %1629 = vmatpush1.msra.mxu0 %v151
    %1630 = vmatprep.subr.mxu0 %v155
    %1631 = vmatpush1.msra.mxu0 %v154
    %1632 = vmatprep.subr.mxu0 %v158
    %1633 = vmatpush1.msra.mxu0 %v157
    %1634 = vmatprep.subr.mxu0 %v161
    %1635 = vmatpush1.msra.mxu0 %v160
    %1636 = vmatprep.subr.mxu0 0.0
    %1637 = vmatpush1.msra.mxu0 0.0
    %1638 = vmatprep.subr.mxu0 0.0
    %1639 = vmatpush1.msra.mxu0 0.0
    %1640 = vmatprep.subr.mxu0 0.0
    %1641 = vmatpush1.msra.mxu0 0.0
    %1642 = vmatprep.subr.mxu0 0.0
    %1643 = vmatpush1.msra.mxu0 0.0
    %1644 = vmatprep.subr.mxu0 0.0
    %1645 = vmatpush1.msra.mxu0 0.0
    %1646 = vmatprep.subr.mxu0 0.0
    %1647 = vmatpush1.msra.mxu0 0.0
    %1648 = vmatprep.subr.mxu0 0.0
    %1649 = vmatpush1.msra.mxu0 0.0
    %1650 = vmatprep.subr.mxu0 0.0
    %1651 = vmatpush1.msra.mxu0 0.0
    %1652 = vmatprep.subr.mxu0 0.0
    %1653 = vmatpush1.msra.mxu0 0.0
    %1654 = vmatprep.subr.mxu0 0.0
    %1655 = vmatpush1.msra.mxu0 0.0
    %1656 = vmatprep.subr.mxu0 0.0
    %1657 = vmatpush1.msra.mxu0 0.0
    %1658 = vmatprep.subr.mxu0 0.0
    %1659 = vmatpush1.msra.mxu0 0.0
    %1660 = vmatprep.subr.mxu0 0.0
    %1661 = vmatpush1.msra.mxu0 0.0
    %1662 = vmatprep.subr.mxu0 0.0
    %1663 = vmatpush1.msra.mxu0 0.0
    %1664 = vmatprep.subr.mxu0 0.0
    %1665 = vmatpush1.msra.mxu0 0.0
    %1666 = vmatprep.subr.mxu0 0.0
    %1667 = vmatpush1.msra.mxu0 0.0
    %1668 = vmatprep.mubr.f32.mxu0 0.0
    %1669 = vmatmul.mubr.f32.gmra.mrb[0].mxu0 %v1602
    %v1670 = vpop.f32.mrb[0].mxu0
    %v1671 = vadd.f32 %v168, %v1670
    %v1672 = vpop.f32.mrb[0].mxu0
    %v1673 = vadd.f32 %v172, %v1672
    %1674 = vdwg.mxu0
    %1675 = vmatprep.subr.mxu0 0.0
    %1676 = vmatpush1.msra.mxu0 %v117
    %1677 = vmatprep.subr.mxu0 0.0
    %1678 = vmatpush1.msra.mxu0 %v120
    %1679 = vmatprep.subr.mxu0 0.0
    %1680 = vmatpush1.msra.mxu0 %v123
    %1681 = vmatprep.subr.mxu0 0.0
    %1682 = vmatpush1.msra.mxu0 %v126
    %1683 = vmatprep.subr.mxu0 0.0
    %1684 = vmatpush1.msra.mxu0 %v129
    %1685 = vmatprep.subr.mxu0 0.0
    %1686 = vmatpush1.msra.mxu0 %v132
    %1687 = vmatprep.subr.mxu0 0.0
    %1688 = vmatpush1.msra.mxu0 %v135
    %1689 = vmatprep.subr.mxu0 0.0
    %1690 = vmatpush1.msra.mxu0 %v138
    %1691 = vmatprep.subr.mxu0 0.0
    %1692 = vmatpush1.msra.mxu0 %v141
    %1693 = vmatprep.subr.mxu0 0.0
    %1694 = vmatpush1.msra.mxu0 %v144
    %1695 = vmatprep.subr.mxu0 0.0
    %1696 = vmatpush1.msra.mxu0 %v147
    %1697 = vmatprep.subr.mxu0 0.0
    %1698 = vmatpush1.msra.mxu0 %v150
    %1699 = vmatprep.subr.mxu0 0.0
    %1700 = vmatpush1.msra.mxu0 %v153
    %1701 = vmatprep.subr.mxu0 0.0
    %1702 = vmatpush1.msra.mxu0 %v156
    %1703 = vmatprep.subr.mxu0 0.0
    %1704 = vmatpush1.msra.mxu0 %v159
    %1705 = vmatprep.subr.mxu0 0.0
    %1706 = vmatpush1.msra.mxu0 %v162
    %1707 = vmatprep.subr.mxu0 0.0
    %1708 = vmatpush1.msra.mxu0 0.0
    %1709 = vmatprep.subr.mxu0 0.0
    %1710 = vmatpush1.msra.mxu0 0.0
    %1711 = vmatprep.subr.mxu0 0.0
    %1712 = vmatpush1.msra.mxu0 0.0
    %1713 = vmatprep.subr.mxu0 0.0
    %1714 = vmatpush1.msra.mxu0 0.0
    %1715 = vmatprep.subr.mxu0 0.0
    %1716 = vmatpush1.msra.mxu0 0.0
    %1717 = vmatprep.subr.mxu0 0.0
    %1718 = vmatpush1.msra.mxu0 0.0
    %1719 = vmatprep.subr.mxu0 0.0
    %1720 = vmatpush1.msra.mxu0 0.0
    %1721 = vmatprep.subr.mxu0 0.0
    %1722 = vmatpush1.msra.mxu0 0.0
    %1723 = vmatprep.subr.mxu0 0.0
    %1724 = vmatpush1.msra.mxu0 0.0
    %1725 = vmatprep.subr.mxu0 0.0
    %1726 = vmatpush1.msra.mxu0 0.0
    %1727 = vmatprep.subr.mxu0 0.0
    %1728 = vmatpush1.msra.mxu0 0.0
    %1729 = vmatprep.subr.mxu0 0.0
    %1730 = vmatpush1.msra.mxu0 0.0
    %1731 = vmatprep.subr.mxu0 0.0
    %1732 = vmatpush1.msra.mxu0 0.0
    %1733 = vmatprep.subr.mxu0 0.0
    %1734 = vmatpush1.msra.mxu0 0.0
    %1735 = vmatprep.subr.mxu0 0.0
    %1736 = vmatpush1.msra.mxu0 0.0
    %1737 = vmatprep.subr.mxu0 0.0
    %1738 = vmatpush1.msra.mxu0 0.0
    %1739 = vmatprep.mubr.f32.mxu0 0.0
    %1740 = vmatmul.mubr.f32.gmra.mrb[0].mxu0 %v1602
    %v1741 = vpop.f32.mrb[0].mxu0
    %v1742 = vadd.f32 %v176, %v1741
    %v1743 = vpop.f32.mrb[0].mxu0
    %1744 = vdwg.mxu0
    %v1745 = vadd.f32 %v354, %v1671
    %v1746 = vxor.u32 %v1745, 2147483648
    %v1747 = vmul.f32 %v1746, 1.442695
    %v1748 = vpow.pop %v1747
    %v1749 = vadd.f32 %v1748, 1.0
    %v1750 = vrcp.pop %v1749
    %v1751 = vmul.f32 1.0, %v1750
    %v1752 = vadd.f32 %v356, %v1673
    %v1753 = vxor.u32 %v1752, 2147483648
    %v1754 = vmul.f32 %v1753, 1.442695
    %v1755 = vpow.pop %v1754
    %v1756 = vadd.f32 %v1755, 1.0
    %v1757 = vrcp.pop %v1756
    %v1758 = vmul.f32 1.0, %v1757
    %v1759 = vmul.f32 %v1751, %v1742
    %v1760 = vadd.f32 %v460, %v1759
    %v1761 = vtanh.pop %v1760
    %v1762 = vsub.f32 1.0, %v1758
    %v1763 = vmul.f32 %v1762, %v1761
    %v1764 = vmul.f32 %v1758, %v1602
    %v1765 = vadd.f32 %v1763, %v1764
    %1766 = vst [vmem:[#allocation2 + $0x38] sm:$0xff] %v1765
    %v1767 = vld [vmem:[#allocation2] sm:$0xff]
    %v1768 = vld [vmem:[#allocation2 + $0x8] sm:$0xff]
    %v1769 = vld [vmem:[#allocation2 + $0x10] sm:$0xff]
    %v1770 = vld [vmem:[#allocation2 + $0x18] sm:$0xff]
    %v1771 = vld [vmem:[#allocation2 + $0x20] sm:$0xff]
    %v1772 = vld [vmem:[#allocation2 + $0x28] sm:$0xff]
    %v1773 = vld [vmem:[#allocation2 + $0x30] sm:$0xff]
    %v1774 = vld [vmem:[#allocation2 + $0x38] sm:$0xff]
    %s1775 = scalar_lea.vmem [#allocation5], 384
    %v1776 = vld [vmem:[%s1775] sm:$0xff]
    %v1777 = vld [vmem:[%s1775 + $0x8] sm:$0xff]
    %v1778 = vld [vmem:[%s1775 + $0x10] sm:$0xff]
    %v1779 = vld [vmem:[%s1775 + $0x18] sm:$0xff]
    %v1780 = vld [vmem:[%s1775 + $0x20] sm:$0xff]
    %v1781 = vld [vmem:[%s1775 + $0x28] sm:$0xff]
    %v1782 = vld [vmem:[%s1775 + $0x30] sm:$0xff]
    %v1783 = vld [vmem:[%s1775 + $0x38] sm:$0xff]
    %v1784 = vld [vmem:[%s1775 + $0x40] sm:$0xff]
    %v1785 = vld [vmem:[%s1775 + $0x48] sm:$0xff]
    %v1786 = vld [vmem:[%s1775 + $0x50] sm:$0xff]
    %v1787 = vld [vmem:[%s1775 + $0x58] sm:$0xff]
    %v1788 = vld [vmem:[%s1775 + $0x60] sm:$0xff]
    %v1789 = vld [vmem:[%s1775 + $0x68] sm:$0xff]
    %v1790 = vld [vmem:[%s1775 + $0x70] sm:$0xff]
    %v1791 = vld [vmem:[%s1775 + $0x78] sm:$0xff]
    %v1792 = vld [vmem:[%s1775 + $0x80] sm:$0xff]
    %v1793 = vld [vmem:[%s1775 + $0x88] sm:$0xff]
    %v1794 = vld [vmem:[%s1775 + $0x90] sm:$0xff]
    %v1795 = vld [vmem:[%s1775 + $0x98] sm:$0xff]
    %v1796 = vld [vmem:[%s1775 + $0xa0] sm:$0xff]
    %v1797 = vld [vmem:[%s1775 + $0xa8] sm:$0xff]
    %v1798 = vld [vmem:[%s1775 + $0xb0] sm:$0xff]
    %v1799 = vld [vmem:[%s1775 + $0xb8] sm:$0xff]
    %v1800 = vld [vmem:[%s1775 + $0xc0] sm:$0xff]
    %v1801 = vld [vmem:[%s1775 + $0xc8] sm:$0xff]
    %v1802 = vld [vmem:[%s1775 + $0xd0] sm:$0xff]
    %v1803 = vld [vmem:[%s1775 + $0xd8] sm:$0xff]
    %v1804 = vld [vmem:[%s1775 + $0xe0] sm:$0xff]
    %v1805 = vld [vmem:[%s1775 + $0xe8] sm:$0xff]
    %v1806 = vld [vmem:[%s1775 + $0xf0] sm:$0xff]
    %v1807 = vld [vmem:[%s1775 + $0xf8] sm:$0xff]
    %v1808 = vld [vmem:[%s1775 + $0x100] sm:$0xff]
    %v1809 = vld [vmem:[%s1775 + $0x108] sm:$0xff]
    %v1810 = vld [vmem:[%s1775 + $0x110] sm:$0xff]
    %v1811 = vld [vmem:[%s1775 + $0x118] sm:$0xff]
    %v1812 = vld [vmem:[%s1775 + $0x120] sm:$0xff]
    %v1813 = vld [vmem:[%s1775 + $0x128] sm:$0xff]
    %v1814 = vld [vmem:[%s1775 + $0x130] sm:$0xff]
    %v1815 = vld [vmem:[%s1775 + $0x138] sm:$0xff]
    %v1816 = vld [vmem:[%s1775 + $0x140] sm:$0xff]
    %v1817 = vld [vmem:[%s1775 + $0x148] sm:$0xff]
    %v1818 = vld [vmem:[%s1775 + $0x150] sm:$0xff]
    %v1819 = vld [vmem:[%s1775 + $0x158] sm:$0xff]
    %v1820 = vld [vmem:[%s1775 + $0x160] sm:$0xff]
    %v1821 = vld [vmem:[%s1775 + $0x168] sm:$0xff]
    %v1822 = vld [vmem:[%s1775 + $0x170] sm:$0xff]
    %v1823 = vld [vmem:[%s1775 + $0x178] sm:$0xff]
    %s1824 = scalar_lea.vmem %s5, 3
    %v1825 = vld [vmem:[%s1824] sm:$0x7]
    %v1827 = vlaneseq
    %v1828 = vshrl.u32 %v1827, 7
    %v1829 = vsub.s32 0, %v1828
    %v1830 = vrot.slane %v1825, %v1829
    %v1831 = vlaneseq
    %v1832 = vshrl.u32 %v1831, 7
    %v1833 = vsub.s32 1, %v1832
    %v1834 = vrot.slane %v1825, %v1833
    %v1835 = vlaneseq
    %v1836 = vshrl.u32 %v1835, 7
    %v1837 = vsub.s32 2, %v1836
    %v1838 = vrot.slane %v1825, %v1837
    %s1842 = scalar_lea.vmem [#allocation3], 384
    %v1843 = vld [vmem:[%s1842] sm:$0xff]
    %v1844 = vld [vmem:[%s1842 + $0x8] sm:$0xff]
    %v1845 = vld [vmem:[%s1842 + $0x10] sm:$0xff]
    %v1846 = vld [vmem:[%s1842 + $0x18] sm:$0xff]
    %v1847 = vld [vmem:[%s1842 + $0x20] sm:$0xff]
    %v1848 = vld [vmem:[%s1842 + $0x28] sm:$0xff]
    %v1849 = vld [vmem:[%s1842 + $0x30] sm:$0xff]
    %v1850 = vld [vmem:[%s1842 + $0x38] sm:$0xff]
    %v1851 = vld [vmem:[%s1842 + $0x40] sm:$0xff]
    %v1852 = vld [vmem:[%s1842 + $0x48] sm:$0xff]
    %v1853 = vld [vmem:[%s1842 + $0x50] sm:$0xff]
    %v1854 = vld [vmem:[%s1842 + $0x58] sm:$0xff]
    %v1855 = vld [vmem:[%s1842 + $0x60] sm:$0xff]
    %v1856 = vld [vmem:[%s1842 + $0x68] sm:$0xff]
    %v1857 = vld [vmem:[%s1842 + $0x70] sm:$0xff]
    %v1858 = vld [vmem:[%s1842 + $0x78] sm:$0xff]
    %v1859 = vld [vmem:[%s1842 + $0x80] sm:$0xff]
    %v1860 = vld [vmem:[%s1842 + $0x88] sm:$0xff]
    %v1861 = vld [vmem:[%s1842 + $0x90] sm:$0xff]
    %v1862 = vld [vmem:[%s1842 + $0x98] sm:$0xff]
    %v1863 = vld [vmem:[%s1842 + $0xa0] sm:$0xff]
    %v1864 = vld [vmem:[%s1842 + $0xa8] sm:$0xff]
    %v1865 = vld [vmem:[%s1842 + $0xb0] sm:$0xff]
    %v1866 = vld [vmem:[%s1842 + $0xb8] sm:$0xff]
    %v1867 = vld [vmem:[%s1842 + $0xc0] sm:$0xff]
    %v1868 = vld [vmem:[%s1842 + $0xc8] sm:$0xff]
    %v1869 = vld [vmem:[%s1842 + $0xd0] sm:$0xff]
    %v1870 = vld [vmem:[%s1842 + $0xd8] sm:$0xff]
    %v1871 = vld [vmem:[%s1842 + $0xe0] sm:$0xff]
    %v1872 = vld [vmem:[%s1842 + $0xe8] sm:$0xff]
    %v1873 = vld [vmem:[%s1842 + $0xf0] sm:$0xff]
    %v1874 = vld [vmem:[%s1842 + $0xf8] sm:$0xff]
    %v1875 = vld [vmem:[%s1842 + $0x100] sm:$0xff]
    %v1876 = vld [vmem:[%s1842 + $0x108] sm:$0xff]
    %v1877 = vld [vmem:[%s1842 + $0x110] sm:$0xff]
    %v1878 = vld [vmem:[%s1842 + $0x118] sm:$0xff]
    %v1879 = vld [vmem:[%s1842 + $0x120] sm:$0xff]
    %v1880 = vld [vmem:[%s1842 + $0x128] sm:$0xff]
    %v1881 = vld [vmem:[%s1842 + $0x130] sm:$0xff]
    %v1882 = vld [vmem:[%s1842 + $0x138] sm:$0xff]
    %v1883 = vld [vmem:[%s1842 + $0x140] sm:$0xff]
    %v1884 = vld [vmem:[%s1842 + $0x148] sm:$0xff]
    %v1885 = vld [vmem:[%s1842 + $0x150] sm:$0xff]
    %v1886 = vld [vmem:[%s1842 + $0x158] sm:$0xff]
    %v1887 = vld [vmem:[%s1842 + $0x160] sm:$0xff]
    %v1888 = vld [vmem:[%s1842 + $0x168] sm:$0xff]
    %v1889 = vld [vmem:[%s1842 + $0x170] sm:$0xff]
    %v1890 = vld [vmem:[%s1842 + $0x178] sm:$0xff]
    %s1891 = scalar_lea.vmem %s4, 3
    %v1892 = vld [vmem:[%s1891] sm:$0x7]
    %v1894 = vlaneseq
    %v1895 = vshrl.u32 %v1894, 7
    %v1896 = vsub.s32 0, %v1895
    %v1897 = vrot.slane %v1892, %v1896
    %v1898 = vlaneseq
    %v1899 = vshrl.u32 %v1898, 7
    %v1900 = vsub.s32 1, %v1899
    %v1901 = vrot.slane %v1892, %v1900
    %v1902 = vlaneseq
    %v1903 = vshrl.u32 %v1902, 7
    %v1904 = vsub.s32 2, %v1903
    %v1905 = vrot.slane %v1892, %v1904
    %1909 = vmatprep.subr.mxu0 %v1844
    %1910 = vmatpush1.msra.mxu0 %v1843
    %1911 = vmatprep.subr.mxu0 %v1847
    %1912 = vmatpush1.msra.mxu0 %v1846
    %1913 = vmatprep.subr.mxu0 %v1850
    %1914 = vmatpush1.msra.mxu0 %v1849
    %1915 = vmatprep.subr.mxu0 %v1853
    %1916 = vmatpush1.msra.mxu0 %v1852
    %1917 = vmatprep.subr.mxu0 %v1856
    %1918 = vmatpush1.msra.mxu0 %v1855
    %1919 = vmatprep.subr.mxu0 %v1859
    %1920 = vmatpush1.msra.mxu0 %v1858
    %1921 = vmatprep.subr.mxu0 %v1862
    %1922 = vmatpush1.msra.mxu0 %v1861
    %1923 = vmatprep.subr.mxu0 %v1865
    %1924 = vmatpush1.msra.mxu0 %v1864
    %1925 = vmatprep.subr.mxu0 %v1868
    %1926 = vmatpush1.msra.mxu0 %v1867
    %1927 = vmatprep.subr.mxu0 %v1871
    %1928 = vmatpush1.msra.mxu0 %v1870
    %1929 = vmatprep.subr.mxu0 %v1874
    %1930 = vmatpush1.msra.mxu0 %v1873
    %1931 = vmatprep.subr.mxu0 %v1877
    %1932 = vmatpush1.msra.mxu0 %v1876
    %1933 = vmatprep.subr.mxu0 %v1880
    %1934 = vmatpush1.msra.mxu0 %v1879
    %1935 = vmatprep.subr.mxu0 %v1883
    %1936 = vmatpush1.msra.mxu0 %v1882
    %1937 = vmatprep.subr.mxu0 %v1886
    %1938 = vmatpush1.msra.mxu0 %v1885
    %1939 = vmatprep.subr.mxu0 %v1889
    %1940 = vmatpush1.msra.mxu0 %v1888
    %1941 = vmatprep.subr.mxu0 0.0
    %1942 = vmatpush1.msra.mxu0 0.0
    %1943 = vmatprep.subr.mxu0 0.0
    %1944 = vmatpush1.msra.mxu0 0.0
    %1945 = vmatprep.subr.mxu0 0.0
    %1946 = vmatpush1.msra.mxu0 0.0
    %1947 = vmatprep.subr.mxu0 0.0
    %1948 = vmatpush1.msra.mxu0 0.0
    %1949 = vmatprep.subr.mxu0 0.0
    %1950 = vmatpush1.msra.mxu0 0.0
    %1951 = vmatprep.subr.mxu0 0.0
    %1952 = vmatpush1.msra.mxu0 0.0
    %1953 = vmatprep.subr.mxu0 0.0
    %1954 = vmatpush1.msra.mxu0 0.0
    %1955 = vmatprep.subr.mxu0 0.0
    %1956 = vmatpush1.msra.mxu0 0.0
    %1957 = vmatprep.subr.mxu0 0.0
    %1958 = vmatpush1.msra.mxu0 0.0
    %1959 = vmatprep.subr.mxu0 0.0
    %1960 = vmatpush1.msra.mxu0 0.0
    %1961 = vmatprep.subr.mxu0 0.0
    %1962 = vmatpush1.msra.mxu0 0.0
    %1963 = vmatprep.subr.mxu0 0.0
    %1964 = vmatpush1.msra.mxu0 0.0
    %1965 = vmatprep.subr.mxu0 0.0
    %1966 = vmatpush1.msra.mxu0 0.0
    %1967 = vmatprep.subr.mxu0 0.0
    %1968 = vmatpush1.msra.mxu0 0.0
    %1969 = vmatprep.subr.mxu0 0.0
    %1970 = vmatpush1.msra.mxu0 0.0
    %1971 = vmatprep.subr.mxu0 0.0
    %1972 = vmatpush1.msra.mxu0 0.0
    %1973 = vmatprep.mubr.f32.mxu0 0.0
    %1974 = vmatmul.mubr.f32.gmra.mrb[0].mxu0 %v1767
    %v1975 = vpop.f32.mrb[0].mxu0
    %v1976 = vadd.f32 %v1897, %v1975
    %v1977 = vpop.f32.mrb[0].mxu0
    %v1978 = vadd.f32 %v1901, %v1977
    %1979 = vmatprep.mubr.f32.mxu0 0.0
    %1980 = vmatmul.mubr.f32.gmra.mrb[0].mxu0 %v1768
    %v1981 = vpop.f32.mrb[0].mxu0
    %v1982 = vadd.f32 %v1897, %v1981
    %v1983 = vpop.f32.mrb[0].mxu0
    %v1984 = vadd.f32 %v1901, %v1983
    %1985 = vmatprep.mubr.f32.mxu0 0.0
    %1986 = vmatmul.mubr.f32.gmra.mrb[0].mxu0 %v1769
    %v1987 = vpop.f32.mrb[0].mxu0
    %v1988 = vadd.f32 %v1897, %v1987
    %v1989 = vpop.f32.mrb[0].mxu0
    %v1990 = vadd.f32 %v1901, %v1989
    %1991 = vmatprep.mubr.f32.mxu0 0.0
    %1992 = vmatmul.mubr.f32.gmra.mrb[0].mxu0 %v1770
    %v1993 = vpop.f32.mrb[0].mxu0
    %v1994 = vadd.f32 %v1897, %v1993
    %v1995 = vpop.f32.mrb[0].mxu0
    %v1996 = vadd.f32 %v1901, %v1995
    %1997 = vmatprep.mubr.f32.mxu0 0.0
    %1998 = vmatmul.mubr.f32.gmra.mrb[0].mxu0 %v1771
    %v1999 = vpop.f32.mrb[0].mxu0
    %v2000 = vadd.f32 %v1897, %v1999
    %v2001 = vpop.f32.mrb[0].mxu0
    %v2002 = vadd.f32 %v1901, %v2001
    %2003 = vmatprep.mubr.f32.mxu0 0.0
    %2004 = vmatmul.mubr.f32.gmra.mrb[0].mxu0 %v1772
    %v2005 = vpop.f32.mrb[0].mxu0
    %v2006 = vadd.f32 %v1897, %v2005
    %v2007 = vpop.f32.mrb[0].mxu0
    %v2008 = vadd.f32 %v1901, %v2007
    %2009 = vmatprep.mubr.f32.mxu0 0.0
    %2010 = vmatmul.mubr.f32.gmra.mrb[0].mxu0 %v1773
    %v2011 = vpop.f32.mrb[0].mxu0
    %v2012 = vadd.f32 %v1897, %v2011
    %v2013 = vpop.f32.mrb[0].mxu0
    %v2014 = vadd.f32 %v1901, %v2013
    %2015 = vmatprep.mubr.f32.mxu0 0.0
    %2016 = vmatmul.mubr.f32.gmra.mrb[0].mxu0 %v1774
    %v2017 = vpop.f32.mrb[0].mxu0
    %v2018 = vadd.f32 %v1897, %v2017
    %v2019 = vpop.f32.mrb[0].mxu0
    %v2020 = vadd.f32 %v1901, %v2019
    %2021 = vdwg.mxu0
    %2022 = vmatprep.subr.mxu0 0.0
    %2023 = vmatpush1.msra.mxu0 %v1845
    %2024 = vmatprep.subr.mxu0 0.0
    %2025 = vmatpush1.msra.mxu0 %v1848
    %2026 = vmatprep.subr.mxu0 0.0
    %2027 = vmatpush1.msra.mxu0 %v1851
    %2028 = vmatprep.subr.mxu0 0.0
    %2029 = vmatpush1.msra.mxu0 %v1854
    %2030 = vmatprep.subr.mxu0 0.0
    %2031 = vmatpush1.msra.mxu0 %v1857
    %2032 = vmatprep.subr.mxu0 0.0
    %2033 = vmatpush1.msra.mxu0 %v1860
    %2034 = vmatprep.subr.mxu0 0.0
    %2035 = vmatpush1.msra.mxu0 %v1863
    %2036 = vmatprep.subr.mxu0 0.0
    %2037 = vmatpush1.msra.mxu0 %v1866
    %2038 = vmatprep.subr.mxu0 0.0
    %2039 = vmatpush1.msra.mxu0 %v1869
    %2040 = vmatprep.subr.mxu0 0.0
    %2041 = vmatpush1.msra.mxu0 %v1872
    %2042 = vmatprep.subr.mxu0 0.0
    %2043 = vmatpush1.msra.mxu0 %v1875
    %2044 = vmatprep.subr.mxu0 0.0
    %2045 = vmatpush1.msra.mxu0 %v1878
    %2046 = vmatprep.subr.mxu0 0.0
    %2047 = vmatpush1.msra.mxu0 %v1881
    %2048 = vmatprep.subr.mxu0 0.0
    %2049 = vmatpush1.msra.mxu0 %v1884
    %2050 = vmatprep.subr.mxu0 0.0
    %2051 = vmatpush1.msra.mxu0 %v1887
    %2052 = vmatprep.subr.mxu0 0.0
    %2053 = vmatpush1.msra.mxu0 %v1890
    %2054 = vmatprep.subr.mxu0 0.0
    %2055 = vmatpush1.msra.mxu0 0.0
    %2056 = vmatprep.subr.mxu0 0.0
    %2057 = vmatpush1.msra.mxu0 0.0
    %2058 = vmatprep.subr.mxu0 0.0
    %2059 = vmatpush1.msra.mxu0 0.0
    %2060 = vmatprep.subr.mxu0 0.0
    %2061 = vmatpush1.msra.mxu0 0.0
    %2062 = vmatprep.subr.mxu0 0.0
    %2063 = vmatpush1.msra.mxu0 0.0
    %2064 = vmatprep.subr.mxu0 0.0
    %2065 = vmatpush1.msra.mxu0 0.0
    %2066 = vmatprep.subr.mxu0 0.0
    %2067 = vmatpush1.msra.mxu0 0.0
    %2068 = vmatprep.subr.mxu0 0.0
    %2069 = vmatpush1.msra.mxu0 0.0
    %2070 = vmatprep.subr.mxu0 0.0
    %2071 = vmatpush1.msra.mxu0 0.0
    %2072 = vmatprep.subr.mxu0 0.0
    %2073 = vmatpush1.msra.mxu0 0.0
    %2074 = vmatprep.subr.mxu0 0.0
    %2075 = vmatpush1.msra.mxu0 0.0
    %2076 = vmatprep.subr.mxu0 0.0
    %2077 = vmatpush1.msra.mxu0 0.0
    %2078 = vmatprep.subr.mxu0 0.0
    %2079 = vmatpush1.msra.mxu0 0.0
    %2080 = vmatprep.subr.mxu0 0.0
    %2081 = vmatpush1.msra.mxu0 0.0
    %2082 = vmatprep.subr.mxu0 0.0
    %2083 = vmatpush1.msra.mxu0 0.0
    %2084 = vmatprep.subr.mxu0 0.0
    %2085 = vmatpush1.msra.mxu0 0.0
    %2086 = vmatprep.mubr.f32.mxu0 0.0
    %2087 = vmatmul.mubr.f32.gmra.mrb[0].mxu0 %v1767
    %v2088 = vpop.f32.mrb[0].mxu0
    %v2089 = vadd.f32 %v1905, %v2088
    %v2090 = vpop.f32.mrb[0].mxu0
    %2091 = vmatprep.mubr.f32.mxu0 0.0
    %2092 = vmatmul.mubr.f32.gmra.mrb[0].mxu0 %v1768
    %v2093 = vpop.f32.mrb[0].mxu0
    %v2094 = vadd.f32 %v1905, %v2093
    %v2095 = vpop.f32.mrb[0].mxu0
    %2096 = vmatprep.mubr.f32.mxu0 0.0
    %2097 = vmatmul.mubr.f32.gmra.mrb[0].mxu0 %v1769
    %v2098 = vpop.f32.mrb[0].mxu0
    %v2099 = vadd.f32 %v1905, %v2098
    %v2100 = vpop.f32.mrb[0].mxu0
    %2101 = vmatprep.mubr.f32.mxu0 0.0
    %2102 = vmatmul.mubr.f32.gmra.mrb[0].mxu0 %v1770
    %v2103 = vpop.f32.mrb[0].mxu0
    %v2104 = vadd.f32 %v1905, %v2103
    %v2105 = vpop.f32.mrb[0].mxu0
    %2106 = vmatprep.mubr.f32.mxu0 0.0
    %2107 = vmatmul.mubr.f32.gmra.mrb[0].mxu0 %v1771
    %v2108 = vpop.f32.mrb[0].mxu0
    %v2109 = vadd.f32 %v1905, %v2108
    %v2110 = vpop.f32.mrb[0].mxu0
    %2111 = vmatprep.mubr.f32.mxu0 0.0
    %2112 = vmatmul.mubr.f32.gmra.mrb[0].mxu0 %v1772
    %v2113 = vpop.f32.mrb[0].mxu0
    %v2114 = vadd.f32 %v1905, %v2113
    %v2115 = vpop.f32.mrb[0].mxu0
    %2116 = vmatprep.mubr.f32.mxu0 0.0
    %2117 = vmatmul.mubr.f32.gmra.mrb[0].mxu0 %v1773
    %v2118 = vpop.f32.mrb[0].mxu0
    %v2119 = vadd.f32 %v1905, %v2118
    %v2120 = vpop.f32.mrb[0].mxu0
    %2121 = vmatprep.mubr.f32.mxu0 0.0
    %2122 = vmatmul.mubr.f32.gmra.mrb[0].mxu0 %v1774
    %v2123 = vpop.f32.mrb[0].mxu0
    %v2124 = vadd.f32 %v1905, %v2123
    %v2125 = vpop.f32.mrb[0].mxu0
    %2126 = vdwg.mxu0
    %2127 = vmatprep.subr.mxu0 %v1777
    %2128 = vmatpush1.msra.mxu0 %v1776
    %2129 = vmatprep.subr.mxu0 %v1780
    %2130 = vmatpush1.msra.mxu0 %v1779
    %2131 = vmatprep.subr.mxu0 %v1783
    %2132 = vmatpush1.msra.mxu0 %v1782
    %2133 = vmatprep.subr.mxu0 %v1786
    %2134 = vmatpush1.msra.mxu0 %v1785
    %2135 = vmatprep.subr.mxu0 %v1789
    %2136 = vmatpush1.msra.mxu0 %v1788
    %2137 = vmatprep.subr.mxu0 %v1792
    %2138 = vmatpush1.msra.mxu0 %v1791
    %2139 = vmatprep.subr.mxu0 %v1795
    %2140 = vmatpush1.msra.mxu0 %v1794
    %2141 = vmatprep.subr.mxu0 %v1798
    %2142 = vmatpush1.msra.mxu0 %v1797
    %2143 = vmatprep.subr.mxu0 %v1801
    %2144 = vmatpush1.msra.mxu0 %v1800
    %2145 = vmatprep.subr.mxu0 %v1804
    %2146 = vmatpush1.msra.mxu0 %v1803
    %2147 = vmatprep.subr.mxu0 %v1807
    %2148 = vmatpush1.msra.mxu0 %v1806
    %2149 = vmatprep.subr.mxu0 %v1810
    %2150 = vmatpush1.msra.mxu0 %v1809
    %2151 = vmatprep.subr.mxu0 %v1813
    %2152 = vmatpush1.msra.mxu0 %v1812
    %2153 = vmatprep.subr.mxu0 %v1816
    %2154 = vmatpush1.msra.mxu0 %v1815
    %2155 = vmatprep.subr.mxu0 %v1819
    %2156 = vmatpush1.msra.mxu0 %v1818
    %2157 = vmatprep.subr.mxu0 %v1822
    %2158 = vmatpush1.msra.mxu0 %v1821
    %2159 = vmatprep.subr.mxu0 0.0
    %2160 = vmatpush1.msra.mxu0 0.0
    %2161 = vmatprep.subr.mxu0 0.0
    %2162 = vmatpush1.msra.mxu0 0.0
    %2163 = vmatprep.subr.mxu0 0.0
    %2164 = vmatpush1.msra.mxu0 0.0
    %2165 = vmatprep.subr.mxu0 0.0
    %2166 = vmatpush1.msra.mxu0 0.0
    %2167 = vmatprep.subr.mxu0 0.0
    %2168 = vmatpush1.msra.mxu0 0.0
    %2169 = vmatprep.subr.mxu0 0.0
    %2170 = vmatpush1.msra.mxu0 0.0
    %2171 = vmatprep.subr.mxu0 0.0
    %2172 = vmatpush1.msra.mxu0 0.0
    %2173 = vmatprep.subr.mxu0 0.0
    %2174 = vmatpush1.msra.mxu0 0.0
    %2175 = vmatprep.subr.mxu0 0.0
    %2176 = vmatpush1.msra.mxu0 0.0
    %2177 = vmatprep.subr.mxu0 0.0
    %2178 = vmatpush1.msra.mxu0 0.0
    %2179 = vmatprep.subr.mxu0 0.0
    %2180 = vmatpush1.msra.mxu0 0.0
    %2181 = vmatprep.subr.mxu0 0.0
    %2182 = vmatpush1.msra.mxu0 0.0
    %2183 = vmatprep.subr.mxu0 0.0
    %2184 = vmatpush1.msra.mxu0 0.0
    %2185 = vmatprep.subr.mxu0 0.0
    %2186 = vmatpush1.msra.mxu0 0.0
    %2187 = vmatprep.subr.mxu0 0.0
    %2188 = vmatpush1.msra.mxu0 0.0
    %2189 = vmatprep.subr.mxu0 0.0
    %2190 = vmatpush1.msra.mxu0 0.0
    %2191 = vmatprep.mubr.f32.mxu0 0.0
    %2192 = vmatmul.mubr.f32.gmra.mrb[0].mxu0 0.0
    %v2193 = vpop.f32.mrb[0].mxu0
    %v2194 = vadd.f32 %v1830, %v2193
    %v2195 = vpop.f32.mrb[0].mxu0
    %v2196 = vadd.f32 %v1834, %v2195
    %2197 = vdwg.mxu0
    %2198 = vmatprep.subr.mxu0 0.0
    %2199 = vmatpush1.msra.mxu0 %v1778
    %2200 = vmatprep.subr.mxu0 0.0
    %2201 = vmatpush1.msra.mxu0 %v1781
    %2202 = vmatprep.subr.mxu0 0.0
    %2203 = vmatpush1.msra.mxu0 %v1784
    %2204 = vmatprep.subr.mxu0 0.0
    %2205 = vmatpush1.msra.mxu0 %v1787
    %2206 = vmatprep.subr.mxu0 0.0
    %2207 = vmatpush1.msra.mxu0 %v1790
    %2208 = vmatprep.subr.mxu0 0.0
    %2209 = vmatpush1.msra.mxu0 %v1793
    %2210 = vmatprep.subr.mxu0 0.0
    %2211 = vmatpush1.msra.mxu0 %v1796
    %2212 = vmatprep.subr.mxu0 0.0
    %2213 = vmatpush1.msra.mxu0 %v1799
    %2214 = vmatprep.subr.mxu0 0.0
    %2215 = vmatpush1.msra.mxu0 %v1802
    %2216 = vmatprep.subr.mxu0 0.0
    %2217 = vmatpush1.msra.mxu0 %v1805
    %2218 = vmatprep.subr.mxu0 0.0
    %2219 = vmatpush1.msra.mxu0 %v1808
    %2220 = vmatprep.subr.mxu0 0.0
    %2221 = vmatpush1.msra.mxu0 %v1811
    %2222 = vmatprep.subr.mxu0 0.0
    %2223 = vmatpush1.msra.mxu0 %v1814
    %2224 = vmatprep.subr.mxu0 0.0
    %2225 = vmatpush1.msra.mxu0 %v1817
    %2226 = vmatprep.subr.mxu0 0.0
    %2227 = vmatpush1.msra.mxu0 %v1820
    %2228 = vmatprep.subr.mxu0 0.0
    %2229 = vmatpush1.msra.mxu0 %v1823
    %2230 = vmatprep.subr.mxu0 0.0
    %2231 = vmatpush1.msra.mxu0 0.0
    %2232 = vmatprep.subr.mxu0 0.0
    %2233 = vmatpush1.msra.mxu0 0.0
    %2234 = vmatprep.subr.mxu0 0.0
    %2235 = vmatpush1.msra.mxu0 0.0
    %2236 = vmatprep.subr.mxu0 0.0
    %2237 = vmatpush1.msra.mxu0 0.0
    %2238 = vmatprep.subr.mxu0 0.0
    %2239 = vmatpush1.msra.mxu0 0.0
    %2240 = vmatprep.subr.mxu0 0.0
    %2241 = vmatpush1.msra.mxu0 0.0
    %2242 = vmatprep.subr.mxu0 0.0
    %2243 = vmatpush1.msra.mxu0 0.0
    %2244 = vmatprep.subr.mxu0 0.0
    %2245 = vmatpush1.msra.mxu0 0.0
    %2246 = vmatprep.subr.mxu0 0.0
    %2247 = vmatpush1.msra.mxu0 0.0
    %2248 = vmatprep.subr.mxu0 0.0
    %2249 = vmatpush1.msra.mxu0 0.0
    %2250 = vmatprep.subr.mxu0 0.0
    %2251 = vmatpush1.msra.mxu0 0.0
    %2252 = vmatprep.subr.mxu0 0.0
    %2253 = vmatpush1.msra.mxu0 0.0
    %2254 = vmatprep.subr.mxu0 0.0
    %2255 = vmatpush1.msra.mxu0 0.0
    %2256 = vmatprep.subr.mxu0 0.0
    %2257 = vmatpush1.msra.mxu0 0.0
    %2258 = vmatprep.subr.mxu0 0.0
    %2259 = vmatpush1.msra.mxu0 0.0
    %2260 = vmatprep.subr.mxu0 0.0
    %2261 = vmatpush1.msra.mxu0 0.0
    %2262 = vmatprep.mubr.f32.mxu0 0.0
    %2263 = vmatmul.mubr.f32.gmra.mrb[0].mxu0 0.0
    %v2264 = vpop.f32.mrb[0].mxu0
    %v2265 = vadd.f32 %v1838, %v2264
    %v2266 = vpop.f32.mrb[0].mxu0
    %2267 = vdwg.mxu0
    %v2268 = vadd.f32 %v1976, %v2194
    %v2269 = vxor.u32 %v2268, 2147483648
    %v2270 = vmul.f32 %v2269, 1.442695
    %v2271 = vpow.pop %v2270
    %v2272 = vadd.f32 %v2271, 1.0
    %v2273 = vrcp.pop %v2272
    %v2274 = vmul.f32 1.0, %v2273
    %v2275 = vadd.f32 %v1978, %v2196
    %v2276 = vxor.u32 %v2275, 2147483648
    %v2277 = vmul.f32 %v2276, 1.442695
    %v2278 = vpow.pop %v2277
    %v2279 = vadd.f32 %v2278, 1.0
    %v2280 = vrcp.pop %v2279
    %v2281 = vmul.f32 1.0, %v2280
    %v2282 = vmul.f32 %v2274, %v2265
    %v2283 = vadd.f32 %v2089, %v2282
    %v2284 = vtanh.pop %v2283
    %v2285 = vsub.f32 1.0, %v2281
    %v2286 = vmul.f32 %v2285, %v2284
    %v2287 = vmul.f32 %v2281, 0.0
    %v2288 = vadd.f32 %v2286, %v2287
    %2289 = vmatprep.subr.mxu0 %v1777
    %2290 = vmatpush1.msra.mxu0 %v1776
    %2291 = vmatprep.subr.mxu0 %v1780
    %2292 = vmatpush1.msra.mxu0 %v1779
    %2293 = vmatprep.subr.mxu0 %v1783
    %2294 = vmatpush1.msra.mxu0 %v1782
    %2295 = vmatprep.subr.mxu0 %v1786
    %2296 = vmatpush1.msra.mxu0 %v1785
    %2297 = vmatprep.subr.mxu0 %v1789
    %2298 = vmatpush1.msra.mxu0 %v1788
    %2299 = vmatprep.subr.mxu0 %v1792
    %2300 = vmatpush1.msra.mxu0 %v1791
    %2301 = vmatprep.subr.mxu0 %v1795
    %2302 = vmatpush1.msra.mxu0 %v1794
    %2303 = vmatprep.subr.mxu0 %v1798
    %2304 = vmatpush1.msra.mxu0 %v1797
    %2305 = vmatprep.subr.mxu0 %v1801
    %2306 = vmatpush1.msra.mxu0 %v1800
    %2307 = vmatprep.subr.mxu0 %v1804
    %2308 = vmatpush1.msra.mxu0 %v1803
    %2309 = vmatprep.subr.mxu0 %v1807
    %2310 = vmatpush1.msra.mxu0 %v1806
    %2311 = vmatprep.subr.mxu0 %v1810
    %2312 = vmatpush1.msra.mxu0 %v1809
    %2313 = vmatprep.subr.mxu0 %v1813
    %2314 = vmatpush1.msra.mxu0 %v1812
    %2315 = vmatprep.subr.mxu0 %v1816
    %2316 = vmatpush1.msra.mxu0 %v1815
    %2317 = vmatprep.subr.mxu0 %v1819
    %2318 = vmatpush1.msra.mxu0 %v1818
    %2319 = vmatprep.subr.mxu0 %v1822
    %2320 = vmatpush1.msra.mxu0 %v1821
    %2321 = vmatprep.subr.mxu0 0.0
    %2322 = vmatpush1.msra.mxu0 0.0
    %2323 = vmatprep.subr.mxu0 0.0
    %2324 = vmatpush1.msra.mxu0 0.0
    %2325 = vmatprep.subr.mxu0 0.0
    %2326 = vmatpush1.msra.mxu0 0.0
    %2327 = vmatprep.subr.mxu0 0.0
    %2328 = vmatpush1.msra.mxu0 0.0
    %2329 = vmatprep.subr.mxu0 0.0
    %2330 = vmatpush1.msra.mxu0 0.0
    %2331 = vmatprep.subr.mxu0 0.0
    %2332 = vmatpush1.msra.mxu0 0.0
    %2333 = vmatprep.subr.mxu0 0.0
    %2334 = vmatpush1.msra.mxu0 0.0
    %2335 = vmatprep.subr.mxu0 0.0
    %2336 = vmatpush1.msra.mxu0 0.0
    %2337 = vmatprep.subr.mxu0 0.0
    %2338 = vmatpush1.msra.mxu0 0.0
    %2339 = vmatprep.subr.mxu0 0.0
    %2340 = vmatpush1.msra.mxu0 0.0
    %2341 = vmatprep.subr.mxu0 0.0
    %2342 = vmatpush1.msra.mxu0 0.0
    %2343 = vmatprep.subr.mxu0 0.0
    %2344 = vmatpush1.msra.mxu0 0.0
    %2345 = vmatprep.subr.mxu0 0.0
    %2346 = vmatpush1.msra.mxu0 0.0
    %2347 = vmatprep.subr.mxu0 0.0
    %2348 = vmatpush1.msra.mxu0 0.0
    %2349 = vmatprep.subr.mxu0 0.0
    %2350 = vmatpush1.msra.mxu0 0.0
    %2351 = vmatprep.subr.mxu0 0.0
    %2352 = vmatpush1.msra.mxu0 0.0
    %2353 = vmatprep.mubr.f32.mxu0 0.0
    %2354 = vmatmul.mubr.f32.gmra.mrb[0].mxu0 %v2288
    %v2355 = vpop.f32.mrb[0].mxu0
    %v2356 = vadd.f32 %v1830, %v2355
    %v2357 = vpop.f32.mrb[0].mxu0
    %v2358 = vadd.f32 %v1834, %v2357
    %2359 = vdwg.mxu0
    %2360 = vmatprep.subr.mxu0 0.0
    %2361 = vmatpush1.msra.mxu0 %v1778
    %2362 = vmatprep.subr.mxu0 0.0
    %2363 = vmatpush1.msra.mxu0 %v1781
    %2364 = vmatprep.subr.mxu0 0.0
    %2365 = vmatpush1.msra.mxu0 %v1784
    %2366 = vmatprep.subr.mxu0 0.0
    %2367 = vmatpush1.msra.mxu0 %v1787
    %2368 = vmatprep.subr.mxu0 0.0
    %2369 = vmatpush1.msra.mxu0 %v1790
    %2370 = vmatprep.subr.mxu0 0.0
    %2371 = vmatpush1.msra.mxu0 %v1793
    %2372 = vmatprep.subr.mxu0 0.0
    %2373 = vmatpush1.msra.mxu0 %v1796
    %2374 = vmatprep.subr.mxu0 0.0
    %2375 = vmatpush1.msra.mxu0 %v1799
    %2376 = vmatprep.subr.mxu0 0.0
    %2377 = vmatpush1.msra.mxu0 %v1802
    %2378 = vmatprep.subr.mxu0 0.0
    %2379 = vmatpush1.msra.mxu0 %v1805
    %2380 = vmatprep.subr.mxu0 0.0
    %2381 = vmatpush1.msra.mxu0 %v1808
    %2382 = vmatprep.subr.mxu0 0.0
    %2383 = vmatpush1.msra.mxu0 %v1811
    %2384 = vmatprep.subr.mxu0 0.0
    %2385 = vmatpush1.msra.mxu0 %v1814
    %2386 = vmatprep.subr.mxu0 0.0
    %2387 = vmatpush1.msra.mxu0 %v1817
    %2388 = vmatprep.subr.mxu0 0.0
    %2389 = vmatpush1.msra.mxu0 %v1820
    %2390 = vmatprep.subr.mxu0 0.0
    %2391 = vmatpush1.msra.mxu0 %v1823
    %2392 = vmatprep.subr.mxu0 0.0
    %2393 = vmatpush1.msra.mxu0 0.0
    %2394 = vmatprep.subr.mxu0 0.0
    %2395 = vmatpush1.msra.mxu0 0.0
    %2396 = vmatprep.subr.mxu0 0.0
    %2397 = vmatpush1.msra.mxu0 0.0
    %2398 = vmatprep.subr.mxu0 0.0
    %2399 = vmatpush1.msra.mxu0 0.0
    %2400 = vmatprep.subr.mxu0 0.0
    %2401 = vmatpush1.msra.mxu0 0.0
    %2402 = vmatprep.subr.mxu0 0.0
    %2403 = vmatpush1.msra.mxu0 0.0
    %2404 = vmatprep.subr.mxu0 0.0
    %2405 = vmatpush1.msra.mxu0 0.0
    %2406 = vmatprep.subr.mxu0 0.0
    %2407 = vmatpush1.msra.mxu0 0.0
    %2408 = vmatprep.subr.mxu0 0.0
    %2409 = vmatpush1.msra.mxu0 0.0
    %2410 = vmatprep.subr.mxu0 0.0
    %2411 = vmatpush1.msra.mxu0 0.0
    %2412 = vmatprep.subr.mxu0 0.0
    %2413 = vmatpush1.msra.mxu0 0.0
    %2414 = vmatprep.subr.mxu0 0.0
    %2415 = vmatpush1.msra.mxu0 0.0
    %2416 = vmatprep.subr.mxu0 0.0
    %2417 = vmatpush1.msra.mxu0 0.0
    %2418 = vmatprep.subr.mxu0 0.0
    %2419 = vmatpush1.msra.mxu0 0.0
    %2420 = vmatprep.subr.mxu0 0.0
    %2421 = vmatpush1.msra.mxu0 0.0
    %2422 = vmatprep.subr.mxu0 0.0
    %2423 = vmatpush1.msra.mxu0 0.0
    %2424 = vmatprep.mubr.f32.mxu0 0.0
    %2425 = vmatmul.mubr.f32.gmra.mrb[0].mxu0 %v2288
    %v2426 = vpop.f32.mrb[0].mxu0
    %v2427 = vadd.f32 %v1838, %v2426
    %v2428 = vpop.f32.mrb[0].mxu0
    %2429 = vdwg.mxu0
    %v2430 = vadd.f32 %v1982, %v2356
    %v2431 = vxor.u32 %v2430, 2147483648
    %v2432 = vmul.f32 %v2431, 1.442695
    %v2433 = vpow.pop %v2432
    %v2434 = vadd.f32 %v2433, 1.0
    %v2435 = vrcp.pop %v2434
    %v2436 = vmul.f32 1.0, %v2435
    %v2437 = vadd.f32 %v1984, %v2358
    %v2438 = vxor.u32 %v2437, 2147483648
    %v2439 = vmul.f32 %v2438, 1.442695
    %v2440 = vpow.pop %v2439
    %v2441 = vadd.f32 %v2440, 1.0
    %v2442 = vrcp.pop %v2441
    %v2443 = vmul.f32 1.0, %v2442
    %v2444 = vmul.f32 %v2436, %v2427
    %v2445 = vadd.f32 %v2094, %v2444
    %v2446 = vtanh.pop %v2445
    %v2447 = vsub.f32 1.0, %v2443
    %v2448 = vmul.f32 %v2447, %v2446
    %v2449 = vmul.f32 %v2443, %v2288
    %v2450 = vadd.f32 %v2448, %v2449
    %2451 = vmatprep.subr.mxu0 %v1777
    %2452 = vmatpush1.msra.mxu0 %v1776
    %2453 = vmatprep.subr.mxu0 %v1780
    %2454 = vmatpush1.msra.mxu0 %v1779
    %2455 = vmatprep.subr.mxu0 %v1783
    %2456 = vmatpush1.msra.mxu0 %v1782
    %2457 = vmatprep.subr.mxu0 %v1786
    %2458 = vmatpush1.msra.mxu0 %v1785
    %2459 = vmatprep.subr.mxu0 %v1789
    %2460 = vmatpush1.msra.mxu0 %v1788
    %2461 = vmatprep.subr.mxu0 %v1792
    %2462 = vmatpush1.msra.mxu0 %v1791
    %2463 = vmatprep.subr.mxu0 %v1795
    %2464 = vmatpush1.msra.mxu0 %v1794
    %2465 = vmatprep.subr.mxu0 %v1798
    %2466 = vmatpush1.msra.mxu0 %v1797
    %2467 = vmatprep.subr.mxu0 %v1801
    %2468 = vmatpush1.msra.mxu0 %v1800
    %2469 = vmatprep.subr.mxu0 %v1804
    %2470 = vmatpush1.msra.mxu0 %v1803
    %2471 = vmatprep.subr.mxu0 %v1807
    %2472 = vmatpush1.msra.mxu0 %v1806
    %2473 = vmatprep.subr.mxu0 %v1810
    %2474 = vmatpush1.msra.mxu0 %v1809
    %2475 = vmatprep.subr.mxu0 %v1813
    %2476 = vmatpush1.msra.mxu0 %v1812
    %2477 = vmatprep.subr.mxu0 %v1816
    %2478 = vmatpush1.msra.mxu0 %v1815
    %2479 = vmatprep.subr.mxu0 %v1819
    %2480 = vmatpush1.msra.mxu0 %v1818
    %2481 = vmatprep.subr.mxu0 %v1822
    %2482 = vmatpush1.msra.mxu0 %v1821
    %2483 = vmatprep.subr.mxu0 0.0
    %2484 = vmatpush1.msra.mxu0 0.0
    %2485 = vmatprep.subr.mxu0 0.0
    %2486 = vmatpush1.msra.mxu0 0.0
    %2487 = vmatprep.subr.mxu0 0.0
    %2488 = vmatpush1.msra.mxu0 0.0
    %2489 = vmatprep.subr.mxu0 0.0
    %2490 = vmatpush1.msra.mxu0 0.0
    %2491 = vmatprep.subr.mxu0 0.0
    %2492 = vmatpush1.msra.mxu0 0.0
    %2493 = vmatprep.subr.mxu0 0.0
    %2494 = vmatpush1.msra.mxu0 0.0
    %2495 = vmatprep.subr.mxu0 0.0
    %2496 = vmatpush1.msra.mxu0 0.0
    %2497 = vmatprep.subr.mxu0 0.0
    %2498 = vmatpush1.msra.mxu0 0.0
    %2499 = vmatprep.subr.mxu0 0.0
    %2500 = vmatpush1.msra.mxu0 0.0
    %2501 = vmatprep.subr.mxu0 0.0
    %2502 = vmatpush1.msra.mxu0 0.0
    %2503 = vmatprep.subr.mxu0 0.0
    %2504 = vmatpush1.msra.mxu0 0.0
    %2505 = vmatprep.subr.mxu0 0.0
    %2506 = vmatpush1.msra.mxu0 0.0
    %2507 = vmatprep.subr.mxu0 0.0
    %2508 = vmatpush1.msra.mxu0 0.0
    %2509 = vmatprep.subr.mxu0 0.0
    %2510 = vmatpush1.msra.mxu0 0.0
    %2511 = vmatprep.subr.mxu0 0.0
    %2512 = vmatpush1.msra.mxu0 0.0
    %2513 = vmatprep.subr.mxu0 0.0
    %2514 = vmatpush1.msra.mxu0 0.0
    %2515 = vmatprep.mubr.f32.mxu0 0.0
    %2516 = vmatmul.mubr.f32.gmra.mrb[0].mxu0 %v2450
    %v2517 = vpop.f32.mrb[0].mxu0
    %v2518 = vadd.f32 %v1830, %v2517
    %v2519 = vpop.f32.mrb[0].mxu0
    %v2520 = vadd.f32 %v1834, %v2519
    %2521 = vdwg.mxu0
    %2522 = vmatprep.subr.mxu0 0.0
    %2523 = vmatpush1.msra.mxu0 %v1778
    %2524 = vmatprep.subr.mxu0 0.0
    %2525 = vmatpush1.msra.mxu0 %v1781
    %2526 = vmatprep.subr.mxu0 0.0
    %2527 = vmatpush1.msra.mxu0 %v1784
    %2528 = vmatprep.subr.mxu0 0.0
    %2529 = vmatpush1.msra.mxu0 %v1787
    %2530 = vmatprep.subr.mxu0 0.0
    %2531 = vmatpush1.msra.mxu0 %v1790
    %2532 = vmatprep.subr.mxu0 0.0
    %2533 = vmatpush1.msra.mxu0 %v1793
    %2534 = vmatprep.subr.mxu0 0.0
    %2535 = vmatpush1.msra.mxu0 %v1796
    %2536 = vmatprep.subr.mxu0 0.0
    %2537 = vmatpush1.msra.mxu0 %v1799
    %2538 = vmatprep.subr.mxu0 0.0
    %2539 = vmatpush1.msra.mxu0 %v1802
    %2540 = vmatprep.subr.mxu0 0.0
    %2541 = vmatpush1.msra.mxu0 %v1805
    %2542 = vmatprep.subr.mxu0 0.0
    %2543 = vmatpush1.msra.mxu0 %v1808
    %2544 = vmatprep.subr.mxu0 0.0
    %2545 = vmatpush1.msra.mxu0 %v1811
    %2546 = vmatprep.subr.mxu0 0.0
    %2547 = vmatpush1.msra.mxu0 %v1814
    %2548 = vmatprep.subr.mxu0 0.0
    %2549 = vmatpush1.msra.mxu0 %v1817
    %2550 = vmatprep.subr.mxu0 0.0
    %2551 = vmatpush1.msra.mxu0 %v1820
    %2552 = vmatprep.subr.mxu0 0.0
    %2553 = vmatpush1.msra.mxu0 %v1823
    %2554 = vmatprep.subr.mxu0 0.0
    %2555 = vmatpush1.msra.mxu0 0.0
    %2556 = vmatprep.subr.mxu0 0.0
    %2557 = vmatpush1.msra.mxu0 0.0
    %2558 = vmatprep.subr.mxu0 0.0
    %2559 = vmatpush1.msra.mxu0 0.0
    %2560 = vmatprep.subr.mxu0 0.0
    %2561 = vmatpush1.msra.mxu0 0.0
    %2562 = vmatprep.subr.mxu0 0.0
    %2563 = vmatpush1.msra.mxu0 0.0
    %2564 = vmatprep.subr.mxu0 0.0
    %2565 = vmatpush1.msra.mxu0 0.0
    %2566 = vmatprep.subr.mxu0 0.0
    %2567 = vmatpush1.msra.mxu0 0.0
    %2568 = vmatprep.subr.mxu0 0.0
    %2569 = vmatpush1.msra.mxu0 0.0
    %2570 = vmatprep.subr.mxu0 0.0
    %2571 = vmatpush1.msra.mxu0 0.0
    %2572 = vmatprep.subr.mxu0 0.0
    %2573 = vmatpush1.msra.mxu0 0.0
    %2574 = vmatprep.subr.mxu0 0.0
    %2575 = vmatpush1.msra.mxu0 0.0
    %2576 = vmatprep.subr.mxu0 0.0
    %2577 = vmatpush1.msra.mxu0 0.0
    %2578 = vmatprep.subr.mxu0 0.0
    %2579 = vmatpush1.msra.mxu0 0.0
    %2580 = vmatprep.subr.mxu0 0.0
    %2581 = vmatpush1.msra.mxu0 0.0
    %2582 = vmatprep.subr.mxu0 0.0
    %2583 = vmatpush1.msra.mxu0 0.0
    %2584 = vmatprep.subr.mxu0 0.0
    %2585 = vmatpush1.msra.mxu0 0.0
    %2586 = vmatprep.mubr.f32.mxu0 0.0
    %2587 = vmatmul.mubr.f32.gmra.mrb[0].mxu0 %v2450
    %v2588 = vpop.f32.mrb[0].mxu0
    %v2589 = vadd.f32 %v1838, %v2588
    %v2590 = vpop.f32.mrb[0].mxu0
    %2591 = vdwg.mxu0
    %v2592 = vadd.f32 %v1988, %v2518
    %v2593 = vxor.u32 %v2592, 2147483648
    %v2594 = vmul.f32 %v2593, 1.442695
    %v2595 = vpow.pop %v2594
    %v2596 = vadd.f32 %v2595, 1.0
    %v2597 = vrcp.pop %v2596
    %v2598 = vmul.f32 1.0, %v2597
    %v2599 = vadd.f32 %v1990, %v2520
    %v2600 = vxor.u32 %v2599, 2147483648
    %v2601 = vmul.f32 %v2600, 1.442695
    %v2602 = vpow.pop %v2601
    %v2603 = vadd.f32 %v2602, 1.0
    %v2604 = vrcp.pop %v2603
    %v2605 = vmul.f32 1.0, %v2604
    %v2606 = vmul.f32 %v2598, %v2589
    %v2607 = vadd.f32 %v2099, %v2606
    %v2608 = vtanh.pop %v2607
    %v2609 = vsub.f32 1.0, %v2605
    %v2610 = vmul.f32 %v2609, %v2608
    %v2611 = vmul.f32 %v2605, %v2450
    %v2612 = vadd.f32 %v2610, %v2611
    %2613 = vmatprep.subr.mxu0 %v1777
    %2614 = vmatpush1.msra.mxu0 %v1776
    %2615 = vmatprep.subr.mxu0 %v1780
    %2616 = vmatpush1.msra.mxu0 %v1779
    %2617 = vmatprep.subr.mxu0 %v1783
    %2618 = vmatpush1.msra.mxu0 %v1782
    %2619 = vmatprep.subr.mxu0 %v1786
    %2620 = vmatpush1.msra.mxu0 %v1785
    %2621 = vmatprep.subr.mxu0 %v1789
    %2622 = vmatpush1.msra.mxu0 %v1788
    %2623 = vmatprep.subr.mxu0 %v1792
    %2624 = vmatpush1.msra.mxu0 %v1791
    %2625 = vmatprep.subr.mxu0 %v1795
    %2626 = vmatpush1.msra.mxu0 %v1794
    %2627 = vmatprep.subr.mxu0 %v1798
    %2628 = vmatpush1.msra.mxu0 %v1797
    %2629 = vmatprep.subr.mxu0 %v1801
    %2630 = vmatpush1.msra.mxu0 %v1800
    %2631 = vmatprep.subr.mxu0 %v1804
    %2632 = vmatpush1.msra.mxu0 %v1803
    %2633 = vmatprep.subr.mxu0 %v1807
    %2634 = vmatpush1.msra.mxu0 %v1806
    %2635 = vmatprep.subr.mxu0 %v1810
    %2636 = vmatpush1.msra.mxu0 %v1809
    %2637 = vmatprep.subr.mxu0 %v1813
    %2638 = vmatpush1.msra.mxu0 %v1812
    %2639 = vmatprep.subr.mxu0 %v1816
    %2640 = vmatpush1.msra.mxu0 %v1815
    %2641 = vmatprep.subr.mxu0 %v1819
    %2642 = vmatpush1.msra.mxu0 %v1818
    %2643 = vmatprep.subr.mxu0 %v1822
    %2644 = vmatpush1.msra.mxu0 %v1821
    %2645 = vmatprep.subr.mxu0 0.0
    %2646 = vmatpush1.msra.mxu0 0.0
    %2647 = vmatprep.subr.mxu0 0.0
    %2648 = vmatpush1.msra.mxu0 0.0
    %2649 = vmatprep.subr.mxu0 0.0
    %2650 = vmatpush1.msra.mxu0 0.0
    %2651 = vmatprep.subr.mxu0 0.0
    %2652 = vmatpush1.msra.mxu0 0.0
    %2653 = vmatprep.subr.mxu0 0.0
    %2654 = vmatpush1.msra.mxu0 0.0
    %2655 = vmatprep.subr.mxu0 0.0
    %2656 = vmatpush1.msra.mxu0 0.0
    %2657 = vmatprep.subr.mxu0 0.0
    %2658 = vmatpush1.msra.mxu0 0.0
    %2659 = vmatprep.subr.mxu0 0.0
    %2660 = vmatpush1.msra.mxu0 0.0
    %2661 = vmatprep.subr.mxu0 0.0
    %2662 = vmatpush1.msra.mxu0 0.0
    %2663 = vmatprep.subr.mxu0 0.0
    %2664 = vmatpush1.msra.mxu0 0.0
    %2665 = vmatprep.subr.mxu0 0.0
    %2666 = vmatpush1.msra.mxu0 0.0
    %2667 = vmatprep.subr.mxu0 0.0
    %2668 = vmatpush1.msra.mxu0 0.0
    %2669 = vmatprep.subr.mxu0 0.0
    %2670 = vmatpush1.msra.mxu0 0.0
    %2671 = vmatprep.subr.mxu0 0.0
    %2672 = vmatpush1.msra.mxu0 0.0
    %2673 = vmatprep.subr.mxu0 0.0
    %2674 = vmatpush1.msra.mxu0 0.0
    %2675 = vmatprep.subr.mxu0 0.0
    %2676 = vmatpush1.msra.mxu0 0.0
    %2677 = vmatprep.mubr.f32.mxu0 0.0
    %2678 = vmatmul.mubr.f32.gmra.mrb[0].mxu0 %v2612
    %v2679 = vpop.f32.mrb[0].mxu0
    %v2680 = vadd.f32 %v1830, %v2679
    %v2681 = vpop.f32.mrb[0].mxu0
    %v2682 = vadd.f32 %v1834, %v2681
    %2683 = vdwg.mxu0
    %2684 = vmatprep.subr.mxu0 0.0
    %2685 = vmatpush1.msra.mxu0 %v1778
    %2686 = vmatprep.subr.mxu0 0.0
    %2687 = vmatpush1.msra.mxu0 %v1781
    %2688 = vmatprep.subr.mxu0 0.0
    %2689 = vmatpush1.msra.mxu0 %v1784
    %2690 = vmatprep.subr.mxu0 0.0
    %2691 = vmatpush1.msra.mxu0 %v1787
    %2692 = vmatprep.subr.mxu0 0.0
    %2693 = vmatpush1.msra.mxu0 %v1790
    %2694 = vmatprep.subr.mxu0 0.0
    %2695 = vmatpush1.msra.mxu0 %v1793
    %2696 = vmatprep.subr.mxu0 0.0
    %2697 = vmatpush1.msra.mxu0 %v1796
    %2698 = vmatprep.subr.mxu0 0.0
    %2699 = vmatpush1.msra.mxu0 %v1799
    %2700 = vmatprep.subr.mxu0 0.0
    %2701 = vmatpush1.msra.mxu0 %v1802
    %2702 = vmatprep.subr.mxu0 0.0
    %2703 = vmatpush1.msra.mxu0 %v1805
    %2704 = vmatprep.subr.mxu0 0.0
    %2705 = vmatpush1.msra.mxu0 %v1808
    %2706 = vmatprep.subr.mxu0 0.0
    %2707 = vmatpush1.msra.mxu0 %v1811
    %2708 = vmatprep.subr.mxu0 0.0
    %2709 = vmatpush1.msra.mxu0 %v1814
    %2710 = vmatprep.subr.mxu0 0.0
    %2711 = vmatpush1.msra.mxu0 %v1817
    %2712 = vmatprep.subr.mxu0 0.0
    %2713 = vmatpush1.msra.mxu0 %v1820
    %2714 = vmatprep.subr.mxu0 0.0
    %2715 = vmatpush1.msra.mxu0 %v1823
    %2716 = vmatprep.subr.mxu0 0.0
    %2717 = vmatpush1.msra.mxu0 0.0
    %2718 = vmatprep.subr.mxu0 0.0
    %2719 = vmatpush1.msra.mxu0 0.0
    %2720 = vmatprep.subr.mxu0 0.0
    %2721 = vmatpush1.msra.mxu0 0.0
    %2722 = vmatprep.subr.mxu0 0.0
    %2723 = vmatpush1.msra.mxu0 0.0
    %2724 = vmatprep.subr.mxu0 0.0
    %2725 = vmatpush1.msra.mxu0 0.0
    %2726 = vmatprep.subr.mxu0 0.0
    %2727 = vmatpush1.msra.mxu0 0.0
    %2728 = vmatprep.subr.mxu0 0.0
    %2729 = vmatpush1.msra.mxu0 0.0
    %2730 = vmatprep.subr.mxu0 0.0
    %2731 = vmatpush1.msra.mxu0 0.0
    %2732 = vmatprep.subr.mxu0 0.0
    %2733 = vmatpush1.msra.mxu0 0.0
    %2734 = vmatprep.subr.mxu0 0.0
    %2735 = vmatpush1.msra.mxu0 0.0
    %2736 = vmatprep.subr.mxu0 0.0
    %2737 = vmatpush1.msra.mxu0 0.0
    %2738 = vmatprep.subr.mxu0 0.0
    %2739 = vmatpush1.msra.mxu0 0.0
    %2740 = vmatprep.subr.mxu0 0.0
    %2741 = vmatpush1.msra.mxu0 0.0
    %2742 = vmatprep.subr.mxu0 0.0
    %2743 = vmatpush1.msra.mxu0 0.0
    %2744 = vmatprep.subr.mxu0 0.0
    %2745 = vmatpush1.msra.mxu0 0.0
    %2746 = vmatprep.subr.mxu0 0.0
    %2747 = vmatpush1.msra.mxu0 0.0
    %2748 = vmatprep.mubr.f32.mxu0 0.0
    %2749 = vmatmul.mubr.f32.gmra.mrb[0].mxu0 %v2612
    %v2750 = vpop.f32.mrb[0].mxu0
    %v2751 = vadd.f32 %v1838, %v2750
    %v2752 = vpop.f32.mrb[0].mxu0
    %2753 = vdwg.mxu0
    %v2754 = vadd.f32 %v1994, %v2680
    %v2755 = vxor.u32 %v2754, 2147483648
    %v2756 = vmul.f32 %v2755, 1.442695
    %v2757 = vpow.pop %v2756
    %v2758 = vadd.f32 %v2757, 1.0
    %v2759 = vrcp.pop %v2758
    %v2760 = vmul.f32 1.0, %v2759
    %v2761 = vadd.f32 %v1996, %v2682
    %v2762 = vxor.u32 %v2761, 2147483648
    %v2763 = vmul.f32 %v2762, 1.442695
    %v2764 = vpow.pop %v2763
    %v2765 = vadd.f32 %v2764, 1.0
    %v2766 = vrcp.pop %v2765
    %v2767 = vmul.f32 1.0, %v2766
    %v2768 = vmul.f32 %v2760, %v2751
    %v2769 = vadd.f32 %v2104, %v2768
    %v2770 = vtanh.pop %v2769
    %v2771 = vsub.f32 1.0, %v2767
    %v2772 = vmul.f32 %v2771, %v2770
    %v2773 = vmul.f32 %v2767, %v2612
    %v2774 = vadd.f32 %v2772, %v2773
    %2775 = vmatprep.subr.mxu0 %v1777
    %2776 = vmatpush1.msra.mxu0 %v1776
    %2777 = vmatprep.subr.mxu0 %v1780
    %2778 = vmatpush1.msra.mxu0 %v1779
    %2779 = vmatprep.subr.mxu0 %v1783
    %2780 = vmatpush1.msra.mxu0 %v1782
    %2781 = vmatprep.subr.mxu0 %v1786
    %2782 = vmatpush1.msra.mxu0 %v1785
    %2783 = vmatprep.subr.mxu0 %v1789
    %2784 = vmatpush1.msra.mxu0 %v1788
    %2785 = vmatprep.subr.mxu0 %v1792
    %2786 = vmatpush1.msra.mxu0 %v1791
    %2787 = vmatprep.subr.mxu0 %v1795
    %2788 = vmatpush1.msra.mxu0 %v1794
    %2789 = vmatprep.subr.mxu0 %v1798
    %2790 = vmatpush1.msra.mxu0 %v1797
    %2791 = vmatprep.subr.mxu0 %v1801
    %2792 = vmatpush1.msra.mxu0 %v1800
    %2793 = vmatprep.subr.mxu0 %v1804
    %2794 = vmatpush1.msra.mxu0 %v1803
    %2795 = vmatprep.subr.mxu0 %v1807
    %2796 = vmatpush1.msra.mxu0 %v1806
    %2797 = vmatprep.subr.mxu0 %v1810
    %2798 = vmatpush1.msra.mxu0 %v1809
    %2799 = vmatprep.subr.mxu0 %v1813
    %2800 = vmatpush1.msra.mxu0 %v1812
    %2801 = vmatprep.subr.mxu0 %v1816
    %2802 = vmatpush1.msra.mxu0 %v1815
    %2803 = vmatprep.subr.mxu0 %v1819
    %2804 = vmatpush1.msra.mxu0 %v1818
    %2805 = vmatprep.subr.mxu0 %v1822
    %2806 = vmatpush1.msra.mxu0 %v1821
    %2807 = vmatprep.subr.mxu0 0.0
    %2808 = vmatpush1.msra.mxu0 0.0
    %2809 = vmatprep.subr.mxu0 0.0
    %2810 = vmatpush1.msra.mxu0 0.0
    %2811 = vmatprep.subr.mxu0 0.0
    %2812 = vmatpush1.msra.mxu0 0.0
    %2813 = vmatprep.subr.mxu0 0.0
    %2814 = vmatpush1.msra.mxu0 0.0
    %2815 = vmatprep.subr.mxu0 0.0
    %2816 = vmatpush1.msra.mxu0 0.0
    %2817 = vmatprep.subr.mxu0 0.0
    %2818 = vmatpush1.msra.mxu0 0.0
    %2819 = vmatprep.subr.mxu0 0.0
    %2820 = vmatpush1.msra.mxu0 0.0
    %2821 = vmatprep.subr.mxu0 0.0
    %2822 = vmatpush1.msra.mxu0 0.0
    %2823 = vmatprep.subr.mxu0 0.0
    %2824 = vmatpush1.msra.mxu0 0.0
    %2825 = vmatprep.subr.mxu0 0.0
    %2826 = vmatpush1.msra.mxu0 0.0
    %2827 = vmatprep.subr.mxu0 0.0
    %2828 = vmatpush1.msra.mxu0 0.0
    %2829 = vmatprep.subr.mxu0 0.0
    %2830 = vmatpush1.msra.mxu0 0.0
    %2831 = vmatprep.subr.mxu0 0.0
    %2832 = vmatpush1.msra.mxu0 0.0
    %2833 = vmatprep.subr.mxu0 0.0
    %2834 = vmatpush1.msra.mxu0 0.0
    %2835 = vmatprep.subr.mxu0 0.0
    %2836 = vmatpush1.msra.mxu0 0.0
    %2837 = vmatprep.subr.mxu0 0.0
    %2838 = vmatpush1.msra.mxu0 0.0
    %2839 = vmatprep.mubr.f32.mxu0 0.0
    %2840 = vmatmul.mubr.f32.gmra.mrb[0].mxu0 %v2774
    %v2841 = vpop.f32.mrb[0].mxu0
    %v2842 = vadd.f32 %v1830, %v2841
    %v2843 = vpop.f32.mrb[0].mxu0
    %v2844 = vadd.f32 %v1834, %v2843
    %2845 = vdwg.mxu0
    %2846 = vmatprep.subr.mxu0 0.0
    %2847 = vmatpush1.msra.mxu0 %v1778
    %2848 = vmatprep.subr.mxu0 0.0
    %2849 = vmatpush1.msra.mxu0 %v1781
    %2850 = vmatprep.subr.mxu0 0.0
    %2851 = vmatpush1.msra.mxu0 %v1784
    %2852 = vmatprep.subr.mxu0 0.0
    %2853 = vmatpush1.msra.mxu0 %v1787
    %2854 = vmatprep.subr.mxu0 0.0
    %2855 = vmatpush1.msra.mxu0 %v1790
    %2856 = vmatprep.subr.mxu0 0.0
    %2857 = vmatpush1.msra.mxu0 %v1793
    %2858 = vmatprep.subr.mxu0 0.0
    %2859 = vmatpush1.msra.mxu0 %v1796
    %2860 = vmatprep.subr.mxu0 0.0
    %2861 = vmatpush1.msra.mxu0 %v1799
    %2862 = vmatprep.subr.mxu0 0.0
    %2863 = vmatpush1.msra.mxu0 %v1802
    %2864 = vmatprep.subr.mxu0 0.0
    %2865 = vmatpush1.msra.mxu0 %v1805
    %2866 = vmatprep.subr.mxu0 0.0
    %2867 = vmatpush1.msra.mxu0 %v1808
    %2868 = vmatprep.subr.mxu0 0.0
    %2869 = vmatpush1.msra.mxu0 %v1811
    %2870 = vmatprep.subr.mxu0 0.0
    %2871 = vmatpush1.msra.mxu0 %v1814
    %2872 = vmatprep.subr.mxu0 0.0
    %2873 = vmatpush1.msra.mxu0 %v1817
    %2874 = vmatprep.subr.mxu0 0.0
    %2875 = vmatpush1.msra.mxu0 %v1820
    %2876 = vmatprep.subr.mxu0 0.0
    %2877 = vmatpush1.msra.mxu0 %v1823
    %2878 = vmatprep.subr.mxu0 0.0
    %2879 = vmatpush1.msra.mxu0 0.0
    %2880 = vmatprep.subr.mxu0 0.0
    %2881 = vmatpush1.msra.mxu0 0.0
    %2882 = vmatprep.subr.mxu0 0.0
    %2883 = vmatpush1.msra.mxu0 0.0
    %2884 = vmatprep.subr.mxu0 0.0
    %2885 = vmatpush1.msra.mxu0 0.0
    %2886 = vmatprep.subr.mxu0 0.0
    %2887 = vmatpush1.msra.mxu0 0.0
    %2888 = vmatprep.subr.mxu0 0.0
    %2889 = vmatpush1.msra.mxu0 0.0
    %2890 = vmatprep.subr.mxu0 0.0
    %2891 = vmatpush1.msra.mxu0 0.0
    %2892 = vmatprep.subr.mxu0 0.0
    %2893 = vmatpush1.msra.mxu0 0.0
    %2894 = vmatprep.subr.mxu0 0.0
    %2895 = vmatpush1.msra.mxu0 0.0
    %2896 = vmatprep.subr.mxu0 0.0
    %2897 = vmatpush1.msra.mxu0 0.0
    %2898 = vmatprep.subr.mxu0 0.0
    %2899 = vmatpush1.msra.mxu0 0.0
    %2900 = vmatprep.subr.mxu0 0.0
    %2901 = vmatpush1.msra.mxu0 0.0
    %2902 = vmatprep.subr.mxu0 0.0
    %2903 = vmatpush1.msra.mxu0 0.0
    %2904 = vmatprep.subr.mxu0 0.0
    %2905 = vmatpush1.msra.mxu0 0.0
    %2906 = vmatprep.subr.mxu0 0.0
    %2907 = vmatpush1.msra.mxu0 0.0
    %2908 = vmatprep.subr.mxu0 0.0
    %2909 = vmatpush1.msra.mxu0 0.0
    %2910 = vmatprep.mubr.f32.mxu0 0.0
    %2911 = vmatmul.mubr.f32.gmra.mrb[0].mxu0 %v2774
    %v2912 = vpop.f32.mrb[0].mxu0
    %v2913 = vadd.f32 %v1838, %v2912
    %v2914 = vpop.f32.mrb[0].mxu0
    %2915 = vdwg.mxu0
    %v2916 = vadd.f32 %v2000, %v2842
    %v2917 = vxor.u32 %v2916, 2147483648
    %v2918 = vmul.f32 %v2917, 1.442695
    %v2919 = vpow.pop %v2918
    %v2920 = vadd.f32 %v2919, 1.0
    %v2921 = vrcp.pop %v2920
    %v2922 = vmul.f32 1.0, %v2921
    %v2923 = vadd.f32 %v2002, %v2844
    %v2924 = vxor.u32 %v2923, 2147483648
    %v2925 = vmul.f32 %v2924, 1.442695
    %v2926 = vpow.pop %v2925
    %v2927 = vadd.f32 %v2926, 1.0
    %v2928 = vrcp.pop %v2927
    %v2929 = vmul.f32 1.0, %v2928
    %v2930 = vmul.f32 %v2922, %v2913
    %v2931 = vadd.f32 %v2109, %v2930
    %v2932 = vtanh.pop %v2931
    %v2933 = vsub.f32 1.0, %v2929
    %v2934 = vmul.f32 %v2933, %v2932
    %v2935 = vmul.f32 %v2929, %v2774
    %v2936 = vadd.f32 %v2934, %v2935
    %2937 = vmatprep.subr.mxu0 %v1777
    %2938 = vmatpush1.msra.mxu0 %v1776
    %2939 = vmatprep.subr.mxu0 %v1780
    %2940 = vmatpush1.msra.mxu0 %v1779
    %2941 = vmatprep.subr.mxu0 %v1783
    %2942 = vmatpush1.msra.mxu0 %v1782
    %2943 = vmatprep.subr.mxu0 %v1786
    %2944 = vmatpush1.msra.mxu0 %v1785
    %2945 = vmatprep.subr.mxu0 %v1789
    %2946 = vmatpush1.msra.mxu0 %v1788
    %2947 = vmatprep.subr.mxu0 %v1792
    %2948 = vmatpush1.msra.mxu0 %v1791
    %2949 = vmatprep.subr.mxu0 %v1795
    %2950 = vmatpush1.msra.mxu0 %v1794
    %2951 = vmatprep.subr.mxu0 %v1798
    %2952 = vmatpush1.msra.mxu0 %v1797
    %2953 = vmatprep.subr.mxu0 %v1801
    %2954 = vmatpush1.msra.mxu0 %v1800
    %2955 = vmatprep.subr.mxu0 %v1804
    %2956 = vmatpush1.msra.mxu0 %v1803
    %2957 = vmatprep.subr.mxu0 %v1807
    %2958 = vmatpush1.msra.mxu0 %v1806
    %2959 = vmatprep.subr.mxu0 %v1810
    %2960 = vmatpush1.msra.mxu0 %v1809
    %2961 = vmatprep.subr.mxu0 %v1813
    %2962 = vmatpush1.msra.mxu0 %v1812
    %2963 = vmatprep.subr.mxu0 %v1816
    %2964 = vmatpush1.msra.mxu0 %v1815
    %2965 = vmatprep.subr.mxu0 %v1819
    %2966 = vmatpush1.msra.mxu0 %v1818
    %2967 = vmatprep.subr.mxu0 %v1822
    %2968 = vmatpush1.msra.mxu0 %v1821
    %2969 = vmatprep.subr.mxu0 0.0
    %2970 = vmatpush1.msra.mxu0 0.0
    %2971 = vmatprep.subr.mxu0 0.0
    %2972 = vmatpush1.msra.mxu0 0.0
    %2973 = vmatprep.subr.mxu0 0.0
    %2974 = vmatpush1.msra.mxu0 0.0
    %2975 = vmatprep.subr.mxu0 0.0
    %2976 = vmatpush1.msra.mxu0 0.0
    %2977 = vmatprep.subr.mxu0 0.0
    %2978 = vmatpush1.msra.mxu0 0.0
    %2979 = vmatprep.subr.mxu0 0.0
    %2980 = vmatpush1.msra.mxu0 0.0
    %2981 = vmatprep.subr.mxu0 0.0
    %2982 = vmatpush1.msra.mxu0 0.0
    %2983 = vmatprep.subr.mxu0 0.0
    %2984 = vmatpush1.msra.mxu0 0.0
    %2985 = vmatprep.subr.mxu0 0.0
    %2986 = vmatpush1.msra.mxu0 0.0
    %2987 = vmatprep.subr.mxu0 0.0
    %2988 = vmatpush1.msra.mxu0 0.0
    %2989 = vmatprep.subr.mxu0 0.0
    %2990 = vmatpush1.msra.mxu0 0.0
    %2991 = vmatprep.subr.mxu0 0.0
    %2992 = vmatpush1.msra.mxu0 0.0
    %2993 = vmatprep.subr.mxu0 0.0
    %2994 = vmatpush1.msra.mxu0 0.0
    %2995 = vmatprep.subr.mxu0 0.0
    %2996 = vmatpush1.msra.mxu0 0.0
    %2997 = vmatprep.subr.mxu0 0.0
    %2998 = vmatpush1.msra.mxu0 0.0
    %2999 = vmatprep.subr.mxu0 0.0
    %3000 = vmatpush1.msra.mxu0 0.0
    %3001 = vmatprep.mubr.f32.mxu0 0.0
    %3002 = vmatmul.mubr.f32.gmra.mrb[0].mxu0 %v2936
    %v3003 = vpop.f32.mrb[0].mxu0
    %v3004 = vadd.f32 %v1830, %v3003
    %v3005 = vpop.f32.mrb[0].mxu0
    %v3006 = vadd.f32 %v1834, %v3005
    %3007 = vdwg.mxu0
    %3008 = vmatprep.subr.mxu0 0.0
    %3009 = vmatpush1.msra.mxu0 %v1778
    %3010 = vmatprep.subr.mxu0 0.0
    %3011 = vmatpush1.msra.mxu0 %v1781
    %3012 = vmatprep.subr.mxu0 0.0
    %3013 = vmatpush1.msra.mxu0 %v1784
    %3014 = vmatprep.subr.mxu0 0.0
    %3015 = vmatpush1.msra.mxu0 %v1787
    %3016 = vmatprep.subr.mxu0 0.0
    %3017 = vmatpush1.msra.mxu0 %v1790
    %3018 = vmatprep.subr.mxu0 0.0
    %3019 = vmatpush1.msra.mxu0 %v1793
    %3020 = vmatprep.subr.mxu0 0.0
    %3021 = vmatpush1.msra.mxu0 %v1796
    %3022 = vmatprep.subr.mxu0 0.0
    %3023 = vmatpush1.msra.mxu0 %v1799
    %3024 = vmatprep.subr.mxu0 0.0
    %3025 = vmatpush1.msra.mxu0 %v1802
    %3026 = vmatprep.subr.mxu0 0.0
    %3027 = vmatpush1.msra.mxu0 %v1805
    %3028 = vmatprep.subr.mxu0 0.0
    %3029 = vmatpush1.msra.mxu0 %v1808
    %3030 = vmatprep.subr.mxu0 0.0
    %3031 = vmatpush1.msra.mxu0 %v1811
    %3032 = vmatprep.subr.mxu0 0.0
    %3033 = vmatpush1.msra.mxu0 %v1814
    %3034 = vmatprep.subr.mxu0 0.0
    %3035 = vmatpush1.msra.mxu0 %v1817
    %3036 = vmatprep.subr.mxu0 0.0
    %3037 = vmatpush1.msra.mxu0 %v1820
    %3038 = vmatprep.subr.mxu0 0.0
    %3039 = vmatpush1.msra.mxu0 %v1823
    %3040 = vmatprep.subr.mxu0 0.0
    %3041 = vmatpush1.msra.mxu0 0.0
    %3042 = vmatprep.subr.mxu0 0.0
    %3043 = vmatpush1.msra.mxu0 0.0
    %3044 = vmatprep.subr.mxu0 0.0
    %3045 = vmatpush1.msra.mxu0 0.0
    %3046 = vmatprep.subr.mxu0 0.0
    %3047 = vmatpush1.msra.mxu0 0.0
    %3048 = vmatprep.subr.mxu0 0.0
    %3049 = vmatpush1.msra.mxu0 0.0
    %3050 = vmatprep.subr.mxu0 0.0
    %3051 = vmatpush1.msra.mxu0 0.0
    %3052 = vmatprep.subr.mxu0 0.0
    %3053 = vmatpush1.msra.mxu0 0.0
    %3054 = vmatprep.subr.mxu0 0.0
    %3055 = vmatpush1.msra.mxu0 0.0
    %3056 = vmatprep.subr.mxu0 0.0
    %3057 = vmatpush1.msra.mxu0 0.0
    %3058 = vmatprep.subr.mxu0 0.0
    %3059 = vmatpush1.msra.mxu0 0.0
    %3060 = vmatprep.subr.mxu0 0.0
    %3061 = vmatpush1.msra.mxu0 0.0
    %3062 = vmatprep.subr.mxu0 0.0
    %3063 = vmatpush1.msra.mxu0 0.0
    %3064 = vmatprep.subr.mxu0 0.0
    %3065 = vmatpush1.msra.mxu0 0.0
    %3066 = vmatprep.subr.mxu0 0.0
    %3067 = vmatpush1.msra.mxu0 0.0
    %3068 = vmatprep.subr.mxu0 0.0
    %3069 = vmatpush1.msra.mxu0 0.0
    %3070 = vmatprep.subr.mxu0 0.0
    %3071 = vmatpush1.msra.mxu0 0.0
    %3072 = vmatprep.mubr.f32.mxu0 0.0
    %3073 = vmatmul.mubr.f32.gmra.mrb[0].mxu0 %v2936
    %v3074 = vpop.f32.mrb[0].mxu0
    %v3075 = vadd.f32 %v1838, %v3074
    %v3076 = vpop.f32.mrb[0].mxu0
    %3077 = vdwg.mxu0
    %v3078 = vadd.f32 %v2006, %v3004
    %v3079 = vxor.u32 %v3078, 2147483648
    %v3080 = vmul.f32 %v3079, 1.442695
    %v3081 = vpow.pop %v3080
    %v3082 = vadd.f32 %v3081, 1.0
    %v3083 = vrcp.pop %v3082
    %v3084 = vmul.f32 1.0, %v3083
    %v3085 = vadd.f32 %v2008, %v3006
    %v3086 = vxor.u32 %v3085, 2147483648
    %v3087 = vmul.f32 %v3086, 1.442695
    %v3088 = vpow.pop %v3087
    %v3089 = vadd.f32 %v3088, 1.0
    %v3090 = vrcp.pop %v3089
    %v3091 = vmul.f32 1.0, %v3090
    %v3092 = vmul.f32 %v3084, %v3075
    %v3093 = vadd.f32 %v2114, %v3092
    %v3094 = vtanh.pop %v3093
    %v3095 = vsub.f32 1.0, %v3091
    %v3096 = vmul.f32 %v3095, %v3094
    %v3097 = vmul.f32 %v3091, %v2936
    %v3098 = vadd.f32 %v3096, %v3097
    %3099 = vmatprep.subr.mxu0 %v1777
    %3100 = vmatpush1.msra.mxu0 %v1776
    %3101 = vmatprep.subr.mxu0 %v1780
    %3102 = vmatpush1.msra.mxu0 %v1779
    %3103 = vmatprep.subr.mxu0 %v1783
    %3104 = vmatpush1.msra.mxu0 %v1782
    %3105 = vmatprep.subr.mxu0 %v1786
    %3106 = vmatpush1.msra.mxu0 %v1785
    %3107 = vmatprep.subr.mxu0 %v1789
    %3108 = vmatpush1.msra.mxu0 %v1788
    %3109 = vmatprep.subr.mxu0 %v1792
    %3110 = vmatpush1.msra.mxu0 %v1791
    %3111 = vmatprep.subr.mxu0 %v1795
    %3112 = vmatpush1.msra.mxu0 %v1794
    %3113 = vmatprep.subr.mxu0 %v1798
    %3114 = vmatpush1.msra.mxu0 %v1797
    %3115 = vmatprep.subr.mxu0 %v1801
    %3116 = vmatpush1.msra.mxu0 %v1800
    %3117 = vmatprep.subr.mxu0 %v1804
    %3118 = vmatpush1.msra.mxu0 %v1803
    %3119 = vmatprep.subr.mxu0 %v1807
    %3120 = vmatpush1.msra.mxu0 %v1806
    %3121 = vmatprep.subr.mxu0 %v1810
    %3122 = vmatpush1.msra.mxu0 %v1809
    %3123 = vmatprep.subr.mxu0 %v1813
    %3124 = vmatpush1.msra.mxu0 %v1812
    %3125 = vmatprep.subr.mxu0 %v1816
    %3126 = vmatpush1.msra.mxu0 %v1815
    %3127 = vmatprep.subr.mxu0 %v1819
    %3128 = vmatpush1.msra.mxu0 %v1818
    %3129 = vmatprep.subr.mxu0 %v1822
    %3130 = vmatpush1.msra.mxu0 %v1821
    %3131 = vmatprep.subr.mxu0 0.0
    %3132 = vmatpush1.msra.mxu0 0.0
    %3133 = vmatprep.subr.mxu0 0.0
    %3134 = vmatpush1.msra.mxu0 0.0
    %3135 = vmatprep.subr.mxu0 0.0
    %3136 = vmatpush1.msra.mxu0 0.0
    %3137 = vmatprep.subr.mxu0 0.0
    %3138 = vmatpush1.msra.mxu0 0.0
    %3139 = vmatprep.subr.mxu0 0.0
    %3140 = vmatpush1.msra.mxu0 0.0
    %3141 = vmatprep.subr.mxu0 0.0
    %3142 = vmatpush1.msra.mxu0 0.0
    %3143 = vmatprep.subr.mxu0 0.0
    %3144 = vmatpush1.msra.mxu0 0.0
    %3145 = vmatprep.subr.mxu0 0.0
    %3146 = vmatpush1.msra.mxu0 0.0
    %3147 = vmatprep.subr.mxu0 0.0
    %3148 = vmatpush1.msra.mxu0 0.0
    %3149 = vmatprep.subr.mxu0 0.0
    %3150 = vmatpush1.msra.mxu0 0.0
    %3151 = vmatprep.subr.mxu0 0.0
    %3152 = vmatpush1.msra.mxu0 0.0
    %3153 = vmatprep.subr.mxu0 0.0
    %3154 = vmatpush1.msra.mxu0 0.0
    %3155 = vmatprep.subr.mxu0 0.0
    %3156 = vmatpush1.msra.mxu0 0.0
    %3157 = vmatprep.subr.mxu0 0.0
    %3158 = vmatpush1.msra.mxu0 0.0
    %3159 = vmatprep.subr.mxu0 0.0
    %3160 = vmatpush1.msra.mxu0 0.0
    %3161 = vmatprep.subr.mxu0 0.0
    %3162 = vmatpush1.msra.mxu0 0.0
    %3163 = vmatprep.mubr.f32.mxu0 0.0
    %3164 = vmatmul.mubr.f32.gmra.mrb[0].mxu0 %v3098
    %v3165 = vpop.f32.mrb[0].mxu0
    %v3166 = vadd.f32 %v1830, %v3165
    %v3167 = vpop.f32.mrb[0].mxu0
    %v3168 = vadd.f32 %v1834, %v3167
    %3169 = vdwg.mxu0
    %3170 = vmatprep.subr.mxu0 0.0
    %3171 = vmatpush1.msra.mxu0 %v1778
    %3172 = vmatprep.subr.mxu0 0.0
    %3173 = vmatpush1.msra.mxu0 %v1781
    %3174 = vmatprep.subr.mxu0 0.0
    %3175 = vmatpush1.msra.mxu0 %v1784
    %3176 = vmatprep.subr.mxu0 0.0
    %3177 = vmatpush1.msra.mxu0 %v1787
    %3178 = vmatprep.subr.mxu0 0.0
    %3179 = vmatpush1.msra.mxu0 %v1790
    %3180 = vmatprep.subr.mxu0 0.0
    %3181 = vmatpush1.msra.mxu0 %v1793
    %3182 = vmatprep.subr.mxu0 0.0
    %3183 = vmatpush1.msra.mxu0 %v1796
    %3184 = vmatprep.subr.mxu0 0.0
    %3185 = vmatpush1.msra.mxu0 %v1799
    %3186 = vmatprep.subr.mxu0 0.0
    %3187 = vmatpush1.msra.mxu0 %v1802
    %3188 = vmatprep.subr.mxu0 0.0
    %3189 = vmatpush1.msra.mxu0 %v1805
    %3190 = vmatprep.subr.mxu0 0.0
    %3191 = vmatpush1.msra.mxu0 %v1808
    %3192 = vmatprep.subr.mxu0 0.0
    %3193 = vmatpush1.msra.mxu0 %v1811
    %3194 = vmatprep.subr.mxu0 0.0
    %3195 = vmatpush1.msra.mxu0 %v1814
    %3196 = vmatprep.subr.mxu0 0.0
    %3197 = vmatpush1.msra.mxu0 %v1817
    %3198 = vmatprep.subr.mxu0 0.0
    %3199 = vmatpush1.msra.mxu0 %v1820
    %3200 = vmatprep.subr.mxu0 0.0
    %3201 = vmatpush1.msra.mxu0 %v1823
    %3202 = vmatprep.subr.mxu0 0.0
    %3203 = vmatpush1.msra.mxu0 0.0
    %3204 = vmatprep.subr.mxu0 0.0
    %3205 = vmatpush1.msra.mxu0 0.0
    %3206 = vmatprep.subr.mxu0 0.0
    %3207 = vmatpush1.msra.mxu0 0.0
    %3208 = vmatprep.subr.mxu0 0.0
    %3209 = vmatpush1.msra.mxu0 0.0
    %3210 = vmatprep.subr.mxu0 0.0
    %3211 = vmatpush1.msra.mxu0 0.0
    %3212 = vmatprep.subr.mxu0 0.0
    %3213 = vmatpush1.msra.mxu0 0.0
    %3214 = vmatprep.subr.mxu0 0.0
    %3215 = vmatpush1.msra.mxu0 0.0
    %3216 = vmatprep.subr.mxu0 0.0
    %3217 = vmatpush1.msra.mxu0 0.0
    %3218 = vmatprep.subr.mxu0 0.0
    %3219 = vmatpush1.msra.mxu0 0.0
    %3220 = vmatprep.subr.mxu0 0.0
    %3221 = vmatpush1.msra.mxu0 0.0
    %3222 = vmatprep.subr.mxu0 0.0
    %3223 = vmatpush1.msra.mxu0 0.0
    %3224 = vmatprep.subr.mxu0 0.0
    %3225 = vmatpush1.msra.mxu0 0.0
    %3226 = vmatprep.subr.mxu0 0.0
    %3227 = vmatpush1.msra.mxu0 0.0
    %3228 = vmatprep.subr.mxu0 0.0
    %3229 = vmatpush1.msra.mxu0 0.0
    %3230 = vmatprep.subr.mxu0 0.0
    %3231 = vmatpush1.msra.mxu0 0.0
    %3232 = vmatprep.subr.mxu0 0.0
    %3233 = vmatpush1.msra.mxu0 0.0
    %3234 = vmatprep.mubr.f32.mxu0 0.0
    %3235 = vmatmul.mubr.f32.gmra.mrb[0].mxu0 %v3098
    %v3236 = vpop.f32.mrb[0].mxu0
    %v3237 = vadd.f32 %v1838, %v3236
    %v3238 = vpop.f32.mrb[0].mxu0
    %3239 = vdwg.mxu0
    %v3240 = vadd.f32 %v2012, %v3166
    %v3241 = vxor.u32 %v3240, 2147483648
    %v3242 = vmul.f32 %v3241, 1.442695
    %v3243 = vpow.pop %v3242
    %v3244 = vadd.f32 %v3243, 1.0
    %v3245 = vrcp.pop %v3244
    %v3246 = vmul.f32 1.0, %v3245
    %v3247 = vadd.f32 %v2014, %v3168
    %v3248 = vxor.u32 %v3247, 2147483648
    %v3249 = vmul.f32 %v3248, 1.442695
    %v3250 = vpow.pop %v3249
    %v3251 = vadd.f32 %v3250, 1.0
    %v3252 = vrcp.pop %v3251
    %v3253 = vmul.f32 1.0, %v3252
    %v3254 = vmul.f32 %v3246, %v3237
    %v3255 = vadd.f32 %v2119, %v3254
    %v3256 = vtanh.pop %v3255
    %v3257 = vsub.f32 1.0, %v3253
    %v3258 = vmul.f32 %v3257, %v3256
    %v3259 = vmul.f32 %v3253, %v3098
    %v3260 = vadd.f32 %v3258, %v3259
    %3261 = vmatprep.subr.mxu0 %v1777
    %3262 = vmatpush1.msra.mxu0 %v1776
    %3263 = vmatprep.subr.mxu0 %v1780
    %3264 = vmatpush1.msra.mxu0 %v1779
    %3265 = vmatprep.subr.mxu0 %v1783
    %3266 = vmatpush1.msra.mxu0 %v1782
    %3267 = vmatprep.subr.mxu0 %v1786
    %3268 = vmatpush1.msra.mxu0 %v1785
    %3269 = vmatprep.subr.mxu0 %v1789
    %3270 = vmatpush1.msra.mxu0 %v1788
    %3271 = vmatprep.subr.mxu0 %v1792
    %3272 = vmatpush1.msra.mxu0 %v1791
    %3273 = vmatprep.subr.mxu0 %v1795
    %3274 = vmatpush1.msra.mxu0 %v1794
    %3275 = vmatprep.subr.mxu0 %v1798
    %3276 = vmatpush1.msra.mxu0 %v1797
    %3277 = vmatprep.subr.mxu0 %v1801
    %3278 = vmatpush1.msra.mxu0 %v1800
    %3279 = vmatprep.subr.mxu0 %v1804
    %3280 = vmatpush1.msra.mxu0 %v1803
    %3281 = vmatprep.subr.mxu0 %v1807
    %3282 = vmatpush1.msra.mxu0 %v1806
    %3283 = vmatprep.subr.mxu0 %v1810
    %3284 = vmatpush1.msra.mxu0 %v1809
    %3285 = vmatprep.subr.mxu0 %v1813
    %3286 = vmatpush1.msra.mxu0 %v1812
    %3287 = vmatprep.subr.mxu0 %v1816
    %3288 = vmatpush1.msra.mxu0 %v1815
    %3289 = vmatprep.subr.mxu0 %v1819
    %3290 = vmatpush1.msra.mxu0 %v1818
    %3291 = vmatprep.subr.mxu0 %v1822
    %3292 = vmatpush1.msra.mxu0 %v1821
    %3293 = vmatprep.subr.mxu0 0.0
    %3294 = vmatpush1.msra.mxu0 0.0
    %3295 = vmatprep.subr.mxu0 0.0
    %3296 = vmatpush1.msra.mxu0 0.0
    %3297 = vmatprep.subr.mxu0 0.0
    %3298 = vmatpush1.msra.mxu0 0.0
    %3299 = vmatprep.subr.mxu0 0.0
    %3300 = vmatpush1.msra.mxu0 0.0
    %3301 = vmatprep.subr.mxu0 0.0
    %3302 = vmatpush1.msra.mxu0 0.0
    %3303 = vmatprep.subr.mxu0 0.0
    %3304 = vmatpush1.msra.mxu0 0.0
    %3305 = vmatprep.subr.mxu0 0.0
    %3306 = vmatpush1.msra.mxu0 0.0
    %3307 = vmatprep.subr.mxu0 0.0
    %3308 = vmatpush1.msra.mxu0 0.0
    %3309 = vmatprep.subr.mxu0 0.0
    %3310 = vmatpush1.msra.mxu0 0.0
    %3311 = vmatprep.subr.mxu0 0.0
    %3312 = vmatpush1.msra.mxu0 0.0
    %3313 = vmatprep.subr.mxu0 0.0
    %3314 = vmatpush1.msra.mxu0 0.0
    %3315 = vmatprep.subr.mxu0 0.0
    %3316 = vmatpush1.msra.mxu0 0.0
    %3317 = vmatprep.subr.mxu0 0.0
    %3318 = vmatpush1.msra.mxu0 0.0
    %3319 = vmatprep.subr.mxu0 0.0
    %3320 = vmatpush1.msra.mxu0 0.0
    %3321 = vmatprep.subr.mxu0 0.0
    %3322 = vmatpush1.msra.mxu0 0.0
    %3323 = vmatprep.subr.mxu0 0.0
    %3324 = vmatpush1.msra.mxu0 0.0
    %3325 = vmatprep.mubr.f32.mxu0 0.0
    %3326 = vmatmul.mubr.f32.gmra.mrb[0].mxu0 %v3260
    %v3327 = vpop.f32.mrb[0].mxu0
    %v3328 = vadd.f32 %v1830, %v3327
    %v3329 = vpop.f32.mrb[0].mxu0
    %v3330 = vadd.f32 %v1834, %v3329
    %3331 = vdwg.mxu0
    %3332 = vmatprep.subr.mxu0 0.0
    %3333 = vmatpush1.msra.mxu0 %v1778
    %3334 = vmatprep.subr.mxu0 0.0
    %3335 = vmatpush1.msra.mxu0 %v1781
    %3336 = vmatprep.subr.mxu0 0.0
    %3337 = vmatpush1.msra.mxu0 %v1784
    %3338 = vmatprep.subr.mxu0 0.0
    %3339 = vmatpush1.msra.mxu0 %v1787
    %3340 = vmatprep.subr.mxu0 0.0
    %3341 = vmatpush1.msra.mxu0 %v1790
    %3342 = vmatprep.subr.mxu0 0.0
    %3343 = vmatpush1.msra.mxu0 %v1793
    %3344 = vmatprep.subr.mxu0 0.0
    %3345 = vmatpush1.msra.mxu0 %v1796
    %3346 = vmatprep.subr.mxu0 0.0
    %3347 = vmatpush1.msra.mxu0 %v1799
    %3348 = vmatprep.subr.mxu0 0.0
    %3349 = vmatpush1.msra.mxu0 %v1802
    %3350 = vmatprep.subr.mxu0 0.0
    %3351 = vmatpush1.msra.mxu0 %v1805
    %3352 = vmatprep.subr.mxu0 0.0
    %3353 = vmatpush1.msra.mxu0 %v1808
    %3354 = vmatprep.subr.mxu0 0.0
    %3355 = vmatpush1.msra.mxu0 %v1811
    %3356 = vmatprep.subr.mxu0 0.0
    %3357 = vmatpush1.msra.mxu0 %v1814
    %3358 = vmatprep.subr.mxu0 0.0
    %3359 = vmatpush1.msra.mxu0 %v1817
    %3360 = vmatprep.subr.mxu0 0.0
    %3361 = vmatpush1.msra.mxu0 %v1820
    %3362 = vmatprep.subr.mxu0 0.0
    %3363 = vmatpush1.msra.mxu0 %v1823
    %3364 = vmatprep.subr.mxu0 0.0
    %3365 = vmatpush1.msra.mxu0 0.0
    %3366 = vmatprep.subr.mxu0 0.0
    %3367 = vmatpush1.msra.mxu0 0.0
    %3368 = vmatprep.subr.mxu0 0.0
    %3369 = vmatpush1.msra.mxu0 0.0
    %3370 = vmatprep.subr.mxu0 0.0
    %3371 = vmatpush1.msra.mxu0 0.0
    %3372 = vmatprep.subr.mxu0 0.0
    %3373 = vmatpush1.msra.mxu0 0.0
    %3374 = vmatprep.subr.mxu0 0.0
    %3375 = vmatpush1.msra.mxu0 0.0
    %3376 = vmatprep.subr.mxu0 0.0
    %3377 = vmatpush1.msra.mxu0 0.0
    %3378 = vmatprep.subr.mxu0 0.0
    %3379 = vmatpush1.msra.mxu0 0.0
    %3380 = vmatprep.subr.mxu0 0.0
    %3381 = vmatpush1.msra.mxu0 0.0
    %3382 = vmatprep.subr.mxu0 0.0
    %3383 = vmatpush1.msra.mxu0 0.0
    %3384 = vmatprep.subr.mxu0 0.0
    %3385 = vmatpush1.msra.mxu0 0.0
    %3386 = vmatprep.subr.mxu0 0.0
    %3387 = vmatpush1.msra.mxu0 0.0
    %3388 = vmatprep.subr.mxu0 0.0
    %3389 = vmatpush1.msra.mxu0 0.0
    %3390 = vmatprep.subr.mxu0 0.0
    %3391 = vmatpush1.msra.mxu0 0.0
    %3392 = vmatprep.subr.mxu0 0.0
    %3393 = vmatpush1.msra.mxu0 0.0
    %3394 = vmatprep.subr.mxu0 0.0
    %3395 = vmatpush1.msra.mxu0 0.0
    %3396 = vmatprep.mubr.f32.mxu0 0.0
    %3397 = vmatmul.mubr.f32.gmra.mrb[0].mxu0 %v3260
    %v3398 = vpop.f32.mrb[0].mxu0
    %v3399 = vadd.f32 %v1838, %v3398
    %v3400 = vpop.f32.mrb[0].mxu0
    %3401 = vdwg.mxu0
    %v3402 = vadd.f32 %v2018, %v3328
    %v3403 = vxor.u32 %v3402, 2147483648
    %v3404 = vmul.f32 %v3403, 1.442695
    %v3405 = vpow.pop %v3404
    %v3406 = vadd.f32 %v3405, 1.0
    %v3407 = vrcp.pop %v3406
    %v3408 = vmul.f32 1.0, %v3407
    %v3409 = vadd.f32 %v2020, %v3330
    %v3410 = vxor.u32 %v3409, 2147483648
    %v3411 = vmul.f32 %v3410, 1.442695
    %v3412 = vpow.pop %v3411
    %v3413 = vadd.f32 %v3412, 1.0
    %v3414 = vrcp.pop %v3413
    %v3415 = vmul.f32 1.0, %v3414
    %v3416 = vmul.f32 %v3408, %v3399
    %v3417 = vadd.f32 %v2124, %v3416
    %v3418 = vtanh.pop %v3417
    %v3419 = vsub.f32 1.0, %v3415
    %v3420 = vmul.f32 %v3419, %v3418
    %v3421 = vmul.f32 %v3415, %v3260
    %v3422 = vadd.f32 %v3420, %v3421
    %v3423 = vld [vmem:[#allocation8] sm:$0xff]
    %v3424 = vld [vmem:[#allocation8 + $0x8] sm:$0xff]
    %v3425 = vld [vmem:[#allocation8 + $0x10] sm:$0xff]
    %v3426 = vld [vmem:[#allocation8 + $0x18] sm:$0xff]
    %v3427 = vld [vmem:[#allocation8 + $0x20] sm:$0xff]
    %v3428 = vld [vmem:[#allocation8 + $0x28] sm:$0xff]
    %v3429 = vld [vmem:[#allocation8 + $0x30] sm:$0xff]
    %v3430 = vld [vmem:[#allocation8 + $0x38] sm:$0xff]
    %v3431 = vld [vmem:[#allocation8 + $0x40] sm:$0xff]
    %v3432 = vld [vmem:[#allocation8 + $0x48] sm:$0xff]
    %v3433 = vld [vmem:[#allocation8 + $0x50] sm:$0xff]
    %v3434 = vld [vmem:[#allocation8 + $0x58] sm:$0xff]
    %v3435 = vld [vmem:[#allocation8 + $0x60] sm:$0xff]
    %v3436 = vld [vmem:[#allocation8 + $0x68] sm:$0xff]
    %v3437 = vld [vmem:[#allocation8 + $0x70] sm:$0xff]
    %v3438 = vld [vmem:[#allocation8 + $0x78] sm:$0xff]
    %v3439 = vld [vmem:[#allocation8 + $0x80] sm:$0xff]
    %v3440 = vld [vmem:[#allocation8 + $0x88] sm:$0xff]
    %v3441 = vld [vmem:[#allocation8 + $0x90] sm:$0xff]
    %v3442 = vld [vmem:[#allocation8 + $0x98] sm:$0xff]
    %v3443 = vld [vmem:[#allocation8 + $0xa0] sm:$0xff]
    %v3444 = vld [vmem:[#allocation8 + $0xa8] sm:$0xff]
    %v3445 = vld [vmem:[#allocation8 + $0xb0] sm:$0xff]
    %v3446 = vld [vmem:[#allocation8 + $0xb8] sm:$0xff]
    %v3447 = vld [vmem:[#allocation8 + $0xc0] sm:$0xff]
    %v3448 = vld [vmem:[#allocation8 + $0xc8] sm:$0xff]
    %v3449 = vld [vmem:[#allocation8 + $0xd0] sm:$0xff]
    %v3450 = vld [vmem:[#allocation8 + $0xd8] sm:$0xff]
    %v3451 = vld [vmem:[#allocation8 + $0xe0] sm:$0xff]
    %v3452 = vld [vmem:[#allocation8 + $0xe8] sm:$0xff]
    %v3453 = vld [vmem:[#allocation8 + $0xf0] sm:$0xff]
    %v3454 = vld [vmem:[#allocation8 + $0xf8] sm:$0xff]
    %v3455 = vld [vmem:[#allocation8 + $0x100] sm:$0xff]
    %v3456 = vld [vmem:[#allocation8 + $0x108] sm:$0xff]
    %v3457 = vld [vmem:[#allocation8 + $0x110] sm:$0xff]
    %v3458 = vld [vmem:[#allocation8 + $0x118] sm:$0xff]
    %v3459 = vld [vmem:[#allocation8 + $0x120] sm:$0xff]
    %v3460 = vld [vmem:[#allocation8 + $0x128] sm:$0xff]
    %v3461 = vld [vmem:[#allocation8 + $0x130] sm:$0xff]
    %v3462 = vld [vmem:[#allocation8 + $0x138] sm:$0xff]
    %v3463 = vld [vmem:[#allocation8 + $0x140] sm:$0xff]
    %v3464 = vld [vmem:[#allocation8 + $0x148] sm:$0xff]
    %v3465 = vld [vmem:[#allocation8 + $0x150] sm:$0xff]
    %v3466 = vld [vmem:[#allocation8 + $0x158] sm:$0xff]
    %v3467 = vld [vmem:[#allocation8 + $0x160] sm:$0xff]
    %v3468 = vld [vmem:[#allocation8 + $0x168] sm:$0xff]
    %v3469 = vld [vmem:[#allocation8 + $0x170] sm:$0xff]
    %v3470 = vld [vmem:[#allocation8 + $0x178] sm:$0xff]
    %v3471 = vld [vmem:[%s9] sm:$0x7]
    %v3473 = vlaneseq
    %v3474 = vshrl.u32 %v3473, 7
    %v3475 = vsub.s32 0, %v3474
    %v3476 = vrot.slane %v3471, %v3475
    %v3477 = vlaneseq
    %v3478 = vshrl.u32 %v3477, 7
    %v3479 = vsub.s32 1, %v3478
    %v3480 = vrot.slane %v3471, %v3479
    %v3481 = vlaneseq
    %v3482 = vshrl.u32 %v3481, 7
    %v3483 = vsub.s32 2, %v3482
    %v3484 = vrot.slane %v3471, %v3483
    %3488 = vmatprep.subr.mxu0 %v3424
    %3489 = vmatpush1.msra.mxu0 %v3423
    %3490 = vmatprep.subr.mxu0 %v3427
    %3491 = vmatpush1.msra.mxu0 %v3426
    %3492 = vmatprep.subr.mxu0 %v3430
    %3493 = vmatpush1.msra.mxu0 %v3429
    %3494 = vmatprep.subr.mxu0 %v3433
    %3495 = vmatpush1.msra.mxu0 %v3432
    %3496 = vmatprep.subr.mxu0 %v3436
    %3497 = vmatpush1.msra.mxu0 %v3435
    %3498 = vmatprep.subr.mxu0 %v3439
    %3499 = vmatpush1.msra.mxu0 %v3438
    %3500 = vmatprep.subr.mxu0 %v3442
    %3501 = vmatpush1.msra.mxu0 %v3441
    %3502 = vmatprep.subr.mxu0 %v3445
    %3503 = vmatpush1.msra.mxu0 %v3444
    %3504 = vmatprep.subr.mxu0 %v3448
    %3505 = vmatpush1.msra.mxu0 %v3447
    %3506 = vmatprep.subr.mxu0 %v3451
    %3507 = vmatpush1.msra.mxu0 %v3450
    %3508 = vmatprep.subr.mxu0 %v3454
    %3509 = vmatpush1.msra.mxu0 %v3453
    %3510 = vmatprep.subr.mxu0 %v3457
    %3511 = vmatpush1.msra.mxu0 %v3456
    %3512 = vmatprep.subr.mxu0 %v3460
    %3513 = vmatpush1.msra.mxu0 %v3459
    %3514 = vmatprep.subr.mxu0 %v3463
    %3515 = vmatpush1.msra.mxu0 %v3462
    %3516 = vmatprep.subr.mxu0 %v3466
    %3517 = vmatpush1.msra.mxu0 %v3465
    %3518 = vmatprep.subr.mxu0 %v3469
    %3519 = vmatpush1.msra.mxu0 %v3468
    %3520 = vmatprep.subr.mxu0 0.0
    %3521 = vmatpush1.msra.mxu0 0.0
    %3522 = vmatprep.subr.mxu0 0.0
    %3523 = vmatpush1.msra.mxu0 0.0
    %3524 = vmatprep.subr.mxu0 0.0
    %3525 = vmatpush1.msra.mxu0 0.0
    %3526 = vmatprep.subr.mxu0 0.0
    %3527 = vmatpush1.msra.mxu0 0.0
    %3528 = vmatprep.subr.mxu0 0.0
    %3529 = vmatpush1.msra.mxu0 0.0
    %3530 = vmatprep.subr.mxu0 0.0
    %3531 = vmatpush1.msra.mxu0 0.0
    %3532 = vmatprep.subr.mxu0 0.0
    %3533 = vmatpush1.msra.mxu0 0.0
    %3534 = vmatprep.subr.mxu0 0.0
    %3535 = vmatpush1.msra.mxu0 0.0
    %3536 = vmatprep.subr.mxu0 0.0
    %3537 = vmatpush1.msra.mxu0 0.0
    %3538 = vmatprep.subr.mxu0 0.0
    %3539 = vmatpush1.msra.mxu0 0.0
    %3540 = vmatprep.subr.mxu0 0.0
    %3541 = vmatpush1.msra.mxu0 0.0
    %3542 = vmatprep.subr.mxu0 0.0
    %3543 = vmatpush1.msra.mxu0 0.0
    %3544 = vmatprep.subr.mxu0 0.0
    %3545 = vmatpush1.msra.mxu0 0.0
    %3546 = vmatprep.subr.mxu0 0.0
    %3547 = vmatpush1.msra.mxu0 0.0
    %3548 = vmatprep.subr.mxu0 0.0
    %3549 = vmatpush1.msra.mxu0 0.0
    %3550 = vmatprep.subr.mxu0 0.0
    %3551 = vmatpush1.msra.mxu0 0.0
    %3552 = vmatprep.mubr.f32.mxu0 0.0
    %3553 = vmatmul.mubr.f32.gmra.mrb[0].mxu0 %v1765
    %v3554 = vpop.f32.mrb[0].mxu0
    %v3555 = vadd.f32 %v3476, %v3554
    %v3556 = vpop.f32.mrb[0].mxu0
    %v3557 = vadd.f32 %v3480, %v3556
    %3558 = vdwg.mxu0
    %3559 = vmatprep.subr.mxu0 0.0
    %3560 = vmatpush1.msra.mxu0 %v3425
    %3561 = vmatprep.subr.mxu0 0.0
    %3562 = vmatpush1.msra.mxu0 %v3428
    %3563 = vmatprep.subr.mxu0 0.0
    %3564 = vmatpush1.msra.mxu0 %v3431
    %3565 = vmatprep.subr.mxu0 0.0
    %3566 = vmatpush1.msra.mxu0 %v3434
    %3567 = vmatprep.subr.mxu0 0.0
    %3568 = vmatpush1.msra.mxu0 %v3437
    %3569 = vmatprep.subr.mxu0 0.0
    %3570 = vmatpush1.msra.mxu0 %v3440
    %3571 = vmatprep.subr.mxu0 0.0
    %3572 = vmatpush1.msra.mxu0 %v3443
    %3573 = vmatprep.subr.mxu0 0.0
    %3574 = vmatpush1.msra.mxu0 %v3446
    %3575 = vmatprep.subr.mxu0 0.0
    %3576 = vmatpush1.msra.mxu0 %v3449
    %3577 = vmatprep.subr.mxu0 0.0
    %3578 = vmatpush1.msra.mxu0 %v3452
    %3579 = vmatprep.subr.mxu0 0.0
    %3580 = vmatpush1.msra.mxu0 %v3455
    %3581 = vmatprep.subr.mxu0 0.0
    %3582 = vmatpush1.msra.mxu0 %v3458
    %3583 = vmatprep.subr.mxu0 0.0
    %3584 = vmatpush1.msra.mxu0 %v3461
    %3585 = vmatprep.subr.mxu0 0.0
    %3586 = vmatpush1.msra.mxu0 %v3464
    %3587 = vmatprep.subr.mxu0 0.0
    %3588 = vmatpush1.msra.mxu0 %v3467
    %3589 = vmatprep.subr.mxu0 0.0
    %3590 = vmatpush1.msra.mxu0 %v3470
    %3591 = vmatprep.subr.mxu0 0.0
    %3592 = vmatpush1.msra.mxu0 0.0
    %3593 = vmatprep.subr.mxu0 0.0
    %3594 = vmatpush1.msra.mxu0 0.0
    %3595 = vmatprep.subr.mxu0 0.0
    %3596 = vmatpush1.msra.mxu0 0.0
    %3597 = vmatprep.subr.mxu0 0.0
    %3598 = vmatpush1.msra.mxu0 0.0
    %3599 = vmatprep.subr.mxu0 0.0
    %3600 = vmatpush1.msra.mxu0 0.0
    %3601 = vmatprep.subr.mxu0 0.0
    %3602 = vmatpush1.msra.mxu0 0.0
    %3603 = vmatprep.subr.mxu0 0.0
    %3604 = vmatpush1.msra.mxu0 0.0
    %3605 = vmatprep.subr.mxu0 0.0
    %3606 = vmatpush1.msra.mxu0 0.0
    %3607 = vmatprep.subr.mxu0 0.0
    %3608 = vmatpush1.msra.mxu0 0.0
    %3609 = vmatprep.subr.mxu0 0.0
    %3610 = vmatpush1.msra.mxu0 0.0
    %3611 = vmatprep.subr.mxu0 0.0
    %3612 = vmatpush1.msra.mxu0 0.0
    %3613 = vmatprep.subr.mxu0 0.0
    %3614 = vmatpush1.msra.mxu0 0.0
    %3615 = vmatprep.subr.mxu0 0.0
    %3616 = vmatpush1.msra.mxu0 0.0
    %3617 = vmatprep.subr.mxu0 0.0
    %3618 = vmatpush1.msra.mxu0 0.0
    %3619 = vmatprep.subr.mxu0 0.0
    %3620 = vmatpush1.msra.mxu0 0.0
    %3621 = vmatprep.subr.mxu0 0.0
    %3622 = vmatpush1.msra.mxu0 0.0
    %3623 = vmatprep.mubr.f32.mxu0 0.0
    %3624 = vmatmul.mubr.f32.gmra.mrb[0].mxu0 %v1765
    %v3625 = vpop.f32.mrb[0].mxu0
    %v3626 = vadd.f32 %v3484, %v3625
    %v3627 = vpop.f32.mrb[0].mxu0
    %3628 = vdwg.mxu0
    %s3629 = scalar_lea.vmem [#allocation8], 384
    %v3630 = vld [vmem:[%s3629] sm:$0xff]
    %v3631 = vld [vmem:[%s3629 + $0x8] sm:$0xff]
    %v3632 = vld [vmem:[%s3629 + $0x10] sm:$0xff]
    %v3633 = vld [vmem:[%s3629 + $0x18] sm:$0xff]
    %v3634 = vld [vmem:[%s3629 + $0x20] sm:$0xff]
    %v3635 = vld [vmem:[%s3629 + $0x28] sm:$0xff]
    %v3636 = vld [vmem:[%s3629 + $0x30] sm:$0xff]
    %v3637 = vld [vmem:[%s3629 + $0x38] sm:$0xff]
    %v3638 = vld [vmem:[%s3629 + $0x40] sm:$0xff]
    %v3639 = vld [vmem:[%s3629 + $0x48] sm:$0xff]
    %v3640 = vld [vmem:[%s3629 + $0x50] sm:$0xff]
    %v3641 = vld [vmem:[%s3629 + $0x58] sm:$0xff]
    %v3642 = vld [vmem:[%s3629 + $0x60] sm:$0xff]
    %v3643 = vld [vmem:[%s3629 + $0x68] sm:$0xff]
    %v3644 = vld [vmem:[%s3629 + $0x70] sm:$0xff]
    %v3645 = vld [vmem:[%s3629 + $0x78] sm:$0xff]
    %v3646 = vld [vmem:[%s3629 + $0x80] sm:$0xff]
    %v3647 = vld [vmem:[%s3629 + $0x88] sm:$0xff]
    %v3648 = vld [vmem:[%s3629 + $0x90] sm:$0xff]
    %v3649 = vld [vmem:[%s3629 + $0x98] sm:$0xff]
    %v3650 = vld [vmem:[%s3629 + $0xa0] sm:$0xff]
    %v3651 = vld [vmem:[%s3629 + $0xa8] sm:$0xff]
    %v3652 = vld [vmem:[%s3629 + $0xb0] sm:$0xff]
    %v3653 = vld [vmem:[%s3629 + $0xb8] sm:$0xff]
    %v3654 = vld [vmem:[%s3629 + $0xc0] sm:$0xff]
    %v3655 = vld [vmem:[%s3629 + $0xc8] sm:$0xff]
    %v3656 = vld [vmem:[%s3629 + $0xd0] sm:$0xff]
    %v3657 = vld [vmem:[%s3629 + $0xd8] sm:$0xff]
    %v3658 = vld [vmem:[%s3629 + $0xe0] sm:$0xff]
    %v3659 = vld [vmem:[%s3629 + $0xe8] sm:$0xff]
    %v3660 = vld [vmem:[%s3629 + $0xf0] sm:$0xff]
    %v3661 = vld [vmem:[%s3629 + $0xf8] sm:$0xff]
    %v3662 = vld [vmem:[%s3629 + $0x100] sm:$0xff]
    %v3663 = vld [vmem:[%s3629 + $0x108] sm:$0xff]
    %v3664 = vld [vmem:[%s3629 + $0x110] sm:$0xff]
    %v3665 = vld [vmem:[%s3629 + $0x118] sm:$0xff]
    %v3666 = vld [vmem:[%s3629 + $0x120] sm:$0xff]
    %v3667 = vld [vmem:[%s3629 + $0x128] sm:$0xff]
    %v3668 = vld [vmem:[%s3629 + $0x130] sm:$0xff]
    %v3669 = vld [vmem:[%s3629 + $0x138] sm:$0xff]
    %v3670 = vld [vmem:[%s3629 + $0x140] sm:$0xff]
    %v3671 = vld [vmem:[%s3629 + $0x148] sm:$0xff]
    %v3672 = vld [vmem:[%s3629 + $0x150] sm:$0xff]
    %v3673 = vld [vmem:[%s3629 + $0x158] sm:$0xff]
    %v3674 = vld [vmem:[%s3629 + $0x160] sm:$0xff]
    %v3675 = vld [vmem:[%s3629 + $0x168] sm:$0xff]
    %v3676 = vld [vmem:[%s3629 + $0x170] sm:$0xff]
    %v3677 = vld [vmem:[%s3629 + $0x178] sm:$0xff]
    %s3678 = scalar_lea.vmem %s9, 3
    %v3679 = vld [vmem:[%s3678] sm:$0x7]
    %v3681 = vlaneseq
    %v3682 = vshrl.u32 %v3681, 7
    %v3683 = vsub.s32 0, %v3682
    %v3684 = vrot.slane %v3679, %v3683
    %v3685 = vlaneseq
    %v3686 = vshrl.u32 %v3685, 7
    %v3687 = vsub.s32 1, %v3686
    %v3688 = vrot.slane %v3679, %v3687
    %v3689 = vlaneseq
    %v3690 = vshrl.u32 %v3689, 7
    %v3691 = vsub.s32 2, %v3690
    %v3692 = vrot.slane %v3679, %v3691
    %3696 = vmatprep.subr.mxu0 %v3631
    %3697 = vmatpush1.msra.mxu0 %v3630
    %3698 = vmatprep.subr.mxu0 %v3634
    %3699 = vmatpush1.msra.mxu0 %v3633
    %3700 = vmatprep.subr.mxu0 %v3637
    %3701 = vmatpush1.msra.mxu0 %v3636
    %3702 = vmatprep.subr.mxu0 %v3640
    %3703 = vmatpush1.msra.mxu0 %v3639
    %3704 = vmatprep.subr.mxu0 %v3643
    %3705 = vmatpush1.msra.mxu0 %v3642
    %3706 = vmatprep.subr.mxu0 %v3646
    %3707 = vmatpush1.msra.mxu0 %v3645
    %3708 = vmatprep.subr.mxu0 %v3649
    %3709 = vmatpush1.msra.mxu0 %v3648
    %3710 = vmatprep.subr.mxu0 %v3652
    %3711 = vmatpush1.msra.mxu0 %v3651
    %3712 = vmatprep.subr.mxu0 %v3655
    %3713 = vmatpush1.msra.mxu0 %v3654
    %3714 = vmatprep.subr.mxu0 %v3658
    %3715 = vmatpush1.msra.mxu0 %v3657
    %3716 = vmatprep.subr.mxu0 %v3661
    %3717 = vmatpush1.msra.mxu0 %v3660
    %3718 = vmatprep.subr.mxu0 %v3664
    %3719 = vmatpush1.msra.mxu0 %v3663
    %3720 = vmatprep.subr.mxu0 %v3667
    %3721 = vmatpush1.msra.mxu0 %v3666
    %3722 = vmatprep.subr.mxu0 %v3670
    %3723 = vmatpush1.msra.mxu0 %v3669
    %3724 = vmatprep.subr.mxu0 %v3673
    %3725 = vmatpush1.msra.mxu0 %v3672
    %3726 = vmatprep.subr.mxu0 %v3676
    %3727 = vmatpush1.msra.mxu0 %v3675
    %3728 = vmatprep.subr.mxu0 0.0
    %3729 = vmatpush1.msra.mxu0 0.0
    %3730 = vmatprep.subr.mxu0 0.0
    %3731 = vmatpush1.msra.mxu0 0.0
    %3732 = vmatprep.subr.mxu0 0.0
    %3733 = vmatpush1.msra.mxu0 0.0
    %3734 = vmatprep.subr.mxu0 0.0
    %3735 = vmatpush1.msra.mxu0 0.0
    %3736 = vmatprep.subr.mxu0 0.0
    %3737 = vmatpush1.msra.mxu0 0.0
    %3738 = vmatprep.subr.mxu0 0.0
    %3739 = vmatpush1.msra.mxu0 0.0
    %3740 = vmatprep.subr.mxu0 0.0
    %3741 = vmatpush1.msra.mxu0 0.0
    %3742 = vmatprep.subr.mxu0 0.0
    %3743 = vmatpush1.msra.mxu0 0.0
    %3744 = vmatprep.subr.mxu0 0.0
    %3745 = vmatpush1.msra.mxu0 0.0
    %3746 = vmatprep.subr.mxu0 0.0
    %3747 = vmatpush1.msra.mxu0 0.0
    %3748 = vmatprep.subr.mxu0 0.0
    %3749 = vmatpush1.msra.mxu0 0.0
    %3750 = vmatprep.subr.mxu0 0.0
    %3751 = vmatpush1.msra.mxu0 0.0
    %3752 = vmatprep.subr.mxu0 0.0
    %3753 = vmatpush1.msra.mxu0 0.0
    %3754 = vmatprep.subr.mxu0 0.0
    %3755 = vmatpush1.msra.mxu0 0.0
    %3756 = vmatprep.subr.mxu0 0.0
    %3757 = vmatpush1.msra.mxu0 0.0
    %3758 = vmatprep.subr.mxu0 0.0
    %3759 = vmatpush1.msra.mxu0 0.0
    %3760 = vmatprep.mubr.f32.mxu0 0.0
    %3761 = vmatmul.mubr.f32.gmra.mrb[0].mxu0 %v3422
    %v3762 = vpop.f32.mrb[0].mxu0
    %v3763 = vadd.f32 %v3684, %v3762
    %v3764 = vpop.f32.mrb[0].mxu0
    %v3765 = vadd.f32 %v3688, %v3764
    %3766 = vdwg.mxu0
    %3767 = vmatprep.subr.mxu0 0.0
    %3768 = vmatpush1.msra.mxu0 %v3632
    %3769 = vmatprep.subr.mxu0 0.0
    %3770 = vmatpush1.msra.mxu0 %v3635
    %3771 = vmatprep.subr.mxu0 0.0
    %3772 = vmatpush1.msra.mxu0 %v3638
    %3773 = vmatprep.subr.mxu0 0.0
    %3774 = vmatpush1.msra.mxu0 %v3641
    %3775 = vmatprep.subr.mxu0 0.0
    %3776 = vmatpush1.msra.mxu0 %v3644
    %3777 = vmatprep.subr.mxu0 0.0
    %3778 = vmatpush1.msra.mxu0 %v3647
    %3779 = vmatprep.subr.mxu0 0.0
    %3780 = vmatpush1.msra.mxu0 %v3650
    %3781 = vmatprep.subr.mxu0 0.0
    %3782 = vmatpush1.msra.mxu0 %v3653
    %3783 = vmatprep.subr.mxu0 0.0
    %3784 = vmatpush1.msra.mxu0 %v3656
    %3785 = vmatprep.subr.mxu0 0.0
    %3786 = vmatpush1.msra.mxu0 %v3659
    %3787 = vmatprep.subr.mxu0 0.0
    %3788 = vmatpush1.msra.mxu0 %v3662
    %3789 = vmatprep.subr.mxu0 0.0
    %3790 = vmatpush1.msra.mxu0 %v3665
    %3791 = vmatprep.subr.mxu0 0.0
    %3792 = vmatpush1.msra.mxu0 %v3668
    %3793 = vmatprep.subr.mxu0 0.0
    %3794 = vmatpush1.msra.mxu0 %v3671
    %3795 = vmatprep.subr.mxu0 0.0
    %3796 = vmatpush1.msra.mxu0 %v3674
    %3797 = vmatprep.subr.mxu0 0.0
    %3798 = vmatpush1.msra.mxu0 %v3677
    %3799 = vmatprep.subr.mxu0 0.0
    %3800 = vmatpush1.msra.mxu0 0.0
    %3801 = vmatprep.subr.mxu0 0.0
    %3802 = vmatpush1.msra.mxu0 0.0
    %3803 = vmatprep.subr.mxu0 0.0
    %3804 = vmatpush1.msra.mxu0 0.0
    %3805 = vmatprep.subr.mxu0 0.0
    %3806 = vmatpush1.msra.mxu0 0.0
    %3807 = vmatprep.subr.mxu0 0.0
    %3808 = vmatpush1.msra.mxu0 0.0
    %3809 = vmatprep.subr.mxu0 0.0
    %3810 = vmatpush1.msra.mxu0 0.0
    %3811 = vmatprep.subr.mxu0 0.0
    %3812 = vmatpush1.msra.mxu0 0.0
    %3813 = vmatprep.subr.mxu0 0.0
    %3814 = vmatpush1.msra.mxu0 0.0
    %3815 = vmatprep.subr.mxu0 0.0
    %3816 = vmatpush1.msra.mxu0 0.0
    %3817 = vmatprep.subr.mxu0 0.0
    %3818 = vmatpush1.msra.mxu0 0.0
    %3819 = vmatprep.subr.mxu0 0.0
    %3820 = vmatpush1.msra.mxu0 0.0
    %3821 = vmatprep.subr.mxu0 0.0
    %3822 = vmatpush1.msra.mxu0 0.0
    %3823 = vmatprep.subr.mxu0 0.0
    %3824 = vmatpush1.msra.mxu0 0.0
    %3825 = vmatprep.subr.mxu0 0.0
    %3826 = vmatpush1.msra.mxu0 0.0
    %3827 = vmatprep.subr.mxu0 0.0
    %3828 = vmatpush1.msra.mxu0 0.0
    %3829 = vmatprep.subr.mxu0 0.0
    %3830 = vmatpush1.msra.mxu0 0.0
    %3831 = vmatprep.mubr.f32.mxu0 0.0
    %3832 = vmatmul.mubr.f32.gmra.mrb[0].mxu0 %v3422
    %v3833 = vpop.f32.mrb[0].mxu0
    %v3834 = vadd.f32 %v3692, %v3833
    %v3835 = vpop.f32.mrb[0].mxu0
    %3836 = vdwg.mxu0
    %v3837 = vld [vmem:[#allocation7] sm:$0xff]
    %v3838 = vld [vmem:[#allocation7 + $0x8] sm:$0xff]
    %v3839 = vld [vmem:[#allocation7 + $0x10] sm:$0xff]
    %v3840 = vld [vmem:[#allocation7 + $0x18] sm:$0xff]
    %v3841 = vld [vmem:[#allocation7 + $0x20] sm:$0xff]
    %v3842 = vld [vmem:[#allocation7 + $0x28] sm:$0xff]
    %v3843 = vld [vmem:[#allocation7 + $0x30] sm:$0xff]
    %v3844 = vld [vmem:[#allocation7 + $0x38] sm:$0xff]
    %v3845 = vld [vmem:[#allocation7 + $0x40] sm:$0xff]
    %v3846 = vld [vmem:[#allocation7 + $0x48] sm:$0xff]
    %v3847 = vld [vmem:[#allocation7 + $0x50] sm:$0xff]
    %v3848 = vld [vmem:[#allocation7 + $0x58] sm:$0xff]
    %v3849 = vld [vmem:[#allocation7 + $0x60] sm:$0xff]
    %v3850 = vld [vmem:[#allocation7 + $0x68] sm:$0xff]
    %v3851 = vld [vmem:[#allocation7 + $0x70] sm:$0xff]
    %v3852 = vld [vmem:[#allocation7 + $0x78] sm:$0xff]
    %v3853 = vld [vmem:[#allocation7 + $0x80] sm:$0xff]
    %v3854 = vld [vmem:[#allocation7 + $0x88] sm:$0xff]
    %v3855 = vld [vmem:[#allocation7 + $0x90] sm:$0xff]
    %v3856 = vld [vmem:[#allocation7 + $0x98] sm:$0xff]
    %v3857 = vld [vmem:[#allocation7 + $0xa0] sm:$0xff]
    %v3858 = vld [vmem:[#allocation7 + $0xa8] sm:$0xff]
    %v3859 = vld [vmem:[#allocation7 + $0xb0] sm:$0xff]
    %v3860 = vld [vmem:[#allocation7 + $0xb8] sm:$0xff]
    %v3861 = vld [vmem:[#allocation7 + $0xc0] sm:$0xff]
    %v3862 = vld [vmem:[#allocation7 + $0xc8] sm:$0xff]
    %v3863 = vld [vmem:[#allocation7 + $0xd0] sm:$0xff]
    %v3864 = vld [vmem:[#allocation7 + $0xd8] sm:$0xff]
    %v3865 = vld [vmem:[#allocation7 + $0xe0] sm:$0xff]
    %v3866 = vld [vmem:[#allocation7 + $0xe8] sm:$0xff]
    %v3867 = vld [vmem:[#allocation7 + $0xf0] sm:$0xff]
    %v3868 = vld [vmem:[#allocation7 + $0xf8] sm:$0xff]
    %v3869 = vld [vmem:[#allocation7 + $0x100] sm:$0xff]
    %v3870 = vld [vmem:[#allocation7 + $0x108] sm:$0xff]
    %v3871 = vld [vmem:[#allocation7 + $0x110] sm:$0xff]
    %v3872 = vld [vmem:[#allocation7 + $0x118] sm:$0xff]
    %v3873 = vld [vmem:[#allocation7 + $0x120] sm:$0xff]
    %v3874 = vld [vmem:[#allocation7 + $0x128] sm:$0xff]
    %v3875 = vld [vmem:[#allocation7 + $0x130] sm:$0xff]
    %v3876 = vld [vmem:[#allocation7 + $0x138] sm:$0xff]
    %v3877 = vld [vmem:[#allocation7 + $0x140] sm:$0xff]
    %v3878 = vld [vmem:[#allocation7 + $0x148] sm:$0xff]
    %v3879 = vld [vmem:[#allocation7 + $0x150] sm:$0xff]
    %v3880 = vld [vmem:[#allocation7 + $0x158] sm:$0xff]
    %v3881 = vld [vmem:[#allocation7 + $0x160] sm:$0xff]
    %v3882 = vld [vmem:[#allocation7 + $0x168] sm:$0xff]
    %v3883 = vld [vmem:[#allocation7 + $0x170] sm:$0xff]
    %v3884 = vld [vmem:[#allocation7 + $0x178] sm:$0xff]
    %s3885 = scalar_lea.vmem [#allocation7], 384
    %v3886 = vld [vmem:[%s3885] sm:$0xff]
    %v3887 = vld [vmem:[%s3885 + $0x8] sm:$0xff]
    %v3888 = vld [vmem:[%s3885 + $0x10] sm:$0xff]
    %v3889 = vld [vmem:[%s3885 + $0x18] sm:$0xff]
    %v3890 = vld [vmem:[%s3885 + $0x20] sm:$0xff]
    %v3891 = vld [vmem:[%s3885 + $0x28] sm:$0xff]
    %v3892 = vld [vmem:[%s3885 + $0x30] sm:$0xff]
    %v3893 = vld [vmem:[%s3885 + $0x38] sm:$0xff]
    %v3894 = vld [vmem:[%s3885 + $0x40] sm:$0xff]
    %v3895 = vld [vmem:[%s3885 + $0x48] sm:$0xff]
    %v3896 = vld [vmem:[%s3885 + $0x50] sm:$0xff]
    %v3897 = vld [vmem:[%s3885 + $0x58] sm:$0xff]
    %v3898 = vld [vmem:[%s3885 + $0x60] sm:$0xff]
    %v3899 = vld [vmem:[%s3885 + $0x68] sm:$0xff]
    %v3900 = vld [vmem:[%s3885 + $0x70] sm:$0xff]
    %v3901 = vld [vmem:[%s3885 + $0x78] sm:$0xff]
    %v3902 = vld [vmem:[%s3885 + $0x80] sm:$0xff]
    %v3903 = vld [vmem:[%s3885 + $0x88] sm:$0xff]
    %v3904 = vld [vmem:[%s3885 + $0x90] sm:$0xff]
    %v3905 = vld [vmem:[%s3885 + $0x98] sm:$0xff]
    %v3906 = vld [vmem:[%s3885 + $0xa0] sm:$0xff]
    %v3907 = vld [vmem:[%s3885 + $0xa8] sm:$0xff]
    %v3908 = vld [vmem:[%s3885 + $0xb0] sm:$0xff]
    %v3909 = vld [vmem:[%s3885 + $0xb8] sm:$0xff]
    %v3910 = vld [vmem:[%s3885 + $0xc0] sm:$0xff]
    %v3911 = vld [vmem:[%s3885 + $0xc8] sm:$0xff]
    %v3912 = vld [vmem:[%s3885 + $0xd0] sm:$0xff]
    %v3913 = vld [vmem:[%s3885 + $0xd8] sm:$0xff]
    %v3914 = vld [vmem:[%s3885 + $0xe0] sm:$0xff]
    %v3915 = vld [vmem:[%s3885 + $0xe8] sm:$0xff]
    %v3916 = vld [vmem:[%s3885 + $0xf0] sm:$0xff]
    %v3917 = vld [vmem:[%s3885 + $0xf8] sm:$0xff]
    %v3918 = vld [vmem:[%s3885 + $0x100] sm:$0xff]
    %v3919 = vld [vmem:[%s3885 + $0x108] sm:$0xff]
    %v3920 = vld [vmem:[%s3885 + $0x110] sm:$0xff]
    %v3921 = vld [vmem:[%s3885 + $0x118] sm:$0xff]
    %v3922 = vld [vmem:[%s3885 + $0x120] sm:$0xff]
    %v3923 = vld [vmem:[%s3885 + $0x128] sm:$0xff]
    %v3924 = vld [vmem:[%s3885 + $0x130] sm:$0xff]
    %v3925 = vld [vmem:[%s3885 + $0x138] sm:$0xff]
    %v3926 = vld [vmem:[%s3885 + $0x140] sm:$0xff]
    %v3927 = vld [vmem:[%s3885 + $0x148] sm:$0xff]
    %v3928 = vld [vmem:[%s3885 + $0x150] sm:$0xff]
    %v3929 = vld [vmem:[%s3885 + $0x158] sm:$0xff]
    %v3930 = vld [vmem:[%s3885 + $0x160] sm:$0xff]
    %v3931 = vld [vmem:[%s3885 + $0x168] sm:$0xff]
    %v3932 = vld [vmem:[%s3885 + $0x170] sm:$0xff]
    %v3933 = vld [vmem:[%s3885 + $0x178] sm:$0xff]
    %v3934 = vld [vmem:[%s8] sm:$0x7]
    %v3936 = vlaneseq
    %v3937 = vshrl.u32 %v3936, 7
    %v3938 = vsub.s32 0, %v3937
    %v3939 = vrot.slane %v3934, %v3938
    %v3940 = vlaneseq
    %v3941 = vshrl.u32 %v3940, 7
    %v3942 = vsub.s32 1, %v3941
    %v3943 = vrot.slane %v3934, %v3942
    %v3944 = vlaneseq
    %v3945 = vshrl.u32 %v3944, 7
    %v3946 = vsub.s32 2, %v3945
    %v3947 = vrot.slane %v3934, %v3946
    %s3951 = scalar_lea.vmem %s8, 3
    %v3952 = vld [vmem:[%s3951] sm:$0x7]
    %v3954 = vlaneseq
    %v3955 = vshrl.u32 %v3954, 7
    %v3956 = vsub.s32 0, %v3955
    %v3957 = vrot.slane %v3952, %v3956
    %v3958 = vlaneseq
    %v3959 = vshrl.u32 %v3958, 7
    %v3960 = vsub.s32 1, %v3959
    %v3961 = vrot.slane %v3952, %v3960
    %v3962 = vlaneseq
    %v3963 = vshrl.u32 %v3962, 7
    %v3964 = vsub.s32 2, %v3963
    %v3965 = vrot.slane %v3952, %v3964
    %v3969 = vld [vmem:[%s10] sm:$0xff]
    %v3970 = vld [vmem:[%s10 + $0x8] sm:$0xff]
    %v3971 = vld [vmem:[%s10 + $0x10] sm:$0xff]
    %v3972 = vld [vmem:[%s10 + $0x18] sm:$0xff]
    %v3973 = vld [vmem:[%s10 + $0x20] sm:$0xff]
    %v3974 = vld [vmem:[%s10 + $0x28] sm:$0xff]
    %v3975 = vld [vmem:[%s10 + $0x30] sm:$0xff]
    %v3976 = vld [vmem:[%s10 + $0x38] sm:$0xff]
    %v3977 = vld [vmem:[%s10 + $0x40] sm:$0xff]
    %v3978 = vld [vmem:[%s10 + $0x48] sm:$0xff]
    %v3979 = vld [vmem:[%s10 + $0x50] sm:$0xff]
    %v3980 = vld [vmem:[%s10 + $0x58] sm:$0xff]
    %v3981 = vld [vmem:[%s10 + $0x60] sm:$0xff]
    %v3982 = vld [vmem:[%s10 + $0x68] sm:$0xff]
    %v3983 = vld [vmem:[%s10 + $0x70] sm:$0xff]
    %v3984 = vld [vmem:[%s10 + $0x78] sm:$0xff]
    %v3985 = vld [vmem:[#allocation10] sm:$0x1]
    %v3987 = vlaneseq
    %v3988 = vshrl.u32 %v3987, 7
    %v3989 = vsub.s32 0, %v3988
    %v3990 = vrot.slane %v3985, %v3989
    %v3992 = vld [vmem:[%s1] sm:$0xff]
    %3993 = vmatprep.subr.mxu0 %v3838
    %3994 = vmatpush1.msra.mxu0 %v3837
    %3995 = vmatprep.subr.mxu0 %v3841
    %3996 = vmatpush1.msra.mxu0 %v3840
    %3997 = vmatprep.subr.mxu0 %v3844
    %3998 = vmatpush1.msra.mxu0 %v3843
    %3999 = vmatprep.subr.mxu0 %v3847
    %4000 = vmatpush1.msra.mxu0 %v3846
    %4001 = vmatprep.subr.mxu0 %v3850
    %4002 = vmatpush1.msra.mxu0 %v3849
    %4003 = vmatprep.subr.mxu0 %v3853
    %4004 = vmatpush1.msra.mxu0 %v3852
    %4005 = vmatprep.subr.mxu0 %v3856
    %4006 = vmatpush1.msra.mxu0 %v3855
    %4007 = vmatprep.subr.mxu0 %v3859
    %4008 = vmatpush1.msra.mxu0 %v3858
    %4009 = vmatprep.subr.mxu0 %v3862
    %4010 = vmatpush1.msra.mxu0 %v3861
    %4011 = vmatprep.subr.mxu0 %v3865
    %4012 = vmatpush1.msra.mxu0 %v3864
    %4013 = vmatprep.subr.mxu0 %v3868
    %4014 = vmatpush1.msra.mxu0 %v3867
    %4015 = vmatprep.subr.mxu0 %v3871
    %4016 = vmatpush1.msra.mxu0 %v3870
    %4017 = vmatprep.subr.mxu0 %v3874
    %4018 = vmatpush1.msra.mxu0 %v3873
    %4019 = vmatprep.subr.mxu0 %v3877
    %4020 = vmatpush1.msra.mxu0 %v3876
    %4021 = vmatprep.subr.mxu0 %v3880
    %4022 = vmatpush1.msra.mxu0 %v3879
    %4023 = vmatprep.subr.mxu0 %v3883
    %4024 = vmatpush1.msra.mxu0 %v3882
    %4025 = vmatprep.subr.mxu0 0.0
    %4026 = vmatpush1.msra.mxu0 0.0
    %4027 = vmatprep.subr.mxu0 0.0
    %4028 = vmatpush1.msra.mxu0 0.0
    %4029 = vmatprep.subr.mxu0 0.0
    %4030 = vmatpush1.msra.mxu0 0.0
    %4031 = vmatprep.subr.mxu0 0.0
    %4032 = vmatpush1.msra.mxu0 0.0
    %4033 = vmatprep.subr.mxu0 0.0
    %4034 = vmatpush1.msra.mxu0 0.0
    %4035 = vmatprep.subr.mxu0 0.0
    %4036 = vmatpush1.msra.mxu0 0.0
    %4037 = vmatprep.subr.mxu0 0.0
    %4038 = vmatpush1.msra.mxu0 0.0
    %4039 = vmatprep.subr.mxu0 0.0
    %4040 = vmatpush1.msra.mxu0 0.0
    %4041 = vmatprep.subr.mxu0 0.0
    %4042 = vmatpush1.msra.mxu0 0.0
    %4043 = vmatprep.subr.mxu0 0.0
    %4044 = vmatpush1.msra.mxu0 0.0
    %4045 = vmatprep.subr.mxu0 0.0
    %4046 = vmatpush1.msra.mxu0 0.0
    %4047 = vmatprep.subr.mxu0 0.0
    %4048 = vmatpush1.msra.mxu0 0.0
    %4049 = vmatprep.subr.mxu0 0.0
    %4050 = vmatpush1.msra.mxu0 0.0
    %4051 = vmatprep.subr.mxu0 0.0
    %4052 = vmatpush1.msra.mxu0 0.0
    %4053 = vmatprep.subr.mxu0 0.0
    %4054 = vmatpush1.msra.mxu0 0.0
    %4055 = vmatprep.subr.mxu0 0.0
    %4056 = vmatpush1.msra.mxu0 0.0
    %4057 = vmatprep.mubr.f32.mxu0 0.0
    %4058 = vmatmul.mubr.f32.gmra.mrb[0].mxu0 %v3992
    %v4059 = vpop.f32.mrb[0].mxu0
    %v4060 = vadd.f32 %v3939, %v4059
    %v4061 = vpop.f32.mrb[0].mxu0
    %v4062 = vadd.f32 %v3943, %v4061
    %4063 = vdwg.mxu0
    %4064 = vmatprep.subr.mxu0 0.0
    %4065 = vmatpush1.msra.mxu0 %v3839
    %4066 = vmatprep.subr.mxu0 0.0
    %4067 = vmatpush1.msra.mxu0 %v3842
    %4068 = vmatprep.subr.mxu0 0.0
    %4069 = vmatpush1.msra.mxu0 %v3845
    %4070 = vmatprep.subr.mxu0 0.0
    %4071 = vmatpush1.msra.mxu0 %v3848
    %4072 = vmatprep.subr.mxu0 0.0
    %4073 = vmatpush1.msra.mxu0 %v3851
    %4074 = vmatprep.subr.mxu0 0.0
    %4075 = vmatpush1.msra.mxu0 %v3854
    %4076 = vmatprep.subr.mxu0 0.0
    %4077 = vmatpush1.msra.mxu0 %v3857
    %4078 = vmatprep.subr.mxu0 0.0
    %4079 = vmatpush1.msra.mxu0 %v3860
    %4080 = vmatprep.subr.mxu0 0.0
    %4081 = vmatpush1.msra.mxu0 %v3863
    %4082 = vmatprep.subr.mxu0 0.0
    %4083 = vmatpush1.msra.mxu0 %v3866
    %4084 = vmatprep.subr.mxu0 0.0
    %4085 = vmatpush1.msra.mxu0 %v3869
    %4086 = vmatprep.subr.mxu0 0.0
    %4087 = vmatpush1.msra.mxu0 %v3872
    %4088 = vmatprep.subr.mxu0 0.0
    %4089 = vmatpush1.msra.mxu0 %v3875
    %4090 = vmatprep.subr.mxu0 0.0
    %4091 = vmatpush1.msra.mxu0 %v3878
    %4092 = vmatprep.subr.mxu0 0.0
    %4093 = vmatpush1.msra.mxu0 %v3881
    %4094 = vmatprep.subr.mxu0 0.0
    %4095 = vmatpush1.msra.mxu0 %v3884
    %4096 = vmatprep.subr.mxu0 0.0
    %4097 = vmatpush1.msra.mxu0 0.0
    %4098 = vmatprep.subr.mxu0 0.0
    %4099 = vmatpush1.msra.mxu0 0.0
    %4100 = vmatprep.subr.mxu0 0.0
    %4101 = vmatpush1.msra.mxu0 0.0
    %4102 = vmatprep.subr.mxu0 0.0
    %4103 = vmatpush1.msra.mxu0 0.0
    %4104 = vmatprep.subr.mxu0 0.0
    %4105 = vmatpush1.msra.mxu0 0.0
    %4106 = vmatprep.subr.mxu0 0.0
    %4107 = vmatpush1.msra.mxu0 0.0
    %4108 = vmatprep.subr.mxu0 0.0
    %4109 = vmatpush1.msra.mxu0 0.0
    %4110 = vmatprep.subr.mxu0 0.0
    %4111 = vmatpush1.msra.mxu0 0.0
    %4112 = vmatprep.subr.mxu0 0.0
    %4113 = vmatpush1.msra.mxu0 0.0
    %4114 = vmatprep.subr.mxu0 0.0
    %4115 = vmatpush1.msra.mxu0 0.0
    %4116 = vmatprep.subr.mxu0 0.0
    %4117 = vmatpush1.msra.mxu0 0.0
    %4118 = vmatprep.subr.mxu0 0.0
    %4119 = vmatpush1.msra.mxu0 0.0
    %4120 = vmatprep.subr.mxu0 0.0
    %4121 = vmatpush1.msra.mxu0 0.0
    %4122 = vmatprep.subr.mxu0 0.0
    %4123 = vmatpush1.msra.mxu0 0.0
    %4124 = vmatprep.subr.mxu0 0.0
    %4125 = vmatpush1.msra.mxu0 0.0
    %4126 = vmatprep.subr.mxu0 0.0
    %4127 = vmatpush1.msra.mxu0 0.0
    %4128 = vmatprep.mubr.f32.mxu0 0.0
    %4129 = vmatmul.mubr.f32.gmra.mrb[0].mxu0 %v3992
    %v4130 = vpop.f32.mrb[0].mxu0
    %v4131 = vadd.f32 %v3947, %v4130
    %v4132 = vpop.f32.mrb[0].mxu0
    %4133 = vdwg.mxu0
    %v4134 = vadd.f32 %v4060, %v3555
    %v4135 = vxor.u32 %v4134, 2147483648
    %v4136 = vmul.f32 %v4135, 1.442695
    %v4137 = vpow.pop %v4136
    %v4138 = vadd.f32 %v4137, 1.0
    %v4139 = vrcp.pop %v4138
    %v4140 = vmul.f32 1.0, %v4139
    %v4141 = vadd.f32 %v4062, %v3557
    %v4142 = vxor.u32 %v4141, 2147483648
    %v4143 = vmul.f32 %v4142, 1.442695
    %v4144 = vpow.pop %v4143
    %v4145 = vadd.f32 %v4144, 1.0
    %v4146 = vrcp.pop %v4145
    %v4147 = vmul.f32 1.0, %v4146
    %v4148 = vmul.f32 %v4140, %v3626
    %v4149 = vadd.f32 %v4131, %v4148
    %v4150 = vtanh.pop %v4149
    %v4151 = vsub.f32 1.0, %v4147
    %v4152 = vmul.f32 %v4151, %v4150
    %v4153 = vmul.f32 %v4147, %v1765
    %v4154 = vadd.f32 %v4152, %v4153
    %4155 = vmatprep.subr.mxu0 %v3887
    %4156 = vmatpush1.msra.mxu0 %v3886
    %4157 = vmatprep.subr.mxu0 %v3890
    %4158 = vmatpush1.msra.mxu0 %v3889
    %4159 = vmatprep.subr.mxu0 %v3893
    %4160 = vmatpush1.msra.mxu0 %v3892
    %4161 = vmatprep.subr.mxu0 %v3896
    %4162 = vmatpush1.msra.mxu0 %v3895
    %4163 = vmatprep.subr.mxu0 %v3899
    %4164 = vmatpush1.msra.mxu0 %v3898
    %4165 = vmatprep.subr.mxu0 %v3902
    %4166 = vmatpush1.msra.mxu0 %v3901
    %4167 = vmatprep.subr.mxu0 %v3905
    %4168 = vmatpush1.msra.mxu0 %v3904
    %4169 = vmatprep.subr.mxu0 %v3908
    %4170 = vmatpush1.msra.mxu0 %v3907
    %4171 = vmatprep.subr.mxu0 %v3911
    %4172 = vmatpush1.msra.mxu0 %v3910
    %4173 = vmatprep.subr.mxu0 %v3914
    %4174 = vmatpush1.msra.mxu0 %v3913
    %4175 = vmatprep.subr.mxu0 %v3917
    %4176 = vmatpush1.msra.mxu0 %v3916
    %4177 = vmatprep.subr.mxu0 %v3920
    %4178 = vmatpush1.msra.mxu0 %v3919
    %4179 = vmatprep.subr.mxu0 %v3923
    %4180 = vmatpush1.msra.mxu0 %v3922
    %4181 = vmatprep.subr.mxu0 %v3926
    %4182 = vmatpush1.msra.mxu0 %v3925
    %4183 = vmatprep.subr.mxu0 %v3929
    %4184 = vmatpush1.msra.mxu0 %v3928
    %4185 = vmatprep.subr.mxu0 %v3932
    %4186 = vmatpush1.msra.mxu0 %v3931
    %4187 = vmatprep.subr.mxu0 0.0
    %4188 = vmatpush1.msra.mxu0 0.0
    %4189 = vmatprep.subr.mxu0 0.0
    %4190 = vmatpush1.msra.mxu0 0.0
    %4191 = vmatprep.subr.mxu0 0.0
    %4192 = vmatpush1.msra.mxu0 0.0
    %4193 = vmatprep.subr.mxu0 0.0
    %4194 = vmatpush1.msra.mxu0 0.0
    %4195 = vmatprep.subr.mxu0 0.0
    %4196 = vmatpush1.msra.mxu0 0.0
    %4197 = vmatprep.subr.mxu0 0.0
    %4198 = vmatpush1.msra.mxu0 0.0
    %4199 = vmatprep.subr.mxu0 0.0
    %4200 = vmatpush1.msra.mxu0 0.0
    %4201 = vmatprep.subr.mxu0 0.0
    %4202 = vmatpush1.msra.mxu0 0.0
    %4203 = vmatprep.subr.mxu0 0.0
    %4204 = vmatpush1.msra.mxu0 0.0
    %4205 = vmatprep.subr.mxu0 0.0
    %4206 = vmatpush1.msra.mxu0 0.0
    %4207 = vmatprep.subr.mxu0 0.0
    %4208 = vmatpush1.msra.mxu0 0.0
    %4209 = vmatprep.subr.mxu0 0.0
    %4210 = vmatpush1.msra.mxu0 0.0
    %4211 = vmatprep.subr.mxu0 0.0
    %4212 = vmatpush1.msra.mxu0 0.0
    %4213 = vmatprep.subr.mxu0 0.0
    %4214 = vmatpush1.msra.mxu0 0.0
    %4215 = vmatprep.subr.mxu0 0.0
    %4216 = vmatpush1.msra.mxu0 0.0
    %4217 = vmatprep.subr.mxu0 0.0
    %4218 = vmatpush1.msra.mxu0 0.0
    %4219 = vmatprep.mubr.f32.mxu0 0.0
    %4220 = vmatmul.mubr.f32.gmra.mrb[0].mxu0 %v4154
    %v4221 = vpop.f32.mrb[0].mxu0
    %v4222 = vadd.f32 %v3957, %v4221
    %v4223 = vpop.f32.mrb[0].mxu0
    %v4224 = vadd.f32 %v3961, %v4223
    %4225 = vdwg.mxu0
    %4226 = vmatprep.subr.mxu0 0.0
    %4227 = vmatpush1.msra.mxu0 %v3888
    %4228 = vmatprep.subr.mxu0 0.0
    %4229 = vmatpush1.msra.mxu0 %v3891
    %4230 = vmatprep.subr.mxu0 0.0
    %4231 = vmatpush1.msra.mxu0 %v3894
    %4232 = vmatprep.subr.mxu0 0.0
    %4233 = vmatpush1.msra.mxu0 %v3897
    %4234 = vmatprep.subr.mxu0 0.0
    %4235 = vmatpush1.msra.mxu0 %v3900
    %4236 = vmatprep.subr.mxu0 0.0
    %4237 = vmatpush1.msra.mxu0 %v3903
    %4238 = vmatprep.subr.mxu0 0.0
    %4239 = vmatpush1.msra.mxu0 %v3906
    %4240 = vmatprep.subr.mxu0 0.0
    %4241 = vmatpush1.msra.mxu0 %v3909
    %4242 = vmatprep.subr.mxu0 0.0
    %4243 = vmatpush1.msra.mxu0 %v3912
    %4244 = vmatprep.subr.mxu0 0.0
    %4245 = vmatpush1.msra.mxu0 %v3915
    %4246 = vmatprep.subr.mxu0 0.0
    %4247 = vmatpush1.msra.mxu0 %v3918
    %4248 = vmatprep.subr.mxu0 0.0
    %4249 = vmatpush1.msra.mxu0 %v3921
    %4250 = vmatprep.subr.mxu0 0.0
    %4251 = vmatpush1.msra.mxu0 %v3924
    %4252 = vmatprep.subr.mxu0 0.0
    %4253 = vmatpush1.msra.mxu0 %v3927
    %4254 = vmatprep.subr.mxu0 0.0
    %4255 = vmatpush1.msra.mxu0 %v3930
    %4256 = vmatprep.subr.mxu0 0.0
    %4257 = vmatpush1.msra.mxu0 %v3933
    %4258 = vmatprep.subr.mxu0 0.0
    %4259 = vmatpush1.msra.mxu0 0.0
    %4260 = vmatprep.subr.mxu0 0.0
    %4261 = vmatpush1.msra.mxu0 0.0
    %4262 = vmatprep.subr.mxu0 0.0
    %4263 = vmatpush1.msra.mxu0 0.0
    %4264 = vmatprep.subr.mxu0 0.0
    %4265 = vmatpush1.msra.mxu0 0.0
    %4266 = vmatprep.subr.mxu0 0.0
    %4267 = vmatpush1.msra.mxu0 0.0
    %4268 = vmatprep.subr.mxu0 0.0
    %4269 = vmatpush1.msra.mxu0 0.0
    %4270 = vmatprep.subr.mxu0 0.0
    %4271 = vmatpush1.msra.mxu0 0.0
    %4272 = vmatprep.subr.mxu0 0.0
    %4273 = vmatpush1.msra.mxu0 0.0
    %4274 = vmatprep.subr.mxu0 0.0
    %4275 = vmatpush1.msra.mxu0 0.0
    %4276 = vmatprep.subr.mxu0 0.0
    %4277 = vmatpush1.msra.mxu0 0.0
    %4278 = vmatprep.subr.mxu0 0.0
    %4279 = vmatpush1.msra.mxu0 0.0
    %4280 = vmatprep.subr.mxu0 0.0
    %4281 = vmatpush1.msra.mxu0 0.0
    %4282 = vmatprep.subr.mxu0 0.0
    %4283 = vmatpush1.msra.mxu0 0.0
    %4284 = vmatprep.subr.mxu0 0.0
    %4285 = vmatpush1.msra.mxu0 0.0
    %4286 = vmatprep.subr.mxu0 0.0
    %4287 = vmatpush1.msra.mxu0 0.0
    %4288 = vmatprep.subr.mxu0 0.0
    %4289 = vmatpush1.msra.mxu0 0.0
    %4290 = vmatprep.mubr.f32.mxu0 0.0
    %4291 = vmatmul.mubr.f32.gmra.mrb[0].mxu0 %v4154
    %v4292 = vpop.f32.mrb[0].mxu0
    %v4293 = vadd.f32 %v3965, %v4292
    %v4294 = vpop.f32.mrb[0].mxu0
    %4295 = vdwg.mxu0
    %v4296 = vadd.f32 %v4222, %v3763
    %v4297 = vxor.u32 %v4296, 2147483648
    %v4298 = vmul.f32 %v4297, 1.442695
    %v4299 = vpow.pop %v4298
    %v4300 = vadd.f32 %v4299, 1.0
    %v4301 = vrcp.pop %v4300
    %v4302 = vmul.f32 1.0, %v4301
    %v4303 = vadd.f32 %v4224, %v3765
    %v4304 = vxor.u32 %v4303, 2147483648
    %v4305 = vmul.f32 %v4304, 1.442695
    %v4306 = vpow.pop %v4305
    %v4307 = vadd.f32 %v4306, 1.0
    %v4308 = vrcp.pop %v4307
    %v4309 = vmul.f32 1.0, %v4308
    %v4310 = vmul.f32 %v4302, %v3834
    %v4311 = vadd.f32 %v4293, %v4310
    %v4312 = vtanh.pop %v4311
    %v4313 = vsub.f32 1.0, %v4309
    %v4314 = vmul.f32 %v4313, %v4312
    %v4315 = vmul.f32 %v4309, %v3422
    %v4316 = vadd.f32 %v4314, %v4315
    %4317 = vmatprep.subr.mxu0 0.0
    %4318 = vmatpush1.msra.mxu0 %v3969
    %4319 = vmatprep.subr.mxu0 0.0
    %4320 = vmatpush1.msra.mxu0 %v3970
    %4321 = vmatprep.subr.mxu0 0.0
    %4322 = vmatpush1.msra.mxu0 %v3971
    %4323 = vmatprep.subr.mxu0 0.0
    %4324 = vmatpush1.msra.mxu0 %v3972
    %4325 = vmatprep.subr.mxu0 0.0
    %4326 = vmatpush1.msra.mxu0 %v3973
    %4327 = vmatprep.subr.mxu0 0.0
    %4328 = vmatpush1.msra.mxu0 %v3974
    %4329 = vmatprep.subr.mxu0 0.0
    %4330 = vmatpush1.msra.mxu0 %v3975
    %4331 = vmatprep.subr.mxu0 0.0
    %4332 = vmatpush1.msra.mxu0 %v3976
    %4333 = vmatprep.subr.mxu0 0.0
    %4334 = vmatpush1.msra.mxu0 %v3977
    %4335 = vmatprep.subr.mxu0 0.0
    %4336 = vmatpush1.msra.mxu0 %v3978
    %4337 = vmatprep.subr.mxu0 0.0
    %4338 = vmatpush1.msra.mxu0 %v3979
    %4339 = vmatprep.subr.mxu0 0.0
    %4340 = vmatpush1.msra.mxu0 %v3980
    %4341 = vmatprep.subr.mxu0 0.0
    %4342 = vmatpush1.msra.mxu0 %v3981
    %4343 = vmatprep.subr.mxu0 0.0
    %4344 = vmatpush1.msra.mxu0 %v3982
    %4345 = vmatprep.subr.mxu0 0.0
    %4346 = vmatpush1.msra.mxu0 %v3983
    %4347 = vmatprep.subr.mxu0 0.0
    %4348 = vmatpush1.msra.mxu0 %v3984
    %4349 = vmatprep.subr.mxu0 0.0
    %4350 = vmatpush1.msra.mxu0 0.0
    %4351 = vmatprep.subr.mxu0 0.0
    %4352 = vmatpush1.msra.mxu0 0.0
    %4353 = vmatprep.subr.mxu0 0.0
    %4354 = vmatpush1.msra.mxu0 0.0
    %4355 = vmatprep.subr.mxu0 0.0
    %4356 = vmatpush1.msra.mxu0 0.0
    %4357 = vmatprep.subr.mxu0 0.0
    %4358 = vmatpush1.msra.mxu0 0.0
    %4359 = vmatprep.subr.mxu0 0.0
    %4360 = vmatpush1.msra.mxu0 0.0
    %4361 = vmatprep.subr.mxu0 0.0
    %4362 = vmatpush1.msra.mxu0 0.0
    %4363 = vmatprep.subr.mxu0 0.0
    %4364 = vmatpush1.msra.mxu0 0.0
    %4365 = vmatprep.subr.mxu0 0.0
    %4366 = vmatpush1.msra.mxu0 0.0
    %4367 = vmatprep.subr.mxu0 0.0
    %4368 = vmatpush1.msra.mxu0 0.0
    %4369 = vmatprep.subr.mxu0 0.0
    %4370 = vmatpush1.msra.mxu0 0.0
    %4371 = vmatprep.subr.mxu0 0.0
    %4372 = vmatpush1.msra.mxu0 0.0
    %4373 = vmatprep.subr.mxu0 0.0
    %4374 = vmatpush1.msra.mxu0 0.0
    %4375 = vmatprep.subr.mxu0 0.0
    %4376 = vmatpush1.msra.mxu0 0.0
    %4377 = vmatprep.subr.mxu0 0.0
    %4378 = vmatpush1.msra.mxu0 0.0
    %4379 = vmatprep.subr.mxu0 0.0
    %4380 = vmatpush1.msra.mxu0 0.0
    %4381 = vmatprep.mubr.f32.mxu0 0.0
    %4382 = vmatmul.mubr.f32.gmra.mrb[0].mxu0 %v4316
    %v4383 = vpop.f32.mrb[0].mxu0
    %v4384 = vadd.f32 %v3990, %v4383
    %v4385 = vpop.f32.mrb[0].mxu0
    %4386 = vdwg.mxu0
    %v4387 = vadd.f32 %v4384, %v3992
    %4388 = vst [vmem:[%s12] sm:$0xff] %v4387
    %4389 = vmatprep.subr.mxu0 %v3838
    %4390 = vmatpush1.msra.mxu0 %v3837
    %4391 = vmatprep.subr.mxu0 %v3841
    %4392 = vmatpush1.msra.mxu0 %v3840
    %4393 = vmatprep.subr.mxu0 %v3844
    %4394 = vmatpush1.msra.mxu0 %v3843
    %4395 = vmatprep.subr.mxu0 %v3847
    %4396 = vmatpush1.msra.mxu0 %v3846
    %4397 = vmatprep.subr.mxu0 %v3850
    %4398 = vmatpush1.msra.mxu0 %v3849
    %4399 = vmatprep.subr.mxu0 %v3853
    %4400 = vmatpush1.msra.mxu0 %v3852
    %4401 = vmatprep.subr.mxu0 %v3856
    %4402 = vmatpush1.msra.mxu0 %v3855
    %4403 = vmatprep.subr.mxu0 %v3859
    %4404 = vmatpush1.msra.mxu0 %v3858
    %4405 = vmatprep.subr.mxu0 %v3862
    %4406 = vmatpush1.msra.mxu0 %v3861
    %4407 = vmatprep.subr.mxu0 %v3865
    %4408 = vmatpush1.msra.mxu0 %v3864
    %4409 = vmatprep.subr.mxu0 %v3868
    %4410 = vmatpush1.msra.mxu0 %v3867
    %4411 = vmatprep.subr.mxu0 %v3871
    %4412 = vmatpush1.msra.mxu0 %v3870
    %4413 = vmatprep.subr.mxu0 %v3874
    %4414 = vmatpush1.msra.mxu0 %v3873
    %4415 = vmatprep.subr.mxu0 %v3877
    %4416 = vmatpush1.msra.mxu0 %v3876
    %4417 = vmatprep.subr.mxu0 %v3880
    %4418 = vmatpush1.msra.mxu0 %v3879
    %4419 = vmatprep.subr.mxu0 %v3883
    %4420 = vmatpush1.msra.mxu0 %v3882
    %4421 = vmatprep.subr.mxu0 0.0
    %4422 = vmatpush1.msra.mxu0 0.0
    %4423 = vmatprep.subr.mxu0 0.0
    %4424 = vmatpush1.msra.mxu0 0.0
    %4425 = vmatprep.subr.mxu0 0.0
    %4426 = vmatpush1.msra.mxu0 0.0
    %4427 = vmatprep.subr.mxu0 0.0
    %4428 = vmatpush1.msra.mxu0 0.0
    %4429 = vmatprep.subr.mxu0 0.0
    %4430 = vmatpush1.msra.mxu0 0.0
    %4431 = vmatprep.subr.mxu0 0.0
    %4432 = vmatpush1.msra.mxu0 0.0
    %4433 = vmatprep.subr.mxu0 0.0
    %4434 = vmatpush1.msra.mxu0 0.0
    %4435 = vmatprep.subr.mxu0 0.0
    %4436 = vmatpush1.msra.mxu0 0.0
    %4437 = vmatprep.subr.mxu0 0.0
    %4438 = vmatpush1.msra.mxu0 0.0
    %4439 = vmatprep.subr.mxu0 0.0
    %4440 = vmatpush1.msra.mxu0 0.0
    %4441 = vmatprep.subr.mxu0 0.0
    %4442 = vmatpush1.msra.mxu0 0.0
    %4443 = vmatprep.subr.mxu0 0.0
    %4444 = vmatpush1.msra.mxu0 0.0
    %4445 = vmatprep.subr.mxu0 0.0
    %4446 = vmatpush1.msra.mxu0 0.0
    %4447 = vmatprep.subr.mxu0 0.0
    %4448 = vmatpush1.msra.mxu0 0.0
    %4449 = vmatprep.subr.mxu0 0.0
    %4450 = vmatpush1.msra.mxu0 0.0
    %4451 = vmatprep.subr.mxu0 0.0
    %4452 = vmatpush1.msra.mxu0 0.0
    %4453 = vmatprep.mubr.f32.mxu0 0.0
    %4454 = vmatmul.mubr.f32.gmra.mrb[0].mxu0 %v4387
    %v4455 = vpop.f32.mrb[0].mxu0
    %v4456 = vadd.f32 %v3939, %v4455
    %v4457 = vpop.f32.mrb[0].mxu0
    %v4458 = vadd.f32 %v3943, %v4457
    %4459 = vdwg.mxu0
    %4460 = vmatprep.subr.mxu0 0.0
    %4461 = vmatpush1.msra.mxu0 %v3839
    %4462 = vmatprep.subr.mxu0 0.0
    %4463 = vmatpush1.msra.mxu0 %v3842
    %4464 = vmatprep.subr.mxu0 0.0
    %4465 = vmatpush1.msra.mxu0 %v3845
    %4466 = vmatprep.subr.mxu0 0.0
    %4467 = vmatpush1.msra.mxu0 %v3848
    %4468 = vmatprep.subr.mxu0 0.0
    %4469 = vmatpush1.msra.mxu0 %v3851
    %4470 = vmatprep.subr.mxu0 0.0
    %4471 = vmatpush1.msra.mxu0 %v3854
    %4472 = vmatprep.subr.mxu0 0.0
    %4473 = vmatpush1.msra.mxu0 %v3857
    %4474 = vmatprep.subr.mxu0 0.0
    %4475 = vmatpush1.msra.mxu0 %v3860
    %4476 = vmatprep.subr.mxu0 0.0
    %4477 = vmatpush1.msra.mxu0 %v3863
    %4478 = vmatprep.subr.mxu0 0.0
    %4479 = vmatpush1.msra.mxu0 %v3866
    %4480 = vmatprep.subr.mxu0 0.0
    %4481 = vmatpush1.msra.mxu0 %v3869
    %4482 = vmatprep.subr.mxu0 0.0
    %4483 = vmatpush1.msra.mxu0 %v3872
    %4484 = vmatprep.subr.mxu0 0.0
    %4485 = vmatpush1.msra.mxu0 %v3875
    %4486 = vmatprep.subr.mxu0 0.0
    %4487 = vmatpush1.msra.mxu0 %v3878
    %4488 = vmatprep.subr.mxu0 0.0
    %4489 = vmatpush1.msra.mxu0 %v3881
    %4490 = vmatprep.subr.mxu0 0.0
    %4491 = vmatpush1.msra.mxu0 %v3884
    %4492 = vmatprep.subr.mxu0 0.0
    %4493 = vmatpush1.msra.mxu0 0.0
    %4494 = vmatprep.subr.mxu0 0.0
    %4495 = vmatpush1.msra.mxu0 0.0
    %4496 = vmatprep.subr.mxu0 0.0
    %4497 = vmatpush1.msra.mxu0 0.0
    %4498 = vmatprep.subr.mxu0 0.0
    %4499 = vmatpush1.msra.mxu0 0.0
    %4500 = vmatprep.subr.mxu0 0.0
    %4501 = vmatpush1.msra.mxu0 0.0
    %4502 = vmatprep.subr.mxu0 0.0
    %4503 = vmatpush1.msra.mxu0 0.0
    %4504 = vmatprep.subr.mxu0 0.0
    %4505 = vmatpush1.msra.mxu0 0.0
    %4506 = vmatprep.subr.mxu0 0.0
    %4507 = vmatpush1.msra.mxu0 0.0
    %4508 = vmatprep.subr.mxu0 0.0
    %4509 = vmatpush1.msra.mxu0 0.0
    %4510 = vmatprep.subr.mxu0 0.0
    %4511 = vmatpush1.msra.mxu0 0.0
    %4512 = vmatprep.subr.mxu0 0.0
    %4513 = vmatpush1.msra.mxu0 0.0
    %4514 = vmatprep.subr.mxu0 0.0
    %4515 = vmatpush1.msra.mxu0 0.0
    %4516 = vmatprep.subr.mxu0 0.0
    %4517 = vmatpush1.msra.mxu0 0.0
    %4518 = vmatprep.subr.mxu0 0.0
    %4519 = vmatpush1.msra.mxu0 0.0
    %4520 = vmatprep.subr.mxu0 0.0
    %4521 = vmatpush1.msra.mxu0 0.0
    %4522 = vmatprep.subr.mxu0 0.0
    %4523 = vmatpush1.msra.mxu0 0.0
    %4524 = vmatprep.mubr.f32.mxu0 0.0
    %4525 = vmatmul.mubr.f32.gmra.mrb[0].mxu0 %v4387
    %v4526 = vpop.f32.mrb[0].mxu0
    %v4527 = vadd.f32 %v3947, %v4526
    %v4528 = vpop.f32.mrb[0].mxu0
    %4529 = vdwg.mxu0
    %v4530 = vadd.f32 %v4456, %v3555
    %v4531 = vxor.u32 %v4530, 2147483648
    %v4532 = vmul.f32 %v4531, 1.442695
    %v4533 = vpow.pop %v4532
    %v4534 = vadd.f32 %v4533, 1.0
    %v4535 = vrcp.pop %v4534
    %v4536 = vmul.f32 1.0, %v4535
    %v4537 = vadd.f32 %v4458, %v3557
    %v4538 = vxor.u32 %v4537, 2147483648
    %v4539 = vmul.f32 %v4538, 1.442695
    %v4540 = vpow.pop %v4539
    %v4541 = vadd.f32 %v4540, 1.0
    %v4542 = vrcp.pop %v4541
    %v4543 = vmul.f32 1.0, %v4542
    %v4544 = vmul.f32 %v4536, %v3626
    %v4545 = vadd.f32 %v4527, %v4544
    %v4546 = vtanh.pop %v4545
    %v4547 = vsub.f32 1.0, %v4543
    %v4548 = vmul.f32 %v4547, %v4546
    %v4549 = vmul.f32 %v4543, %v1765
    %v4550 = vadd.f32 %v4548, %v4549
    %4551 = vmatprep.subr.mxu0 %v3887
    %4552 = vmatpush1.msra.mxu0 %v3886
    %4553 = vmatprep.subr.mxu0 %v3890
    %4554 = vmatpush1.msra.mxu0 %v3889
    %4555 = vmatprep.subr.mxu0 %v3893
    %4556 = vmatpush1.msra.mxu0 %v3892
    %4557 = vmatprep.subr.mxu0 %v3896
    %4558 = vmatpush1.msra.mxu0 %v3895
    %4559 = vmatprep.subr.mxu0 %v3899
    %4560 = vmatpush1.msra.mxu0 %v3898
    %4561 = vmatprep.subr.mxu0 %v3902
    %4562 = vmatpush1.msra.mxu0 %v3901
    %4563 = vmatprep.subr.mxu0 %v3905
    %4564 = vmatpush1.msra.mxu0 %v3904
    %4565 = vmatprep.subr.mxu0 %v3908
    %4566 = vmatpush1.msra.mxu0 %v3907
    %4567 = vmatprep.subr.mxu0 %v3911
    %4568 = vmatpush1.msra.mxu0 %v3910
    %4569 = vmatprep.subr.mxu0 %v3914
    %4570 = vmatpush1.msra.mxu0 %v3913
    %4571 = vmatprep.subr.mxu0 %v3917
    %4572 = vmatpush1.msra.mxu0 %v3916
    %4573 = vmatprep.subr.mxu0 %v3920
    %4574 = vmatpush1.msra.mxu0 %v3919
    %4575 = vmatprep.subr.mxu0 %v3923
    %4576 = vmatpush1.msra.mxu0 %v3922
    %4577 = vmatprep.subr.mxu0 %v3926
    %4578 = vmatpush1.msra.mxu0 %v3925
    %4579 = vmatprep.subr.mxu0 %v3929
    %4580 = vmatpush1.msra.mxu0 %v3928
    %4581 = vmatprep.subr.mxu0 %v3932
    %4582 = vmatpush1.msra.mxu0 %v3931
    %4583 = vmatprep.subr.mxu0 0.0
    %4584 = vmatpush1.msra.mxu0 0.0
    %4585 = vmatprep.subr.mxu0 0.0
    %4586 = vmatpush1.msra.mxu0 0.0
    %4587 = vmatprep.subr.mxu0 0.0
    %4588 = vmatpush1.msra.mxu0 0.0
    %4589 = vmatprep.subr.mxu0 0.0
    %4590 = vmatpush1.msra.mxu0 0.0
    %4591 = vmatprep.subr.mxu0 0.0
    %4592 = vmatpush1.msra.mxu0 0.0
    %4593 = vmatprep.subr.mxu0 0.0
    %4594 = vmatpush1.msra.mxu0 0.0
    %4595 = vmatprep.subr.mxu0 0.0
    %4596 = vmatpush1.msra.mxu0 0.0
    %4597 = vmatprep.subr.mxu0 0.0
    %4598 = vmatpush1.msra.mxu0 0.0
    %4599 = vmatprep.subr.mxu0 0.0
    %4600 = vmatpush1.msra.mxu0 0.0
    %4601 = vmatprep.subr.mxu0 0.0
    %4602 = vmatpush1.msra.mxu0 0.0
    %4603 = vmatprep.subr.mxu0 0.0
    %4604 = vmatpush1.msra.mxu0 0.0
    %4605 = vmatprep.subr.mxu0 0.0
    %4606 = vmatpush1.msra.mxu0 0.0
    %4607 = vmatprep.subr.mxu0 0.0
    %4608 = vmatpush1.msra.mxu0 0.0
    %4609 = vmatprep.subr.mxu0 0.0
    %4610 = vmatpush1.msra.mxu0 0.0
    %4611 = vmatprep.subr.mxu0 0.0
    %4612 = vmatpush1.msra.mxu0 0.0
    %4613 = vmatprep.subr.mxu0 0.0
    %4614 = vmatpush1.msra.mxu0 0.0
    %4615 = vmatprep.mubr.f32.mxu0 0.0
    %4616 = vmatmul.mubr.f32.gmra.mrb[0].mxu0 %v4550
    %v4617 = vpop.f32.mrb[0].mxu0
    %v4618 = vadd.f32 %v3957, %v4617
    %v4619 = vpop.f32.mrb[0].mxu0
    %v4620 = vadd.f32 %v3961, %v4619
    %4621 = vdwg.mxu0
    %4622 = vmatprep.subr.mxu0 0.0
    %4623 = vmatpush1.msra.mxu0 %v3888
    %4624 = vmatprep.subr.mxu0 0.0
    %4625 = vmatpush1.msra.mxu0 %v3891
    %4626 = vmatprep.subr.mxu0 0.0
    %4627 = vmatpush1.msra.mxu0 %v3894
    %4628 = vmatprep.subr.mxu0 0.0
    %4629 = vmatpush1.msra.mxu0 %v3897
    %4630 = vmatprep.subr.mxu0 0.0
    %4631 = vmatpush1.msra.mxu0 %v3900
    %4632 = vmatprep.subr.mxu0 0.0
    %4633 = vmatpush1.msra.mxu0 %v3903
    %4634 = vmatprep.subr.mxu0 0.0
    %4635 = vmatpush1.msra.mxu0 %v3906
    %4636 = vmatprep.subr.mxu0 0.0
    %4637 = vmatpush1.msra.mxu0 %v3909
    %4638 = vmatprep.subr.mxu0 0.0
    %4639 = vmatpush1.msra.mxu0 %v3912
    %4640 = vmatprep.subr.mxu0 0.0
    %4641 = vmatpush1.msra.mxu0 %v3915
    %4642 = vmatprep.subr.mxu0 0.0
    %4643 = vmatpush1.msra.mxu0 %v3918
    %4644 = vmatprep.subr.mxu0 0.0
    %4645 = vmatpush1.msra.mxu0 %v3921
    %4646 = vmatprep.subr.mxu0 0.0
    %4647 = vmatpush1.msra.mxu0 %v3924
    %4648 = vmatprep.subr.mxu0 0.0
    %4649 = vmatpush1.msra.mxu0 %v3927
    %4650 = vmatprep.subr.mxu0 0.0
    %4651 = vmatpush1.msra.mxu0 %v3930
    %4652 = vmatprep.subr.mxu0 0.0
    %4653 = vmatpush1.msra.mxu0 %v3933
    %4654 = vmatprep.subr.mxu0 0.0
    %4655 = vmatpush1.msra.mxu0 0.0
    %4656 = vmatprep.subr.mxu0 0.0
    %4657 = vmatpush1.msra.mxu0 0.0
    %4658 = vmatprep.subr.mxu0 0.0
    %4659 = vmatpush1.msra.mxu0 0.0
    %4660 = vmatprep.subr.mxu0 0.0
    %4661 = vmatpush1.msra.mxu0 0.0
    %4662 = vmatprep.subr.mxu0 0.0
    %4663 = vmatpush1.msra.mxu0 0.0
    %4664 = vmatprep.subr.mxu0 0.0
    %4665 = vmatpush1.msra.mxu0 0.0
    %4666 = vmatprep.subr.mxu0 0.0
    %4667 = vmatpush1.msra.mxu0 0.0
    %4668 = vmatprep.subr.mxu0 0.0
    %4669 = vmatpush1.msra.mxu0 0.0
    %4670 = vmatprep.subr.mxu0 0.0
    %4671 = vmatpush1.msra.mxu0 0.0
    %4672 = vmatprep.subr.mxu0 0.0
    %4673 = vmatpush1.msra.mxu0 0.0
    %4674 = vmatprep.subr.mxu0 0.0
    %4675 = vmatpush1.msra.mxu0 0.0
    %4676 = vmatprep.subr.mxu0 0.0
    %4677 = vmatpush1.msra.mxu0 0.0
    %4678 = vmatprep.subr.mxu0 0.0
    %4679 = vmatpush1.msra.mxu0 0.0
    %4680 = vmatprep.subr.mxu0 0.0
    %4681 = vmatpush1.msra.mxu0 0.0
    %4682 = vmatprep.subr.mxu0 0.0
    %4683 = vmatpush1.msra.mxu0 0.0
    %4684 = vmatprep.subr.mxu0 0.0
    %4685 = vmatpush1.msra.mxu0 0.0
    %4686 = vmatprep.mubr.f32.mxu0 0.0
    %4687 = vmatmul.mubr.f32.gmra.mrb[0].mxu0 %v4550
    %v4688 = vpop.f32.mrb[0].mxu0
    %v4689 = vadd.f32 %v3965, %v4688
    %v4690 = vpop.f32.mrb[0].mxu0
    %4691 = vdwg.mxu0
    %v4692 = vadd.f32 %v4618, %v3763
    %v4693 = vxor.u32 %v4692, 2147483648
    %v4694 = vmul.f32 %v4693, 1.442695
    %v4695 = vpow.pop %v4694
    %v4696 = vadd.f32 %v4695, 1.0
    %v4697 = vrcp.pop %v4696
    %v4698 = vmul.f32 1.0, %v4697
    %v4699 = vadd.f32 %v4620, %v3765
    %v4700 = vxor.u32 %v4699, 2147483648
    %v4701 = vmul.f32 %v4700, 1.442695
    %v4702 = vpow.pop %v4701
    %v4703 = vadd.f32 %v4702, 1.0
    %v4704 = vrcp.pop %v4703
    %v4705 = vmul.f32 1.0, %v4704
    %v4706 = vmul.f32 %v4698, %v3834
    %v4707 = vadd.f32 %v4689, %v4706
    %v4708 = vtanh.pop %v4707
    %v4709 = vsub.f32 1.0, %v4705
    %v4710 = vmul.f32 %v4709, %v4708
    %v4711 = vmul.f32 %v4705, %v3422
    %v4712 = vadd.f32 %v4710, %v4711
    %4713 = vmatprep.subr.mxu0 0.0
    %4714 = vmatpush1.msra.mxu0 %v3969
    %4715 = vmatprep.subr.mxu0 0.0
    %4716 = vmatpush1.msra.mxu0 %v3970
    %4717 = vmatprep.subr.mxu0 0.0
    %4718 = vmatpush1.msra.mxu0 %v3971
    %4719 = vmatprep.subr.mxu0 0.0
    %4720 = vmatpush1.msra.mxu0 %v3972
    %4721 = vmatprep.subr.mxu0 0.0
    %4722 = vmatpush1.msra.mxu0 %v3973
    %4723 = vmatprep.subr.mxu0 0.0
    %4724 = vmatpush1.msra.mxu0 %v3974
    %4725 = vmatprep.subr.mxu0 0.0
    %4726 = vmatpush1.msra.mxu0 %v3975
    %4727 = vmatprep.subr.mxu0 0.0
    %4728 = vmatpush1.msra.mxu0 %v3976
    %4729 = vmatprep.subr.mxu0 0.0
    %4730 = vmatpush1.msra.mxu0 %v3977
    %4731 = vmatprep.subr.mxu0 0.0
    %4732 = vmatpush1.msra.mxu0 %v3978
    %4733 = vmatprep.subr.mxu0 0.0
    %4734 = vmatpush1.msra.mxu0 %v3979
    %4735 = vmatprep.subr.mxu0 0.0
    %4736 = vmatpush1.msra.mxu0 %v3980
    %4737 = vmatprep.subr.mxu0 0.0
    %4738 = vmatpush1.msra.mxu0 %v3981
    %4739 = vmatprep.subr.mxu0 0.0
    %4740 = vmatpush1.msra.mxu0 %v3982
    %4741 = vmatprep.subr.mxu0 0.0
    %4742 = vmatpush1.msra.mxu0 %v3983
    %4743 = vmatprep.subr.mxu0 0.0
    %4744 = vmatpush1.msra.mxu0 %v3984
    %4745 = vmatprep.subr.mxu0 0.0
    %4746 = vmatpush1.msra.mxu0 0.0
    %4747 = vmatprep.subr.mxu0 0.0
    %4748 = vmatpush1.msra.mxu0 0.0
    %4749 = vmatprep.subr.mxu0 0.0
    %4750 = vmatpush1.msra.mxu0 0.0
    %4751 = vmatprep.subr.mxu0 0.0
    %4752 = vmatpush1.msra.mxu0 0.0
    %4753 = vmatprep.subr.mxu0 0.0
    %4754 = vmatpush1.msra.mxu0 0.0
    %4755 = vmatprep.subr.mxu0 0.0
    %4756 = vmatpush1.msra.mxu0 0.0
    %4757 = vmatprep.subr.mxu0 0.0
    %4758 = vmatpush1.msra.mxu0 0.0
    %4759 = vmatprep.subr.mxu0 0.0
    %4760 = vmatpush1.msra.mxu0 0.0
    %4761 = vmatprep.subr.mxu0 0.0
    %4762 = vmatpush1.msra.mxu0 0.0
    %4763 = vmatprep.subr.mxu0 0.0
    %4764 = vmatpush1.msra.mxu0 0.0
    %4765 = vmatprep.subr.mxu0 0.0
    %4766 = vmatpush1.msra.mxu0 0.0
    %4767 = vmatprep.subr.mxu0 0.0
    %4768 = vmatpush1.msra.mxu0 0.0
    %4769 = vmatprep.subr.mxu0 0.0
    %4770 = vmatpush1.msra.mxu0 0.0
    %4771 = vmatprep.subr.mxu0 0.0
    %4772 = vmatpush1.msra.mxu0 0.0
    %4773 = vmatprep.subr.mxu0 0.0
    %4774 = vmatpush1.msra.mxu0 0.0
    %4775 = vmatprep.subr.mxu0 0.0
    %4776 = vmatpush1.msra.mxu0 0.0
    %4777 = vmatprep.mubr.f32.mxu0 0.0
    %4778 = vmatmul.mubr.f32.gmra.mrb[0].mxu0 %v4712
    %v4779 = vpop.f32.mrb[0].mxu0
    %v4780 = vadd.f32 %v3990, %v4779
    %v4781 = vpop.f32.mrb[0].mxu0
    %4782 = vdwg.mxu0
    %v4783 = vadd.f32 %v4780, %v4387
    %s4784 = scalar_lea.vmem %s12, 8
    %4785 = vst [vmem:[%s4784] sm:$0xff] %v4783
    %4786 = vmatprep.subr.mxu0 %v3838
    %4787 = vmatpush1.msra.mxu0 %v3837
    %4788 = vmatprep.subr.mxu0 %v3841
    %4789 = vmatpush1.msra.mxu0 %v3840
    %4790 = vmatprep.subr.mxu0 %v3844
    %4791 = vmatpush1.msra.mxu0 %v3843
    %4792 = vmatprep.subr.mxu0 %v3847
    %4793 = vmatpush1.msra.mxu0 %v3846
    %4794 = vmatprep.subr.mxu0 %v3850
    %4795 = vmatpush1.msra.mxu0 %v3849
    %4796 = vmatprep.subr.mxu0 %v3853
    %4797 = vmatpush1.msra.mxu0 %v3852
    %4798 = vmatprep.subr.mxu0 %v3856
    %4799 = vmatpush1.msra.mxu0 %v3855
    %4800 = vmatprep.subr.mxu0 %v3859
    %4801 = vmatpush1.msra.mxu0 %v3858
    %4802 = vmatprep.subr.mxu0 %v3862
    %4803 = vmatpush1.msra.mxu0 %v3861
    %4804 = vmatprep.subr.mxu0 %v3865
    %4805 = vmatpush1.msra.mxu0 %v3864
    %4806 = vmatprep.subr.mxu0 %v3868
    %4807 = vmatpush1.msra.mxu0 %v3867
    %4808 = vmatprep.subr.mxu0 %v3871
    %4809 = vmatpush1.msra.mxu0 %v3870
    %4810 = vmatprep.subr.mxu0 %v3874
    %4811 = vmatpush1.msra.mxu0 %v3873
    %4812 = vmatprep.subr.mxu0 %v3877
    %4813 = vmatpush1.msra.mxu0 %v3876
    %4814 = vmatprep.subr.mxu0 %v3880
    %4815 = vmatpush1.msra.mxu0 %v3879
    %4816 = vmatprep.subr.mxu0 %v3883
    %4817 = vmatpush1.msra.mxu0 %v3882
    %4818 = vmatprep.subr.mxu0 0.0
    %4819 = vmatpush1.msra.mxu0 0.0
    %4820 = vmatprep.subr.mxu0 0.0
    %4821 = vmatpush1.msra.mxu0 0.0
    %4822 = vmatprep.subr.mxu0 0.0
    %4823 = vmatpush1.msra.mxu0 0.0
    %4824 = vmatprep.subr.mxu0 0.0
    %4825 = vmatpush1.msra.mxu0 0.0
    %4826 = vmatprep.subr.mxu0 0.0
    %4827 = vmatpush1.msra.mxu0 0.0
    %4828 = vmatprep.subr.mxu0 0.0
    %4829 = vmatpush1.msra.mxu0 0.0
    %4830 = vmatprep.subr.mxu0 0.0
    %4831 = vmatpush1.msra.mxu0 0.0
    %4832 = vmatprep.subr.mxu0 0.0
    %4833 = vmatpush1.msra.mxu0 0.0
    %4834 = vmatprep.subr.mxu0 0.0
    %4835 = vmatpush1.msra.mxu0 0.0
    %4836 = vmatprep.subr.mxu0 0.0
    %4837 = vmatpush1.msra.mxu0 0.0
    %4838 = vmatprep.subr.mxu0 0.0
    %4839 = vmatpush1.msra.mxu0 0.0
    %4840 = vmatprep.subr.mxu0 0.0
    %4841 = vmatpush1.msra.mxu0 0.0
    %4842 = vmatprep.subr.mxu0 0.0
    %4843 = vmatpush1.msra.mxu0 0.0
    %4844 = vmatprep.subr.mxu0 0.0
    %4845 = vmatpush1.msra.mxu0 0.0
    %4846 = vmatprep.subr.mxu0 0.0
    %4847 = vmatpush1.msra.mxu0 0.0
    %4848 = vmatprep.subr.mxu0 0.0
    %4849 = vmatpush1.msra.mxu0 0.0
    %4850 = vmatprep.mubr.f32.mxu0 0.0
    %4851 = vmatmul.mubr.f32.gmra.mrb[0].mxu0 %v4783
    %v4852 = vpop.f32.mrb[0].mxu0
    %v4853 = vadd.f32 %v3939, %v4852
    %v4854 = vpop.f32.mrb[0].mxu0
    %v4855 = vadd.f32 %v3943, %v4854
    %4856 = vdwg.mxu0
    %4857 = vmatprep.subr.mxu0 0.0
    %4858 = vmatpush1.msra.mxu0 %v3839
    %4859 = vmatprep.subr.mxu0 0.0
    %4860 = vmatpush1.msra.mxu0 %v3842
    %4861 = vmatprep.subr.mxu0 0.0
    %4862 = vmatpush1.msra.mxu0 %v3845
    %4863 = vmatprep.subr.mxu0 0.0
    %4864 = vmatpush1.msra.mxu0 %v3848
    %4865 = vmatprep.subr.mxu0 0.0
    %4866 = vmatpush1.msra.mxu0 %v3851
    %4867 = vmatprep.subr.mxu0 0.0
    %4868 = vmatpush1.msra.mxu0 %v3854
    %4869 = vmatprep.subr.mxu0 0.0
    %4870 = vmatpush1.msra.mxu0 %v3857
    %4871 = vmatprep.subr.mxu0 0.0
    %4872 = vmatpush1.msra.mxu0 %v3860
    %4873 = vmatprep.subr.mxu0 0.0
    %4874 = vmatpush1.msra.mxu0 %v3863
    %4875 = vmatprep.subr.mxu0 0.0
    %4876 = vmatpush1.msra.mxu0 %v3866
    %4877 = vmatprep.subr.mxu0 0.0
    %4878 = vmatpush1.msra.mxu0 %v3869
    %4879 = vmatprep.subr.mxu0 0.0
    %4880 = vmatpush1.msra.mxu0 %v3872
    %4881 = vmatprep.subr.mxu0 0.0
    %4882 = vmatpush1.msra.mxu0 %v3875
    %4883 = vmatprep.subr.mxu0 0.0
    %4884 = vmatpush1.msra.mxu0 %v3878
    %4885 = vmatprep.subr.mxu0 0.0
    %4886 = vmatpush1.msra.mxu0 %v3881
    %4887 = vmatprep.subr.mxu0 0.0
    %4888 = vmatpush1.msra.mxu0 %v3884
    %4889 = vmatprep.subr.mxu0 0.0
    %4890 = vmatpush1.msra.mxu0 0.0
    %4891 = vmatprep.subr.mxu0 0.0
    %4892 = vmatpush1.msra.mxu0 0.0
    %4893 = vmatprep.subr.mxu0 0.0
    %4894 = vmatpush1.msra.mxu0 0.0
    %4895 = vmatprep.subr.mxu0 0.0
    %4896 = vmatpush1.msra.mxu0 0.0
    %4897 = vmatprep.subr.mxu0 0.0
    %4898 = vmatpush1.msra.mxu0 0.0
    %4899 = vmatprep.subr.mxu0 0.0
    %4900 = vmatpush1.msra.mxu0 0.0
    %4901 = vmatprep.subr.mxu0 0.0
    %4902 = vmatpush1.msra.mxu0 0.0
    %4903 = vmatprep.subr.mxu0 0.0
    %4904 = vmatpush1.msra.mxu0 0.0
    %4905 = vmatprep.subr.mxu0 0.0
    %4906 = vmatpush1.msra.mxu0 0.0
    %4907 = vmatprep.subr.mxu0 0.0
    %4908 = vmatpush1.msra.mxu0 0.0
    %4909 = vmatprep.subr.mxu0 0.0
    %4910 = vmatpush1.msra.mxu0 0.0
    %4911 = vmatprep.subr.mxu0 0.0
    %4912 = vmatpush1.msra.mxu0 0.0
    %4913 = vmatprep.subr.mxu0 0.0
    %4914 = vmatpush1.msra.mxu0 0.0
    %4915 = vmatprep.subr.mxu0 0.0
    %4916 = vmatpush1.msra.mxu0 0.0
    %4917 = vmatprep.subr.mxu0 0.0
    %4918 = vmatpush1.msra.mxu0 0.0
    %4919 = vmatprep.subr.mxu0 0.0
    %4920 = vmatpush1.msra.mxu0 0.0
    %4921 = vmatprep.mubr.f32.mxu0 0.0
    %4922 = vmatmul.mubr.f32.gmra.mrb[0].mxu0 %v4783
    %v4923 = vpop.f32.mrb[0].mxu0
    %v4924 = vadd.f32 %v3947, %v4923
    %v4925 = vpop.f32.mrb[0].mxu0
    %4926 = vdwg.mxu0
    %v4927 = vadd.f32 %v4853, %v3555
    %v4928 = vxor.u32 %v4927, 2147483648
    %v4929 = vmul.f32 %v4928, 1.442695
    %v4930 = vpow.pop %v4929
    %v4931 = vadd.f32 %v4930, 1.0
    %v4932 = vrcp.pop %v4931
    %v4933 = vmul.f32 1.0, %v4932
    %v4934 = vadd.f32 %v4855, %v3557
    %v4935 = vxor.u32 %v4934, 2147483648
    %v4936 = vmul.f32 %v4935, 1.442695
    %v4937 = vpow.pop %v4936
    %v4938 = vadd.f32 %v4937, 1.0
    %v4939 = vrcp.pop %v4938
    %v4940 = vmul.f32 1.0, %v4939
    %v4941 = vmul.f32 %v4933, %v3626
    %v4942 = vadd.f32 %v4924, %v4941
    %v4943 = vtanh.pop %v4942
    %v4944 = vsub.f32 1.0, %v4940
    %v4945 = vmul.f32 %v4944, %v4943
    %v4946 = vmul.f32 %v4940, %v1765
    %v4947 = vadd.f32 %v4945, %v4946
    %4948 = vmatprep.subr.mxu0 %v3887
    %4949 = vmatpush1.msra.mxu0 %v3886
    %4950 = vmatprep.subr.mxu0 %v3890
    %4951 = vmatpush1.msra.mxu0 %v3889
    %4952 = vmatprep.subr.mxu0 %v3893
    %4953 = vmatpush1.msra.mxu0 %v3892
    %4954 = vmatprep.subr.mxu0 %v3896
    %4955 = vmatpush1.msra.mxu0 %v3895
    %4956 = vmatprep.subr.mxu0 %v3899
    %4957 = vmatpush1.msra.mxu0 %v3898
    %4958 = vmatprep.subr.mxu0 %v3902
    %4959 = vmatpush1.msra.mxu0 %v3901
    %4960 = vmatprep.subr.mxu0 %v3905
    %4961 = vmatpush1.msra.mxu0 %v3904
    %4962 = vmatprep.subr.mxu0 %v3908
    %4963 = vmatpush1.msra.mxu0 %v3907
    %4964 = vmatprep.subr.mxu0 %v3911
    %4965 = vmatpush1.msra.mxu0 %v3910
    %4966 = vmatprep.subr.mxu0 %v3914
    %4967 = vmatpush1.msra.mxu0 %v3913
    %4968 = vmatprep.subr.mxu0 %v3917
    %4969 = vmatpush1.msra.mxu0 %v3916
    %4970 = vmatprep.subr.mxu0 %v3920
    %4971 = vmatpush1.msra.mxu0 %v3919
    %4972 = vmatprep.subr.mxu0 %v3923
    %4973 = vmatpush1.msra.mxu0 %v3922
    %4974 = vmatprep.subr.mxu0 %v3926
    %4975 = vmatpush1.msra.mxu0 %v3925
    %4976 = vmatprep.subr.mxu0 %v3929
    %4977 = vmatpush1.msra.mxu0 %v3928
    %4978 = vmatprep.subr.mxu0 %v3932
    %4979 = vmatpush1.msra.mxu0 %v3931
    %4980 = vmatprep.subr.mxu0 0.0
    %4981 = vmatpush1.msra.mxu0 0.0
    %4982 = vmatprep.subr.mxu0 0.0
    %4983 = vmatpush1.msra.mxu0 0.0
    %4984 = vmatprep.subr.mxu0 0.0
    %4985 = vmatpush1.msra.mxu0 0.0
    %4986 = vmatprep.subr.mxu0 0.0
    %4987 = vmatpush1.msra.mxu0 0.0
    %4988 = vmatprep.subr.mxu0 0.0
    %4989 = vmatpush1.msra.mxu0 0.0
    %4990 = vmatprep.subr.mxu0 0.0
    %4991 = vmatpush1.msra.mxu0 0.0
    %4992 = vmatprep.subr.mxu0 0.0
    %4993 = vmatpush1.msra.mxu0 0.0
    %4994 = vmatprep.subr.mxu0 0.0
    %4995 = vmatpush1.msra.mxu0 0.0
    %4996 = vmatprep.subr.mxu0 0.0
    %4997 = vmatpush1.msra.mxu0 0.0
    %4998 = vmatprep.subr.mxu0 0.0
    %4999 = vmatpush1.msra.mxu0 0.0
    %5000 = vmatprep.subr.mxu0 0.0
    %5001 = vmatpush1.msra.mxu0 0.0
    %5002 = vmatprep.subr.mxu0 0.0
    %5003 = vmatpush1.msra.mxu0 0.0
    %5004 = vmatprep.subr.mxu0 0.0
    %5005 = vmatpush1.msra.mxu0 0.0
    %5006 = vmatprep.subr.mxu0 0.0
    %5007 = vmatpush1.msra.mxu0 0.0
    %5008 = vmatprep.subr.mxu0 0.0
    %5009 = vmatpush1.msra.mxu0 0.0
    %5010 = vmatprep.subr.mxu0 0.0
    %5011 = vmatpush1.msra.mxu0 0.0
    %5012 = vmatprep.mubr.f32.mxu0 0.0
    %5013 = vmatmul.mubr.f32.gmra.mrb[0].mxu0 %v4947
    %v5014 = vpop.f32.mrb[0].mxu0
    %v5015 = vadd.f32 %v3957, %v5014
    %v5016 = vpop.f32.mrb[0].mxu0
    %v5017 = vadd.f32 %v3961, %v5016
    %5018 = vdwg.mxu0
    %5019 = vmatprep.subr.mxu0 0.0
    %5020 = vmatpush1.msra.mxu0 %v3888
    %5021 = vmatprep.subr.mxu0 0.0
    %5022 = vmatpush1.msra.mxu0 %v3891
    %5023 = vmatprep.subr.mxu0 0.0
    %5024 = vmatpush1.msra.mxu0 %v3894
    %5025 = vmatprep.subr.mxu0 0.0
    %5026 = vmatpush1.msra.mxu0 %v3897
    %5027 = vmatprep.subr.mxu0 0.0
    %5028 = vmatpush1.msra.mxu0 %v3900
    %5029 = vmatprep.subr.mxu0 0.0
    %5030 = vmatpush1.msra.mxu0 %v3903
    %5031 = vmatprep.subr.mxu0 0.0
    %5032 = vmatpush1.msra.mxu0 %v3906
    %5033 = vmatprep.subr.mxu0 0.0
    %5034 = vmatpush1.msra.mxu0 %v3909
    %5035 = vmatprep.subr.mxu0 0.0
    %5036 = vmatpush1.msra.mxu0 %v3912
    %5037 = vmatprep.subr.mxu0 0.0
    %5038 = vmatpush1.msra.mxu0 %v3915
    %5039 = vmatprep.subr.mxu0 0.0
    %5040 = vmatpush1.msra.mxu0 %v3918
    %5041 = vmatprep.subr.mxu0 0.0
    %5042 = vmatpush1.msra.mxu0 %v3921
    %5043 = vmatprep.subr.mxu0 0.0
    %5044 = vmatpush1.msra.mxu0 %v3924
    %5045 = vmatprep.subr.mxu0 0.0
    %5046 = vmatpush1.msra.mxu0 %v3927
    %5047 = vmatprep.subr.mxu0 0.0
    %5048 = vmatpush1.msra.mxu0 %v3930
    %5049 = vmatprep.subr.mxu0 0.0
    %5050 = vmatpush1.msra.mxu0 %v3933
    %5051 = vmatprep.subr.mxu0 0.0
    %5052 = vmatpush1.msra.mxu0 0.0
    %5053 = vmatprep.subr.mxu0 0.0
    %5054 = vmatpush1.msra.mxu0 0.0
    %5055 = vmatprep.subr.mxu0 0.0
    %5056 = vmatpush1.msra.mxu0 0.0
    %5057 = vmatprep.subr.mxu0 0.0
    %5058 = vmatpush1.msra.mxu0 0.0
    %5059 = vmatprep.subr.mxu0 0.0
    %5060 = vmatpush1.msra.mxu0 0.0
    %5061 = vmatprep.subr.mxu0 0.0
    %5062 = vmatpush1.msra.mxu0 0.0
    %5063 = vmatprep.subr.mxu0 0.0
    %5064 = vmatpush1.msra.mxu0 0.0
    %5065 = vmatprep.subr.mxu0 0.0
    %5066 = vmatpush1.msra.mxu0 0.0
    %5067 = vmatprep.subr.mxu0 0.0
    %5068 = vmatpush1.msra.mxu0 0.0
    %5069 = vmatprep.subr.mxu0 0.0
    %5070 = vmatpush1.msra.mxu0 0.0
    %5071 = vmatprep.subr.mxu0 0.0
    %5072 = vmatpush1.msra.mxu0 0.0
    %5073 = vmatprep.subr.mxu0 0.0
    %5074 = vmatpush1.msra.mxu0 0.0
    %5075 = vmatprep.subr.mxu0 0.0
    %5076 = vmatpush1.msra.mxu0 0.0
    %5077 = vmatprep.subr.mxu0 0.0
    %5078 = vmatpush1.msra.mxu0 0.0
    %5079 = vmatprep.subr.mxu0 0.0
    %5080 = vmatpush1.msra.mxu0 0.0
    %5081 = vmatprep.subr.mxu0 0.0
    %5082 = vmatpush1.msra.mxu0 0.0
    %5083 = vmatprep.mubr.f32.mxu0 0.0
    %5084 = vmatmul.mubr.f32.gmra.mrb[0].mxu0 %v4947
    %v5085 = vpop.f32.mrb[0].mxu0
    %v5086 = vadd.f32 %v3965, %v5085
    %v5087 = vpop.f32.mrb[0].mxu0
    %5088 = vdwg.mxu0
    %v5089 = vadd.f32 %v5015, %v3763
    %v5090 = vxor.u32 %v5089, 2147483648
    %v5091 = vmul.f32 %v5090, 1.442695
    %v5092 = vpow.pop %v5091
    %v5093 = vadd.f32 %v5092, 1.0
    %v5094 = vrcp.pop %v5093
    %v5095 = vmul.f32 1.0, %v5094
    %v5096 = vadd.f32 %v5017, %v3765
    %v5097 = vxor.u32 %v5096, 2147483648
    %v5098 = vmul.f32 %v5097, 1.442695
    %v5099 = vpow.pop %v5098
    %v5100 = vadd.f32 %v5099, 1.0
    %v5101 = vrcp.pop %v5100
    %v5102 = vmul.f32 1.0, %v5101
    %v5103 = vmul.f32 %v5095, %v3834
    %v5104 = vadd.f32 %v5086, %v5103
    %v5105 = vtanh.pop %v5104
    %v5106 = vsub.f32 1.0, %v5102
    %v5107 = vmul.f32 %v5106, %v5105
    %v5108 = vmul.f32 %v5102, %v3422
    %v5109 = vadd.f32 %v5107, %v5108
    %5110 = vmatprep.subr.mxu0 0.0
    %5111 = vmatpush1.msra.mxu0 %v3969
    %5112 = vmatprep.subr.mxu0 0.0
    %5113 = vmatpush1.msra.mxu0 %v3970
    %5114 = vmatprep.subr.mxu0 0.0
    %5115 = vmatpush1.msra.mxu0 %v3971
    %5116 = vmatprep.subr.mxu0 0.0
    %5117 = vmatpush1.msra.mxu0 %v3972
    %5118 = vmatprep.subr.mxu0 0.0
    %5119 = vmatpush1.msra.mxu0 %v3973
    %5120 = vmatprep.subr.mxu0 0.0
    %5121 = vmatpush1.msra.mxu0 %v3974
    %5122 = vmatprep.subr.mxu0 0.0
    %5123 = vmatpush1.msra.mxu0 %v3975
    %5124 = vmatprep.subr.mxu0 0.0
    %5125 = vmatpush1.msra.mxu0 %v3976
    %5126 = vmatprep.subr.mxu0 0.0
    %5127 = vmatpush1.msra.mxu0 %v3977
    %5128 = vmatprep.subr.mxu0 0.0
    %5129 = vmatpush1.msra.mxu0 %v3978
    %5130 = vmatprep.subr.mxu0 0.0
    %5131 = vmatpush1.msra.mxu0 %v3979
    %5132 = vmatprep.subr.mxu0 0.0
    %5133 = vmatpush1.msra.mxu0 %v3980
    %5134 = vmatprep.subr.mxu0 0.0
    %5135 = vmatpush1.msra.mxu0 %v3981
    %5136 = vmatprep.subr.mxu0 0.0
    %5137 = vmatpush1.msra.mxu0 %v3982
    %5138 = vmatprep.subr.mxu0 0.0
    %5139 = vmatpush1.msra.mxu0 %v3983
    %5140 = vmatprep.subr.mxu0 0.0
    %5141 = vmatpush1.msra.mxu0 %v3984
    %5142 = vmatprep.subr.mxu0 0.0
    %5143 = vmatpush1.msra.mxu0 0.0
    %5144 = vmatprep.subr.mxu0 0.0
    %5145 = vmatpush1.msra.mxu0 0.0
    %5146 = vmatprep.subr.mxu0 0.0
    %5147 = vmatpush1.msra.mxu0 0.0
    %5148 = vmatprep.subr.mxu0 0.0
    %5149 = vmatpush1.msra.mxu0 0.0
    %5150 = vmatprep.subr.mxu0 0.0
    %5151 = vmatpush1.msra.mxu0 0.0
    %5152 = vmatprep.subr.mxu0 0.0
    %5153 = vmatpush1.msra.mxu0 0.0
    %5154 = vmatprep.subr.mxu0 0.0
    %5155 = vmatpush1.msra.mxu0 0.0
    %5156 = vmatprep.subr.mxu0 0.0
    %5157 = vmatpush1.msra.mxu0 0.0
    %5158 = vmatprep.subr.mxu0 0.0
    %5159 = vmatpush1.msra.mxu0 0.0
    %5160 = vmatprep.subr.mxu0 0.0
    %5161 = vmatpush1.msra.mxu0 0.0
    %5162 = vmatprep.subr.mxu0 0.0
    %5163 = vmatpush1.msra.mxu0 0.0
    %5164 = vmatprep.subr.mxu0 0.0
    %5165 = vmatpush1.msra.mxu0 0.0
    %5166 = vmatprep.subr.mxu0 0.0
    %5167 = vmatpush1.msra.mxu0 0.0
    %5168 = vmatprep.subr.mxu0 0.0
    %5169 = vmatpush1.msra.mxu0 0.0
    %5170 = vmatprep.subr.mxu0 0.0
    %5171 = vmatpush1.msra.mxu0 0.0
    %5172 = vmatprep.subr.mxu0 0.0
    %5173 = vmatpush1.msra.mxu0 0.0
    %5174 = vmatprep.mubr.f32.mxu0 0.0
    %5175 = vmatmul.mubr.f32.gmra.mrb[0].mxu0 %v5109
    %v5176 = vpop.f32.mrb[0].mxu0
    %v5177 = vadd.f32 %v3990, %v5176
    %v5178 = vpop.f32.mrb[0].mxu0
    %5179 = vdwg.mxu0
    %v5180 = vadd.f32 %v5177, %v4783
    %s5181 = scalar_lea.vmem %s12, 16
    %5182 = vst [vmem:[%s5181] sm:$0xff] %v5180
    // Predicated region
    $region70: #{seq2seq_forward.1} parent=1 // pred_check
      _
    $region71: #{seq2seq_forward.1} parent=1 // pred_check_branch
      %5184 = sbr.rel (0) target = $region73
    $region72: #{seq2seq_forward.1} parent=1 // pred_region
      _
    $region73: #{seq2seq_forward.1} parent=1 // pred_fallthru
      _
    // Predicated region
    $region74: #{seq2seq_forward.1} parent=1 // pred_check
      _
    $region75: #{seq2seq_forward.1} parent=1 // pred_check_branch
      %5186 = sbr.rel (0) target = $region77
    $region76: #{seq2seq_forward.1} parent=1 // pred_region
      _
    $region77: #{seq2seq_forward.1} parent=1 // pred_fallthru
      _
    %5187 = vsyncpa [#allocation4], 1
    %5188 = vsyncpa [#allocation6], 1
    %5189 = vsyncpa [#allocation9], 1

</llo_original>
